<compile_context>
chip_gen: v7x
topology: tpu7x:2x2x1
jax: 0.10.0
libtpu: 0.0.40
codegen_flags: <defaults>
</compile_context>

<pallas_src>
import math

import numpy as np
import jax
import jax.numpy as jnp
from jax import lax
from jax.experimental import pallas as pl
from jax.experimental.pallas import tpu as pltpu

BF16 = jnp.bfloat16


# ----------------------------------------------------------------------------
# Precomputed (numpy, trace-time) selection matrices
# ----------------------------------------------------------------------------
def _pool_matrix(batch, f_in, f_out, g_out):
    """AvgPool2d(2,2, floor) + embed into the next zero-padded/guarded frame."""
    v_out = f_out - 2
    n_in = batch * f_in * f_in
    l_out = batch * f_out * f_out + 2 * g_out
    p = np.zeros((n_in, l_out), np.float32)
    for b in range(batch):
        for i in range(v_out):
            for j in range(v_out):
                dst = g_out + b * f_out * f_out + (1 + i) * f_out + (1 + j)
                for a in range(2):
                    for c in range(2):
                        src = b * f_in * f_in + (1 + 2 * i + a) * f_in + (1 + 2 * j + c)
                        p[src, dst] = 0.25
    return p


def _embed_matrix(batch, f, g):
    """Keep valid pixels, zero the padding ring, re-attach guard lanes."""
    v = f - 2
    n = batch * f * f
    e = np.zeros((n, n + 2 * g), np.float32)
    for b in range(batch):
        for i in range(v):
            for j in range(v):
                pos = b * f * f + (1 + i) * f + (1 + j)
                e[pos, g + pos] = 1.0
    return e


def _stddev_masks(batch, group, f, g):
    """Row r is 1 at the valid pixels of every batch chunk b with b % g2 == r."""
    g2 = batch // group
    v = f - 2
    m = np.zeros((g2, batch * f * f + 2 * g), np.float32)
    for b in range(batch):
        r = b % g2
        for i in range(v):
            for j in range(v):
                m[r, g + b * f * f + (1 + i) * f + (1 + j)] = 1.0
    return m


# ----------------------------------------------------------------------------
# Pallas kernel (whole network, single invocation)
# ----------------------------------------------------------------------------
def _lrelu(x):
    return jnp.where(x >= 0.0, x, 0.2 * x)


def _conv3x3(src_bf, w_ref, fr):
    """3x3 / pad-1 conv as 9 shifted-slice matmuls over the padded frame."""
    acc = None
    for kh in range(3):
        for kw in range(3):
            d = (kh - 1) * fr["F"] + (kw - 1)
            part = jnp.dot(w_ref[kh * 3 + kw],
                           src_bf[:, fr["G"] + d: fr["G"] + d + fr["N"]],
                           preferred_element_type=jnp.float32)
            acc = part if acc is None else acc + part
    return acc


def _make_kernel(cfg):
    frames = cfg["frames"]
    n_rb = cfg["n_rb"]
    batch = cfg["batch"]
    group = cfg["group"]
    g2 = cfg["g2"]
    c_last = cfg["c_last"]

    def kernel(*refs):
        o_ref = refs[-1]
        it = iter(refs[:-1])
        xf_ref = next(it)
        w0_ref = next(it)

        # ConvLayer(3, ch[size], 1, padding=1) + LeakyReLU (no bias, no scale).
        act = _lrelu(jnp.dot(w0_ref[...], xf_ref[...],
                             preferred_element_type=jnp.float32))

        for i in range(n_rb):
            wc1_ref = next(it)
            wc2_ref = next(it)
            wsk_ref = next(it)
            p_ref = next(it)
            e_ref = next(it)
            fi, fo = frames[i], frames[i + 1]

            act_bf = act.astype(BF16)
            # conv1 (+ LeakyReLU * 1.4), same spatial frame.
            c1 = _lrelu(_conv3x3(act_bf, wc1_ref, fi)) * 1.4
            # fused AvgPool2d(2,2) + re-padding for both branches (one matmul each).
            pool = p_ref[...]
            main = jnp.dot(c1.astype(BF16), pool, preferred_element_type=jnp.float32)
            side = jnp.dot(act_bf[:, fi["G"]: fi["G"] + fi["N"]], pool,
                           preferred_element_type=jnp.float32)
            # conv2 (+ LeakyReLU * 1.4) and the 1x1 skip conv (* 1.4).
            c2 = _lrelu(_conv3x3(main.astype(BF16), wc2_ref, fo)) * 1.4
            sk = jnp.dot(wsk_ref[...],
                         side.astype(BF16)[:, fo["G"]: fo["G"] + fo["N"]],
                         preferred_element_type=jnp.float32) * 1.4
            comb = (c2 + sk) * (1.0 / math.sqrt(2.0))
            if i == n_rb - 1:
                comb = comb * 1.4        # trailing `* 1.4` after the convs Sequential
            # zero the padding ring + re-attach guard lanes (0/1 matrix).
            act = jnp.dot(comb.astype(BF16), e_ref[...],
                          preferred_element_type=jnp.float32)

        mr_ref = next(it)
        wf_ref = next(it)
        w1_ref = next(it)
        w2_ref = next(it)
        b2_ref = next(it)

        fl = frames[-1]
        ff, gg, nn, vv = fl["F"], fl["G"], fl["N"], fl["V"]
        cell = ff * ff

        # ---- minibatch stddev feature ----
        sd_row = None
        for r in range(g2):
            blks = [act[:, gg + (g * g2 + r) * cell: gg + (g * g2 + r + 1) * cell]
                    for g in range(group)]
            mean = blks[0]
            for blk in blks[1:]:
                mean = mean + blk
            mean = mean * (1.0 / group)
            var = None
            for blk in blks:
                d = blk - mean
                var = d * d if var is None else var + d * d
            sd = jnp.sqrt(var * (1.0 / group) + 1e-8)
            valid = mr_ref[r:r + 1, gg + r * cell: gg + (r + 1) * cell]
            tot = jnp.sum(sd * valid, axis=1, keepdims=True)
            tot = jnp.sum(tot, axis=0, keepdims=True) * (1.0 / (c_last * vv * vv))
            term = tot * mr_ref[r:r + 1, :]
            sd_row = term if sd_row is None else sd_row + term
        sd_row = sd_row.astype(BF16).astype(jnp.float32)

        # ---- final 3x3 conv over (c_last + 1) channels (+ LeakyReLU * 1.4) ----
        act_bf = act.astype(BF16)
        acc = None
        for kh in range(3):
            for kw in range(3):
                d = (kh - 1) * ff + (kw - 1)
                wt = wf_ref[kh * 3 + kw]
                part = jnp.dot(wt[:, :c_last], act_bf[:, gg + d: gg + d + nn],
                               preferred_element_type=jnp.float32)
                part = part + (wt[:, c_last:c_last + 1].astype(jnp.float32)
                               * sd_row[:, gg + d: gg + d + nn])
                acc = part if acc is None else acc + part
        feat = (_lrelu(acc) * 1.4).astype(BF16)

        # ---- EqualLinear(ch*4*4, ch, fused_lrelu) as a 4x4 valid conv ----
        span = nn - ((vv - 1) * ff + (vv - 1))
        acc1 = None
        for kh in range(vv):
            for kw in range(vv):
                d = kh * ff + kw
                part = jnp.dot(w1_ref[kh * vv + kw], feat[:, d: d + span],
                               preferred_element_type=jnp.float32)
                acc1 = part if acc1 is None else acc1 + part
        h1 = _lrelu(acc1) * 1.4
        # ---- EqualLinear(ch, 1) with (zero) bias ----
        out = jnp.dot(w2_ref[...], h1, preferred_element_type=jnp.float32) + b2_ref[...]
        for b in range(batch):
            p = b * cell + ff + 1          # frame position (1, 1) of batch b
            o_ref[b:b + 1, 0:1] = out[0:1, p:p + 1]

    return kernel


# ----------------------------------------------------------------------------
# Wrapper: trace-time parameter/layout prep + single pallas_call
# ----------------------------------------------------------------------------
def discriminator_forward(params, x):
    batch, in_ch, size, size2 = x.shape
    assert in_ch == 3 and size == size2
    n_rb = len(params["resblocks"])
    group = min(batch, 4)
    assert batch % group == 0, "batch must be divisible by the stddev group"
    g2 = batch // group

    # Frame i is the (zero-padded + guarded) input frame of resblock i;
    # frame n_rb feeds the stddev / final_conv / linear tail.
    frames = []
    valid = size + 2
    for i in range(n_rb + 1):
        frm = valid + 2
        guard = (3 * frm + 3) if i == n_rb else (frm + 1)
        n = batch * frm * frm
        frames.append(dict(V=valid, F=frm, G=guard, N=n, L=n + 2 * guard))
        valid //= 2
    assert frames[-1]["V"] == 4, "Discriminator tail expects a 4x4 spatial map"

    f0 = frames[0]
    args = []
    # Input image embedded into its zero-padded frame: NCHW -> (3, B*F0*F0).
    xf = jnp.pad(jnp.transpose(x.astype(jnp.float32), (1, 0, 2, 3)),
                 ((0, 0), (0, 0), (2, 2), (2, 2)))
    xf = jnp.pad(xf.reshape(3, f0["N"]), ((0, 0), (f0["G"], f0["G"])))
    args.append(xf.astype(BF16))
    # conv0 (EqualConv2d 1x1, no bias).
    args.append((params["conv0_w"][:, :, 0, 0] * (1.0 / math.sqrt(3.0))).astype(BF16))

    for i, p in enumerate(params["resblocks"]):
        cin = p["conv1_w"].shape[0]
        cout = p["conv2_w"].shape[0]
        s3 = 1.0 / math.sqrt(cin * 9.0)
        wc1 = (jnp.transpose(p["conv1_w"], (2, 3, 0, 1)) * s3).reshape(9, cin, cin)
        wc2 = (jnp.transpose(p["conv2_w"], (2, 3, 0, 1)) * s3).reshape(9, cout, cin)
        wsk = p["skip_w"][:, :, 0, 0] * (1.0 / math.sqrt(cin))
        fi, fo = frames[i], frames[i + 1]
        pool = _pool_matrix(batch, fi["F"], fo["F"], fo["G"])
        emb = _embed_matrix(batch, fo["F"], fo["G"])
        args += [wc1.astype(BF16), wc2.astype(BF16), wsk.astype(BF16),
                 jnp.asarray(pool, BF16), jnp.asarray(emb, BF16)]

    c_last = params["resblocks"][-1]["conv2_w"].shape[0]
    c_final = params["final_conv_w"].shape[0]
    assert params["final_conv_w"].shape[1] == c_last + 1
    mr = _stddev_masks(batch, group, frames[-1]["F"], frames[-1]["G"])
    sfin = 1.0 / math.sqrt((c_last + 1) * 9.0)
    wf = (jnp.transpose(params["final_conv_w"], (2, 3, 0, 1)) * sfin
          ).reshape(9, c_final, c_last + 1)
    m1, kin = params["lin1_w"].shape
    assert kin == c_final * 16
    w1 = (params["lin1_w"] * (1.0 / math.sqrt(kin))).reshape(m1, c_final, 4, 4)
    w1 = jnp.transpose(w1, (2, 3, 0, 1)).reshape(16, m1, c_final)
    w2 = (params["lin2_w"] * (1.0 / math.sqrt(m1))).astype(jnp.float32)
    b2 = params["lin2_b"].reshape(1, 1).astype(jnp.float32)
    args += [jnp.asarray(mr, jnp.float32), wf.astype(BF16), w1.astype(BF16), w2, b2]

    kernel = _make_kernel(dict(frames=frames, n_rb=n_rb, batch=batch,
                               group=group, g2=g2, c_last=c_last))
    return pl.pallas_call(
        kernel,
        out_shape=jax.ShapeDtypeStruct((batch, 1), jnp.float32),
        in_specs=[pl.BlockSpec(memory_space=pltpu.MemorySpace.VMEM)] * len(args),
        out_specs=pl.BlockSpec(memory_space=pltpu.MemorySpace.VMEM),
    )(*args)


# ----------------------------------------------------------------------------
# Pure-JAX reference (mirrors the PyTorch module, with the same bf16 roundings)
# ----------------------------------------------------------------------------
def _round_bf16(x):
    return x.astype(jnp.bfloat16).astype(jnp.float32)


def _ref_conv(x, w, scale, padding):
    return lax.conv_general_dilated(
        x.astype(jnp.bfloat16), (w * scale).astype(jnp.bfloat16),
        window_strides=(1, 1),
        padding=[(padding, padding), (padding, padding)],
        dimension_numbers=("NCHW", "OIHW", "NCHW"),
        preferred_element_type=jnp.float32)


def _ref_pool(x):
    b, c, h, w = x.shape
    h2, w2 = h // 2, w // 2
    xr = _round_bf16(x[:, :, : 2 * h2, : 2 * w2]).reshape(b, c, h2, 2, w2, 2)
    return jnp.mean(xr, axis=(3, 5))


def discriminator_reference(params, x):
    out = _lrelu(_ref_conv(x.astype(jnp.float32), params["conv0_w"],
                           1.0 / math.sqrt(3.0), 1))
    for p in params["resblocks"]:
        cin = p["conv1_w"].shape[1]
        o = _lrelu(_ref_conv(out, p["conv1_w"], 1.0 / math.sqrt(cin * 9.0), 1)) * 1.4
        o = _lrelu(_ref_conv(_ref_pool(o), p["conv2_w"],
                             1.0 / math.sqrt(cin * 9.0), 1)) * 1.4
        s = _ref_conv(_ref_pool(out), p["skip_w"], 1.0 / math.sqrt(cin), 0) * 1.4
        out = (o + s) / math.sqrt(2.0)
    out = _round_bf16(out * 1.4)
    b, c, h, w = out.shape
    group = min(b, 4)
    st = out.reshape(group, -1, 1, c, h, w)
    st = jnp.sqrt(jnp.var(st, axis=0) + 1e-8)
    st = jnp.mean(st, axis=(2, 3, 4), keepdims=True)[:, :, 0]
    st = jnp.tile(st, (group, 1, h, w))
    out = jnp.concatenate([out, st], axis=1)
    cin_f = params["final_conv_w"].shape[1]
    out = _lrelu(_ref_conv(out, params["final_conv_w"],
                           1.0 / math.sqrt(cin_f * 9.0), 1)) * 1.4
    out = out.reshape(b, -1)
    w1 = params["lin1_w"]
    h1 = jnp.dot(out.astype(jnp.bfloat16),
                 (w1.T * (1.0 / math.sqrt(w1.shape[1]))).astype(jnp.bfloat16),
                 preferred_element_type=jnp.float32)
    h1 = _lrelu(h1) * 1.4
    w2 = params["lin2_w"]
    return (jnp.dot(h1, (w2.T * (1.0 / math.sqrt(w2.shape[1]))).astype(jnp.float32),
                    preferred_element_type=jnp.float32)
            + params["lin2_b"][None, :])


# ----------------------------------------------------------------------------
# Deterministic parameter init (mirrors shapes in Discriminator.__init__)
# ----------------------------------------------------------------------------
def init_params(key, size, ndf):
    channels = {4: ndf * 2, 8: ndf * 2, 16: ndf, 32: ndf, 64: ndf // 2, 128: ndf // 2}
    log_size = int(math.log(size, 2))
    keys = iter(jax.random.split(key, 64))
    params = {}
    params["conv0_w"] = jax.random.normal(next(keys), (channels[size], 3, 1, 1),
                                          jnp.float32)
    resblocks = []
    in_ch = channels[size]
    for i in range(log_size, 2, -1):
        out_ch = channels[2 ** (i - 1)]
        resblocks.append({
            "conv1_w": jax.random.normal(next(keys), (in_ch, in_ch, 3, 3), jnp.float32),
            "conv2_w": jax.random.normal(next(keys), (out_ch, in_ch, 3, 3), jnp.float32),
            "skip_w": jax.random.normal(next(keys), (out_ch, in_ch, 1, 1), jnp.float32),
        })
        in_ch = out_ch
    params["resblocks"] = resblocks
    params["final_conv_w"] = jax.random.normal(next(keys),
                                               (channels[4], in_ch + 1, 3, 3),
                                               jnp.float32)
    params["lin1_w"] = jax.random.normal(next(keys),
                                         (channels[4], channels[4] * 4 * 4),
                                         jnp.float32)
    params["lin2_w"] = jax.random.normal(next(keys), (1, channels[4]), jnp.float32)
    params["lin2_b"] = jnp.zeros((1,), jnp.float32)      # torch zeros bias
    return params


if __name__ == "__main__":
    size, ndf, batch = 16, 8, 2
    key = jax.random.PRNGKey(0)
    pkey, xkey = jax.random.split(key)
    params = init_params(pkey, size, ndf)
    x = jax.random.normal(xkey, (batch, 3, size, size), jnp.float32)  # NCHW like torch

    fwd = jax.jit(discriminator_forward)
    out = fwd(params, x)
    jax.block_until_ready(out)
    assert out.shape == (batch, 1)
    assert bool(jnp.all(jnp.isfinite(out)))

    ref = jax.jit(discriminator_reference)(params, x)
    jax.block_until_ready(ref)
    assert bool(jnp.allclose(out, ref, rtol=1e-2, atol=1e-2)), (out, ref)

    print("KERNEL_OK")
</pallas_src>

<mosaic_0001>
module attributes {stable_mosaic.version = 11 : i64} {
  func.func @kernel(%arg0: memref<3x842xbf16, #tpu.memory_space<vmem>>, %arg1: memref<8x3xbf16, #tpu.memory_space<vmem>>, %arg2: memref<9x8x8xbf16, #tpu.memory_space<vmem>>, %arg3: memref<9x16x8xbf16, #tpu.memory_space<vmem>>, %arg4: memref<16x8xbf16, #tpu.memory_space<vmem>>, %arg5: memref<800x266xbf16, #tpu.memory_space<vmem>>, %arg6: memref<242x266xbf16, #tpu.memory_space<vmem>>, %arg7: memref<9x16x16xbf16, #tpu.memory_space<vmem>>, %arg8: memref<9x16x16xbf16, #tpu.memory_space<vmem>>, %arg9: memref<16x16xbf16, #tpu.memory_space<vmem>>, %arg10: memref<242x114xbf16, #tpu.memory_space<vmem>>, %arg11: memref<72x114xbf16, #tpu.memory_space<vmem>>, %arg12: memref<1x114xf32, #tpu.memory_space<vmem>>, %arg13: memref<9x16x17xbf16, #tpu.memory_space<vmem>>, %arg14: memref<16x16x16xbf16, #tpu.memory_space<vmem>>, %arg15: memref<1x16xf32, #tpu.memory_space<vmem>>, %arg16: memref<1x1xf32, #tpu.memory_space<vmem>>, %arg17: memref<2x1xf32, #tpu.memory_space<vmem>>) attributes {dimension_semantics = [], scalar_prefetch = 0 : i64, scratch_operands = 0 : i64, tpu.core_type = #tpu.core_type<tc>} {
    %c0 = arith.constant 0 : index
    %c0_0 = arith.constant 0 : index
    %0 = vector.load %arg1[%c0, %c0_0] : memref<8x3xbf16, #tpu.memory_space<vmem>>, vector<8x3xbf16>
    %c0_1 = arith.constant 0 : index
    %c0_2 = arith.constant 0 : index
    %1 = vector.load %arg0[%c0_1, %c0_2] : memref<3x842xbf16, #tpu.memory_space<vmem>>, vector<3x842xbf16>
    %cst = arith.constant dense<0.000000e+00> : vector<8x842xf32>
    %2 = tpu.matmul %0, %1, %cst {dimension_numbers = #tpu.dot_dimension_numbers<[1], [0], [0], [1], [0, 0, 1, 1], [], []>} : vector<8x3xbf16>, vector<3x842xbf16>, vector<8x842xf32> -> vector<8x842xf32>
    %cst_3 = arith.constant 0.000000e+00 : f32
    %3 = vector.broadcast %cst_3 : f32 to vector<8x842xf32>
    %4 = arith.cmpf oge, %2, %3 : vector<8x842xf32>
    %cst_4 = arith.constant 2.000000e-01 : f32
    %5 = vector.broadcast %cst_4 : f32 to vector<8x842xf32>
    %6 = arith.mulf %5, %2 : vector<8x842xf32>
    %7 = arith.select %4, %2, %6 : vector<8x842xi1>, vector<8x842xf32>
    %8 = arith.truncf %7 : vector<8x842xf32> to vector<8x842xbf16>
    %c0_5 = arith.constant 0 : index
    %c0_6 = arith.constant 0 : index
    %c0_7 = arith.constant 0 : index
    %9 = vector.load %arg2[%c0_5, %c0_6, %c0_7] : memref<9x8x8xbf16, #tpu.memory_space<vmem>>, vector<1x8x8xbf16>
    %10 = vector.shape_cast %9 : vector<1x8x8xbf16> to vector<8x8xbf16>
    %11 = vector.extract_strided_slice %8 {offsets = [0, 0], sizes = [8, 800], strides = [1, 1]} : vector<8x842xbf16> to vector<8x800xbf16>
    %cst_8 = arith.constant dense<0.000000e+00> : vector<8x800xf32>
    %12 = tpu.matmul %10, %11, %cst_8 {dimension_numbers = #tpu.dot_dimension_numbers<[1], [0], [0], [1], [0, 0, 1, 1], [], []>} : vector<8x8xbf16>, vector<8x800xbf16>, vector<8x800xf32> -> vector<8x800xf32>
    %c1 = arith.constant 1 : index
    %c0_9 = arith.constant 0 : index
    %c0_10 = arith.constant 0 : index
    %13 = vector.load %arg2[%c1, %c0_9, %c0_10] : memref<9x8x8xbf16, #tpu.memory_space<vmem>>, vector<1x8x8xbf16>
    %14 = vector.shape_cast %13 : vector<1x8x8xbf16> to vector<8x8xbf16>
    %15 = vector.extract_strided_slice %8 {offsets = [0, 1], sizes = [8, 800], strides = [1, 1]} : vector<8x842xbf16> to vector<8x800xbf16>
    %cst_11 = arith.constant dense<0.000000e+00> : vector<8x800xf32>
    %16 = tpu.matmul %14, %15, %cst_11 {dimension_numbers = #tpu.dot_dimension_numbers<[1], [0], [0], [1], [0, 0, 1, 1], [], []>} : vector<8x8xbf16>, vector<8x800xbf16>, vector<8x800xf32> -> vector<8x800xf32>
    %17 = arith.addf %12, %16 : vector<8x800xf32>
    %c2 = arith.constant 2 : index
    %c0_12 = arith.constant 0 : index
    %c0_13 = arith.constant 0 : index
    %18 = vector.load %arg2[%c2, %c0_12, %c0_13] : memref<9x8x8xbf16, #tpu.memory_space<vmem>>, vector<1x8x8xbf16>
    %19 = vector.shape_cast %18 : vector<1x8x8xbf16> to vector<8x8xbf16>
    %20 = vector.extract_strided_slice %8 {offsets = [0, 2], sizes = [8, 800], strides = [1, 1]} : vector<8x842xbf16> to vector<8x800xbf16>
    %cst_14 = arith.constant dense<0.000000e+00> : vector<8x800xf32>
    %21 = tpu.matmul %19, %20, %cst_14 {dimension_numbers = #tpu.dot_dimension_numbers<[1], [0], [0], [1], [0, 0, 1, 1], [], []>} : vector<8x8xbf16>, vector<8x800xbf16>, vector<8x800xf32> -> vector<8x800xf32>
    %22 = arith.addf %17, %21 : vector<8x800xf32>
    %c3 = arith.constant 3 : index
    %c0_15 = arith.constant 0 : index
    %c0_16 = arith.constant 0 : index
    %23 = vector.load %arg2[%c3, %c0_15, %c0_16] : memref<9x8x8xbf16, #tpu.memory_space<vmem>>, vector<1x8x8xbf16>
    %24 = vector.shape_cast %23 : vector<1x8x8xbf16> to vector<8x8xbf16>
    %25 = vector.extract_strided_slice %8 {offsets = [0, 20], sizes = [8, 800], strides = [1, 1]} : vector<8x842xbf16> to vector<8x800xbf16>
    %cst_17 = arith.constant dense<0.000000e+00> : vector<8x800xf32>
    %26 = tpu.matmul %24, %25, %cst_17 {dimension_numbers = #tpu.dot_dimension_numbers<[1], [0], [0], [1], [0, 0, 1, 1], [], []>} : vector<8x8xbf16>, vector<8x800xbf16>, vector<8x800xf32> -> vector<8x800xf32>
    %27 = arith.addf %22, %26 : vector<8x800xf32>
    %c4 = arith.constant 4 : index
    %c0_18 = arith.constant 0 : index
    %c0_19 = arith.constant 0 : index
    %28 = vector.load %arg2[%c4, %c0_18, %c0_19] : memref<9x8x8xbf16, #tpu.memory_space<vmem>>, vector<1x8x8xbf16>
    %29 = vector.shape_cast %28 : vector<1x8x8xbf16> to vector<8x8xbf16>
    %30 = vector.extract_strided_slice %8 {offsets = [0, 21], sizes = [8, 800], strides = [1, 1]} : vector<8x842xbf16> to vector<8x800xbf16>
    %cst_20 = arith.constant dense<0.000000e+00> : vector<8x800xf32>
    %31 = tpu.matmul %29, %30, %cst_20 {dimension_numbers = #tpu.dot_dimension_numbers<[1], [0], [0], [1], [0, 0, 1, 1], [], []>} : vector<8x8xbf16>, vector<8x800xbf16>, vector<8x800xf32> -> vector<8x800xf32>
    %32 = arith.addf %27, %31 : vector<8x800xf32>
    %c5 = arith.constant 5 : index
    %c0_21 = arith.constant 0 : index
    %c0_22 = arith.constant 0 : index
    %33 = vector.load %arg2[%c5, %c0_21, %c0_22] : memref<9x8x8xbf16, #tpu.memory_space<vmem>>, vector<1x8x8xbf16>
    %34 = vector.shape_cast %33 : vector<1x8x8xbf16> to vector<8x8xbf16>
    %35 = vector.extract_strided_slice %8 {offsets = [0, 22], sizes = [8, 800], strides = [1, 1]} : vector<8x842xbf16> to vector<8x800xbf16>
    %cst_23 = arith.constant dense<0.000000e+00> : vector<8x800xf32>
    %36 = tpu.matmul %34, %35, %cst_23 {dimension_numbers = #tpu.dot_dimension_numbers<[1], [0], [0], [1], [0, 0, 1, 1], [], []>} : vector<8x8xbf16>, vector<8x800xbf16>, vector<8x800xf32> -> vector<8x800xf32>
    %37 = arith.addf %32, %36 : vector<8x800xf32>
    %c6 = arith.constant 6 : index
    %c0_24 = arith.constant 0 : index
    %c0_25 = arith.constant 0 : index
    %38 = vector.load %arg2[%c6, %c0_24, %c0_25] : memref<9x8x8xbf16, #tpu.memory_space<vmem>>, vector<1x8x8xbf16>
    %39 = vector.shape_cast %38 : vector<1x8x8xbf16> to vector<8x8xbf16>
    %40 = vector.extract_strided_slice %8 {offsets = [0, 40], sizes = [8, 800], strides = [1, 1]} : vector<8x842xbf16> to vector<8x800xbf16>
    %cst_26 = arith.constant dense<0.000000e+00> : vector<8x800xf32>
    %41 = tpu.matmul %39, %40, %cst_26 {dimension_numbers = #tpu.dot_dimension_numbers<[1], [0], [0], [1], [0, 0, 1, 1], [], []>} : vector<8x8xbf16>, vector<8x800xbf16>, vector<8x800xf32> -> vector<8x800xf32>
    %42 = arith.addf %37, %41 : vector<8x800xf32>
    %c7 = arith.constant 7 : index
    %c0_27 = arith.constant 0 : index
    %c0_28 = arith.constant 0 : index
    %43 = vector.load %arg2[%c7, %c0_27, %c0_28] : memref<9x8x8xbf16, #tpu.memory_space<vmem>>, vector<1x8x8xbf16>
    %44 = vector.shape_cast %43 : vector<1x8x8xbf16> to vector<8x8xbf16>
    %45 = vector.extract_strided_slice %8 {offsets = [0, 41], sizes = [8, 800], strides = [1, 1]} : vector<8x842xbf16> to vector<8x800xbf16>
    %cst_29 = arith.constant dense<0.000000e+00> : vector<8x800xf32>
    %46 = tpu.matmul %44, %45, %cst_29 {dimension_numbers = #tpu.dot_dimension_numbers<[1], [0], [0], [1], [0, 0, 1, 1], [], []>} : vector<8x8xbf16>, vector<8x800xbf16>, vector<8x800xf32> -> vector<8x800xf32>
    %47 = arith.addf %42, %46 : vector<8x800xf32>
    %c8 = arith.constant 8 : index
    %c0_30 = arith.constant 0 : index
    %c0_31 = arith.constant 0 : index
    %48 = vector.load %arg2[%c8, %c0_30, %c0_31] : memref<9x8x8xbf16, #tpu.memory_space<vmem>>, vector<1x8x8xbf16>
    %49 = vector.shape_cast %48 : vector<1x8x8xbf16> to vector<8x8xbf16>
    %50 = vector.extract_strided_slice %8 {offsets = [0, 42], sizes = [8, 800], strides = [1, 1]} : vector<8x842xbf16> to vector<8x800xbf16>
    %cst_32 = arith.constant dense<0.000000e+00> : vector<8x800xf32>
    %51 = tpu.matmul %49, %50, %cst_32 {dimension_numbers = #tpu.dot_dimension_numbers<[1], [0], [0], [1], [0, 0, 1, 1], [], []>} : vector<8x8xbf16>, vector<8x800xbf16>, vector<8x800xf32> -> vector<8x800xf32>
    %52 = arith.addf %47, %51 : vector<8x800xf32>
    %cst_33 = arith.constant 0.000000e+00 : f32
    %53 = vector.broadcast %cst_33 : f32 to vector<8x800xf32>
    %54 = arith.cmpf oge, %52, %53 : vector<8x800xf32>
    %cst_34 = arith.constant 2.000000e-01 : f32
    %55 = vector.broadcast %cst_34 : f32 to vector<8x800xf32>
    %56 = arith.mulf %55, %52 : vector<8x800xf32>
    %57 = arith.select %54, %52, %56 : vector<8x800xi1>, vector<8x800xf32>
    %cst_35 = arith.constant 1.400000e+00 : f32
    %58 = vector.broadcast %cst_35 : f32 to vector<8x800xf32>
    %59 = arith.mulf %57, %58 : vector<8x800xf32>
    %c0_36 = arith.constant 0 : index
    %c0_37 = arith.constant 0 : index
    %60 = vector.load %arg5[%c0_36, %c0_37] : memref<800x266xbf16, #tpu.memory_space<vmem>>, vector<800x266xbf16>
    %61 = arith.truncf %59 : vector<8x800xf32> to vector<8x800xbf16>
    %cst_38 = arith.constant dense<0.000000e+00> : vector<8x266xf32>
    %62 = tpu.matmul %61, %60, %cst_38 {dimension_numbers = #tpu.dot_dimension_numbers<[1], [0], [0], [1], [0, 0, 1, 1], [], []>} : vector<8x800xbf16>, vector<800x266xbf16>, vector<8x266xf32> -> vector<8x266xf32>
    %63 = vector.extract_strided_slice %8 {offsets = [0, 21], sizes = [8, 800], strides = [1, 1]} : vector<8x842xbf16> to vector<8x800xbf16>
    %cst_39 = arith.constant dense<0.000000e+00> : vector<8x266xf32>
    %64 = tpu.matmul %63, %60, %cst_39 {dimension_numbers = #tpu.dot_dimension_numbers<[1], [0], [0], [1], [0, 0, 1, 1], [], []>} : vector<8x800xbf16>, vector<800x266xbf16>, vector<8x266xf32> -> vector<8x266xf32>
    %65 = arith.truncf %62 : vector<8x266xf32> to vector<8x266xbf16>
    %c0_40 = arith.constant 0 : index
    %c0_41 = arith.constant 0 : index
    %c0_42 = arith.constant 0 : index
    %66 = vector.load %arg3[%c0_40, %c0_41, %c0_42] : memref<9x16x8xbf16, #tpu.memory_space<vmem>>, vector<1x16x8xbf16>
    %67 = vector.shape_cast %66 : vector<1x16x8xbf16> to vector<16x8xbf16>
    %68 = vector.extract_strided_slice %65 {offsets = [0, 0], sizes = [8, 242], strides = [1, 1]} : vector<8x266xbf16> to vector<8x242xbf16>
    %cst_43 = arith.constant dense<0.000000e+00> : vector<16x242xf32>
    %69 = tpu.matmul %67, %68, %cst_43 {dimension_numbers = #tpu.dot_dimension_numbers<[1], [0], [0], [1], [0, 0, 1, 1], [], []>} : vector<16x8xbf16>, vector<8x242xbf16>, vector<16x242xf32> -> vector<16x242xf32>
    %c1_44 = arith.constant 1 : index
    %c0_45 = arith.constant 0 : index
    %c0_46 = arith.constant 0 : index
    %70 = vector.load %arg3[%c1_44, %c0_45, %c0_46] : memref<9x16x8xbf16, #tpu.memory_space<vmem>>, vector<1x16x8xbf16>
    %71 = vector.shape_cast %70 : vector<1x16x8xbf16> to vector<16x8xbf16>
    %72 = vector.extract_strided_slice %65 {offsets = [0, 1], sizes = [8, 242], strides = [1, 1]} : vector<8x266xbf16> to vector<8x242xbf16>
    %cst_47 = arith.constant dense<0.000000e+00> : vector<16x242xf32>
    %73 = tpu.matmul %71, %72, %cst_47 {dimension_numbers = #tpu.dot_dimension_numbers<[1], [0], [0], [1], [0, 0, 1, 1], [], []>} : vector<16x8xbf16>, vector<8x242xbf16>, vector<16x242xf32> -> vector<16x242xf32>
    %74 = arith.addf %69, %73 : vector<16x242xf32>
    %c2_48 = arith.constant 2 : index
    %c0_49 = arith.constant 0 : index
    %c0_50 = arith.constant 0 : index
    %75 = vector.load %arg3[%c2_48, %c0_49, %c0_50] : memref<9x16x8xbf16, #tpu.memory_space<vmem>>, vector<1x16x8xbf16>
    %76 = vector.shape_cast %75 : vector<1x16x8xbf16> to vector<16x8xbf16>
    %77 = vector.extract_strided_slice %65 {offsets = [0, 2], sizes = [8, 242], strides = [1, 1]} : vector<8x266xbf16> to vector<8x242xbf16>
    %cst_51 = arith.constant dense<0.000000e+00> : vector<16x242xf32>
    %78 = tpu.matmul %76, %77, %cst_51 {dimension_numbers = #tpu.dot_dimension_numbers<[1], [0], [0], [1], [0, 0, 1, 1], [], []>} : vector<16x8xbf16>, vector<8x242xbf16>, vector<16x242xf32> -> vector<16x242xf32>
    %79 = arith.addf %74, %78 : vector<16x242xf32>
    %c3_52 = arith.constant 3 : index
    %c0_53 = arith.constant 0 : index
    %c0_54 = arith.constant 0 : index
    %80 = vector.load %arg3[%c3_52, %c0_53, %c0_54] : memref<9x16x8xbf16, #tpu.memory_space<vmem>>, vector<1x16x8xbf16>
    %81 = vector.shape_cast %80 : vector<1x16x8xbf16> to vector<16x8xbf16>
    %82 = vector.extract_strided_slice %65 {offsets = [0, 11], sizes = [8, 242], strides = [1, 1]} : vector<8x266xbf16> to vector<8x242xbf16>
    %cst_55 = arith.constant dense<0.000000e+00> : vector<16x242xf32>
    %83 = tpu.matmul %81, %82, %cst_55 {dimension_numbers = #tpu.dot_dimension_numbers<[1], [0], [0], [1], [0, 0, 1, 1], [], []>} : vector<16x8xbf16>, vector<8x242xbf16>, vector<16x242xf32> -> vector<16x242xf32>
    %84 = arith.addf %79, %83 : vector<16x242xf32>
    %c4_56 = arith.constant 4 : index
    %c0_57 = arith.constant 0 : index
    %c0_58 = arith.constant 0 : index
    %85 = vector.load %arg3[%c4_56, %c0_57, %c0_58] : memref<9x16x8xbf16, #tpu.memory_space<vmem>>, vector<1x16x8xbf16>
    %86 = vector.shape_cast %85 : vector<1x16x8xbf16> to vector<16x8xbf16>
    %87 = vector.extract_strided_slice %65 {offsets = [0, 12], sizes = [8, 242], strides = [1, 1]} : vector<8x266xbf16> to vector<8x242xbf16>
    %cst_59 = arith.constant dense<0.000000e+00> : vector<16x242xf32>
    %88 = tpu.matmul %86, %87, %cst_59 {dimension_numbers = #tpu.dot_dimension_numbers<[1], [0], [0], [1], [0, 0, 1, 1], [], []>} : vector<16x8xbf16>, vector<8x242xbf16>, vector<16x242xf32> -> vector<16x242xf32>
    %89 = arith.addf %84, %88 : vector<16x242xf32>
    %c5_60 = arith.constant 5 : index
    %c0_61 = arith.constant 0 : index
    %c0_62 = arith.constant 0 : index
    %90 = vector.load %arg3[%c5_60, %c0_61, %c0_62] : memref<9x16x8xbf16, #tpu.memory_space<vmem>>, vector<1x16x8xbf16>
    %91 = vector.shape_cast %90 : vector<1x16x8xbf16> to vector<16x8xbf16>
    %92 = vector.extract_strided_slice %65 {offsets = [0, 13], sizes = [8, 242], strides = [1, 1]} : vector<8x266xbf16> to vector<8x242xbf16>
    %cst_63 = arith.constant dense<0.000000e+00> : vector<16x242xf32>
    %93 = tpu.matmul %91, %92, %cst_63 {dimension_numbers = #tpu.dot_dimension_numbers<[1], [0], [0], [1], [0, 0, 1, 1], [], []>} : vector<16x8xbf16>, vector<8x242xbf16>, vector<16x242xf32> -> vector<16x242xf32>
    %94 = arith.addf %89, %93 : vector<16x242xf32>
    %c6_64 = arith.constant 6 : index
    %c0_65 = arith.constant 0 : index
    %c0_66 = arith.constant 0 : index
    %95 = vector.load %arg3[%c6_64, %c0_65, %c0_66] : memref<9x16x8xbf16, #tpu.memory_space<vmem>>, vector<1x16x8xbf16>
    %96 = vector.shape_cast %95 : vector<1x16x8xbf16> to vector<16x8xbf16>
    %97 = vector.extract_strided_slice %65 {offsets = [0, 22], sizes = [8, 242], strides = [1, 1]} : vector<8x266xbf16> to vector<8x242xbf16>
    %cst_67 = arith.constant dense<0.000000e+00> : vector<16x242xf32>
    %98 = tpu.matmul %96, %97, %cst_67 {dimension_numbers = #tpu.dot_dimension_numbers<[1], [0], [0], [1], [0, 0, 1, 1], [], []>} : vector<16x8xbf16>, vector<8x242xbf16>, vector<16x242xf32> -> vector<16x242xf32>
    %99 = arith.addf %94, %98 : vector<16x242xf32>
    %c7_68 = arith.constant 7 : index
    %c0_69 = arith.constant 0 : index
    %c0_70 = arith.constant 0 : index
    %100 = vector.load %arg3[%c7_68, %c0_69, %c0_70] : memref<9x16x8xbf16, #tpu.memory_space<vmem>>, vector<1x16x8xbf16>
    %101 = vector.shape_cast %100 : vector<1x16x8xbf16> to vector<16x8xbf16>
    %102 = vector.extract_strided_slice %65 {offsets = [0, 23], sizes = [8, 242], strides = [1, 1]} : vector<8x266xbf16> to vector<8x242xbf16>
    %cst_71 = arith.constant dense<0.000000e+00> : vector<16x242xf32>
    %103 = tpu.matmul %101, %102, %cst_71 {dimension_numbers = #tpu.dot_dimension_numbers<[1], [0], [0], [1], [0, 0, 1, 1], [], []>} : vector<16x8xbf16>, vector<8x242xbf16>, vector<16x242xf32> -> vector<16x242xf32>
    %104 = arith.addf %99, %103 : vector<16x242xf32>
    %c8_72 = arith.constant 8 : index
    %c0_73 = arith.constant 0 : index
    %c0_74 = arith.constant 0 : index
    %105 = vector.load %arg3[%c8_72, %c0_73, %c0_74] : memref<9x16x8xbf16, #tpu.memory_space<vmem>>, vector<1x16x8xbf16>
    %106 = vector.shape_cast %105 : vector<1x16x8xbf16> to vector<16x8xbf16>
    %107 = vector.extract_strided_slice %65 {offsets = [0, 24], sizes = [8, 242], strides = [1, 1]} : vector<8x266xbf16> to vector<8x242xbf16>
    %cst_75 = arith.constant dense<0.000000e+00> : vector<16x242xf32>
    %108 = tpu.matmul %106, %107, %cst_75 {dimension_numbers = #tpu.dot_dimension_numbers<[1], [0], [0], [1], [0, 0, 1, 1], [], []>} : vector<16x8xbf16>, vector<8x242xbf16>, vector<16x242xf32> -> vector<16x242xf32>
    %109 = arith.addf %104, %108 : vector<16x242xf32>
    %cst_76 = arith.constant 0.000000e+00 : f32
    %110 = vector.broadcast %cst_76 : f32 to vector<16x242xf32>
    %111 = arith.cmpf oge, %109, %110 : vector<16x242xf32>
    %cst_77 = arith.constant 2.000000e-01 : f32
    %112 = vector.broadcast %cst_77 : f32 to vector<16x242xf32>
    %113 = arith.mulf %112, %109 : vector<16x242xf32>
    %114 = arith.select %111, %109, %113 : vector<16x242xi1>, vector<16x242xf32>
    %cst_78 = arith.constant 1.400000e+00 : f32
    %115 = vector.broadcast %cst_78 : f32 to vector<16x242xf32>
    %116 = arith.mulf %114, %115 : vector<16x242xf32>
    %c0_79 = arith.constant 0 : index
    %c0_80 = arith.constant 0 : index
    %117 = vector.load %arg4[%c0_79, %c0_80] : memref<16x8xbf16, #tpu.memory_space<vmem>>, vector<16x8xbf16>
    %118 = arith.truncf %64 : vector<8x266xf32> to vector<8x266xbf16>
    %119 = vector.extract_strided_slice %118 {offsets = [0, 12], sizes = [8, 242], strides = [1, 1]} : vector<8x266xbf16> to vector<8x242xbf16>
    %cst_81 = arith.constant dense<0.000000e+00> : vector<16x242xf32>
    %120 = tpu.matmul %117, %119, %cst_81 {dimension_numbers = #tpu.dot_dimension_numbers<[1], [0], [0], [1], [0, 0, 1, 1], [], []>} : vector<16x8xbf16>, vector<8x242xbf16>, vector<16x242xf32> -> vector<16x242xf32>
    %cst_82 = arith.constant 1.400000e+00 : f32
    %121 = vector.broadcast %cst_82 : f32 to vector<16x242xf32>
    %122 = arith.mulf %120, %121 : vector<16x242xf32>
    %123 = arith.addf %116, %122 : vector<16x242xf32>
    %cst_83 = arith.constant 0.707106769 : f32
    %124 = vector.broadcast %cst_83 : f32 to vector<16x242xf32>
    %125 = arith.mulf %123, %124 : vector<16x242xf32>
    %126 = arith.truncf %125 : vector<16x242xf32> to vector<16x242xbf16>
    %c0_84 = arith.constant 0 : index
    %c0_85 = arith.constant 0 : index
    %127 = vector.load %arg6[%c0_84, %c0_85] : memref<242x266xbf16, #tpu.memory_space<vmem>>, vector<242x266xbf16>
    %cst_86 = arith.constant dense<0.000000e+00> : vector<16x266xf32>
    %128 = tpu.matmul %126, %127, %cst_86 {dimension_numbers = #tpu.dot_dimension_numbers<[1], [0], [0], [1], [0, 0, 1, 1], [], []>} : vector<16x242xbf16>, vector<242x266xbf16>, vector<16x266xf32> -> vector<16x266xf32>
    %129 = arith.truncf %128 : vector<16x266xf32> to vector<16x266xbf16>
    %c0_87 = arith.constant 0 : index
    %c0_88 = arith.constant 0 : index
    %c0_89 = arith.constant 0 : index
    %130 = vector.load %arg7[%c0_87, %c0_88, %c0_89] : memref<9x16x16xbf16, #tpu.memory_space<vmem>>, vector<1x16x16xbf16>
    %131 = vector.shape_cast %130 : vector<1x16x16xbf16> to vector<16x16xbf16>
    %132 = vector.extract_strided_slice %129 {offsets = [0, 0], sizes = [16, 242], strides = [1, 1]} : vector<16x266xbf16> to vector<16x242xbf16>
    %cst_90 = arith.constant dense<0.000000e+00> : vector<16x242xf32>
    %133 = tpu.matmul %131, %132, %cst_90 {dimension_numbers = #tpu.dot_dimension_numbers<[1], [0], [0], [1], [0, 0, 1, 1], [], []>} : vector<16x16xbf16>, vector<16x242xbf16>, vector<16x242xf32> -> vector<16x242xf32>
    %c1_91 = arith.constant 1 : index
    %c0_92 = arith.constant 0 : index
    %c0_93 = arith.constant 0 : index
    %134 = vector.load %arg7[%c1_91, %c0_92, %c0_93] : memref<9x16x16xbf16, #tpu.memory_space<vmem>>, vector<1x16x16xbf16>
    %135 = vector.shape_cast %134 : vector<1x16x16xbf16> to vector<16x16xbf16>
    %136 = vector.extract_strided_slice %129 {offsets = [0, 1], sizes = [16, 242], strides = [1, 1]} : vector<16x266xbf16> to vector<16x242xbf16>
    %cst_94 = arith.constant dense<0.000000e+00> : vector<16x242xf32>
    %137 = tpu.matmul %135, %136, %cst_94 {dimension_numbers = #tpu.dot_dimension_numbers<[1], [0], [0], [1], [0, 0, 1, 1], [], []>} : vector<16x16xbf16>, vector<16x242xbf16>, vector<16x242xf32> -> vector<16x242xf32>
    %138 = arith.addf %133, %137 : vector<16x242xf32>
    %c2_95 = arith.constant 2 : index
    %c0_96 = arith.constant 0 : index
    %c0_97 = arith.constant 0 : index
    %139 = vector.load %arg7[%c2_95, %c0_96, %c0_97] : memref<9x16x16xbf16, #tpu.memory_space<vmem>>, vector<1x16x16xbf16>
    %140 = vector.shape_cast %139 : vector<1x16x16xbf16> to vector<16x16xbf16>
    %141 = vector.extract_strided_slice %129 {offsets = [0, 2], sizes = [16, 242], strides = [1, 1]} : vector<16x266xbf16> to vector<16x242xbf16>
    %cst_98 = arith.constant dense<0.000000e+00> : vector<16x242xf32>
    %142 = tpu.matmul %140, %141, %cst_98 {dimension_numbers = #tpu.dot_dimension_numbers<[1], [0], [0], [1], [0, 0, 1, 1], [], []>} : vector<16x16xbf16>, vector<16x242xbf16>, vector<16x242xf32> -> vector<16x242xf32>
    %143 = arith.addf %138, %142 : vector<16x242xf32>
    %c3_99 = arith.constant 3 : index
    %c0_100 = arith.constant 0 : index
    %c0_101 = arith.constant 0 : index
    %144 = vector.load %arg7[%c3_99, %c0_100, %c0_101] : memref<9x16x16xbf16, #tpu.memory_space<vmem>>, vector<1x16x16xbf16>
    %145 = vector.shape_cast %144 : vector<1x16x16xbf16> to vector<16x16xbf16>
    %146 = vector.extract_strided_slice %129 {offsets = [0, 11], sizes = [16, 242], strides = [1, 1]} : vector<16x266xbf16> to vector<16x242xbf16>
    %cst_102 = arith.constant dense<0.000000e+00> : vector<16x242xf32>
    %147 = tpu.matmul %145, %146, %cst_102 {dimension_numbers = #tpu.dot_dimension_numbers<[1], [0], [0], [1], [0, 0, 1, 1], [], []>} : vector<16x16xbf16>, vector<16x242xbf16>, vector<16x242xf32> -> vector<16x242xf32>
    %148 = arith.addf %143, %147 : vector<16x242xf32>
    %c4_103 = arith.constant 4 : index
    %c0_104 = arith.constant 0 : index
    %c0_105 = arith.constant 0 : index
    %149 = vector.load %arg7[%c4_103, %c0_104, %c0_105] : memref<9x16x16xbf16, #tpu.memory_space<vmem>>, vector<1x16x16xbf16>
    %150 = vector.shape_cast %149 : vector<1x16x16xbf16> to vector<16x16xbf16>
    %151 = vector.extract_strided_slice %129 {offsets = [0, 12], sizes = [16, 242], strides = [1, 1]} : vector<16x266xbf16> to vector<16x242xbf16>
    %cst_106 = arith.constant dense<0.000000e+00> : vector<16x242xf32>
    %152 = tpu.matmul %150, %151, %cst_106 {dimension_numbers = #tpu.dot_dimension_numbers<[1], [0], [0], [1], [0, 0, 1, 1], [], []>} : vector<16x16xbf16>, vector<16x242xbf16>, vector<16x242xf32> -> vector<16x242xf32>
    %153 = arith.addf %148, %152 : vector<16x242xf32>
    %c5_107 = arith.constant 5 : index
    %c0_108 = arith.constant 0 : index
    %c0_109 = arith.constant 0 : index
    %154 = vector.load %arg7[%c5_107, %c0_108, %c0_109] : memref<9x16x16xbf16, #tpu.memory_space<vmem>>, vector<1x16x16xbf16>
    %155 = vector.shape_cast %154 : vector<1x16x16xbf16> to vector<16x16xbf16>
    %156 = vector.extract_strided_slice %129 {offsets = [0, 13], sizes = [16, 242], strides = [1, 1]} : vector<16x266xbf16> to vector<16x242xbf16>
    %cst_110 = arith.constant dense<0.000000e+00> : vector<16x242xf32>
    %157 = tpu.matmul %155, %156, %cst_110 {dimension_numbers = #tpu.dot_dimension_numbers<[1], [0], [0], [1], [0, 0, 1, 1], [], []>} : vector<16x16xbf16>, vector<16x242xbf16>, vector<16x242xf32> -> vector<16x242xf32>
    %158 = arith.addf %153, %157 : vector<16x242xf32>
    %c6_111 = arith.constant 6 : index
    %c0_112 = arith.constant 0 : index
    %c0_113 = arith.constant 0 : index
    %159 = vector.load %arg7[%c6_111, %c0_112, %c0_113] : memref<9x16x16xbf16, #tpu.memory_space<vmem>>, vector<1x16x16xbf16>
    %160 = vector.shape_cast %159 : vector<1x16x16xbf16> to vector<16x16xbf16>
    %161 = vector.extract_strided_slice %129 {offsets = [0, 22], sizes = [16, 242], strides = [1, 1]} : vector<16x266xbf16> to vector<16x242xbf16>
    %cst_114 = arith.constant dense<0.000000e+00> : vector<16x242xf32>
    %162 = tpu.matmul %160, %161, %cst_114 {dimension_numbers = #tpu.dot_dimension_numbers<[1], [0], [0], [1], [0, 0, 1, 1], [], []>} : vector<16x16xbf16>, vector<16x242xbf16>, vector<16x242xf32> -> vector<16x242xf32>
    %163 = arith.addf %158, %162 : vector<16x242xf32>
    %c7_115 = arith.constant 7 : index
    %c0_116 = arith.constant 0 : index
    %c0_117 = arith.constant 0 : index
    %164 = vector.load %arg7[%c7_115, %c0_116, %c0_117] : memref<9x16x16xbf16, #tpu.memory_space<vmem>>, vector<1x16x16xbf16>
    %165 = vector.shape_cast %164 : vector<1x16x16xbf16> to vector<16x16xbf16>
    %166 = vector.extract_strided_slice %129 {offsets = [0, 23], sizes = [16, 242], strides = [1, 1]} : vector<16x266xbf16> to vector<16x242xbf16>
    %cst_118 = arith.constant dense<0.000000e+00> : vector<16x242xf32>
    %167 = tpu.matmul %165, %166, %cst_118 {dimension_numbers = #tpu.dot_dimension_numbers<[1], [0], [0], [1], [0, 0, 1, 1], [], []>} : vector<16x16xbf16>, vector<16x242xbf16>, vector<16x242xf32> -> vector<16x242xf32>
    %168 = arith.addf %163, %167 : vector<16x242xf32>
    %c8_119 = arith.constant 8 : index
    %c0_120 = arith.constant 0 : index
    %c0_121 = arith.constant 0 : index
    %169 = vector.load %arg7[%c8_119, %c0_120, %c0_121] : memref<9x16x16xbf16, #tpu.memory_space<vmem>>, vector<1x16x16xbf16>
    %170 = vector.shape_cast %169 : vector<1x16x16xbf16> to vector<16x16xbf16>
    %171 = vector.extract_strided_slice %129 {offsets = [0, 24], sizes = [16, 242], strides = [1, 1]} : vector<16x266xbf16> to vector<16x242xbf16>
    %cst_122 = arith.constant dense<0.000000e+00> : vector<16x242xf32>
    %172 = tpu.matmul %170, %171, %cst_122 {dimension_numbers = #tpu.dot_dimension_numbers<[1], [0], [0], [1], [0, 0, 1, 1], [], []>} : vector<16x16xbf16>, vector<16x242xbf16>, vector<16x242xf32> -> vector<16x242xf32>
    %173 = arith.addf %168, %172 : vector<16x242xf32>
    %cst_123 = arith.constant 0.000000e+00 : f32
    %174 = vector.broadcast %cst_123 : f32 to vector<16x242xf32>
    %175 = arith.cmpf oge, %173, %174 : vector<16x242xf32>
    %cst_124 = arith.constant 2.000000e-01 : f32
    %176 = vector.broadcast %cst_124 : f32 to vector<16x242xf32>
    %177 = arith.mulf %176, %173 : vector<16x242xf32>
    %178 = arith.select %175, %173, %177 : vector<16x242xi1>, vector<16x242xf32>
    %cst_125 = arith.constant 1.400000e+00 : f32
    %179 = vector.broadcast %cst_125 : f32 to vector<16x242xf32>
    %180 = arith.mulf %178, %179 : vector<16x242xf32>
    %c0_126 = arith.constant 0 : index
    %c0_127 = arith.constant 0 : index
    %181 = vector.load %arg10[%c0_126, %c0_127] : memref<242x114xbf16, #tpu.memory_space<vmem>>, vector<242x114xbf16>
    %182 = arith.truncf %180 : vector<16x242xf32> to vector<16x242xbf16>
    %cst_128 = arith.constant dense<0.000000e+00> : vector<16x114xf32>
    %183 = tpu.matmul %182, %181, %cst_128 {dimension_numbers = #tpu.dot_dimension_numbers<[1], [0], [0], [1], [0, 0, 1, 1], [], []>} : vector<16x242xbf16>, vector<242x114xbf16>, vector<16x114xf32> -> vector<16x114xf32>
    %184 = vector.extract_strided_slice %129 {offsets = [0, 12], sizes = [16, 242], strides = [1, 1]} : vector<16x266xbf16> to vector<16x242xbf16>
    %cst_129 = arith.constant dense<0.000000e+00> : vector<16x114xf32>
    %185 = tpu.matmul %184, %181, %cst_129 {dimension_numbers = #tpu.dot_dimension_numbers<[1], [0], [0], [1], [0, 0, 1, 1], [], []>} : vector<16x242xbf16>, vector<242x114xbf16>, vector<16x114xf32> -> vector<16x114xf32>
    %186 = arith.truncf %183 : vector<16x114xf32> to vector<16x114xbf16>
    %c0_130 = arith.constant 0 : index
    %c0_131 = arith.constant 0 : index
    %c0_132 = arith.constant 0 : index
    %187 = vector.load %arg8[%c0_130, %c0_131, %c0_132] : memref<9x16x16xbf16, #tpu.memory_space<vmem>>, vector<1x16x16xbf16>
    %188 = vector.shape_cast %187 : vector<1x16x16xbf16> to vector<16x16xbf16>
    %189 = vector.extract_strided_slice %186 {offsets = [0, 14], sizes = [16, 72], strides = [1, 1]} : vector<16x114xbf16> to vector<16x72xbf16>
    %cst_133 = arith.constant dense<0.000000e+00> : vector<16x72xf32>
    %190 = tpu.matmul %188, %189, %cst_133 {dimension_numbers = #tpu.dot_dimension_numbers<[1], [0], [0], [1], [0, 0, 1, 1], [], []>} : vector<16x16xbf16>, vector<16x72xbf16>, vector<16x72xf32> -> vector<16x72xf32>
    %c1_134 = arith.constant 1 : index
    %c0_135 = arith.constant 0 : index
    %c0_136 = arith.constant 0 : index
    %191 = vector.load %arg8[%c1_134, %c0_135, %c0_136] : memref<9x16x16xbf16, #tpu.memory_space<vmem>>, vector<1x16x16xbf16>
    %192 = vector.shape_cast %191 : vector<1x16x16xbf16> to vector<16x16xbf16>
    %193 = vector.extract_strided_slice %186 {offsets = [0, 15], sizes = [16, 72], strides = [1, 1]} : vector<16x114xbf16> to vector<16x72xbf16>
    %cst_137 = arith.constant dense<0.000000e+00> : vector<16x72xf32>
    %194 = tpu.matmul %192, %193, %cst_137 {dimension_numbers = #tpu.dot_dimension_numbers<[1], [0], [0], [1], [0, 0, 1, 1], [], []>} : vector<16x16xbf16>, vector<16x72xbf16>, vector<16x72xf32> -> vector<16x72xf32>
    %195 = arith.addf %190, %194 : vector<16x72xf32>
    %c2_138 = arith.constant 2 : index
    %c0_139 = arith.constant 0 : index
    %c0_140 = arith.constant 0 : index
    %196 = vector.load %arg8[%c2_138, %c0_139, %c0_140] : memref<9x16x16xbf16, #tpu.memory_space<vmem>>, vector<1x16x16xbf16>
    %197 = vector.shape_cast %196 : vector<1x16x16xbf16> to vector<16x16xbf16>
    %198 = vector.extract_strided_slice %186 {offsets = [0, 16], sizes = [16, 72], strides = [1, 1]} : vector<16x114xbf16> to vector<16x72xbf16>
    %cst_141 = arith.constant dense<0.000000e+00> : vector<16x72xf32>
    %199 = tpu.matmul %197, %198, %cst_141 {dimension_numbers = #tpu.dot_dimension_numbers<[1], [0], [0], [1], [0, 0, 1, 1], [], []>} : vector<16x16xbf16>, vector<16x72xbf16>, vector<16x72xf32> -> vector<16x72xf32>
    %200 = arith.addf %195, %199 : vector<16x72xf32>
    %c3_142 = arith.constant 3 : index
    %c0_143 = arith.constant 0 : index
    %c0_144 = arith.constant 0 : index
    %201 = vector.load %arg8[%c3_142, %c0_143, %c0_144] : memref<9x16x16xbf16, #tpu.memory_space<vmem>>, vector<1x16x16xbf16>
    %202 = vector.shape_cast %201 : vector<1x16x16xbf16> to vector<16x16xbf16>
    %203 = vector.extract_strided_slice %186 {offsets = [0, 20], sizes = [16, 72], strides = [1, 1]} : vector<16x114xbf16> to vector<16x72xbf16>
    %cst_145 = arith.constant dense<0.000000e+00> : vector<16x72xf32>
    %204 = tpu.matmul %202, %203, %cst_145 {dimension_numbers = #tpu.dot_dimension_numbers<[1], [0], [0], [1], [0, 0, 1, 1], [], []>} : vector<16x16xbf16>, vector<16x72xbf16>, vector<16x72xf32> -> vector<16x72xf32>
    %205 = arith.addf %200, %204 : vector<16x72xf32>
    %c4_146 = arith.constant 4 : index
    %c0_147 = arith.constant 0 : index
    %c0_148 = arith.constant 0 : index
    %206 = vector.load %arg8[%c4_146, %c0_147, %c0_148] : memref<9x16x16xbf16, #tpu.memory_space<vmem>>, vector<1x16x16xbf16>
    %207 = vector.shape_cast %206 : vector<1x16x16xbf16> to vector<16x16xbf16>
    %208 = vector.extract_strided_slice %186 {offsets = [0, 21], sizes = [16, 72], strides = [1, 1]} : vector<16x114xbf16> to vector<16x72xbf16>
    %cst_149 = arith.constant dense<0.000000e+00> : vector<16x72xf32>
    %209 = tpu.matmul %207, %208, %cst_149 {dimension_numbers = #tpu.dot_dimension_numbers<[1], [0], [0], [1], [0, 0, 1, 1], [], []>} : vector<16x16xbf16>, vector<16x72xbf16>, vector<16x72xf32> -> vector<16x72xf32>
    %210 = arith.addf %205, %209 : vector<16x72xf32>
    %c5_150 = arith.constant 5 : index
    %c0_151 = arith.constant 0 : index
    %c0_152 = arith.constant 0 : index
    %211 = vector.load %arg8[%c5_150, %c0_151, %c0_152] : memref<9x16x16xbf16, #tpu.memory_space<vmem>>, vector<1x16x16xbf16>
    %212 = vector.shape_cast %211 : vector<1x16x16xbf16> to vector<16x16xbf16>
    %213 = vector.extract_strided_slice %186 {offsets = [0, 22], sizes = [16, 72], strides = [1, 1]} : vector<16x114xbf16> to vector<16x72xbf16>
    %cst_153 = arith.constant dense<0.000000e+00> : vector<16x72xf32>
    %214 = tpu.matmul %212, %213, %cst_153 {dimension_numbers = #tpu.dot_dimension_numbers<[1], [0], [0], [1], [0, 0, 1, 1], [], []>} : vector<16x16xbf16>, vector<16x72xbf16>, vector<16x72xf32> -> vector<16x72xf32>
    %215 = arith.addf %210, %214 : vector<16x72xf32>
    %c6_154 = arith.constant 6 : index
    %c0_155 = arith.constant 0 : index
    %c0_156 = arith.constant 0 : index
    %216 = vector.load %arg8[%c6_154, %c0_155, %c0_156] : memref<9x16x16xbf16, #tpu.memory_space<vmem>>, vector<1x16x16xbf16>
    %217 = vector.shape_cast %216 : vector<1x16x16xbf16> to vector<16x16xbf16>
    %218 = vector.extract_strided_slice %186 {offsets = [0, 26], sizes = [16, 72], strides = [1, 1]} : vector<16x114xbf16> to vector<16x72xbf16>
    %cst_157 = arith.constant dense<0.000000e+00> : vector<16x72xf32>
    %219 = tpu.matmul %217, %218, %cst_157 {dimension_numbers = #tpu.dot_dimension_numbers<[1], [0], [0], [1], [0, 0, 1, 1], [], []>} : vector<16x16xbf16>, vector<16x72xbf16>, vector<16x72xf32> -> vector<16x72xf32>
    %220 = arith.addf %215, %219 : vector<16x72xf32>
    %c7_158 = arith.constant 7 : index
    %c0_159 = arith.constant 0 : index
    %c0_160 = arith.constant 0 : index
    %221 = vector.load %arg8[%c7_158, %c0_159, %c0_160] : memref<9x16x16xbf16, #tpu.memory_space<vmem>>, vector<1x16x16xbf16>
    %222 = vector.shape_cast %221 : vector<1x16x16xbf16> to vector<16x16xbf16>
    %223 = vector.extract_strided_slice %186 {offsets = [0, 27], sizes = [16, 72], strides = [1, 1]} : vector<16x114xbf16> to vector<16x72xbf16>
    %cst_161 = arith.constant dense<0.000000e+00> : vector<16x72xf32>
    %224 = tpu.matmul %222, %223, %cst_161 {dimension_numbers = #tpu.dot_dimension_numbers<[1], [0], [0], [1], [0, 0, 1, 1], [], []>} : vector<16x16xbf16>, vector<16x72xbf16>, vector<16x72xf32> -> vector<16x72xf32>
    %225 = arith.addf %220, %224 : vector<16x72xf32>
    %c8_162 = arith.constant 8 : index
    %c0_163 = arith.constant 0 : index
    %c0_164 = arith.constant 0 : index
    %226 = vector.load %arg8[%c8_162, %c0_163, %c0_164] : memref<9x16x16xbf16, #tpu.memory_space<vmem>>, vector<1x16x16xbf16>
    %227 = vector.shape_cast %226 : vector<1x16x16xbf16> to vector<16x16xbf16>
    %228 = vector.extract_strided_slice %186 {offsets = [0, 28], sizes = [16, 72], strides = [1, 1]} : vector<16x114xbf16> to vector<16x72xbf16>
    %cst_165 = arith.constant dense<0.000000e+00> : vector<16x72xf32>
    %229 = tpu.matmul %227, %228, %cst_165 {dimension_numbers = #tpu.dot_dimension_numbers<[1], [0], [0], [1], [0, 0, 1, 1], [], []>} : vector<16x16xbf16>, vector<16x72xbf16>, vector<16x72xf32> -> vector<16x72xf32>
    %230 = arith.addf %225, %229 : vector<16x72xf32>
    %cst_166 = arith.constant 0.000000e+00 : f32
    %231 = vector.broadcast %cst_166 : f32 to vector<16x72xf32>
    %232 = arith.cmpf oge, %230, %231 : vector<16x72xf32>
    %cst_167 = arith.constant 2.000000e-01 : f32
    %233 = vector.broadcast %cst_167 : f32 to vector<16x72xf32>
    %234 = arith.mulf %233, %230 : vector<16x72xf32>
    %235 = arith.select %232, %230, %234 : vector<16x72xi1>, vector<16x72xf32>
    %cst_168 = arith.constant 1.400000e+00 : f32
    %236 = vector.broadcast %cst_168 : f32 to vector<16x72xf32>
    %237 = arith.mulf %235, %236 : vector<16x72xf32>
    %c0_169 = arith.constant 0 : index
    %c0_170 = arith.constant 0 : index
    %238 = vector.load %arg9[%c0_169, %c0_170] : memref<16x16xbf16, #tpu.memory_space<vmem>>, vector<16x16xbf16>
    %239 = arith.truncf %185 : vector<16x114xf32> to vector<16x114xbf16>
    %240 = vector.extract_strided_slice %239 {offsets = [0, 21], sizes = [16, 72], strides = [1, 1]} : vector<16x114xbf16> to vector<16x72xbf16>
    %cst_171 = arith.constant dense<0.000000e+00> : vector<16x72xf32>
    %241 = tpu.matmul %238, %240, %cst_171 {dimension_numbers = #tpu.dot_dimension_numbers<[1], [0], [0], [1], [0, 0, 1, 1], [], []>} : vector<16x16xbf16>, vector<16x72xbf16>, vector<16x72xf32> -> vector<16x72xf32>
    %cst_172 = arith.constant 1.400000e+00 : f32
    %242 = vector.broadcast %cst_172 : f32 to vector<16x72xf32>
    %243 = arith.mulf %241, %242 : vector<16x72xf32>
    %244 = arith.addf %237, %243 : vector<16x72xf32>
    %cst_173 = arith.constant 0.707106769 : f32
    %245 = vector.broadcast %cst_173 : f32 to vector<16x72xf32>
    %246 = arith.mulf %244, %245 : vector<16x72xf32>
    %cst_174 = arith.constant 1.400000e+00 : f32
    %247 = vector.broadcast %cst_174 : f32 to vector<16x72xf32>
    %248 = arith.mulf %246, %247 : vector<16x72xf32>
    %249 = arith.truncf %248 : vector<16x72xf32> to vector<16x72xbf16>
    %c0_175 = arith.constant 0 : index
    %c0_176 = arith.constant 0 : index
    %250 = vector.load %arg11[%c0_175, %c0_176] : memref<72x114xbf16, #tpu.memory_space<vmem>>, vector<72x114xbf16>
    %cst_177 = arith.constant dense<0.000000e+00> : vector<16x114xf32>
    %251 = tpu.matmul %249, %250, %cst_177 {dimension_numbers = #tpu.dot_dimension_numbers<[1], [0], [0], [1], [0, 0, 1, 1], [], []>} : vector<16x72xbf16>, vector<72x114xbf16>, vector<16x114xf32> -> vector<16x114xf32>
    %252 = vector.extract_strided_slice %251 {offsets = [0, 21], sizes = [16, 36], strides = [1, 1]} : vector<16x114xf32> to vector<16x36xf32>
    %253 = vector.extract_strided_slice %251 {offsets = [0, 57], sizes = [16, 36], strides = [1, 1]} : vector<16x114xf32> to vector<16x36xf32>
    %254 = arith.addf %252, %253 : vector<16x36xf32>
    %cst_178 = arith.constant 5.000000e-01 : f32
    %255 = vector.broadcast %cst_178 : f32 to vector<16x36xf32>
    %256 = arith.mulf %254, %255 : vector<16x36xf32>
    %257 = arith.subf %252, %256 : vector<16x36xf32>
    %258 = arith.mulf %257, %257 : vector<16x36xf32>
    %259 = arith.subf %253, %256 : vector<16x36xf32>
    %260 = arith.mulf %259, %259 : vector<16x36xf32>
    %261 = arith.addf %258, %260 : vector<16x36xf32>
    %cst_179 = arith.constant 5.000000e-01 : f32
    %262 = vector.broadcast %cst_179 : f32 to vector<16x36xf32>
    %263 = arith.mulf %261, %262 : vector<16x36xf32>
    %cst_180 = arith.constant 9.99999993E-9 : f32
    %264 = vector.broadcast %cst_180 : f32 to vector<16x36xf32>
    %265 = arith.addf %263, %264 : vector<16x36xf32>
    %266 = math.sqrt %265 : vector<16x36xf32>
    %c0_181 = arith.constant 0 : index
    %c21 = arith.constant 21 : index
    %267 = vector.load %arg12[%c0_181, %c21] : memref<1x114xf32, #tpu.memory_space<vmem>>, vector<1x36xf32>
    %268 = vector.broadcast %267 : vector<1x36xf32> to vector<16x36xf32>
    %269 = arith.mulf %266, %268 : vector<16x36xf32>
    %cst_182 = arith.constant dense<0.000000e+00> : vector<16xf32>
    %270 = vector.multi_reduction <add>, %269, %cst_182 [1] : vector<16x36xf32> to vector<16xf32>
    %271 = vector.shape_cast %270 : vector<16xf32> to vector<16x1xf32>
    %cst_183 = arith.constant dense<0.000000e+00> : vector<1xf32>
    %272 = vector.multi_reduction <add>, %271, %cst_183 [0] : vector<16x1xf32> to vector<1xf32>
    %273 = vector.shape_cast %272 : vector<1xf32> to vector<1x1xf32>
    %cst_184 = arith.constant 3.906250e-03 : f32
    %274 = vector.broadcast %cst_184 : f32 to vector<1x1xf32>
    %275 = arith.mulf %273, %274 : vector<1x1xf32>
    %c0_185 = arith.constant 0 : index
    %c0_186 = arith.constant 0 : index
    %276 = vector.load %arg12[%c0_185, %c0_186] : memref<1x114xf32, #tpu.memory_space<vmem>>, vector<1x114xf32>
    %277 = vector.broadcast %275 : vector<1x1xf32> to vector<1x114xf32>
    %278 = arith.mulf %277, %276 : vector<1x114xf32>
    %279 = arith.truncf %278 : vector<1x114xf32> to vector<1x114xbf16>
    %280 = arith.extf %279 : vector<1x114xbf16> to vector<1x114xf32>
    %281 = arith.truncf %251 : vector<16x114xf32> to vector<16x114xbf16>
    %c0_187 = arith.constant 0 : index
    %c0_188 = arith.constant 0 : index
    %c0_189 = arith.constant 0 : index
    %282 = vector.load %arg13[%c0_187, %c0_188, %c0_189] : memref<9x16x17xbf16, #tpu.memory_space<vmem>>, vector<1x16x17xbf16>
    %283 = vector.shape_cast %282 : vector<1x16x17xbf16> to vector<16x17xbf16>
    %284 = vector.extract_strided_slice %283 {offsets = [0, 0], sizes = [16, 16], strides = [1, 1]} : vector<16x17xbf16> to vector<16x16xbf16>
    %285 = vector.extract_strided_slice %281 {offsets = [0, 14], sizes = [16, 72], strides = [1, 1]} : vector<16x114xbf16> to vector<16x72xbf16>
    %cst_190 = arith.constant dense<0.000000e+00> : vector<16x72xf32>
    %286 = tpu.matmul %284, %285, %cst_190 {dimension_numbers = #tpu.dot_dimension_numbers<[1], [0], [0], [1], [0, 0, 1, 1], [], []>} : vector<16x16xbf16>, vector<16x72xbf16>, vector<16x72xf32> -> vector<16x72xf32>
    %287 = vector.extract_strided_slice %283 {offsets = [0, 16], sizes = [16, 1], strides = [1, 1]} : vector<16x17xbf16> to vector<16x1xbf16>
    %288 = arith.extf %287 : vector<16x1xbf16> to vector<16x1xf32>
    %289 = vector.extract_strided_slice %280 {offsets = [0, 14], sizes = [1, 72], strides = [1, 1]} : vector<1x114xf32> to vector<1x72xf32>
    %290 = vector.broadcast %288 : vector<16x1xf32> to vector<16x72xf32>
    %291 = vector.broadcast %289 : vector<1x72xf32> to vector<16x72xf32>
    %292 = arith.mulf %290, %291 : vector<16x72xf32>
    %293 = arith.addf %286, %292 : vector<16x72xf32>
    %c1_191 = arith.constant 1 : index
    %c0_192 = arith.constant 0 : index
    %c0_193 = arith.constant 0 : index
    %294 = vector.load %arg13[%c1_191, %c0_192, %c0_193] : memref<9x16x17xbf16, #tpu.memory_space<vmem>>, vector<1x16x17xbf16>
    %295 = vector.shape_cast %294 : vector<1x16x17xbf16> to vector<16x17xbf16>
    %296 = vector.extract_strided_slice %295 {offsets = [0, 0], sizes = [16, 16], strides = [1, 1]} : vector<16x17xbf16> to vector<16x16xbf16>
    %297 = vector.extract_strided_slice %281 {offsets = [0, 15], sizes = [16, 72], strides = [1, 1]} : vector<16x114xbf16> to vector<16x72xbf16>
    %cst_194 = arith.constant dense<0.000000e+00> : vector<16x72xf32>
    %298 = tpu.matmul %296, %297, %cst_194 {dimension_numbers = #tpu.dot_dimension_numbers<[1], [0], [0], [1], [0, 0, 1, 1], [], []>} : vector<16x16xbf16>, vector<16x72xbf16>, vector<16x72xf32> -> vector<16x72xf32>
    %299 = vector.extract_strided_slice %295 {offsets = [0, 16], sizes = [16, 1], strides = [1, 1]} : vector<16x17xbf16> to vector<16x1xbf16>
    %300 = arith.extf %299 : vector<16x1xbf16> to vector<16x1xf32>
    %301 = vector.extract_strided_slice %280 {offsets = [0, 15], sizes = [1, 72], strides = [1, 1]} : vector<1x114xf32> to vector<1x72xf32>
    %302 = vector.broadcast %300 : vector<16x1xf32> to vector<16x72xf32>
    %303 = vector.broadcast %301 : vector<1x72xf32> to vector<16x72xf32>
    %304 = arith.mulf %302, %303 : vector<16x72xf32>
    %305 = arith.addf %298, %304 : vector<16x72xf32>
    %306 = arith.addf %293, %305 : vector<16x72xf32>
    %c2_195 = arith.constant 2 : index
    %c0_196 = arith.constant 0 : index
    %c0_197 = arith.constant 0 : index
    %307 = vector.load %arg13[%c2_195, %c0_196, %c0_197] : memref<9x16x17xbf16, #tpu.memory_space<vmem>>, vector<1x16x17xbf16>
    %308 = vector.shape_cast %307 : vector<1x16x17xbf16> to vector<16x17xbf16>
    %309 = vector.extract_strided_slice %308 {offsets = [0, 0], sizes = [16, 16], strides = [1, 1]} : vector<16x17xbf16> to vector<16x16xbf16>
    %310 = vector.extract_strided_slice %281 {offsets = [0, 16], sizes = [16, 72], strides = [1, 1]} : vector<16x114xbf16> to vector<16x72xbf16>
    %cst_198 = arith.constant dense<0.000000e+00> : vector<16x72xf32>
    %311 = tpu.matmul %309, %310, %cst_198 {dimension_numbers = #tpu.dot_dimension_numbers<[1], [0], [0], [1], [0, 0, 1, 1], [], []>} : vector<16x16xbf16>, vector<16x72xbf16>, vector<16x72xf32> -> vector<16x72xf32>
    %312 = vector.extract_strided_slice %308 {offsets = [0, 16], sizes = [16, 1], strides = [1, 1]} : vector<16x17xbf16> to vector<16x1xbf16>
    %313 = arith.extf %312 : vector<16x1xbf16> to vector<16x1xf32>
    %314 = vector.extract_strided_slice %280 {offsets = [0, 16], sizes = [1, 72], strides = [1, 1]} : vector<1x114xf32> to vector<1x72xf32>
    %315 = vector.broadcast %313 : vector<16x1xf32> to vector<16x72xf32>
    %316 = vector.broadcast %314 : vector<1x72xf32> to vector<16x72xf32>
    %317 = arith.mulf %315, %316 : vector<16x72xf32>
    %318 = arith.addf %311, %317 : vector<16x72xf32>
    %319 = arith.addf %306, %318 : vector<16x72xf32>
    %c3_199 = arith.constant 3 : index
    %c0_200 = arith.constant 0 : index
    %c0_201 = arith.constant 0 : index
    %320 = vector.load %arg13[%c3_199, %c0_200, %c0_201] : memref<9x16x17xbf16, #tpu.memory_space<vmem>>, vector<1x16x17xbf16>
    %321 = vector.shape_cast %320 : vector<1x16x17xbf16> to vector<16x17xbf16>
    %322 = vector.extract_strided_slice %321 {offsets = [0, 0], sizes = [16, 16], strides = [1, 1]} : vector<16x17xbf16> to vector<16x16xbf16>
    %323 = vector.extract_strided_slice %281 {offsets = [0, 20], sizes = [16, 72], strides = [1, 1]} : vector<16x114xbf16> to vector<16x72xbf16>
    %cst_202 = arith.constant dense<0.000000e+00> : vector<16x72xf32>
    %324 = tpu.matmul %322, %323, %cst_202 {dimension_numbers = #tpu.dot_dimension_numbers<[1], [0], [0], [1], [0, 0, 1, 1], [], []>} : vector<16x16xbf16>, vector<16x72xbf16>, vector<16x72xf32> -> vector<16x72xf32>
    %325 = vector.extract_strided_slice %321 {offsets = [0, 16], sizes = [16, 1], strides = [1, 1]} : vector<16x17xbf16> to vector<16x1xbf16>
    %326 = arith.extf %325 : vector<16x1xbf16> to vector<16x1xf32>
    %327 = vector.extract_strided_slice %280 {offsets = [0, 20], sizes = [1, 72], strides = [1, 1]} : vector<1x114xf32> to vector<1x72xf32>
    %328 = vector.broadcast %326 : vector<16x1xf32> to vector<16x72xf32>
    %329 = vector.broadcast %327 : vector<1x72xf32> to vector<16x72xf32>
    %330 = arith.mulf %328, %329 : vector<16x72xf32>
    %331 = arith.addf %324, %330 : vector<16x72xf32>
    %332 = arith.addf %319, %331 : vector<16x72xf32>
    %c4_203 = arith.constant 4 : index
    %c0_204 = arith.constant 0 : index
    %c0_205 = arith.constant 0 : index
    %333 = vector.load %arg13[%c4_203, %c0_204, %c0_205] : memref<9x16x17xbf16, #tpu.memory_space<vmem>>, vector<1x16x17xbf16>
    %334 = vector.shape_cast %333 : vector<1x16x17xbf16> to vector<16x17xbf16>
    %335 = vector.extract_strided_slice %334 {offsets = [0, 0], sizes = [16, 16], strides = [1, 1]} : vector<16x17xbf16> to vector<16x16xbf16>
    %336 = vector.extract_strided_slice %281 {offsets = [0, 21], sizes = [16, 72], strides = [1, 1]} : vector<16x114xbf16> to vector<16x72xbf16>
    %cst_206 = arith.constant dense<0.000000e+00> : vector<16x72xf32>
    %337 = tpu.matmul %335, %336, %cst_206 {dimension_numbers = #tpu.dot_dimension_numbers<[1], [0], [0], [1], [0, 0, 1, 1], [], []>} : vector<16x16xbf16>, vector<16x72xbf16>, vector<16x72xf32> -> vector<16x72xf32>
    %338 = vector.extract_strided_slice %334 {offsets = [0, 16], sizes = [16, 1], strides = [1, 1]} : vector<16x17xbf16> to vector<16x1xbf16>
    %339 = arith.extf %338 : vector<16x1xbf16> to vector<16x1xf32>
    %340 = vector.extract_strided_slice %280 {offsets = [0, 21], sizes = [1, 72], strides = [1, 1]} : vector<1x114xf32> to vector<1x72xf32>
    %341 = vector.broadcast %339 : vector<16x1xf32> to vector<16x72xf32>
    %342 = vector.broadcast %340 : vector<1x72xf32> to vector<16x72xf32>
    %343 = arith.mulf %341, %342 : vector<16x72xf32>
    %344 = arith.addf %337, %343 : vector<16x72xf32>
    %345 = arith.addf %332, %344 : vector<16x72xf32>
    %c5_207 = arith.constant 5 : index
    %c0_208 = arith.constant 0 : index
    %c0_209 = arith.constant 0 : index
    %346 = vector.load %arg13[%c5_207, %c0_208, %c0_209] : memref<9x16x17xbf16, #tpu.memory_space<vmem>>, vector<1x16x17xbf16>
    %347 = vector.shape_cast %346 : vector<1x16x17xbf16> to vector<16x17xbf16>
    %348 = vector.extract_strided_slice %347 {offsets = [0, 0], sizes = [16, 16], strides = [1, 1]} : vector<16x17xbf16> to vector<16x16xbf16>
    %349 = vector.extract_strided_slice %281 {offsets = [0, 22], sizes = [16, 72], strides = [1, 1]} : vector<16x114xbf16> to vector<16x72xbf16>
    %cst_210 = arith.constant dense<0.000000e+00> : vector<16x72xf32>
    %350 = tpu.matmul %348, %349, %cst_210 {dimension_numbers = #tpu.dot_dimension_numbers<[1], [0], [0], [1], [0, 0, 1, 1], [], []>} : vector<16x16xbf16>, vector<16x72xbf16>, vector<16x72xf32> -> vector<16x72xf32>
    %351 = vector.extract_strided_slice %347 {offsets = [0, 16], sizes = [16, 1], strides = [1, 1]} : vector<16x17xbf16> to vector<16x1xbf16>
    %352 = arith.extf %351 : vector<16x1xbf16> to vector<16x1xf32>
    %353 = vector.extract_strided_slice %280 {offsets = [0, 22], sizes = [1, 72], strides = [1, 1]} : vector<1x114xf32> to vector<1x72xf32>
    %354 = vector.broadcast %352 : vector<16x1xf32> to vector<16x72xf32>
    %355 = vector.broadcast %353 : vector<1x72xf32> to vector<16x72xf32>
    %356 = arith.mulf %354, %355 : vector<16x72xf32>
    %357 = arith.addf %350, %356 : vector<16x72xf32>
    %358 = arith.addf %345, %357 : vector<16x72xf32>
    %c6_211 = arith.constant 6 : index
    %c0_212 = arith.constant 0 : index
    %c0_213 = arith.constant 0 : index
    %359 = vector.load %arg13[%c6_211, %c0_212, %c0_213] : memref<9x16x17xbf16, #tpu.memory_space<vmem>>, vector<1x16x17xbf16>
    %360 = vector.shape_cast %359 : vector<1x16x17xbf16> to vector<16x17xbf16>
    %361 = vector.extract_strided_slice %360 {offsets = [0, 0], sizes = [16, 16], strides = [1, 1]} : vector<16x17xbf16> to vector<16x16xbf16>
    %362 = vector.extract_strided_slice %281 {offsets = [0, 26], sizes = [16, 72], strides = [1, 1]} : vector<16x114xbf16> to vector<16x72xbf16>
    %cst_214 = arith.constant dense<0.000000e+00> : vector<16x72xf32>
    %363 = tpu.matmul %361, %362, %cst_214 {dimension_numbers = #tpu.dot_dimension_numbers<[1], [0], [0], [1], [0, 0, 1, 1], [], []>} : vector<16x16xbf16>, vector<16x72xbf16>, vector<16x72xf32> -> vector<16x72xf32>
    %364 = vector.extract_strided_slice %360 {offsets = [0, 16], sizes = [16, 1], strides = [1, 1]} : vector<16x17xbf16> to vector<16x1xbf16>
    %365 = arith.extf %364 : vector<16x1xbf16> to vector<16x1xf32>
    %366 = vector.extract_strided_slice %280 {offsets = [0, 26], sizes = [1, 72], strides = [1, 1]} : vector<1x114xf32> to vector<1x72xf32>
    %367 = vector.broadcast %365 : vector<16x1xf32> to vector<16x72xf32>
    %368 = vector.broadcast %366 : vector<1x72xf32> to vector<16x72xf32>
    %369 = arith.mulf %367, %368 : vector<16x72xf32>
    %370 = arith.addf %363, %369 : vector<16x72xf32>
    %371 = arith.addf %358, %370 : vector<16x72xf32>
    %c7_215 = arith.constant 7 : index
    %c0_216 = arith.constant 0 : index
    %c0_217 = arith.constant 0 : index
    %372 = vector.load %arg13[%c7_215, %c0_216, %c0_217] : memref<9x16x17xbf16, #tpu.memory_space<vmem>>, vector<1x16x17xbf16>
    %373 = vector.shape_cast %372 : vector<1x16x17xbf16> to vector<16x17xbf16>
    %374 = vector.extract_strided_slice %373 {offsets = [0, 0], sizes = [16, 16], strides = [1, 1]} : vector<16x17xbf16> to vector<16x16xbf16>
    %375 = vector.extract_strided_slice %281 {offsets = [0, 27], sizes = [16, 72], strides = [1, 1]} : vector<16x114xbf16> to vector<16x72xbf16>
    %cst_218 = arith.constant dense<0.000000e+00> : vector<16x72xf32>
    %376 = tpu.matmul %374, %375, %cst_218 {dimension_numbers = #tpu.dot_dimension_numbers<[1], [0], [0], [1], [0, 0, 1, 1], [], []>} : vector<16x16xbf16>, vector<16x72xbf16>, vector<16x72xf32> -> vector<16x72xf32>
    %377 = vector.extract_strided_slice %373 {offsets = [0, 16], sizes = [16, 1], strides = [1, 1]} : vector<16x17xbf16> to vector<16x1xbf16>
    %378 = arith.extf %377 : vector<16x1xbf16> to vector<16x1xf32>
    %379 = vector.extract_strided_slice %280 {offsets = [0, 27], sizes = [1, 72], strides = [1, 1]} : vector<1x114xf32> to vector<1x72xf32>
    %380 = vector.broadcast %378 : vector<16x1xf32> to vector<16x72xf32>
    %381 = vector.broadcast %379 : vector<1x72xf32> to vector<16x72xf32>
    %382 = arith.mulf %380, %381 : vector<16x72xf32>
    %383 = arith.addf %376, %382 : vector<16x72xf32>
    %384 = arith.addf %371, %383 : vector<16x72xf32>
    %c8_219 = arith.constant 8 : index
    %c0_220 = arith.constant 0 : index
    %c0_221 = arith.constant 0 : index
    %385 = vector.load %arg13[%c8_219, %c0_220, %c0_221] : memref<9x16x17xbf16, #tpu.memory_space<vmem>>, vector<1x16x17xbf16>
    %386 = vector.shape_cast %385 : vector<1x16x17xbf16> to vector<16x17xbf16>
    %387 = vector.extract_strided_slice %386 {offsets = [0, 0], sizes = [16, 16], strides = [1, 1]} : vector<16x17xbf16> to vector<16x16xbf16>
    %388 = vector.extract_strided_slice %281 {offsets = [0, 28], sizes = [16, 72], strides = [1, 1]} : vector<16x114xbf16> to vector<16x72xbf16>
    %cst_222 = arith.constant dense<0.000000e+00> : vector<16x72xf32>
    %389 = tpu.matmul %387, %388, %cst_222 {dimension_numbers = #tpu.dot_dimension_numbers<[1], [0], [0], [1], [0, 0, 1, 1], [], []>} : vector<16x16xbf16>, vector<16x72xbf16>, vector<16x72xf32> -> vector<16x72xf32>
    %390 = vector.extract_strided_slice %386 {offsets = [0, 16], sizes = [16, 1], strides = [1, 1]} : vector<16x17xbf16> to vector<16x1xbf16>
    %391 = arith.extf %390 : vector<16x1xbf16> to vector<16x1xf32>
    %392 = vector.extract_strided_slice %280 {offsets = [0, 28], sizes = [1, 72], strides = [1, 1]} : vector<1x114xf32> to vector<1x72xf32>
    %393 = vector.broadcast %391 : vector<16x1xf32> to vector<16x72xf32>
    %394 = vector.broadcast %392 : vector<1x72xf32> to vector<16x72xf32>
    %395 = arith.mulf %393, %394 : vector<16x72xf32>
    %396 = arith.addf %389, %395 : vector<16x72xf32>
    %397 = arith.addf %384, %396 : vector<16x72xf32>
    %cst_223 = arith.constant 0.000000e+00 : f32
    %398 = vector.broadcast %cst_223 : f32 to vector<16x72xf32>
    %399 = arith.cmpf oge, %397, %398 : vector<16x72xf32>
    %cst_224 = arith.constant 2.000000e-01 : f32
    %400 = vector.broadcast %cst_224 : f32 to vector<16x72xf32>
    %401 = arith.mulf %400, %397 : vector<16x72xf32>
    %402 = arith.select %399, %397, %401 : vector<16x72xi1>, vector<16x72xf32>
    %cst_225 = arith.constant 1.400000e+00 : f32
    %403 = vector.broadcast %cst_225 : f32 to vector<16x72xf32>
    %404 = arith.mulf %402, %403 : vector<16x72xf32>
    %405 = arith.truncf %404 : vector<16x72xf32> to vector<16x72xbf16>
    %c0_226 = arith.constant 0 : index
    %c0_227 = arith.constant 0 : index
    %c0_228 = arith.constant 0 : index
    %406 = vector.load %arg14[%c0_226, %c0_227, %c0_228] : memref<16x16x16xbf16, #tpu.memory_space<vmem>>, vector<1x16x16xbf16>
    %407 = vector.shape_cast %406 : vector<1x16x16xbf16> to vector<16x16xbf16>
    %408 = vector.extract_strided_slice %405 {offsets = [0, 0], sizes = [16, 51], strides = [1, 1]} : vector<16x72xbf16> to vector<16x51xbf16>
    %cst_229 = arith.constant dense<0.000000e+00> : vector<16x51xf32>
    %409 = tpu.matmul %407, %408, %cst_229 {dimension_numbers = #tpu.dot_dimension_numbers<[1], [0], [0], [1], [0, 0, 1, 1], [], []>} : vector<16x16xbf16>, vector<16x51xbf16>, vector<16x51xf32> -> vector<16x51xf32>
    %c1_230 = arith.constant 1 : index
    %c0_231 = arith.constant 0 : index
    %c0_232 = arith.constant 0 : index
    %410 = vector.load %arg14[%c1_230, %c0_231, %c0_232] : memref<16x16x16xbf16, #tpu.memory_space<vmem>>, vector<1x16x16xbf16>
    %411 = vector.shape_cast %410 : vector<1x16x16xbf16> to vector<16x16xbf16>
    %412 = vector.extract_strided_slice %405 {offsets = [0, 1], sizes = [16, 51], strides = [1, 1]} : vector<16x72xbf16> to vector<16x51xbf16>
    %cst_233 = arith.constant dense<0.000000e+00> : vector<16x51xf32>
    %413 = tpu.matmul %411, %412, %cst_233 {dimension_numbers = #tpu.dot_dimension_numbers<[1], [0], [0], [1], [0, 0, 1, 1], [], []>} : vector<16x16xbf16>, vector<16x51xbf16>, vector<16x51xf32> -> vector<16x51xf32>
    %414 = arith.addf %409, %413 : vector<16x51xf32>
    %c2_234 = arith.constant 2 : index
    %c0_235 = arith.constant 0 : index
    %c0_236 = arith.constant 0 : index
    %415 = vector.load %arg14[%c2_234, %c0_235, %c0_236] : memref<16x16x16xbf16, #tpu.memory_space<vmem>>, vector<1x16x16xbf16>
    %416 = vector.shape_cast %415 : vector<1x16x16xbf16> to vector<16x16xbf16>
    %417 = vector.extract_strided_slice %405 {offsets = [0, 2], sizes = [16, 51], strides = [1, 1]} : vector<16x72xbf16> to vector<16x51xbf16>
    %cst_237 = arith.constant dense<0.000000e+00> : vector<16x51xf32>
    %418 = tpu.matmul %416, %417, %cst_237 {dimension_numbers = #tpu.dot_dimension_numbers<[1], [0], [0], [1], [0, 0, 1, 1], [], []>} : vector<16x16xbf16>, vector<16x51xbf16>, vector<16x51xf32> -> vector<16x51xf32>
    %419 = arith.addf %414, %418 : vector<16x51xf32>
    %c3_238 = arith.constant 3 : index
    %c0_239 = arith.constant 0 : index
    %c0_240 = arith.constant 0 : index
    %420 = vector.load %arg14[%c3_238, %c0_239, %c0_240] : memref<16x16x16xbf16, #tpu.memory_space<vmem>>, vector<1x16x16xbf16>
    %421 = vector.shape_cast %420 : vector<1x16x16xbf16> to vector<16x16xbf16>
    %422 = vector.extract_strided_slice %405 {offsets = [0, 3], sizes = [16, 51], strides = [1, 1]} : vector<16x72xbf16> to vector<16x51xbf16>
    %cst_241 = arith.constant dense<0.000000e+00> : vector<16x51xf32>
    %423 = tpu.matmul %421, %422, %cst_241 {dimension_numbers = #tpu.dot_dimension_numbers<[1], [0], [0], [1], [0, 0, 1, 1], [], []>} : vector<16x16xbf16>, vector<16x51xbf16>, vector<16x51xf32> -> vector<16x51xf32>
    %424 = arith.addf %419, %423 : vector<16x51xf32>
    %c4_242 = arith.constant 4 : index
    %c0_243 = arith.constant 0 : index
    %c0_244 = arith.constant 0 : index
    %425 = vector.load %arg14[%c4_242, %c0_243, %c0_244] : memref<16x16x16xbf16, #tpu.memory_space<vmem>>, vector<1x16x16xbf16>
    %426 = vector.shape_cast %425 : vector<1x16x16xbf16> to vector<16x16xbf16>
    %427 = vector.extract_strided_slice %405 {offsets = [0, 6], sizes = [16, 51], strides = [1, 1]} : vector<16x72xbf16> to vector<16x51xbf16>
    %cst_245 = arith.constant dense<0.000000e+00> : vector<16x51xf32>
    %428 = tpu.matmul %426, %427, %cst_245 {dimension_numbers = #tpu.dot_dimension_numbers<[1], [0], [0], [1], [0, 0, 1, 1], [], []>} : vector<16x16xbf16>, vector<16x51xbf16>, vector<16x51xf32> -> vector<16x51xf32>
    %429 = arith.addf %424, %428 : vector<16x51xf32>
    %c5_246 = arith.constant 5 : index
    %c0_247 = arith.constant 0 : index
    %c0_248 = arith.constant 0 : index
    %430 = vector.load %arg14[%c5_246, %c0_247, %c0_248] : memref<16x16x16xbf16, #tpu.memory_space<vmem>>, vector<1x16x16xbf16>
    %431 = vector.shape_cast %430 : vector<1x16x16xbf16> to vector<16x16xbf16>
    %432 = vector.extract_strided_slice %405 {offsets = [0, 7], sizes = [16, 51], strides = [1, 1]} : vector<16x72xbf16> to vector<16x51xbf16>
    %cst_249 = arith.constant dense<0.000000e+00> : vector<16x51xf32>
    %433 = tpu.matmul %431, %432, %cst_249 {dimension_numbers = #tpu.dot_dimension_numbers<[1], [0], [0], [1], [0, 0, 1, 1], [], []>} : vector<16x16xbf16>, vector<16x51xbf16>, vector<16x51xf32> -> vector<16x51xf32>
    %434 = arith.addf %429, %433 : vector<16x51xf32>
    %c6_250 = arith.constant 6 : index
    %c0_251 = arith.constant 0 : index
    %c0_252 = arith.constant 0 : index
    %435 = vector.load %arg14[%c6_250, %c0_251, %c0_252] : memref<16x16x16xbf16, #tpu.memory_space<vmem>>, vector<1x16x16xbf16>
    %436 = vector.shape_cast %435 : vector<1x16x16xbf16> to vector<16x16xbf16>
    %437 = vector.extract_strided_slice %405 {offsets = [0, 8], sizes = [16, 51], strides = [1, 1]} : vector<16x72xbf16> to vector<16x51xbf16>
    %cst_253 = arith.constant dense<0.000000e+00> : vector<16x51xf32>
    %438 = tpu.matmul %436, %437, %cst_253 {dimension_numbers = #tpu.dot_dimension_numbers<[1], [0], [0], [1], [0, 0, 1, 1], [], []>} : vector<16x16xbf16>, vector<16x51xbf16>, vector<16x51xf32> -> vector<16x51xf32>
    %439 = arith.addf %434, %438 : vector<16x51xf32>
    %c7_254 = arith.constant 7 : index
    %c0_255 = arith.constant 0 : index
    %c0_256 = arith.constant 0 : index
    %440 = vector.load %arg14[%c7_254, %c0_255, %c0_256] : memref<16x16x16xbf16, #tpu.memory_space<vmem>>, vector<1x16x16xbf16>
    %441 = vector.shape_cast %440 : vector<1x16x16xbf16> to vector<16x16xbf16>
    %442 = vector.extract_strided_slice %405 {offsets = [0, 9], sizes = [16, 51], strides = [1, 1]} : vector<16x72xbf16> to vector<16x51xbf16>
    %cst_257 = arith.constant dense<0.000000e+00> : vector<16x51xf32>
    %443 = tpu.matmul %441, %442, %cst_257 {dimension_numbers = #tpu.dot_dimension_numbers<[1], [0], [0], [1], [0, 0, 1, 1], [], []>} : vector<16x16xbf16>, vector<16x51xbf16>, vector<16x51xf32> -> vector<16x51xf32>
    %444 = arith.addf %439, %443 : vector<16x51xf32>
    %c8_258 = arith.constant 8 : index
    %c0_259 = arith.constant 0 : index
    %c0_260 = arith.constant 0 : index
    %445 = vector.load %arg14[%c8_258, %c0_259, %c0_260] : memref<16x16x16xbf16, #tpu.memory_space<vmem>>, vector<1x16x16xbf16>
    %446 = vector.shape_cast %445 : vector<1x16x16xbf16> to vector<16x16xbf16>
    %447 = vector.extract_strided_slice %405 {offsets = [0, 12], sizes = [16, 51], strides = [1, 1]} : vector<16x72xbf16> to vector<16x51xbf16>
    %cst_261 = arith.constant dense<0.000000e+00> : vector<16x51xf32>
    %448 = tpu.matmul %446, %447, %cst_261 {dimension_numbers = #tpu.dot_dimension_numbers<[1], [0], [0], [1], [0, 0, 1, 1], [], []>} : vector<16x16xbf16>, vector<16x51xbf16>, vector<16x51xf32> -> vector<16x51xf32>
    %449 = arith.addf %444, %448 : vector<16x51xf32>
    %c9 = arith.constant 9 : index
    %c0_262 = arith.constant 0 : index
    %c0_263 = arith.constant 0 : index
    %450 = vector.load %arg14[%c9, %c0_262, %c0_263] : memref<16x16x16xbf16, #tpu.memory_space<vmem>>, vector<1x16x16xbf16>
    %451 = vector.shape_cast %450 : vector<1x16x16xbf16> to vector<16x16xbf16>
    %452 = vector.extract_strided_slice %405 {offsets = [0, 13], sizes = [16, 51], strides = [1, 1]} : vector<16x72xbf16> to vector<16x51xbf16>
    %cst_264 = arith.constant dense<0.000000e+00> : vector<16x51xf32>
    %453 = tpu.matmul %451, %452, %cst_264 {dimension_numbers = #tpu.dot_dimension_numbers<[1], [0], [0], [1], [0, 0, 1, 1], [], []>} : vector<16x16xbf16>, vector<16x51xbf16>, vector<16x51xf32> -> vector<16x51xf32>
    %454 = arith.addf %449, %453 : vector<16x51xf32>
    %c10 = arith.constant 10 : index
    %c0_265 = arith.constant 0 : index
    %c0_266 = arith.constant 0 : index
    %455 = vector.load %arg14[%c10, %c0_265, %c0_266] : memref<16x16x16xbf16, #tpu.memory_space<vmem>>, vector<1x16x16xbf16>
    %456 = vector.shape_cast %455 : vector<1x16x16xbf16> to vector<16x16xbf16>
    %457 = vector.extract_strided_slice %405 {offsets = [0, 14], sizes = [16, 51], strides = [1, 1]} : vector<16x72xbf16> to vector<16x51xbf16>
    %cst_267 = arith.constant dense<0.000000e+00> : vector<16x51xf32>
    %458 = tpu.matmul %456, %457, %cst_267 {dimension_numbers = #tpu.dot_dimension_numbers<[1], [0], [0], [1], [0, 0, 1, 1], [], []>} : vector<16x16xbf16>, vector<16x51xbf16>, vector<16x51xf32> -> vector<16x51xf32>
    %459 = arith.addf %454, %458 : vector<16x51xf32>
    %c11 = arith.constant 11 : index
    %c0_268 = arith.constant 0 : index
    %c0_269 = arith.constant 0 : index
    %460 = vector.load %arg14[%c11, %c0_268, %c0_269] : memref<16x16x16xbf16, #tpu.memory_space<vmem>>, vector<1x16x16xbf16>
    %461 = vector.shape_cast %460 : vector<1x16x16xbf16> to vector<16x16xbf16>
    %462 = vector.extract_strided_slice %405 {offsets = [0, 15], sizes = [16, 51], strides = [1, 1]} : vector<16x72xbf16> to vector<16x51xbf16>
    %cst_270 = arith.constant dense<0.000000e+00> : vector<16x51xf32>
    %463 = tpu.matmul %461, %462, %cst_270 {dimension_numbers = #tpu.dot_dimension_numbers<[1], [0], [0], [1], [0, 0, 1, 1], [], []>} : vector<16x16xbf16>, vector<16x51xbf16>, vector<16x51xf32> -> vector<16x51xf32>
    %464 = arith.addf %459, %463 : vector<16x51xf32>
    %c12 = arith.constant 12 : index
    %c0_271 = arith.constant 0 : index
    %c0_272 = arith.constant 0 : index
    %465 = vector.load %arg14[%c12, %c0_271, %c0_272] : memref<16x16x16xbf16, #tpu.memory_space<vmem>>, vector<1x16x16xbf16>
    %466 = vector.shape_cast %465 : vector<1x16x16xbf16> to vector<16x16xbf16>
    %467 = vector.extract_strided_slice %405 {offsets = [0, 18], sizes = [16, 51], strides = [1, 1]} : vector<16x72xbf16> to vector<16x51xbf16>
    %cst_273 = arith.constant dense<0.000000e+00> : vector<16x51xf32>
    %468 = tpu.matmul %466, %467, %cst_273 {dimension_numbers = #tpu.dot_dimension_numbers<[1], [0], [0], [1], [0, 0, 1, 1], [], []>} : vector<16x16xbf16>, vector<16x51xbf16>, vector<16x51xf32> -> vector<16x51xf32>
    %469 = arith.addf %464, %468 : vector<16x51xf32>
    %c13 = arith.constant 13 : index
    %c0_274 = arith.constant 0 : index
    %c0_275 = arith.constant 0 : index
    %470 = vector.load %arg14[%c13, %c0_274, %c0_275] : memref<16x16x16xbf16, #tpu.memory_space<vmem>>, vector<1x16x16xbf16>
    %471 = vector.shape_cast %470 : vector<1x16x16xbf16> to vector<16x16xbf16>
    %472 = vector.extract_strided_slice %405 {offsets = [0, 19], sizes = [16, 51], strides = [1, 1]} : vector<16x72xbf16> to vector<16x51xbf16>
    %cst_276 = arith.constant dense<0.000000e+00> : vector<16x51xf32>
    %473 = tpu.matmul %471, %472, %cst_276 {dimension_numbers = #tpu.dot_dimension_numbers<[1], [0], [0], [1], [0, 0, 1, 1], [], []>} : vector<16x16xbf16>, vector<16x51xbf16>, vector<16x51xf32> -> vector<16x51xf32>
    %474 = arith.addf %469, %473 : vector<16x51xf32>
    %c14 = arith.constant 14 : index
    %c0_277 = arith.constant 0 : index
    %c0_278 = arith.constant 0 : index
    %475 = vector.load %arg14[%c14, %c0_277, %c0_278] : memref<16x16x16xbf16, #tpu.memory_space<vmem>>, vector<1x16x16xbf16>
    %476 = vector.shape_cast %475 : vector<1x16x16xbf16> to vector<16x16xbf16>
    %477 = vector.extract_strided_slice %405 {offsets = [0, 20], sizes = [16, 51], strides = [1, 1]} : vector<16x72xbf16> to vector<16x51xbf16>
    %cst_279 = arith.constant dense<0.000000e+00> : vector<16x51xf32>
    %478 = tpu.matmul %476, %477, %cst_279 {dimension_numbers = #tpu.dot_dimension_numbers<[1], [0], [0], [1], [0, 0, 1, 1], [], []>} : vector<16x16xbf16>, vector<16x51xbf16>, vector<16x51xf32> -> vector<16x51xf32>
    %479 = arith.addf %474, %478 : vector<16x51xf32>
    %c15 = arith.constant 15 : index
    %c0_280 = arith.constant 0 : index
    %c0_281 = arith.constant 0 : index
    %480 = vector.load %arg14[%c15, %c0_280, %c0_281] : memref<16x16x16xbf16, #tpu.memory_space<vmem>>, vector<1x16x16xbf16>
    %481 = vector.shape_cast %480 : vector<1x16x16xbf16> to vector<16x16xbf16>
    %482 = vector.extract_strided_slice %405 {offsets = [0, 21], sizes = [16, 51], strides = [1, 1]} : vector<16x72xbf16> to vector<16x51xbf16>
    %cst_282 = arith.constant dense<0.000000e+00> : vector<16x51xf32>
    %483 = tpu.matmul %481, %482, %cst_282 {dimension_numbers = #tpu.dot_dimension_numbers<[1], [0], [0], [1], [0, 0, 1, 1], [], []>} : vector<16x16xbf16>, vector<16x51xbf16>, vector<16x51xf32> -> vector<16x51xf32>
    %484 = arith.addf %479, %483 : vector<16x51xf32>
    %cst_283 = arith.constant 0.000000e+00 : f32
    %485 = vector.broadcast %cst_283 : f32 to vector<16x51xf32>
    %486 = arith.cmpf oge, %484, %485 : vector<16x51xf32>
    %cst_284 = arith.constant 2.000000e-01 : f32
    %487 = vector.broadcast %cst_284 : f32 to vector<16x51xf32>
    %488 = arith.mulf %487, %484 : vector<16x51xf32>
    %489 = arith.select %486, %484, %488 : vector<16x51xi1>, vector<16x51xf32>
    %cst_285 = arith.constant 1.400000e+00 : f32
    %490 = vector.broadcast %cst_285 : f32 to vector<16x51xf32>
    %491 = arith.mulf %489, %490 : vector<16x51xf32>
    %c0_286 = arith.constant 0 : index
    %c0_287 = arith.constant 0 : index
    %492 = vector.load %arg15[%c0_286, %c0_287] : memref<1x16xf32, #tpu.memory_space<vmem>>, vector<1x16xf32>
    %cst_288 = arith.constant dense<0.000000e+00> : vector<1x51xf32>
    %493 = tpu.matmul %492, %491, %cst_288 {dimension_numbers = #tpu.dot_dimension_numbers<[1], [0], [0], [1], [0, 0, 1, 1], [], []>} : vector<1x16xf32>, vector<16x51xf32>, vector<1x51xf32> -> vector<1x51xf32>
    %c0_289 = arith.constant 0 : index
    %c0_290 = arith.constant 0 : index
    %494 = vector.load %arg16[%c0_289, %c0_290] : memref<1x1xf32, #tpu.memory_space<vmem>>, vector<1x1xf32>
    %495 = vector.broadcast %494 : vector<1x1xf32> to vector<1x51xf32>
    %496 = arith.addf %493, %495 : vector<1x51xf32>
    %497 = vector.extract_strided_slice %496 {offsets = [0, 7], sizes = [1, 1], strides = [1, 1]} : vector<1x51xf32> to vector<1x1xf32>
    %c0_291 = arith.constant 0 : index
    %c0_292 = arith.constant 0 : index
    %498 = vector.load %arg17[%c0_291, %c0_292] : memref<2x1xf32, #tpu.memory_space<vmem>>, vector<1x1xf32>
    tpu.vector_store %arg17[%c0_291, %c0_292], %497 {strides = array<i32>} : memref<2x1xf32, #tpu.memory_space<vmem>>, vector<1x1xf32>,
    %499 = vector.extract_strided_slice %496 {offsets = [0, 43], sizes = [1, 1], strides = [1, 1]} : vector<1x51xf32> to vector<1x1xf32>
    %c1_293 = arith.constant 1 : index
    %c0_294 = arith.constant 0 : index
    %500 = vector.load %arg17[%c1_293, %c0_294] : memref<2x1xf32, #tpu.memory_space<vmem>>, vector<1x1xf32>
    tpu.vector_store %arg17[%c1_293, %c0_294], %499 {strides = array<i32>} : memref<2x1xf32, #tpu.memory_space<vmem>>, vector<1x1xf32>,
    return
  }
}

</mosaic_0001>

<llo_original>
// kernel: discriminator_forward.1
$region0: #{discriminator_forward.1}
  #allocation0 [shape = 'u32[]', space=smem, size = 0x4, offset = 0x4, fixed_abs, tag = 'smem constant byte address 0x4 - core index']
  #allocation1 [shape = 'u32[144,128]{1,0:T(1,128)}', space=vmem, size = 0x12000, scoped, tag = 'internal scratch']
  #allocation2 [shape = 'f32[1,1]{1,0:T(1,128)S(1)}', space=vmem, size = 0x200, scoped, tag = 'scoped memory for discriminator_forward.1']
  %s0 = inlined_call_operand.vmem [shape: bf16[3,842], index: 0, kind: input, shape index: {}]
  %s1 = inlined_call_operand.vmem [shape: bf16[8,3], index: 1, kind: input, shape index: {}]
  %s2 = inlined_call_operand.vmem [shape: bf16[9,8,8], index: 2, kind: input, shape index: {}]
  %s3 = inlined_call_operand.vmem [shape: bf16[9,16,8], index: 3, kind: input, shape index: {}]
  %s4 = inlined_call_operand.vmem [shape: bf16[16,8], index: 4, kind: input, shape index: {}]
  %s5 = inlined_call_operand.vmem [shape: bf16[800,266], index: 5, kind: input, shape index: {}]
  %s6 = inlined_call_operand.vmem [shape: bf16[242,266], index: 6, kind: input, shape index: {}]
  %s7 = inlined_call_operand.vmem [shape: bf16[9,16,16], index: 7, kind: input, shape index: {}]
  %s8 = inlined_call_operand.vmem [shape: bf16[9,16,16], index: 8, kind: input, shape index: {}]
  %s9 = inlined_call_operand.vmem [shape: bf16[16,16], index: 9, kind: input, shape index: {}]
  %s10 = inlined_call_operand.vmem [shape: bf16[242,114], index: 10, kind: input, shape index: {}]
  %s11 = inlined_call_operand.vmem [shape: bf16[72,114], index: 11, kind: input, shape index: {}]
  %s12 = inlined_call_operand.vmem [shape: f32[1,114], index: 12, kind: input, shape index: {}]
  %s13 = inlined_call_operand.vmem [shape: bf16[9,16,17], index: 13, kind: input, shape index: {}]
  %s14 = inlined_call_operand.vmem [shape: bf16[16,16,16], index: 14, kind: input, shape index: {}]
  %s15 = inlined_call_operand.vmem [shape: f32[1,16], index: 15, kind: input, shape index: {}]
  %s16 = inlined_call_operand.<no memory space> [shape: f32[1,1], index: 16, kind: input, shape index: {}]
  %s17 = inlined_call_operand.vmem [shape: f32[2,1], index: 17, kind: output, shape index: {}]
  %s18 = sld [smem:[#allocation0]]
  $region78: #{discriminator_forward.1} parent=0
    _
  %s20 = ssub.s32 1, %s18
  %s21 = scalar_select 0, %s20, %s18
  %v22 = vstv %s16
  %23 = vst [vmem:[#allocation2] sm:$0x1] %v22
  // Predicated region
  $region2: #{discriminator_forward.1} parent=0 // pred_check
    _
  $region3: #{discriminator_forward.1} parent=0 // pred_check_branch
    %25 = sbr.rel (0) target = $region5
  $region4: #{discriminator_forward.1} parent=0 // pred_region
    _
  $region5: #{discriminator_forward.1} parent=0 // pred_fallthru
    _
  // Predicated region
  $region6: #{discriminator_forward.1} parent=0 // pred_check
    _
  $region7: #{discriminator_forward.1} parent=0 // pred_check_branch
    %27 = sbr.rel (0) target = $region9
  $region8: #{discriminator_forward.1} parent=0 // pred_region
    _
  $region9: #{discriminator_forward.1} parent=0 // pred_fallthru
    _
  // Predicated region
  $region10: #{discriminator_forward.1} parent=0 // pred_check
    _
  $region11: #{discriminator_forward.1} parent=0 // pred_check_branch
    %29 = sbr.rel (0) target = $region13
  $region12: #{discriminator_forward.1} parent=0 // pred_region
    _
  $region13: #{discriminator_forward.1} parent=0 // pred_fallthru
    _
  // Predicated region
  $region14: #{discriminator_forward.1} parent=0 // pred_check
    _
  $region15: #{discriminator_forward.1} parent=0 // pred_check_branch
    %31 = sbr.rel (0) target = $region17
  $region16: #{discriminator_forward.1} parent=0 // pred_region
    _
  $region17: #{discriminator_forward.1} parent=0 // pred_fallthru
    _
  // Predicated region
  $region18: #{discriminator_forward.1} parent=0 // pred_check
    _
  $region19: #{discriminator_forward.1} parent=0 // pred_check_branch
    %33 = sbr.rel (0) target = $region21
  $region20: #{discriminator_forward.1} parent=0 // pred_region
    _
  $region21: #{discriminator_forward.1} parent=0 // pred_fallthru
    _
  // Predicated region
  $region22: #{discriminator_forward.1} parent=0 // pred_check
    _
  $region23: #{discriminator_forward.1} parent=0 // pred_check_branch
    %35 = sbr.rel (0) target = $region25
  $region24: #{discriminator_forward.1} parent=0 // pred_region
    _
  $region25: #{discriminator_forward.1} parent=0 // pred_fallthru
    _
  // Predicated region
  $region26: #{discriminator_forward.1} parent=0 // pred_check
    _
  $region27: #{discriminator_forward.1} parent=0 // pred_check_branch
    %37 = sbr.rel (0) target = $region29
  $region28: #{discriminator_forward.1} parent=0 // pred_region
    _
  $region29: #{discriminator_forward.1} parent=0 // pred_fallthru
    _
  // Predicated region
  $region30: #{discriminator_forward.1} parent=0 // pred_check
    _
  $region31: #{discriminator_forward.1} parent=0 // pred_check_branch
    %39 = sbr.rel (0) target = $region33
  $region32: #{discriminator_forward.1} parent=0 // pred_region
    _
  $region33: #{discriminator_forward.1} parent=0 // pred_fallthru
    _
  // Predicated region
  $region34: #{discriminator_forward.1} parent=0 // pred_check
    _
  $region35: #{discriminator_forward.1} parent=0 // pred_check_branch
    %41 = sbr.rel (0) target = $region37
  $region36: #{discriminator_forward.1} parent=0 // pred_region
    _
  $region37: #{discriminator_forward.1} parent=0 // pred_fallthru
    _
  // Predicated region
  $region38: #{discriminator_forward.1} parent=0 // pred_check
    _
  $region39: #{discriminator_forward.1} parent=0 // pred_check_branch
    %43 = sbr.rel (0) target = $region41
  $region40: #{discriminator_forward.1} parent=0 // pred_region
    _
  $region41: #{discriminator_forward.1} parent=0 // pred_fallthru
    _
  // Predicated region
  $region42: #{discriminator_forward.1} parent=0 // pred_check
    _
  $region43: #{discriminator_forward.1} parent=0 // pred_check_branch
    %45 = sbr.rel (0) target = $region45
  $region44: #{discriminator_forward.1} parent=0 // pred_region
    _
  $region45: #{discriminator_forward.1} parent=0 // pred_fallthru
    _
  // Predicated region
  $region46: #{discriminator_forward.1} parent=0 // pred_check
    _
  $region47: #{discriminator_forward.1} parent=0 // pred_check_branch
    %47 = sbr.rel (0) target = $region49
  $region48: #{discriminator_forward.1} parent=0 // pred_region
    _
  $region49: #{discriminator_forward.1} parent=0 // pred_fallthru
    _
  // Predicated region
  $region50: #{discriminator_forward.1} parent=0 // pred_check
    _
  $region51: #{discriminator_forward.1} parent=0 // pred_check_branch
    %49 = sbr.rel (0) target = $region53
  $region52: #{discriminator_forward.1} parent=0 // pred_region
    _
  $region53: #{discriminator_forward.1} parent=0 // pred_fallthru
    _
  // Predicated region
  $region54: #{discriminator_forward.1} parent=0 // pred_check
    _
  $region55: #{discriminator_forward.1} parent=0 // pred_check_branch
    %51 = sbr.rel (0) target = $region57
  $region56: #{discriminator_forward.1} parent=0 // pred_region
    _
  $region57: #{discriminator_forward.1} parent=0 // pred_fallthru
    _
  // Predicated region
  $region58: #{discriminator_forward.1} parent=0 // pred_check
    _
  $region59: #{discriminator_forward.1} parent=0 // pred_check_branch
    %53 = sbr.rel (0) target = $region61
  $region60: #{discriminator_forward.1} parent=0 // pred_region
    _
  $region61: #{discriminator_forward.1} parent=0 // pred_fallthru
    _
  // Predicated region
  $region62: #{discriminator_forward.1} parent=0 // pred_check
    _
  $region63: #{discriminator_forward.1} parent=0 // pred_check_branch
    %55 = sbr.rel (0) target = $region65
  $region64: #{discriminator_forward.1} parent=0 // pred_region
    _
  $region65: #{discriminator_forward.1} parent=0 // pred_fallthru
    _
  // Predicated region
  $region66: #{discriminator_forward.1} parent=0 // pred_check
    _
  $region67: #{discriminator_forward.1} parent=0 // pred_check_branch
    %57 = sbr.rel (0) target = $region69
  $region68: #{discriminator_forward.1} parent=0 // pred_region
    _
  $region69: #{discriminator_forward.1} parent=0 // pred_fallthru
    _
  %v59 = vld [vmem:[%s1] sm:$0xf]
  %v60 = vld [vmem:[%s0] sm:$0xff]
  %v61 = vld [vmem:[%s0 + $0x8] sm:$0x3f]
  %v64 = vcombine.high %v60, %v60
  %v66 = vunpack.c.l.s4 1983009808
  %v67 = vunpack.c.0.s8 %v66
  %v68 = vlaneseq
  %v69 = vshrl.u32 %v68, 7
  %v70 = vsub.s32 %v67, %v69
  %v71 = vrot.slane %v60, %v70
  %v73 = vunpack.c.l.s4 1983009808
  %v74 = vunpack.c.0.s8 %v73
  %v75 = vlaneseq
  %v76 = vshrl.u32 %v75, 7
  %v77 = vsub.s32 %v74, %v76
  %v78 = vrot.slane %v64, %v77
  %v79 = vcombine.high %v71, %v71
  %v80 = vcombine.high %v78, %v78
  %v81 = vcombine.high %v61, %v61
  %v83 = vunpack.c.l.s4 1983009808
  %v84 = vunpack.c.0.s8 %v83
  %v85 = vlaneseq
  %v86 = vshrl.u32 %v85, 7
  %v87 = vsub.s32 %v84, %v86
  %v88 = vrot.slane %v61, %v87
  %v90 = vunpack.c.l.s4 1983009808
  %v91 = vunpack.c.0.s8 %v90
  %v92 = vlaneseq
  %v93 = vshrl.u32 %v92, 7
  %v94 = vsub.s32 %v91, %v93
  %v95 = vrot.slane %v81, %v94
  %v96 = vcombine.high %v88, %v88
  %vm97 = vcmask 23552
  %v99 = vsel %vm97, %v59, 0
  %vm101 = vcmask 1040384
  %vm102 = vcmask 1041408
  %v103 = vsel %vm101, 4294967295, 65535
  %v104 = vsel %vm102, %v103, 0
  %v106 = vand.u32 %v71, %v104
  %v109 = vand.u32 %v79, %v104
  %v112 = vand.u32 %v78, %v104
  %v115 = vand.u32 %v80, %v104
  %v118 = vand.u32 %v88, %v104
  %v121 = vand.u32 %v96, %v104
  %v124 = vand.u32 %v95, %v104
  %126 = vmatprep.subr.bf16.mxu0 %v109
  %127 = vmatpush1.bf16.msra.mxu0 %v106
  %128 = vmatprep.subr.bf16.mxu0 0
  %129 = vmatpush1.bf16.msra.mxu0 0
  %130 = vmatprep.subr.bf16.mxu0 0
  %131 = vmatpush1.bf16.msra.mxu0 0
  %132 = vmatprep.subr.bf16.mxu0 0
  %133 = vmatpush1.bf16.msra.mxu0 0
  %134 = vmatprep.subr.bf16.mxu0 0
  %135 = vmatpush1.bf16.msra.mxu0 0
  %136 = vmatprep.subr.bf16.mxu0 0
  %137 = vmatpush1.bf16.msra.mxu0 0
  %138 = vmatprep.subr.bf16.mxu0 0
  %139 = vmatpush1.bf16.msra.mxu0 0
  %140 = vmatprep.subr.bf16.mxu0 0
  %141 = vmatpush1.bf16.msra.mxu0 0
  %142 = vmatprep.subr.bf16.mxu0 0
  %143 = vmatpush1.bf16.msra.mxu0 0
  %144 = vmatprep.subr.bf16.mxu0 0
  %145 = vmatpush1.bf16.msra.mxu0 0
  %146 = vmatprep.subr.bf16.mxu0 0
  %147 = vmatpush1.bf16.msra.mxu0 0
  %148 = vmatprep.subr.bf16.mxu0 0
  %149 = vmatpush1.bf16.msra.mxu0 0
  %150 = vmatprep.subr.bf16.mxu0 0
  %151 = vmatpush1.bf16.msra.mxu0 0
  %152 = vmatprep.subr.bf16.mxu0 0
  %153 = vmatpush1.bf16.msra.mxu0 0
  %154 = vmatprep.subr.bf16.mxu0 0
  %155 = vmatpush1.bf16.msra.mxu0 0
  %156 = vmatprep.subr.bf16.mxu0 0
  %157 = vmatpush1.bf16.msra.mxu0 0
  %158 = vmatprep.mubr.bf16.mxu0 0
  %159 = vmatmul.mubr.bf16.gmra.mrb[0].mxu0 %v99
  %v160 = vpop.f32.mrb[0].mxu0
  %v161 = vadd.f32 0.0, %v160
  %v162 = vpop.f32.mrb[0].mxu0
  %v163 = vadd.f32 0.0, %v162
  %v164 = vpop.f32.mrb[0].mxu0
  %v165 = vpop.f32.mrb[0].mxu0
  %166 = vdwg.mxu0
  %167 = vmatprep.subr.bf16.mxu0 %v115
  %168 = vmatpush1.bf16.msra.mxu0 %v112
  %169 = vmatprep.subr.bf16.mxu0 0
  %170 = vmatpush1.bf16.msra.mxu0 0
  %171 = vmatprep.subr.bf16.mxu0 0
  %172 = vmatpush1.bf16.msra.mxu0 0
  %173 = vmatprep.subr.bf16.mxu0 0
  %174 = vmatpush1.bf16.msra.mxu0 0
  %175 = vmatprep.subr.bf16.mxu0 0
  %176 = vmatpush1.bf16.msra.mxu0 0
  %177 = vmatprep.subr.bf16.mxu0 0
  %178 = vmatpush1.bf16.msra.mxu0 0
  %179 = vmatprep.subr.bf16.mxu0 0
  %180 = vmatpush1.bf16.msra.mxu0 0
  %181 = vmatprep.subr.bf16.mxu0 0
  %182 = vmatpush1.bf16.msra.mxu0 0
  %183 = vmatprep.subr.bf16.mxu0 0
  %184 = vmatpush1.bf16.msra.mxu0 0
  %185 = vmatprep.subr.bf16.mxu0 0
  %186 = vmatpush1.bf16.msra.mxu0 0
  %187 = vmatprep.subr.bf16.mxu0 0
  %188 = vmatpush1.bf16.msra.mxu0 0
  %189 = vmatprep.subr.bf16.mxu0 0
  %190 = vmatpush1.bf16.msra.mxu0 0
  %191 = vmatprep.subr.bf16.mxu0 0
  %192 = vmatpush1.bf16.msra.mxu0 0
  %193 = vmatprep.subr.bf16.mxu0 0
  %194 = vmatpush1.bf16.msra.mxu0 0
  %195 = vmatprep.subr.bf16.mxu0 0
  %196 = vmatpush1.bf16.msra.mxu0 0
  %197 = vmatprep.subr.bf16.mxu0 0
  %198 = vmatpush1.bf16.msra.mxu0 0
  %199 = vmatprep.mubr.bf16.mxu0 0
  %200 = vmatmul.mubr.bf16.gmra.mrb[0].mxu0 %v99
  %v201 = vpop.f32.mrb[0].mxu0
  %v202 = vadd.f32 0.0, %v201
  %v203 = vpop.f32.mrb[0].mxu0
  %v204 = vadd.f32 0.0, %v203
  %v205 = vpop.f32.mrb[0].mxu0
  %v206 = vpop.f32.mrb[0].mxu0
  %207 = vdwg.mxu0
  %208 = vmatprep.subr.bf16.mxu0 %v121
  %209 = vmatpush1.bf16.msra.mxu0 %v118
  %210 = vmatprep.subr.bf16.mxu0 0
  %211 = vmatpush1.bf16.msra.mxu0 0
  %212 = vmatprep.subr.bf16.mxu0 0
  %213 = vmatpush1.bf16.msra.mxu0 0
  %214 = vmatprep.subr.bf16.mxu0 0
  %215 = vmatpush1.bf16.msra.mxu0 0
  %216 = vmatprep.subr.bf16.mxu0 0
  %217 = vmatpush1.bf16.msra.mxu0 0
  %218 = vmatprep.subr.bf16.mxu0 0
  %219 = vmatpush1.bf16.msra.mxu0 0
  %220 = vmatprep.subr.bf16.mxu0 0
  %221 = vmatpush1.bf16.msra.mxu0 0
  %222 = vmatprep.subr.bf16.mxu0 0
  %223 = vmatpush1.bf16.msra.mxu0 0
  %224 = vmatprep.subr.bf16.mxu0 0
  %225 = vmatpush1.bf16.msra.mxu0 0
  %226 = vmatprep.subr.bf16.mxu0 0
  %227 = vmatpush1.bf16.msra.mxu0 0
  %228 = vmatprep.subr.bf16.mxu0 0
  %229 = vmatpush1.bf16.msra.mxu0 0
  %230 = vmatprep.subr.bf16.mxu0 0
  %231 = vmatpush1.bf16.msra.mxu0 0
  %232 = vmatprep.subr.bf16.mxu0 0
  %233 = vmatpush1.bf16.msra.mxu0 0
  %234 = vmatprep.subr.bf16.mxu0 0
  %235 = vmatpush1.bf16.msra.mxu0 0
  %236 = vmatprep.subr.bf16.mxu0 0
  %237 = vmatpush1.bf16.msra.mxu0 0
  %238 = vmatprep.subr.bf16.mxu0 0
  %239 = vmatpush1.bf16.msra.mxu0 0
  %240 = vmatprep.mubr.bf16.mxu0 0
  %241 = vmatmul.mubr.bf16.gmra.mrb[0].mxu0 %v99
  %v242 = vpop.f32.mrb[0].mxu0
  %v243 = vadd.f32 0.0, %v242
  %v244 = vpop.f32.mrb[0].mxu0
  %v245 = vadd.f32 0.0, %v244
  %v246 = vpop.f32.mrb[0].mxu0
  %v247 = vpop.f32.mrb[0].mxu0
  %248 = vdwg.mxu0
  %249 = vmatprep.subr.bf16.mxu0 0
  %250 = vmatpush1.bf16.msra.mxu0 %v124
  %251 = vmatprep.subr.bf16.mxu0 0
  %252 = vmatpush1.bf16.msra.mxu0 0
  %253 = vmatprep.subr.bf16.mxu0 0
  %254 = vmatpush1.bf16.msra.mxu0 0
  %255 = vmatprep.subr.bf16.mxu0 0
  %256 = vmatpush1.bf16.msra.mxu0 0
  %257 = vmatprep.subr.bf16.mxu0 0
  %258 = vmatpush1.bf16.msra.mxu0 0
  %259 = vmatprep.subr.bf16.mxu0 0
  %260 = vmatpush1.bf16.msra.mxu0 0
  %261 = vmatprep.subr.bf16.mxu0 0
  %262 = vmatpush1.bf16.msra.mxu0 0
  %263 = vmatprep.subr.bf16.mxu0 0
  %264 = vmatpush1.bf16.msra.mxu0 0
  %265 = vmatprep.subr.bf16.mxu0 0
  %266 = vmatpush1.bf16.msra.mxu0 0
  %267 = vmatprep.subr.bf16.mxu0 0
  %268 = vmatpush1.bf16.msra.mxu0 0
  %269 = vmatprep.subr.bf16.mxu0 0
  %270 = vmatpush1.bf16.msra.mxu0 0
  %271 = vmatprep.subr.bf16.mxu0 0
  %272 = vmatpush1.bf16.msra.mxu0 0
  %273 = vmatprep.subr.bf16.mxu0 0
  %274 = vmatpush1.bf16.msra.mxu0 0
  %275 = vmatprep.subr.bf16.mxu0 0
  %276 = vmatpush1.bf16.msra.mxu0 0
  %277 = vmatprep.subr.bf16.mxu0 0
  %278 = vmatpush1.bf16.msra.mxu0 0
  %279 = vmatprep.subr.bf16.mxu0 0
  %280 = vmatpush1.bf16.msra.mxu0 0
  %281 = vmatprep.mubr.bf16.mxu0 0
  %282 = vmatmul.mubr.bf16.gmra.mrb[0].mxu0 %v99
  %v283 = vpop.f32.mrb[0].mxu0
  %v284 = vadd.f32 0.0, %v283
  %v285 = vpop.f32.mrb[0].mxu0
  %v286 = vpop.f32.mrb[0].mxu0
  %v287 = vpop.f32.mrb[0].mxu0
  %288 = vdwg.mxu0
  %vm289 = vcmp.ge.f32.partialorder %v161, 0.0
  %vm290 = vcmp.ge.f32.partialorder %v163, 0.0
  %vm291 = vcmp.ge.f32.partialorder %v202, 0.0
  %vm292 = vcmp.ge.f32.partialorder %v204, 0.0
  %vm293 = vcmp.ge.f32.partialorder %v243, 0.0
  %vm294 = vcmp.ge.f32.partialorder %v245, 0.0
  %vm295 = vcmp.ge.f32.partialorder %v284, 0.0
  %v296 = vmul.f32 %v161, 0.2
  %v297 = vmul.f32 %v163, 0.2
  %v298 = vmul.f32 %v202, 0.2
  %v299 = vmul.f32 %v204, 0.2
  %v300 = vmul.f32 %v243, 0.2
  %v301 = vmul.f32 %v245, 0.2
  %v302 = vmul.f32 %v284, 0.2
  %v303 = vsel %vm289, %v161, %v296
  %v304 = vsel %vm290, %v163, %v297
  %v305 = vsel %vm291, %v202, %v298
  %v306 = vsel %vm292, %v204, %v299
  %v307 = vsel %vm293, %v243, %v300
  %v308 = vsel %vm294, %v245, %v301
  %v309 = vsel %vm295, %v284, %v302
  %v310 = vpack.c.bf16 %v303, %v303
  %v311 = vpack.c.bf16 %v304, %v304
  %v312 = vpack.c.bf16 %v305, %v305
  %v313 = vpack.c.bf16 %v306, %v306
  %v314 = vpack.c.bf16 %v307, %v307
  %v315 = vpack.c.bf16 %v308, %v308
  %v316 = vpack.c.bf16 %v309, %v309
  %v317 = vld [vmem:[%s2] sm:$0xf]
  %s318 = scalar_lea.vmem %s2, 4
  %v319 = vld [vmem:[%s318] sm:$0xf]
  %327 = vrot.lane.b32.xlu0 %v310, 127
  %v328 = vpop.permute.xlu0 %327
  %329 = vrot.lane.b32.xlu0 %v311, 127
  %v330 = vpop.permute.xlu0 %329
  %331 = vrot.lane.b32.xlu0 %v312, 127
  %v332 = vpop.permute.xlu0 %331
  %333 = vrot.lane.b32.xlu0 %v313, 127
  %v334 = vpop.permute.xlu0 %333
  %335 = vrot.lane.b32.xlu0 %v314, 127
  %v336 = vpop.permute.xlu0 %335
  %337 = vrot.lane.b32.xlu0 %v315, 127
  %v338 = vpop.permute.xlu0 %337
  %339 = vrot.lane.b32.xlu0 %v316, 127
  %v340 = vpop.permute.xlu0 %339
  %vm341 = vcmask 1039360
  %v342 = vsel %vm341, %v328, %v330
  %v343 = vsel %vm341, %v330, %v332
  %v344 = vsel %vm341, %v332, %v334
  %v345 = vsel %vm341, %v334, %v336
  %v346 = vsel %vm341, %v336, %v338
  %v347 = vsel %vm341, %v338, %v340
  %vm348 = vcmask 64512
  %v350 = vsel %vm348, %v319, 0
  %vm352 = vcmask 1043456
  %v354 = vsel %vm352, %v342, 0
  %v357 = vsel %vm352, %v343, 0
  %v360 = vsel %vm352, %v344, 0
  %v363 = vsel %vm352, %v345, 0
  %v366 = vsel %vm352, %v346, 0
  %v369 = vsel %vm352, %v347, 0
  %v372 = vsel %vm352, %v340, 0
  %374 = vmatprep.subr.bf16.mxu0 %v357
  %375 = vmatpush1.bf16.msra.mxu0 %v354
  %376 = vmatprep.subr.bf16.mxu0 0
  %377 = vmatpush1.bf16.msra.mxu0 0
  %378 = vmatprep.subr.bf16.mxu0 0
  %379 = vmatpush1.bf16.msra.mxu0 0
  %380 = vmatprep.subr.bf16.mxu0 0
  %381 = vmatpush1.bf16.msra.mxu0 0
  %382 = vmatprep.subr.bf16.mxu0 0
  %383 = vmatpush1.bf16.msra.mxu0 0
  %384 = vmatprep.subr.bf16.mxu0 0
  %385 = vmatpush1.bf16.msra.mxu0 0
  %386 = vmatprep.subr.bf16.mxu0 0
  %387 = vmatpush1.bf16.msra.mxu0 0
  %388 = vmatprep.subr.bf16.mxu0 0
  %389 = vmatpush1.bf16.msra.mxu0 0
  %390 = vmatprep.subr.bf16.mxu0 0
  %391 = vmatpush1.bf16.msra.mxu0 0
  %392 = vmatprep.subr.bf16.mxu0 0
  %393 = vmatpush1.bf16.msra.mxu0 0
  %394 = vmatprep.subr.bf16.mxu0 0
  %395 = vmatpush1.bf16.msra.mxu0 0
  %396 = vmatprep.subr.bf16.mxu0 0
  %397 = vmatpush1.bf16.msra.mxu0 0
  %398 = vmatprep.subr.bf16.mxu0 0
  %399 = vmatpush1.bf16.msra.mxu0 0
  %400 = vmatprep.subr.bf16.mxu0 0
  %401 = vmatpush1.bf16.msra.mxu0 0
  %402 = vmatprep.subr.bf16.mxu0 0
  %403 = vmatpush1.bf16.msra.mxu0 0
  %404 = vmatprep.subr.bf16.mxu0 0
  %405 = vmatpush1.bf16.msra.mxu0 0
  %406 = vmatprep.mubr.bf16.mxu0 0
  %407 = vmatmul.mubr.bf16.gmra.mrb[0].mxu0 %v350
  %v408 = vpop.f32.mrb[0].mxu0
  %v409 = vadd.f32 0.0, %v408
  %v410 = vpop.f32.mrb[0].mxu0
  %v411 = vadd.f32 0.0, %v410
  %v412 = vpop.f32.mrb[0].mxu0
  %v413 = vpop.f32.mrb[0].mxu0
  %414 = vdwg.mxu0
  %415 = vmatprep.subr.bf16.mxu0 %v363
  %416 = vmatpush1.bf16.msra.mxu0 %v360
  %417 = vmatprep.subr.bf16.mxu0 0
  %418 = vmatpush1.bf16.msra.mxu0 0
  %419 = vmatprep.subr.bf16.mxu0 0
  %420 = vmatpush1.bf16.msra.mxu0 0
  %421 = vmatprep.subr.bf16.mxu0 0
  %422 = vmatpush1.bf16.msra.mxu0 0
  %423 = vmatprep.subr.bf16.mxu0 0
  %424 = vmatpush1.bf16.msra.mxu0 0
  %425 = vmatprep.subr.bf16.mxu0 0
  %426 = vmatpush1.bf16.msra.mxu0 0
  %427 = vmatprep.subr.bf16.mxu0 0
  %428 = vmatpush1.bf16.msra.mxu0 0
  %429 = vmatprep.subr.bf16.mxu0 0
  %430 = vmatpush1.bf16.msra.mxu0 0
  %431 = vmatprep.subr.bf16.mxu0 0
  %432 = vmatpush1.bf16.msra.mxu0 0
  %433 = vmatprep.subr.bf16.mxu0 0
  %434 = vmatpush1.bf16.msra.mxu0 0
  %435 = vmatprep.subr.bf16.mxu0 0
  %436 = vmatpush1.bf16.msra.mxu0 0
  %437 = vmatprep.subr.bf16.mxu0 0
  %438 = vmatpush1.bf16.msra.mxu0 0
  %439 = vmatprep.subr.bf16.mxu0 0
  %440 = vmatpush1.bf16.msra.mxu0 0
  %441 = vmatprep.subr.bf16.mxu0 0
  %442 = vmatpush1.bf16.msra.mxu0 0
  %443 = vmatprep.subr.bf16.mxu0 0
  %444 = vmatpush1.bf16.msra.mxu0 0
  %445 = vmatprep.subr.bf16.mxu0 0
  %446 = vmatpush1.bf16.msra.mxu0 0
  %447 = vmatprep.mubr.bf16.mxu0 0
  %448 = vmatmul.mubr.bf16.gmra.mrb[0].mxu0 %v350
  %v449 = vpop.f32.mrb[0].mxu0
  %v450 = vadd.f32 0.0, %v449
  %v451 = vpop.f32.mrb[0].mxu0
  %v452 = vadd.f32 0.0, %v451
  %v453 = vpop.f32.mrb[0].mxu0
  %v454 = vpop.f32.mrb[0].mxu0
  %455 = vdwg.mxu0
  %456 = vmatprep.subr.bf16.mxu0 %v369
  %457 = vmatpush1.bf16.msra.mxu0 %v366
  %458 = vmatprep.subr.bf16.mxu0 0
  %459 = vmatpush1.bf16.msra.mxu0 0
  %460 = vmatprep.subr.bf16.mxu0 0
  %461 = vmatpush1.bf16.msra.mxu0 0
  %462 = vmatprep.subr.bf16.mxu0 0
  %463 = vmatpush1.bf16.msra.mxu0 0
  %464 = vmatprep.subr.bf16.mxu0 0
  %465 = vmatpush1.bf16.msra.mxu0 0
  %466 = vmatprep.subr.bf16.mxu0 0
  %467 = vmatpush1.bf16.msra.mxu0 0
  %468 = vmatprep.subr.bf16.mxu0 0
  %469 = vmatpush1.bf16.msra.mxu0 0
  %470 = vmatprep.subr.bf16.mxu0 0
  %471 = vmatpush1.bf16.msra.mxu0 0
  %472 = vmatprep.subr.bf16.mxu0 0
  %473 = vmatpush1.bf16.msra.mxu0 0
  %474 = vmatprep.subr.bf16.mxu0 0
  %475 = vmatpush1.bf16.msra.mxu0 0
  %476 = vmatprep.subr.bf16.mxu0 0
  %477 = vmatpush1.bf16.msra.mxu0 0
  %478 = vmatprep.subr.bf16.mxu0 0
  %479 = vmatpush1.bf16.msra.mxu0 0
  %480 = vmatprep.subr.bf16.mxu0 0
  %481 = vmatpush1.bf16.msra.mxu0 0
  %482 = vmatprep.subr.bf16.mxu0 0
  %483 = vmatpush1.bf16.msra.mxu0 0
  %484 = vmatprep.subr.bf16.mxu0 0
  %485 = vmatpush1.bf16.msra.mxu0 0
  %486 = vmatprep.subr.bf16.mxu0 0
  %487 = vmatpush1.bf16.msra.mxu0 0
  %488 = vmatprep.mubr.bf16.mxu0 0
  %489 = vmatmul.mubr.bf16.gmra.mrb[0].mxu0 %v350
  %v490 = vpop.f32.mrb[0].mxu0
  %v491 = vadd.f32 0.0, %v490
  %v492 = vpop.f32.mrb[0].mxu0
  %v493 = vadd.f32 0.0, %v492
  %v494 = vpop.f32.mrb[0].mxu0
  %v495 = vpop.f32.mrb[0].mxu0
  %496 = vdwg.mxu0
  %497 = vmatprep.subr.bf16.mxu0 0
  %498 = vmatpush1.bf16.msra.mxu0 %v372
  %499 = vmatprep.subr.bf16.mxu0 0
  %500 = vmatpush1.bf16.msra.mxu0 0
  %501 = vmatprep.subr.bf16.mxu0 0
  %502 = vmatpush1.bf16.msra.mxu0 0
  %503 = vmatprep.subr.bf16.mxu0 0
  %504 = vmatpush1.bf16.msra.mxu0 0
  %505 = vmatprep.subr.bf16.mxu0 0
  %506 = vmatpush1.bf16.msra.mxu0 0
  %507 = vmatprep.subr.bf16.mxu0 0
  %508 = vmatpush1.bf16.msra.mxu0 0
  %509 = vmatprep.subr.bf16.mxu0 0
  %510 = vmatpush1.bf16.msra.mxu0 0
  %511 = vmatprep.subr.bf16.mxu0 0
  %512 = vmatpush1.bf16.msra.mxu0 0
  %513 = vmatprep.subr.bf16.mxu0 0
  %514 = vmatpush1.bf16.msra.mxu0 0
  %515 = vmatprep.subr.bf16.mxu0 0
  %516 = vmatpush1.bf16.msra.mxu0 0
  %517 = vmatprep.subr.bf16.mxu0 0
  %518 = vmatpush1.bf16.msra.mxu0 0
  %519 = vmatprep.subr.bf16.mxu0 0
  %520 = vmatpush1.bf16.msra.mxu0 0
  %521 = vmatprep.subr.bf16.mxu0 0
  %522 = vmatpush1.bf16.msra.mxu0 0
  %523 = vmatprep.subr.bf16.mxu0 0
  %524 = vmatpush1.bf16.msra.mxu0 0
  %525 = vmatprep.subr.bf16.mxu0 0
  %526 = vmatpush1.bf16.msra.mxu0 0
  %527 = vmatprep.subr.bf16.mxu0 0
  %528 = vmatpush1.bf16.msra.mxu0 0
  %529 = vmatprep.mubr.bf16.mxu0 0
  %530 = vmatmul.mubr.bf16.gmra.mrb[0].mxu0 %v350
  %v531 = vpop.f32.mrb[0].mxu0
  %v532 = vadd.f32 0.0, %v531
  %v533 = vpop.f32.mrb[0].mxu0
  %v534 = vpop.f32.mrb[0].mxu0
  %v535 = vpop.f32.mrb[0].mxu0
  %536 = vdwg.mxu0
  %v538 = vsel %vm348, %v317, 0
  %v541 = vsel %vm352, %v310, 0
  %v544 = vsel %vm352, %v311, 0
  %v547 = vsel %vm352, %v312, 0
  %v550 = vsel %vm352, %v313, 0
  %v553 = vsel %vm352, %v314, 0
  %v556 = vsel %vm352, %v315, 0
  %v559 = vsel %vm352, %v316, 0
  %561 = vmatprep.subr.bf16.mxu0 %v544
  %562 = vmatpush1.bf16.msra.mxu0 %v541
  %563 = vmatprep.subr.bf16.mxu0 0
  %564 = vmatpush1.bf16.msra.mxu0 0
  %565 = vmatprep.subr.bf16.mxu0 0
  %566 = vmatpush1.bf16.msra.mxu0 0
  %567 = vmatprep.subr.bf16.mxu0 0
  %568 = vmatpush1.bf16.msra.mxu0 0
  %569 = vmatprep.subr.bf16.mxu0 0
  %570 = vmatpush1.bf16.msra.mxu0 0
  %571 = vmatprep.subr.bf16.mxu0 0
  %572 = vmatpush1.bf16.msra.mxu0 0
  %573 = vmatprep.subr.bf16.mxu0 0
  %574 = vmatpush1.bf16.msra.mxu0 0
  %575 = vmatprep.subr.bf16.mxu0 0
  %576 = vmatpush1.bf16.msra.mxu0 0
  %577 = vmatprep.subr.bf16.mxu0 0
  %578 = vmatpush1.bf16.msra.mxu0 0
  %579 = vmatprep.subr.bf16.mxu0 0
  %580 = vmatpush1.bf16.msra.mxu0 0
  %581 = vmatprep.subr.bf16.mxu0 0
  %582 = vmatpush1.bf16.msra.mxu0 0
  %583 = vmatprep.subr.bf16.mxu0 0
  %584 = vmatpush1.bf16.msra.mxu0 0
  %585 = vmatprep.subr.bf16.mxu0 0
  %586 = vmatpush1.bf16.msra.mxu0 0
  %587 = vmatprep.subr.bf16.mxu0 0
  %588 = vmatpush1.bf16.msra.mxu0 0
  %589 = vmatprep.subr.bf16.mxu0 0
  %590 = vmatpush1.bf16.msra.mxu0 0
  %591 = vmatprep.subr.bf16.mxu0 0
  %592 = vmatpush1.bf16.msra.mxu0 0
  %593 = vmatprep.mubr.bf16.mxu0 0
  %594 = vmatmul.mubr.bf16.gmra.mrb[0].mxu0 %v538
  %v595 = vpop.f32.mrb[0].mxu0
  %v596 = vadd.f32 %v409, %v595
  %v597 = vpop.f32.mrb[0].mxu0
  %v598 = vadd.f32 %v411, %v597
  %v599 = vpop.f32.mrb[0].mxu0
  %v600 = vpop.f32.mrb[0].mxu0
  %601 = vdwg.mxu0
  %602 = vmatprep.subr.bf16.mxu0 %v550
  %603 = vmatpush1.bf16.msra.mxu0 %v547
  %604 = vmatprep.subr.bf16.mxu0 0
  %605 = vmatpush1.bf16.msra.mxu0 0
  %606 = vmatprep.subr.bf16.mxu0 0
  %607 = vmatpush1.bf16.msra.mxu0 0
  %608 = vmatprep.subr.bf16.mxu0 0
  %609 = vmatpush1.bf16.msra.mxu0 0
  %610 = vmatprep.subr.bf16.mxu0 0
  %611 = vmatpush1.bf16.msra.mxu0 0
  %612 = vmatprep.subr.bf16.mxu0 0
  %613 = vmatpush1.bf16.msra.mxu0 0
  %614 = vmatprep.subr.bf16.mxu0 0
  %615 = vmatpush1.bf16.msra.mxu0 0
  %616 = vmatprep.subr.bf16.mxu0 0
  %617 = vmatpush1.bf16.msra.mxu0 0
  %618 = vmatprep.subr.bf16.mxu0 0
  %619 = vmatpush1.bf16.msra.mxu0 0
  %620 = vmatprep.subr.bf16.mxu0 0
  %621 = vmatpush1.bf16.msra.mxu0 0
  %622 = vmatprep.subr.bf16.mxu0 0
  %623 = vmatpush1.bf16.msra.mxu0 0
  %624 = vmatprep.subr.bf16.mxu0 0
  %625 = vmatpush1.bf16.msra.mxu0 0
  %626 = vmatprep.subr.bf16.mxu0 0
  %627 = vmatpush1.bf16.msra.mxu0 0
  %628 = vmatprep.subr.bf16.mxu0 0
  %629 = vmatpush1.bf16.msra.mxu0 0
  %630 = vmatprep.subr.bf16.mxu0 0
  %631 = vmatpush1.bf16.msra.mxu0 0
  %632 = vmatprep.subr.bf16.mxu0 0
  %633 = vmatpush1.bf16.msra.mxu0 0
  %634 = vmatprep.mubr.bf16.mxu0 0
  %635 = vmatmul.mubr.bf16.gmra.mrb[0].mxu0 %v538
  %v636 = vpop.f32.mrb[0].mxu0
  %v637 = vadd.f32 %v450, %v636
  %v638 = vpop.f32.mrb[0].mxu0
  %v639 = vadd.f32 %v452, %v638
  %v640 = vpop.f32.mrb[0].mxu0
  %v641 = vpop.f32.mrb[0].mxu0
  %642 = vdwg.mxu0
  %643 = vmatprep.subr.bf16.mxu0 %v556
  %644 = vmatpush1.bf16.msra.mxu0 %v553
  %645 = vmatprep.subr.bf16.mxu0 0
  %646 = vmatpush1.bf16.msra.mxu0 0
  %647 = vmatprep.subr.bf16.mxu0 0
  %648 = vmatpush1.bf16.msra.mxu0 0
  %649 = vmatprep.subr.bf16.mxu0 0
  %650 = vmatpush1.bf16.msra.mxu0 0
  %651 = vmatprep.subr.bf16.mxu0 0
  %652 = vmatpush1.bf16.msra.mxu0 0
  %653 = vmatprep.subr.bf16.mxu0 0
  %654 = vmatpush1.bf16.msra.mxu0 0
  %655 = vmatprep.subr.bf16.mxu0 0
  %656 = vmatpush1.bf16.msra.mxu0 0
  %657 = vmatprep.subr.bf16.mxu0 0
  %658 = vmatpush1.bf16.msra.mxu0 0
  %659 = vmatprep.subr.bf16.mxu0 0
  %660 = vmatpush1.bf16.msra.mxu0 0
  %661 = vmatprep.subr.bf16.mxu0 0
  %662 = vmatpush1.bf16.msra.mxu0 0
  %663 = vmatprep.subr.bf16.mxu0 0
  %664 = vmatpush1.bf16.msra.mxu0 0
  %665 = vmatprep.subr.bf16.mxu0 0
  %666 = vmatpush1.bf16.msra.mxu0 0
  %667 = vmatprep.subr.bf16.mxu0 0
  %668 = vmatpush1.bf16.msra.mxu0 0
  %669 = vmatprep.subr.bf16.mxu0 0
  %670 = vmatpush1.bf16.msra.mxu0 0
  %671 = vmatprep.subr.bf16.mxu0 0
  %672 = vmatpush1.bf16.msra.mxu0 0
  %673 = vmatprep.subr.bf16.mxu0 0
  %674 = vmatpush1.bf16.msra.mxu0 0
  %675 = vmatprep.mubr.bf16.mxu0 0
  %676 = vmatmul.mubr.bf16.gmra.mrb[0].mxu0 %v538
  %v677 = vpop.f32.mrb[0].mxu0
  %v678 = vadd.f32 %v491, %v677
  %v679 = vpop.f32.mrb[0].mxu0
  %v680 = vadd.f32 %v493, %v679
  %v681 = vpop.f32.mrb[0].mxu0
  %v682 = vpop.f32.mrb[0].mxu0
  %683 = vdwg.mxu0
  %684 = vmatprep.subr.bf16.mxu0 0
  %685 = vmatpush1.bf16.msra.mxu0 %v559
  %686 = vmatprep.subr.bf16.mxu0 0
  %687 = vmatpush1.bf16.msra.mxu0 0
  %688 = vmatprep.subr.bf16.mxu0 0
  %689 = vmatpush1.bf16.msra.mxu0 0
  %690 = vmatprep.subr.bf16.mxu0 0
  %691 = vmatpush1.bf16.msra.mxu0 0
  %692 = vmatprep.subr.bf16.mxu0 0
  %693 = vmatpush1.bf16.msra.mxu0 0
  %694 = vmatprep.subr.bf16.mxu0 0
  %695 = vmatpush1.bf16.msra.mxu0 0
  %696 = vmatprep.subr.bf16.mxu0 0
  %697 = vmatpush1.bf16.msra.mxu0 0
  %698 = vmatprep.subr.bf16.mxu0 0
  %699 = vmatpush1.bf16.msra.mxu0 0
  %700 = vmatprep.subr.bf16.mxu0 0
  %701 = vmatpush1.bf16.msra.mxu0 0
  %702 = vmatprep.subr.bf16.mxu0 0
  %703 = vmatpush1.bf16.msra.mxu0 0
  %704 = vmatprep.subr.bf16.mxu0 0
  %705 = vmatpush1.bf16.msra.mxu0 0
  %706 = vmatprep.subr.bf16.mxu0 0
  %707 = vmatpush1.bf16.msra.mxu0 0
  %708 = vmatprep.subr.bf16.mxu0 0
  %709 = vmatpush1.bf16.msra.mxu0 0
  %710 = vmatprep.subr.bf16.mxu0 0
  %711 = vmatpush1.bf16.msra.mxu0 0
  %712 = vmatprep.subr.bf16.mxu0 0
  %713 = vmatpush1.bf16.msra.mxu0 0
  %714 = vmatprep.subr.bf16.mxu0 0
  %715 = vmatpush1.bf16.msra.mxu0 0
  %716 = vmatprep.mubr.bf16.mxu0 0
  %717 = vmatmul.mubr.bf16.gmra.mrb[0].mxu0 %v538
  %v718 = vpop.f32.mrb[0].mxu0
  %v719 = vadd.f32 %v532, %v718
  %v720 = vpop.f32.mrb[0].mxu0
  %v721 = vpop.f32.mrb[0].mxu0
  %v722 = vpop.f32.mrb[0].mxu0
  %723 = vdwg.mxu0
  %s724 = scalar_lea.vmem %s2, 8
  %v725 = vld [vmem:[%s724] sm:$0xf]
  %726 = vrot.lane.b32.xlu0 %v310, 126
  %v727 = vpop.permute.xlu0 %726
  %728 = vrot.lane.b32.xlu0 %v311, 126
  %v729 = vpop.permute.xlu0 %728
  %730 = vrot.lane.b32.xlu0 %v312, 126
  %v731 = vpop.permute.xlu0 %730
  %732 = vrot.lane.b32.xlu0 %v313, 126
  %v733 = vpop.permute.xlu0 %732
  %734 = vrot.lane.b32.xlu0 %v314, 126
  %v735 = vpop.permute.xlu0 %734
  %736 = vrot.lane.b32.xlu0 %v315, 126
  %v737 = vpop.permute.xlu0 %736
  %738 = vrot.lane.b32.xlu0 %v316, 126
  %v739 = vpop.permute.xlu0 %738
  %vm740 = vcmask 1031168
  %v741 = vsel %vm740, %v727, %v729
  %v742 = vsel %vm740, %v729, %v731
  %v743 = vsel %vm740, %v731, %v733
  %v744 = vsel %vm740, %v733, %v735
  %v745 = vsel %vm740, %v735, %v737
  %v746 = vsel %vm740, %v737, %v739
  %v748 = vsel %vm348, %v725, 0
  %v751 = vsel %vm352, %v741, 0
  %v754 = vsel %vm352, %v742, 0
  %v757 = vsel %vm352, %v743, 0
  %v760 = vsel %vm352, %v744, 0
  %v763 = vsel %vm352, %v745, 0
  %v766 = vsel %vm352, %v746, 0
  %v769 = vsel %vm352, %v739, 0
  %771 = vmatprep.subr.bf16.mxu0 %v754
  %772 = vmatpush1.bf16.msra.mxu0 %v751
  %773 = vmatprep.subr.bf16.mxu0 0
  %774 = vmatpush1.bf16.msra.mxu0 0
  %775 = vmatprep.subr.bf16.mxu0 0
  %776 = vmatpush1.bf16.msra.mxu0 0
  %777 = vmatprep.subr.bf16.mxu0 0
  %778 = vmatpush1.bf16.msra.mxu0 0
  %779 = vmatprep.subr.bf16.mxu0 0
  %780 = vmatpush1.bf16.msra.mxu0 0
  %781 = vmatprep.subr.bf16.mxu0 0
  %782 = vmatpush1.bf16.msra.mxu0 0
  %783 = vmatprep.subr.bf16.mxu0 0
  %784 = vmatpush1.bf16.msra.mxu0 0
  %785 = vmatprep.subr.bf16.mxu0 0
  %786 = vmatpush1.bf16.msra.mxu0 0
  %787 = vmatprep.subr.bf16.mxu0 0
  %788 = vmatpush1.bf16.msra.mxu0 0
  %789 = vmatprep.subr.bf16.mxu0 0
  %790 = vmatpush1.bf16.msra.mxu0 0
  %791 = vmatprep.subr.bf16.mxu0 0
  %792 = vmatpush1.bf16.msra.mxu0 0
  %793 = vmatprep.subr.bf16.mxu0 0
  %794 = vmatpush1.bf16.msra.mxu0 0
  %795 = vmatprep.subr.bf16.mxu0 0
  %796 = vmatpush1.bf16.msra.mxu0 0
  %797 = vmatprep.subr.bf16.mxu0 0
  %798 = vmatpush1.bf16.msra.mxu0 0
  %799 = vmatprep.subr.bf16.mxu0 0
  %800 = vmatpush1.bf16.msra.mxu0 0
  %801 = vmatprep.subr.bf16.mxu0 0
  %802 = vmatpush1.bf16.msra.mxu0 0
  %803 = vmatprep.mubr.bf16.mxu0 0
  %804 = vmatmul.mubr.bf16.gmra.mrb[0].mxu0 %v748
  %v805 = vpop.f32.mrb[0].mxu0
  %v806 = vadd.f32 0.0, %v805
  %v807 = vpop.f32.mrb[0].mxu0
  %v808 = vadd.f32 0.0, %v807
  %v809 = vpop.f32.mrb[0].mxu0
  %v810 = vpop.f32.mrb[0].mxu0
  %811 = vdwg.mxu0
  %812 = vmatprep.subr.bf16.mxu0 %v760
  %813 = vmatpush1.bf16.msra.mxu0 %v757
  %814 = vmatprep.subr.bf16.mxu0 0
  %815 = vmatpush1.bf16.msra.mxu0 0
  %816 = vmatprep.subr.bf16.mxu0 0
  %817 = vmatpush1.bf16.msra.mxu0 0
  %818 = vmatprep.subr.bf16.mxu0 0
  %819 = vmatpush1.bf16.msra.mxu0 0
  %820 = vmatprep.subr.bf16.mxu0 0
  %821 = vmatpush1.bf16.msra.mxu0 0
  %822 = vmatprep.subr.bf16.mxu0 0
  %823 = vmatpush1.bf16.msra.mxu0 0
  %824 = vmatprep.subr.bf16.mxu0 0
  %825 = vmatpush1.bf16.msra.mxu0 0
  %826 = vmatprep.subr.bf16.mxu0 0
  %827 = vmatpush1.bf16.msra.mxu0 0
  %828 = vmatprep.subr.bf16.mxu0 0
  %829 = vmatpush1.bf16.msra.mxu0 0
  %830 = vmatprep.subr.bf16.mxu0 0
  %831 = vmatpush1.bf16.msra.mxu0 0
  %832 = vmatprep.subr.bf16.mxu0 0
  %833 = vmatpush1.bf16.msra.mxu0 0
  %834 = vmatprep.subr.bf16.mxu0 0
  %835 = vmatpush1.bf16.msra.mxu0 0
  %836 = vmatprep.subr.bf16.mxu0 0
  %837 = vmatpush1.bf16.msra.mxu0 0
  %838 = vmatprep.subr.bf16.mxu0 0
  %839 = vmatpush1.bf16.msra.mxu0 0
  %840 = vmatprep.subr.bf16.mxu0 0
  %841 = vmatpush1.bf16.msra.mxu0 0
  %842 = vmatprep.subr.bf16.mxu0 0
  %843 = vmatpush1.bf16.msra.mxu0 0
  %844 = vmatprep.mubr.bf16.mxu0 0
  %845 = vmatmul.mubr.bf16.gmra.mrb[0].mxu0 %v748
  %v846 = vpop.f32.mrb[0].mxu0
  %v847 = vadd.f32 0.0, %v846
  %v848 = vpop.f32.mrb[0].mxu0
  %v849 = vadd.f32 0.0, %v848
  %v850 = vpop.f32.mrb[0].mxu0
  %v851 = vpop.f32.mrb[0].mxu0
  %852 = vdwg.mxu0
  %853 = vmatprep.subr.bf16.mxu0 %v766
  %854 = vmatpush1.bf16.msra.mxu0 %v763
  %855 = vmatprep.subr.bf16.mxu0 0
  %856 = vmatpush1.bf16.msra.mxu0 0
  %857 = vmatprep.subr.bf16.mxu0 0
  %858 = vmatpush1.bf16.msra.mxu0 0
  %859 = vmatprep.subr.bf16.mxu0 0
  %860 = vmatpush1.bf16.msra.mxu0 0
  %861 = vmatprep.subr.bf16.mxu0 0
  %862 = vmatpush1.bf16.msra.mxu0 0
  %863 = vmatprep.subr.bf16.mxu0 0
  %864 = vmatpush1.bf16.msra.mxu0 0
  %865 = vmatprep.subr.bf16.mxu0 0
  %866 = vmatpush1.bf16.msra.mxu0 0
  %867 = vmatprep.subr.bf16.mxu0 0
  %868 = vmatpush1.bf16.msra.mxu0 0
  %869 = vmatprep.subr.bf16.mxu0 0
  %870 = vmatpush1.bf16.msra.mxu0 0
  %871 = vmatprep.subr.bf16.mxu0 0
  %872 = vmatpush1.bf16.msra.mxu0 0
  %873 = vmatprep.subr.bf16.mxu0 0
  %874 = vmatpush1.bf16.msra.mxu0 0
  %875 = vmatprep.subr.bf16.mxu0 0
  %876 = vmatpush1.bf16.msra.mxu0 0
  %877 = vmatprep.subr.bf16.mxu0 0
  %878 = vmatpush1.bf16.msra.mxu0 0
  %879 = vmatprep.subr.bf16.mxu0 0
  %880 = vmatpush1.bf16.msra.mxu0 0
  %881 = vmatprep.subr.bf16.mxu0 0
  %882 = vmatpush1.bf16.msra.mxu0 0
  %883 = vmatprep.subr.bf16.mxu0 0
  %884 = vmatpush1.bf16.msra.mxu0 0
  %885 = vmatprep.mubr.bf16.mxu0 0
  %886 = vmatmul.mubr.bf16.gmra.mrb[0].mxu0 %v748
  %v887 = vpop.f32.mrb[0].mxu0
  %v888 = vadd.f32 0.0, %v887
  %v889 = vpop.f32.mrb[0].mxu0
  %v890 = vadd.f32 0.0, %v889
  %v891 = vpop.f32.mrb[0].mxu0
  %v892 = vpop.f32.mrb[0].mxu0
  %893 = vdwg.mxu0
  %894 = vmatprep.subr.bf16.mxu0 0
  %895 = vmatpush1.bf16.msra.mxu0 %v769
  %896 = vmatprep.subr.bf16.mxu0 0
  %897 = vmatpush1.bf16.msra.mxu0 0
  %898 = vmatprep.subr.bf16.mxu0 0
  %899 = vmatpush1.bf16.msra.mxu0 0
  %900 = vmatprep.subr.bf16.mxu0 0
  %901 = vmatpush1.bf16.msra.mxu0 0
  %902 = vmatprep.subr.bf16.mxu0 0
  %903 = vmatpush1.bf16.msra.mxu0 0
  %904 = vmatprep.subr.bf16.mxu0 0
  %905 = vmatpush1.bf16.msra.mxu0 0
  %906 = vmatprep.subr.bf16.mxu0 0
  %907 = vmatpush1.bf16.msra.mxu0 0
  %908 = vmatprep.subr.bf16.mxu0 0
  %909 = vmatpush1.bf16.msra.mxu0 0
  %910 = vmatprep.subr.bf16.mxu0 0
  %911 = vmatpush1.bf16.msra.mxu0 0
  %912 = vmatprep.subr.bf16.mxu0 0
  %913 = vmatpush1.bf16.msra.mxu0 0
  %914 = vmatprep.subr.bf16.mxu0 0
  %915 = vmatpush1.bf16.msra.mxu0 0
  %916 = vmatprep.subr.bf16.mxu0 0
  %917 = vmatpush1.bf16.msra.mxu0 0
  %918 = vmatprep.subr.bf16.mxu0 0
  %919 = vmatpush1.bf16.msra.mxu0 0
  %920 = vmatprep.subr.bf16.mxu0 0
  %921 = vmatpush1.bf16.msra.mxu0 0
  %922 = vmatprep.subr.bf16.mxu0 0
  %923 = vmatpush1.bf16.msra.mxu0 0
  %924 = vmatprep.subr.bf16.mxu0 0
  %925 = vmatpush1.bf16.msra.mxu0 0
  %926 = vmatprep.mubr.bf16.mxu0 0
  %927 = vmatmul.mubr.bf16.gmra.mrb[0].mxu0 %v748
  %v928 = vpop.f32.mrb[0].mxu0
  %v929 = vadd.f32 0.0, %v928
  %v930 = vpop.f32.mrb[0].mxu0
  %v931 = vpop.f32.mrb[0].mxu0
  %v932 = vpop.f32.mrb[0].mxu0
  %933 = vdwg.mxu0
  %v934 = vadd.f32 %v596, %v806
  %v935 = vadd.f32 %v598, %v808
  %v936 = vadd.f32 %v637, %v847
  %v937 = vadd.f32 %v639, %v849
  %v938 = vadd.f32 %v678, %v888
  %v939 = vadd.f32 %v680, %v890
  %v940 = vadd.f32 %v719, %v929
  %s941 = scalar_lea.vmem %s2, 12
  %v942 = vld [vmem:[%s941] sm:$0xf]
  %943 = vrot.lane.b32.xlu0 %v310, 108
  %v944 = vpop.permute.xlu0 %943
  %945 = vrot.lane.b32.xlu0 %v311, 108
  %v946 = vpop.permute.xlu0 %945
  %947 = vrot.lane.b32.xlu0 %v312, 108
  %v948 = vpop.permute.xlu0 %947
  %949 = vrot.lane.b32.xlu0 %v313, 108
  %v950 = vpop.permute.xlu0 %949
  %951 = vrot.lane.b32.xlu0 %v314, 108
  %v952 = vpop.permute.xlu0 %951
  %953 = vrot.lane.b32.xlu0 %v315, 108
  %v954 = vpop.permute.xlu0 %953
  %955 = vrot.lane.b32.xlu0 %v316, 108
  %v956 = vpop.permute.xlu0 %955
  %vm957 = vcmask 883712
  %v958 = vsel %vm957, %v944, %v946
  %v959 = vsel %vm957, %v946, %v948
  %v960 = vsel %vm957, %v948, %v950
  %v961 = vsel %vm957, %v950, %v952
  %v962 = vsel %vm957, %v952, %v954
  %v963 = vsel %vm957, %v954, %v956
  %v965 = vsel %vm348, %v942, 0
  %v968 = vsel %vm352, %v958, 0
  %v971 = vsel %vm352, %v959, 0
  %v974 = vsel %vm352, %v960, 0
  %v977 = vsel %vm352, %v961, 0
  %v980 = vsel %vm352, %v962, 0
  %v983 = vsel %vm352, %v963, 0
  %v986 = vsel %vm352, %v956, 0
  %988 = vmatprep.subr.bf16.mxu0 %v971
  %989 = vmatpush1.bf16.msra.mxu0 %v968
  %990 = vmatprep.subr.bf16.mxu0 0
  %991 = vmatpush1.bf16.msra.mxu0 0
  %992 = vmatprep.subr.bf16.mxu0 0
  %993 = vmatpush1.bf16.msra.mxu0 0
  %994 = vmatprep.subr.bf16.mxu0 0
  %995 = vmatpush1.bf16.msra.mxu0 0
  %996 = vmatprep.subr.bf16.mxu0 0
  %997 = vmatpush1.bf16.msra.mxu0 0
  %998 = vmatprep.subr.bf16.mxu0 0
  %999 = vmatpush1.bf16.msra.mxu0 0
  %1000 = vmatprep.subr.bf16.mxu0 0
  %1001 = vmatpush1.bf16.msra.mxu0 0
  %1002 = vmatprep.subr.bf16.mxu0 0
  %1003 = vmatpush1.bf16.msra.mxu0 0
  %1004 = vmatprep.subr.bf16.mxu0 0
  %1005 = vmatpush1.bf16.msra.mxu0 0
  %1006 = vmatprep.subr.bf16.mxu0 0
  %1007 = vmatpush1.bf16.msra.mxu0 0
  %1008 = vmatprep.subr.bf16.mxu0 0
  %1009 = vmatpush1.bf16.msra.mxu0 0
  %1010 = vmatprep.subr.bf16.mxu0 0
  %1011 = vmatpush1.bf16.msra.mxu0 0
  %1012 = vmatprep.subr.bf16.mxu0 0
  %1013 = vmatpush1.bf16.msra.mxu0 0
  %1014 = vmatprep.subr.bf16.mxu0 0
  %1015 = vmatpush1.bf16.msra.mxu0 0
  %1016 = vmatprep.subr.bf16.mxu0 0
  %1017 = vmatpush1.bf16.msra.mxu0 0
  %1018 = vmatprep.subr.bf16.mxu0 0
  %1019 = vmatpush1.bf16.msra.mxu0 0
  %1020 = vmatprep.mubr.bf16.mxu0 0
  %1021 = vmatmul.mubr.bf16.gmra.mrb[0].mxu0 %v965
  %v1022 = vpop.f32.mrb[0].mxu0
  %v1023 = vadd.f32 0.0, %v1022
  %v1024 = vpop.f32.mrb[0].mxu0
  %v1025 = vadd.f32 0.0, %v1024
  %v1026 = vpop.f32.mrb[0].mxu0
  %v1027 = vpop.f32.mrb[0].mxu0
  %1028 = vdwg.mxu0
  %1029 = vmatprep.subr.bf16.mxu0 %v977
  %1030 = vmatpush1.bf16.msra.mxu0 %v974
  %1031 = vmatprep.subr.bf16.mxu0 0
  %1032 = vmatpush1.bf16.msra.mxu0 0
  %1033 = vmatprep.subr.bf16.mxu0 0
  %1034 = vmatpush1.bf16.msra.mxu0 0
  %1035 = vmatprep.subr.bf16.mxu0 0
  %1036 = vmatpush1.bf16.msra.mxu0 0
  %1037 = vmatprep.subr.bf16.mxu0 0
  %1038 = vmatpush1.bf16.msra.mxu0 0
  %1039 = vmatprep.subr.bf16.mxu0 0
  %1040 = vmatpush1.bf16.msra.mxu0 0
  %1041 = vmatprep.subr.bf16.mxu0 0
  %1042 = vmatpush1.bf16.msra.mxu0 0
  %1043 = vmatprep.subr.bf16.mxu0 0
  %1044 = vmatpush1.bf16.msra.mxu0 0
  %1045 = vmatprep.subr.bf16.mxu0 0
  %1046 = vmatpush1.bf16.msra.mxu0 0
  %1047 = vmatprep.subr.bf16.mxu0 0
  %1048 = vmatpush1.bf16.msra.mxu0 0
  %1049 = vmatprep.subr.bf16.mxu0 0
  %1050 = vmatpush1.bf16.msra.mxu0 0
  %1051 = vmatprep.subr.bf16.mxu0 0
  %1052 = vmatpush1.bf16.msra.mxu0 0
  %1053 = vmatprep.subr.bf16.mxu0 0
  %1054 = vmatpush1.bf16.msra.mxu0 0
  %1055 = vmatprep.subr.bf16.mxu0 0
  %1056 = vmatpush1.bf16.msra.mxu0 0
  %1057 = vmatprep.subr.bf16.mxu0 0
  %1058 = vmatpush1.bf16.msra.mxu0 0
  %1059 = vmatprep.subr.bf16.mxu0 0
  %1060 = vmatpush1.bf16.msra.mxu0 0
  %1061 = vmatprep.mubr.bf16.mxu0 0
  %1062 = vmatmul.mubr.bf16.gmra.mrb[0].mxu0 %v965
  %v1063 = vpop.f32.mrb[0].mxu0
  %v1064 = vadd.f32 0.0, %v1063
  %v1065 = vpop.f32.mrb[0].mxu0
  %v1066 = vadd.f32 0.0, %v1065
  %v1067 = vpop.f32.mrb[0].mxu0
  %v1068 = vpop.f32.mrb[0].mxu0
  %1069 = vdwg.mxu0
  %1070 = vmatprep.subr.bf16.mxu0 %v983
  %1071 = vmatpush1.bf16.msra.mxu0 %v980
  %1072 = vmatprep.subr.bf16.mxu0 0
  %1073 = vmatpush1.bf16.msra.mxu0 0
  %1074 = vmatprep.subr.bf16.mxu0 0
  %1075 = vmatpush1.bf16.msra.mxu0 0
  %1076 = vmatprep.subr.bf16.mxu0 0
  %1077 = vmatpush1.bf16.msra.mxu0 0
  %1078 = vmatprep.subr.bf16.mxu0 0
  %1079 = vmatpush1.bf16.msra.mxu0 0
  %1080 = vmatprep.subr.bf16.mxu0 0
  %1081 = vmatpush1.bf16.msra.mxu0 0
  %1082 = vmatprep.subr.bf16.mxu0 0
  %1083 = vmatpush1.bf16.msra.mxu0 0
  %1084 = vmatprep.subr.bf16.mxu0 0
  %1085 = vmatpush1.bf16.msra.mxu0 0
  %1086 = vmatprep.subr.bf16.mxu0 0
  %1087 = vmatpush1.bf16.msra.mxu0 0
  %1088 = vmatprep.subr.bf16.mxu0 0
  %1089 = vmatpush1.bf16.msra.mxu0 0
  %1090 = vmatprep.subr.bf16.mxu0 0
  %1091 = vmatpush1.bf16.msra.mxu0 0
  %1092 = vmatprep.subr.bf16.mxu0 0
  %1093 = vmatpush1.bf16.msra.mxu0 0
  %1094 = vmatprep.subr.bf16.mxu0 0
  %1095 = vmatpush1.bf16.msra.mxu0 0
  %1096 = vmatprep.subr.bf16.mxu0 0
  %1097 = vmatpush1.bf16.msra.mxu0 0
  %1098 = vmatprep.subr.bf16.mxu0 0
  %1099 = vmatpush1.bf16.msra.mxu0 0
  %1100 = vmatprep.subr.bf16.mxu0 0
  %1101 = vmatpush1.bf16.msra.mxu0 0
  %1102 = vmatprep.mubr.bf16.mxu0 0
  %1103 = vmatmul.mubr.bf16.gmra.mrb[0].mxu0 %v965
  %v1104 = vpop.f32.mrb[0].mxu0
  %v1105 = vadd.f32 0.0, %v1104
  %v1106 = vpop.f32.mrb[0].mxu0
  %v1107 = vadd.f32 0.0, %v1106
  %v1108 = vpop.f32.mrb[0].mxu0
  %v1109 = vpop.f32.mrb[0].mxu0
  %1110 = vdwg.mxu0
  %1111 = vmatprep.subr.bf16.mxu0 0
  %1112 = vmatpush1.bf16.msra.mxu0 %v986
  %1113 = vmatprep.subr.bf16.mxu0 0
  %1114 = vmatpush1.bf16.msra.mxu0 0
  %1115 = vmatprep.subr.bf16.mxu0 0
  %1116 = vmatpush1.bf16.msra.mxu0 0
  %1117 = vmatprep.subr.bf16.mxu0 0
  %1118 = vmatpush1.bf16.msra.mxu0 0
  %1119 = vmatprep.subr.bf16.mxu0 0
  %1120 = vmatpush1.bf16.msra.mxu0 0
  %1121 = vmatprep.subr.bf16.mxu0 0
  %1122 = vmatpush1.bf16.msra.mxu0 0
  %1123 = vmatprep.subr.bf16.mxu0 0
  %1124 = vmatpush1.bf16.msra.mxu0 0
  %1125 = vmatprep.subr.bf16.mxu0 0
  %1126 = vmatpush1.bf16.msra.mxu0 0
  %1127 = vmatprep.subr.bf16.mxu0 0
  %1128 = vmatpush1.bf16.msra.mxu0 0
  %1129 = vmatprep.subr.bf16.mxu0 0
  %1130 = vmatpush1.bf16.msra.mxu0 0
  %1131 = vmatprep.subr.bf16.mxu0 0
  %1132 = vmatpush1.bf16.msra.mxu0 0
  %1133 = vmatprep.subr.bf16.mxu0 0
  %1134 = vmatpush1.bf16.msra.mxu0 0
  %1135 = vmatprep.subr.bf16.mxu0 0
  %1136 = vmatpush1.bf16.msra.mxu0 0
  %1137 = vmatprep.subr.bf16.mxu0 0
  %1138 = vmatpush1.bf16.msra.mxu0 0
  %1139 = vmatprep.subr.bf16.mxu0 0
  %1140 = vmatpush1.bf16.msra.mxu0 0
  %1141 = vmatprep.subr.bf16.mxu0 0
  %1142 = vmatpush1.bf16.msra.mxu0 0
  %1143 = vmatprep.mubr.bf16.mxu0 0
  %1144 = vmatmul.mubr.bf16.gmra.mrb[0].mxu0 %v965
  %v1145 = vpop.f32.mrb[0].mxu0
  %v1146 = vadd.f32 0.0, %v1145
  %v1147 = vpop.f32.mrb[0].mxu0
  %v1148 = vpop.f32.mrb[0].mxu0
  %v1149 = vpop.f32.mrb[0].mxu0
  %1150 = vdwg.mxu0
  %v1151 = vadd.f32 %v934, %v1023
  %v1152 = vadd.f32 %v935, %v1025
  %v1153 = vadd.f32 %v936, %v1064
  %v1154 = vadd.f32 %v937, %v1066
  %v1155 = vadd.f32 %v938, %v1105
  %v1156 = vadd.f32 %v939, %v1107
  %v1157 = vadd.f32 %v940, %v1146
  %s1158 = scalar_lea.vmem %s2, 16
  %v1159 = vld [vmem:[%s1158] sm:$0xf]
  %1160 = vrot.lane.b32.xlu0 %v310, 107
  %v1161 = vpop.permute.xlu0 %1160
  %1162 = vrot.lane.b32.xlu0 %v311, 107
  %v1163 = vpop.permute.xlu0 %1162
  %1164 = vrot.lane.b32.xlu0 %v312, 107
  %v1165 = vpop.permute.xlu0 %1164
  %1166 = vrot.lane.b32.xlu0 %v313, 107
  %v1167 = vpop.permute.xlu0 %1166
  %1168 = vrot.lane.b32.xlu0 %v314, 107
  %v1169 = vpop.permute.xlu0 %1168
  %1170 = vrot.lane.b32.xlu0 %v315, 107
  %v1171 = vpop.permute.xlu0 %1170
  %1172 = vrot.lane.b32.xlu0 %v316, 107
  %v1173 = vpop.permute.xlu0 %1172
  %vm1174 = vcmask 875520
  %v1175 = vsel %vm1174, %v1161, %v1163
  %v1176 = vsel %vm1174, %v1163, %v1165
  %v1177 = vsel %vm1174, %v1165, %v1167
  %v1178 = vsel %vm1174, %v1167, %v1169
  %v1179 = vsel %vm1174, %v1169, %v1171
  %v1180 = vsel %vm1174, %v1171, %v1173
  %v1182 = vsel %vm348, %v1159, 0
  %v1185 = vsel %vm352, %v1175, 0
  %v1188 = vsel %vm352, %v1176, 0
  %v1191 = vsel %vm352, %v1177, 0
  %v1194 = vsel %vm352, %v1178, 0
  %v1197 = vsel %vm352, %v1179, 0
  %v1200 = vsel %vm352, %v1180, 0
  %v1203 = vsel %vm352, %v1173, 0
  %1205 = vmatprep.subr.bf16.mxu0 %v1188
  %1206 = vmatpush1.bf16.msra.mxu0 %v1185
  %1207 = vmatprep.subr.bf16.mxu0 0
  %1208 = vmatpush1.bf16.msra.mxu0 0
  %1209 = vmatprep.subr.bf16.mxu0 0
  %1210 = vmatpush1.bf16.msra.mxu0 0
  %1211 = vmatprep.subr.bf16.mxu0 0
  %1212 = vmatpush1.bf16.msra.mxu0 0
  %1213 = vmatprep.subr.bf16.mxu0 0
  %1214 = vmatpush1.bf16.msra.mxu0 0
  %1215 = vmatprep.subr.bf16.mxu0 0
  %1216 = vmatpush1.bf16.msra.mxu0 0
  %1217 = vmatprep.subr.bf16.mxu0 0
  %1218 = vmatpush1.bf16.msra.mxu0 0
  %1219 = vmatprep.subr.bf16.mxu0 0
  %1220 = vmatpush1.bf16.msra.mxu0 0
  %1221 = vmatprep.subr.bf16.mxu0 0
  %1222 = vmatpush1.bf16.msra.mxu0 0
  %1223 = vmatprep.subr.bf16.mxu0 0
  %1224 = vmatpush1.bf16.msra.mxu0 0
  %1225 = vmatprep.subr.bf16.mxu0 0
  %1226 = vmatpush1.bf16.msra.mxu0 0
  %1227 = vmatprep.subr.bf16.mxu0 0
  %1228 = vmatpush1.bf16.msra.mxu0 0
  %1229 = vmatprep.subr.bf16.mxu0 0
  %1230 = vmatpush1.bf16.msra.mxu0 0
  %1231 = vmatprep.subr.bf16.mxu0 0
  %1232 = vmatpush1.bf16.msra.mxu0 0
  %1233 = vmatprep.subr.bf16.mxu0 0
  %1234 = vmatpush1.bf16.msra.mxu0 0
  %1235 = vmatprep.subr.bf16.mxu0 0
  %1236 = vmatpush1.bf16.msra.mxu0 0
  %1237 = vmatprep.mubr.bf16.mxu0 0
  %1238 = vmatmul.mubr.bf16.gmra.mrb[0].mxu0 %v1182
  %v1239 = vpop.f32.mrb[0].mxu0
  %v1240 = vadd.f32 0.0, %v1239
  %v1241 = vpop.f32.mrb[0].mxu0
  %v1242 = vadd.f32 0.0, %v1241
  %v1243 = vpop.f32.mrb[0].mxu0
  %v1244 = vpop.f32.mrb[0].mxu0
  %1245 = vdwg.mxu0
  %1246 = vmatprep.subr.bf16.mxu0 %v1194
  %1247 = vmatpush1.bf16.msra.mxu0 %v1191
  %1248 = vmatprep.subr.bf16.mxu0 0
  %1249 = vmatpush1.bf16.msra.mxu0 0
  %1250 = vmatprep.subr.bf16.mxu0 0
  %1251 = vmatpush1.bf16.msra.mxu0 0
  %1252 = vmatprep.subr.bf16.mxu0 0
  %1253 = vmatpush1.bf16.msra.mxu0 0
  %1254 = vmatprep.subr.bf16.mxu0 0
  %1255 = vmatpush1.bf16.msra.mxu0 0
  %1256 = vmatprep.subr.bf16.mxu0 0
  %1257 = vmatpush1.bf16.msra.mxu0 0
  %1258 = vmatprep.subr.bf16.mxu0 0
  %1259 = vmatpush1.bf16.msra.mxu0 0
  %1260 = vmatprep.subr.bf16.mxu0 0
  %1261 = vmatpush1.bf16.msra.mxu0 0
  %1262 = vmatprep.subr.bf16.mxu0 0
  %1263 = vmatpush1.bf16.msra.mxu0 0
  %1264 = vmatprep.subr.bf16.mxu0 0
  %1265 = vmatpush1.bf16.msra.mxu0 0
  %1266 = vmatprep.subr.bf16.mxu0 0
  %1267 = vmatpush1.bf16.msra.mxu0 0
  %1268 = vmatprep.subr.bf16.mxu0 0
  %1269 = vmatpush1.bf16.msra.mxu0 0
  %1270 = vmatprep.subr.bf16.mxu0 0
  %1271 = vmatpush1.bf16.msra.mxu0 0
  %1272 = vmatprep.subr.bf16.mxu0 0
  %1273 = vmatpush1.bf16.msra.mxu0 0
  %1274 = vmatprep.subr.bf16.mxu0 0
  %1275 = vmatpush1.bf16.msra.mxu0 0
  %1276 = vmatprep.subr.bf16.mxu0 0
  %1277 = vmatpush1.bf16.msra.mxu0 0
  %1278 = vmatprep.mubr.bf16.mxu0 0
  %1279 = vmatmul.mubr.bf16.gmra.mrb[0].mxu0 %v1182
  %v1280 = vpop.f32.mrb[0].mxu0
  %v1281 = vadd.f32 0.0, %v1280
  %v1282 = vpop.f32.mrb[0].mxu0
  %v1283 = vadd.f32 0.0, %v1282
  %v1284 = vpop.f32.mrb[0].mxu0
  %v1285 = vpop.f32.mrb[0].mxu0
  %1286 = vdwg.mxu0
  %1287 = vmatprep.subr.bf16.mxu0 %v1200
  %1288 = vmatpush1.bf16.msra.mxu0 %v1197
  %1289 = vmatprep.subr.bf16.mxu0 0
  %1290 = vmatpush1.bf16.msra.mxu0 0
  %1291 = vmatprep.subr.bf16.mxu0 0
  %1292 = vmatpush1.bf16.msra.mxu0 0
  %1293 = vmatprep.subr.bf16.mxu0 0
  %1294 = vmatpush1.bf16.msra.mxu0 0
  %1295 = vmatprep.subr.bf16.mxu0 0
  %1296 = vmatpush1.bf16.msra.mxu0 0
  %1297 = vmatprep.subr.bf16.mxu0 0
  %1298 = vmatpush1.bf16.msra.mxu0 0
  %1299 = vmatprep.subr.bf16.mxu0 0
  %1300 = vmatpush1.bf16.msra.mxu0 0
  %1301 = vmatprep.subr.bf16.mxu0 0
  %1302 = vmatpush1.bf16.msra.mxu0 0
  %1303 = vmatprep.subr.bf16.mxu0 0
  %1304 = vmatpush1.bf16.msra.mxu0 0
  %1305 = vmatprep.subr.bf16.mxu0 0
  %1306 = vmatpush1.bf16.msra.mxu0 0
  %1307 = vmatprep.subr.bf16.mxu0 0
  %1308 = vmatpush1.bf16.msra.mxu0 0
  %1309 = vmatprep.subr.bf16.mxu0 0
  %1310 = vmatpush1.bf16.msra.mxu0 0
  %1311 = vmatprep.subr.bf16.mxu0 0
  %1312 = vmatpush1.bf16.msra.mxu0 0
  %1313 = vmatprep.subr.bf16.mxu0 0
  %1314 = vmatpush1.bf16.msra.mxu0 0
  %1315 = vmatprep.subr.bf16.mxu0 0
  %1316 = vmatpush1.bf16.msra.mxu0 0
  %1317 = vmatprep.subr.bf16.mxu0 0
  %1318 = vmatpush1.bf16.msra.mxu0 0
  %1319 = vmatprep.mubr.bf16.mxu0 0
  %1320 = vmatmul.mubr.bf16.gmra.mrb[0].mxu0 %v1182
  %v1321 = vpop.f32.mrb[0].mxu0
  %v1322 = vadd.f32 0.0, %v1321
  %v1323 = vpop.f32.mrb[0].mxu0
  %v1324 = vadd.f32 0.0, %v1323
  %v1325 = vpop.f32.mrb[0].mxu0
  %v1326 = vpop.f32.mrb[0].mxu0
  %1327 = vdwg.mxu0
  %1328 = vmatprep.subr.bf16.mxu0 0
  %1329 = vmatpush1.bf16.msra.mxu0 %v1203
  %1330 = vmatprep.subr.bf16.mxu0 0
  %1331 = vmatpush1.bf16.msra.mxu0 0
  %1332 = vmatprep.subr.bf16.mxu0 0
  %1333 = vmatpush1.bf16.msra.mxu0 0
  %1334 = vmatprep.subr.bf16.mxu0 0
  %1335 = vmatpush1.bf16.msra.mxu0 0
  %1336 = vmatprep.subr.bf16.mxu0 0
  %1337 = vmatpush1.bf16.msra.mxu0 0
  %1338 = vmatprep.subr.bf16.mxu0 0
  %1339 = vmatpush1.bf16.msra.mxu0 0
  %1340 = vmatprep.subr.bf16.mxu0 0
  %1341 = vmatpush1.bf16.msra.mxu0 0
  %1342 = vmatprep.subr.bf16.mxu0 0
  %1343 = vmatpush1.bf16.msra.mxu0 0
  %1344 = vmatprep.subr.bf16.mxu0 0
  %1345 = vmatpush1.bf16.msra.mxu0 0
  %1346 = vmatprep.subr.bf16.mxu0 0
  %1347 = vmatpush1.bf16.msra.mxu0 0
  %1348 = vmatprep.subr.bf16.mxu0 0
  %1349 = vmatpush1.bf16.msra.mxu0 0
  %1350 = vmatprep.subr.bf16.mxu0 0
  %1351 = vmatpush1.bf16.msra.mxu0 0
  %1352 = vmatprep.subr.bf16.mxu0 0
  %1353 = vmatpush1.bf16.msra.mxu0 0
  %1354 = vmatprep.subr.bf16.mxu0 0
  %1355 = vmatpush1.bf16.msra.mxu0 0
  %1356 = vmatprep.subr.bf16.mxu0 0
  %1357 = vmatpush1.bf16.msra.mxu0 0
  %1358 = vmatprep.subr.bf16.mxu0 0
  %1359 = vmatpush1.bf16.msra.mxu0 0
  %1360 = vmatprep.mubr.bf16.mxu0 0
  %1361 = vmatmul.mubr.bf16.gmra.mrb[0].mxu0 %v1182
  %v1362 = vpop.f32.mrb[0].mxu0
  %v1363 = vadd.f32 0.0, %v1362
  %v1364 = vpop.f32.mrb[0].mxu0
  %v1365 = vpop.f32.mrb[0].mxu0
  %v1366 = vpop.f32.mrb[0].mxu0
  %1367 = vdwg.mxu0
  %v1368 = vadd.f32 %v1151, %v1240
  %v1369 = vadd.f32 %v1152, %v1242
  %v1370 = vadd.f32 %v1153, %v1281
  %v1371 = vadd.f32 %v1154, %v1283
  %v1372 = vadd.f32 %v1155, %v1322
  %v1373 = vadd.f32 %v1156, %v1324
  %v1374 = vadd.f32 %v1157, %v1363
  %s1375 = scalar_lea.vmem %s2, 20
  %v1376 = vld [vmem:[%s1375] sm:$0xf]
  %1377 = vrot.lane.b32.xlu0 %v310, 106
  %v1378 = vpop.permute.xlu0 %1377
  %1379 = vrot.lane.b32.xlu0 %v311, 106
  %v1380 = vpop.permute.xlu0 %1379
  %1381 = vrot.lane.b32.xlu0 %v312, 106
  %v1382 = vpop.permute.xlu0 %1381
  %1383 = vrot.lane.b32.xlu0 %v313, 106
  %v1384 = vpop.permute.xlu0 %1383
  %1385 = vrot.lane.b32.xlu0 %v314, 106
  %v1386 = vpop.permute.xlu0 %1385
  %1387 = vrot.lane.b32.xlu0 %v315, 106
  %v1388 = vpop.permute.xlu0 %1387
  %1389 = vrot.lane.b32.xlu0 %v316, 106
  %v1390 = vpop.permute.xlu0 %1389
  %vm1391 = vcmask 867328
  %v1392 = vsel %vm1391, %v1378, %v1380
  %v1393 = vsel %vm1391, %v1380, %v1382
  %v1394 = vsel %vm1391, %v1382, %v1384
  %v1395 = vsel %vm1391, %v1384, %v1386
  %v1396 = vsel %vm1391, %v1386, %v1388
  %v1397 = vsel %vm1391, %v1388, %v1390
  %v1399 = vsel %vm348, %v1376, 0
  %v1402 = vsel %vm352, %v1392, 0
  %v1405 = vsel %vm352, %v1393, 0
  %v1408 = vsel %vm352, %v1394, 0
  %v1411 = vsel %vm352, %v1395, 0
  %v1414 = vsel %vm352, %v1396, 0
  %v1417 = vsel %vm352, %v1397, 0
  %v1420 = vsel %vm352, %v1390, 0
  %1422 = vmatprep.subr.bf16.mxu0 %v1405
  %1423 = vmatpush1.bf16.msra.mxu0 %v1402
  %1424 = vmatprep.subr.bf16.mxu0 0
  %1425 = vmatpush1.bf16.msra.mxu0 0
  %1426 = vmatprep.subr.bf16.mxu0 0
  %1427 = vmatpush1.bf16.msra.mxu0 0
  %1428 = vmatprep.subr.bf16.mxu0 0
  %1429 = vmatpush1.bf16.msra.mxu0 0
  %1430 = vmatprep.subr.bf16.mxu0 0
  %1431 = vmatpush1.bf16.msra.mxu0 0
  %1432 = vmatprep.subr.bf16.mxu0 0
  %1433 = vmatpush1.bf16.msra.mxu0 0
  %1434 = vmatprep.subr.bf16.mxu0 0
  %1435 = vmatpush1.bf16.msra.mxu0 0
  %1436 = vmatprep.subr.bf16.mxu0 0
  %1437 = vmatpush1.bf16.msra.mxu0 0
  %1438 = vmatprep.subr.bf16.mxu0 0
  %1439 = vmatpush1.bf16.msra.mxu0 0
  %1440 = vmatprep.subr.bf16.mxu0 0
  %1441 = vmatpush1.bf16.msra.mxu0 0
  %1442 = vmatprep.subr.bf16.mxu0 0
  %1443 = vmatpush1.bf16.msra.mxu0 0
  %1444 = vmatprep.subr.bf16.mxu0 0
  %1445 = vmatpush1.bf16.msra.mxu0 0
  %1446 = vmatprep.subr.bf16.mxu0 0
  %1447 = vmatpush1.bf16.msra.mxu0 0
  %1448 = vmatprep.subr.bf16.mxu0 0
  %1449 = vmatpush1.bf16.msra.mxu0 0
  %1450 = vmatprep.subr.bf16.mxu0 0
  %1451 = vmatpush1.bf16.msra.mxu0 0
  %1452 = vmatprep.subr.bf16.mxu0 0
  %1453 = vmatpush1.bf16.msra.mxu0 0
  %1454 = vmatprep.mubr.bf16.mxu0 0
  %1455 = vmatmul.mubr.bf16.gmra.mrb[0].mxu0 %v1399
  %v1456 = vpop.f32.mrb[0].mxu0
  %v1457 = vadd.f32 0.0, %v1456
  %v1458 = vpop.f32.mrb[0].mxu0
  %v1459 = vadd.f32 0.0, %v1458
  %v1460 = vpop.f32.mrb[0].mxu0
  %v1461 = vpop.f32.mrb[0].mxu0
  %1462 = vdwg.mxu0
  %1463 = vmatprep.subr.bf16.mxu0 %v1411
  %1464 = vmatpush1.bf16.msra.mxu0 %v1408
  %1465 = vmatprep.subr.bf16.mxu0 0
  %1466 = vmatpush1.bf16.msra.mxu0 0
  %1467 = vmatprep.subr.bf16.mxu0 0
  %1468 = vmatpush1.bf16.msra.mxu0 0
  %1469 = vmatprep.subr.bf16.mxu0 0
  %1470 = vmatpush1.bf16.msra.mxu0 0
  %1471 = vmatprep.subr.bf16.mxu0 0
  %1472 = vmatpush1.bf16.msra.mxu0 0
  %1473 = vmatprep.subr.bf16.mxu0 0
  %1474 = vmatpush1.bf16.msra.mxu0 0
  %1475 = vmatprep.subr.bf16.mxu0 0
  %1476 = vmatpush1.bf16.msra.mxu0 0
  %1477 = vmatprep.subr.bf16.mxu0 0
  %1478 = vmatpush1.bf16.msra.mxu0 0
  %1479 = vmatprep.subr.bf16.mxu0 0
  %1480 = vmatpush1.bf16.msra.mxu0 0
  %1481 = vmatprep.subr.bf16.mxu0 0
  %1482 = vmatpush1.bf16.msra.mxu0 0
  %1483 = vmatprep.subr.bf16.mxu0 0
  %1484 = vmatpush1.bf16.msra.mxu0 0
  %1485 = vmatprep.subr.bf16.mxu0 0
  %1486 = vmatpush1.bf16.msra.mxu0 0
  %1487 = vmatprep.subr.bf16.mxu0 0
  %1488 = vmatpush1.bf16.msra.mxu0 0
  %1489 = vmatprep.subr.bf16.mxu0 0
  %1490 = vmatpush1.bf16.msra.mxu0 0
  %1491 = vmatprep.subr.bf16.mxu0 0
  %1492 = vmatpush1.bf16.msra.mxu0 0
  %1493 = vmatprep.subr.bf16.mxu0 0
  %1494 = vmatpush1.bf16.msra.mxu0 0
  %1495 = vmatprep.mubr.bf16.mxu0 0
  %1496 = vmatmul.mubr.bf16.gmra.mrb[0].mxu0 %v1399
  %v1497 = vpop.f32.mrb[0].mxu0
  %v1498 = vadd.f32 0.0, %v1497
  %v1499 = vpop.f32.mrb[0].mxu0
  %v1500 = vadd.f32 0.0, %v1499
  %v1501 = vpop.f32.mrb[0].mxu0
  %v1502 = vpop.f32.mrb[0].mxu0
  %1503 = vdwg.mxu0
  %1504 = vmatprep.subr.bf16.mxu0 %v1417
  %1505 = vmatpush1.bf16.msra.mxu0 %v1414
  %1506 = vmatprep.subr.bf16.mxu0 0
  %1507 = vmatpush1.bf16.msra.mxu0 0
  %1508 = vmatprep.subr.bf16.mxu0 0
  %1509 = vmatpush1.bf16.msra.mxu0 0
  %1510 = vmatprep.subr.bf16.mxu0 0
  %1511 = vmatpush1.bf16.msra.mxu0 0
  %1512 = vmatprep.subr.bf16.mxu0 0
  %1513 = vmatpush1.bf16.msra.mxu0 0
  %1514 = vmatprep.subr.bf16.mxu0 0
  %1515 = vmatpush1.bf16.msra.mxu0 0
  %1516 = vmatprep.subr.bf16.mxu0 0
  %1517 = vmatpush1.bf16.msra.mxu0 0
  %1518 = vmatprep.subr.bf16.mxu0 0
  %1519 = vmatpush1.bf16.msra.mxu0 0
  %1520 = vmatprep.subr.bf16.mxu0 0
  %1521 = vmatpush1.bf16.msra.mxu0 0
  %1522 = vmatprep.subr.bf16.mxu0 0
  %1523 = vmatpush1.bf16.msra.mxu0 0
  %1524 = vmatprep.subr.bf16.mxu0 0
  %1525 = vmatpush1.bf16.msra.mxu0 0
  %1526 = vmatprep.subr.bf16.mxu0 0
  %1527 = vmatpush1.bf16.msra.mxu0 0
  %1528 = vmatprep.subr.bf16.mxu0 0
  %1529 = vmatpush1.bf16.msra.mxu0 0
  %1530 = vmatprep.subr.bf16.mxu0 0
  %1531 = vmatpush1.bf16.msra.mxu0 0
  %1532 = vmatprep.subr.bf16.mxu0 0
  %1533 = vmatpush1.bf16.msra.mxu0 0
  %1534 = vmatprep.subr.bf16.mxu0 0
  %1535 = vmatpush1.bf16.msra.mxu0 0
  %1536 = vmatprep.mubr.bf16.mxu0 0
  %1537 = vmatmul.mubr.bf16.gmra.mrb[0].mxu0 %v1399
  %v1538 = vpop.f32.mrb[0].mxu0
  %v1539 = vadd.f32 0.0, %v1538
  %v1540 = vpop.f32.mrb[0].mxu0
  %v1541 = vadd.f32 0.0, %v1540
  %v1542 = vpop.f32.mrb[0].mxu0
  %v1543 = vpop.f32.mrb[0].mxu0
  %1544 = vdwg.mxu0
  %1545 = vmatprep.subr.bf16.mxu0 0
  %1546 = vmatpush1.bf16.msra.mxu0 %v1420
  %1547 = vmatprep.subr.bf16.mxu0 0
  %1548 = vmatpush1.bf16.msra.mxu0 0
  %1549 = vmatprep.subr.bf16.mxu0 0
  %1550 = vmatpush1.bf16.msra.mxu0 0
  %1551 = vmatprep.subr.bf16.mxu0 0
  %1552 = vmatpush1.bf16.msra.mxu0 0
  %1553 = vmatprep.subr.bf16.mxu0 0
  %1554 = vmatpush1.bf16.msra.mxu0 0
  %1555 = vmatprep.subr.bf16.mxu0 0
  %1556 = vmatpush1.bf16.msra.mxu0 0
  %1557 = vmatprep.subr.bf16.mxu0 0
  %1558 = vmatpush1.bf16.msra.mxu0 0
  %1559 = vmatprep.subr.bf16.mxu0 0
  %1560 = vmatpush1.bf16.msra.mxu0 0
  %1561 = vmatprep.subr.bf16.mxu0 0
  %1562 = vmatpush1.bf16.msra.mxu0 0
  %1563 = vmatprep.subr.bf16.mxu0 0
  %1564 = vmatpush1.bf16.msra.mxu0 0
  %1565 = vmatprep.subr.bf16.mxu0 0
  %1566 = vmatpush1.bf16.msra.mxu0 0
  %1567 = vmatprep.subr.bf16.mxu0 0
  %1568 = vmatpush1.bf16.msra.mxu0 0
  %1569 = vmatprep.subr.bf16.mxu0 0
  %1570 = vmatpush1.bf16.msra.mxu0 0
  %1571 = vmatprep.subr.bf16.mxu0 0
  %1572 = vmatpush1.bf16.msra.mxu0 0
  %1573 = vmatprep.subr.bf16.mxu0 0
  %1574 = vmatpush1.bf16.msra.mxu0 0
  %1575 = vmatprep.subr.bf16.mxu0 0
  %1576 = vmatpush1.bf16.msra.mxu0 0
  %1577 = vmatprep.mubr.bf16.mxu0 0
  %1578 = vmatmul.mubr.bf16.gmra.mrb[0].mxu0 %v1399
  %v1579 = vpop.f32.mrb[0].mxu0
  %v1580 = vadd.f32 0.0, %v1579
  %v1581 = vpop.f32.mrb[0].mxu0
  %v1582 = vpop.f32.mrb[0].mxu0
  %v1583 = vpop.f32.mrb[0].mxu0
  %1584 = vdwg.mxu0
  %v1585 = vadd.f32 %v1368, %v1457
  %v1586 = vadd.f32 %v1369, %v1459
  %v1587 = vadd.f32 %v1370, %v1498
  %v1588 = vadd.f32 %v1371, %v1500
  %v1589 = vadd.f32 %v1372, %v1539
  %v1590 = vadd.f32 %v1373, %v1541
  %v1591 = vadd.f32 %v1374, %v1580
  %s1592 = scalar_lea.vmem %s2, 24
  %v1593 = vld [vmem:[%s1592] sm:$0xf]
  %1594 = vrot.lane.b32.xlu0 %v310, 88
  %v1595 = vpop.permute.xlu0 %1594
  %1596 = vrot.lane.b32.xlu0 %v311, 88
  %v1597 = vpop.permute.xlu0 %1596
  %1598 = vrot.lane.b32.xlu0 %v312, 88
  %v1599 = vpop.permute.xlu0 %1598
  %1600 = vrot.lane.b32.xlu0 %v313, 88
  %v1601 = vpop.permute.xlu0 %1600
  %1602 = vrot.lane.b32.xlu0 %v314, 88
  %v1603 = vpop.permute.xlu0 %1602
  %1604 = vrot.lane.b32.xlu0 %v315, 88
  %v1605 = vpop.permute.xlu0 %1604
  %1606 = vrot.lane.b32.xlu0 %v316, 88
  %v1607 = vpop.permute.xlu0 %1606
  %vm1608 = vcmask 719872
  %v1609 = vsel %vm1608, %v1595, %v1597
  %v1610 = vsel %vm1608, %v1597, %v1599
  %v1611 = vsel %vm1608, %v1599, %v1601
  %v1612 = vsel %vm1608, %v1601, %v1603
  %v1613 = vsel %vm1608, %v1603, %v1605
  %v1614 = vsel %vm1608, %v1605, %v1607
  %v1616 = vsel %vm348, %v1593, 0
  %v1619 = vsel %vm352, %v1609, 0
  %v1622 = vsel %vm352, %v1610, 0
  %v1625 = vsel %vm352, %v1611, 0
  %v1628 = vsel %vm352, %v1612, 0
  %v1631 = vsel %vm352, %v1613, 0
  %v1634 = vsel %vm352, %v1614, 0
  %v1637 = vsel %vm352, %v1607, 0
  %1639 = vmatprep.subr.bf16.mxu0 %v1622
  %1640 = vmatpush1.bf16.msra.mxu0 %v1619
  %1641 = vmatprep.subr.bf16.mxu0 0
  %1642 = vmatpush1.bf16.msra.mxu0 0
  %1643 = vmatprep.subr.bf16.mxu0 0
  %1644 = vmatpush1.bf16.msra.mxu0 0
  %1645 = vmatprep.subr.bf16.mxu0 0
  %1646 = vmatpush1.bf16.msra.mxu0 0
  %1647 = vmatprep.subr.bf16.mxu0 0
  %1648 = vmatpush1.bf16.msra.mxu0 0
  %1649 = vmatprep.subr.bf16.mxu0 0
  %1650 = vmatpush1.bf16.msra.mxu0 0
  %1651 = vmatprep.subr.bf16.mxu0 0
  %1652 = vmatpush1.bf16.msra.mxu0 0
  %1653 = vmatprep.subr.bf16.mxu0 0
  %1654 = vmatpush1.bf16.msra.mxu0 0
  %1655 = vmatprep.subr.bf16.mxu0 0
  %1656 = vmatpush1.bf16.msra.mxu0 0
  %1657 = vmatprep.subr.bf16.mxu0 0
  %1658 = vmatpush1.bf16.msra.mxu0 0
  %1659 = vmatprep.subr.bf16.mxu0 0
  %1660 = vmatpush1.bf16.msra.mxu0 0
  %1661 = vmatprep.subr.bf16.mxu0 0
  %1662 = vmatpush1.bf16.msra.mxu0 0
  %1663 = vmatprep.subr.bf16.mxu0 0
  %1664 = vmatpush1.bf16.msra.mxu0 0
  %1665 = vmatprep.subr.bf16.mxu0 0
  %1666 = vmatpush1.bf16.msra.mxu0 0
  %1667 = vmatprep.subr.bf16.mxu0 0
  %1668 = vmatpush1.bf16.msra.mxu0 0
  %1669 = vmatprep.subr.bf16.mxu0 0
  %1670 = vmatpush1.bf16.msra.mxu0 0
  %1671 = vmatprep.mubr.bf16.mxu0 0
  %1672 = vmatmul.mubr.bf16.gmra.mrb[0].mxu0 %v1616
  %v1673 = vpop.f32.mrb[0].mxu0
  %v1674 = vadd.f32 0.0, %v1673
  %v1675 = vpop.f32.mrb[0].mxu0
  %v1676 = vadd.f32 0.0, %v1675
  %v1677 = vpop.f32.mrb[0].mxu0
  %v1678 = vpop.f32.mrb[0].mxu0
  %1679 = vdwg.mxu0
  %1680 = vmatprep.subr.bf16.mxu0 %v1628
  %1681 = vmatpush1.bf16.msra.mxu0 %v1625
  %1682 = vmatprep.subr.bf16.mxu0 0
  %1683 = vmatpush1.bf16.msra.mxu0 0
  %1684 = vmatprep.subr.bf16.mxu0 0
  %1685 = vmatpush1.bf16.msra.mxu0 0
  %1686 = vmatprep.subr.bf16.mxu0 0
  %1687 = vmatpush1.bf16.msra.mxu0 0
  %1688 = vmatprep.subr.bf16.mxu0 0
  %1689 = vmatpush1.bf16.msra.mxu0 0
  %1690 = vmatprep.subr.bf16.mxu0 0
  %1691 = vmatpush1.bf16.msra.mxu0 0
  %1692 = vmatprep.subr.bf16.mxu0 0
  %1693 = vmatpush1.bf16.msra.mxu0 0
  %1694 = vmatprep.subr.bf16.mxu0 0
  %1695 = vmatpush1.bf16.msra.mxu0 0
  %1696 = vmatprep.subr.bf16.mxu0 0
  %1697 = vmatpush1.bf16.msra.mxu0 0
  %1698 = vmatprep.subr.bf16.mxu0 0
  %1699 = vmatpush1.bf16.msra.mxu0 0
  %1700 = vmatprep.subr.bf16.mxu0 0
  %1701 = vmatpush1.bf16.msra.mxu0 0
  %1702 = vmatprep.subr.bf16.mxu0 0
  %1703 = vmatpush1.bf16.msra.mxu0 0
  %1704 = vmatprep.subr.bf16.mxu0 0
  %1705 = vmatpush1.bf16.msra.mxu0 0
  %1706 = vmatprep.subr.bf16.mxu0 0
  %1707 = vmatpush1.bf16.msra.mxu0 0
  %1708 = vmatprep.subr.bf16.mxu0 0
  %1709 = vmatpush1.bf16.msra.mxu0 0
  %1710 = vmatprep.subr.bf16.mxu0 0
  %1711 = vmatpush1.bf16.msra.mxu0 0
  %1712 = vmatprep.mubr.bf16.mxu0 0
  %1713 = vmatmul.mubr.bf16.gmra.mrb[0].mxu0 %v1616
  %v1714 = vpop.f32.mrb[0].mxu0
  %v1715 = vadd.f32 0.0, %v1714
  %v1716 = vpop.f32.mrb[0].mxu0
  %v1717 = vadd.f32 0.0, %v1716
  %v1718 = vpop.f32.mrb[0].mxu0
  %v1719 = vpop.f32.mrb[0].mxu0
  %1720 = vdwg.mxu0
  %1721 = vmatprep.subr.bf16.mxu0 %v1634
  %1722 = vmatpush1.bf16.msra.mxu0 %v1631
  %1723 = vmatprep.subr.bf16.mxu0 0
  %1724 = vmatpush1.bf16.msra.mxu0 0
  %1725 = vmatprep.subr.bf16.mxu0 0
  %1726 = vmatpush1.bf16.msra.mxu0 0
  %1727 = vmatprep.subr.bf16.mxu0 0
  %1728 = vmatpush1.bf16.msra.mxu0 0
  %1729 = vmatprep.subr.bf16.mxu0 0
  %1730 = vmatpush1.bf16.msra.mxu0 0
  %1731 = vmatprep.subr.bf16.mxu0 0
  %1732 = vmatpush1.bf16.msra.mxu0 0
  %1733 = vmatprep.subr.bf16.mxu0 0
  %1734 = vmatpush1.bf16.msra.mxu0 0
  %1735 = vmatprep.subr.bf16.mxu0 0
  %1736 = vmatpush1.bf16.msra.mxu0 0
  %1737 = vmatprep.subr.bf16.mxu0 0
  %1738 = vmatpush1.bf16.msra.mxu0 0
  %1739 = vmatprep.subr.bf16.mxu0 0
  %1740 = vmatpush1.bf16.msra.mxu0 0
  %1741 = vmatprep.subr.bf16.mxu0 0
  %1742 = vmatpush1.bf16.msra.mxu0 0
  %1743 = vmatprep.subr.bf16.mxu0 0
  %1744 = vmatpush1.bf16.msra.mxu0 0
  %1745 = vmatprep.subr.bf16.mxu0 0
  %1746 = vmatpush1.bf16.msra.mxu0 0
  %1747 = vmatprep.subr.bf16.mxu0 0
  %1748 = vmatpush1.bf16.msra.mxu0 0
  %1749 = vmatprep.subr.bf16.mxu0 0
  %1750 = vmatpush1.bf16.msra.mxu0 0
  %1751 = vmatprep.subr.bf16.mxu0 0
  %1752 = vmatpush1.bf16.msra.mxu0 0
  %1753 = vmatprep.mubr.bf16.mxu0 0
  %1754 = vmatmul.mubr.bf16.gmra.mrb[0].mxu0 %v1616
  %v1755 = vpop.f32.mrb[0].mxu0
  %v1756 = vadd.f32 0.0, %v1755
  %v1757 = vpop.f32.mrb[0].mxu0
  %v1758 = vadd.f32 0.0, %v1757
  %v1759 = vpop.f32.mrb[0].mxu0
  %v1760 = vpop.f32.mrb[0].mxu0
  %1761 = vdwg.mxu0
  %1762 = vmatprep.subr.bf16.mxu0 0
  %1763 = vmatpush1.bf16.msra.mxu0 %v1637
  %1764 = vmatprep.subr.bf16.mxu0 0
  %1765 = vmatpush1.bf16.msra.mxu0 0
  %1766 = vmatprep.subr.bf16.mxu0 0
  %1767 = vmatpush1.bf16.msra.mxu0 0
  %1768 = vmatprep.subr.bf16.mxu0 0
  %1769 = vmatpush1.bf16.msra.mxu0 0
  %1770 = vmatprep.subr.bf16.mxu0 0
  %1771 = vmatpush1.bf16.msra.mxu0 0
  %1772 = vmatprep.subr.bf16.mxu0 0
  %1773 = vmatpush1.bf16.msra.mxu0 0
  %1774 = vmatprep.subr.bf16.mxu0 0
  %1775 = vmatpush1.bf16.msra.mxu0 0
  %1776 = vmatprep.subr.bf16.mxu0 0
  %1777 = vmatpush1.bf16.msra.mxu0 0
  %1778 = vmatprep.subr.bf16.mxu0 0
  %1779 = vmatpush1.bf16.msra.mxu0 0
  %1780 = vmatprep.subr.bf16.mxu0 0
  %1781 = vmatpush1.bf16.msra.mxu0 0
  %1782 = vmatprep.subr.bf16.mxu0 0
  %1783 = vmatpush1.bf16.msra.mxu0 0
  %1784 = vmatprep.subr.bf16.mxu0 0
  %1785 = vmatpush1.bf16.msra.mxu0 0
  %1786 = vmatprep.subr.bf16.mxu0 0
  %1787 = vmatpush1.bf16.msra.mxu0 0
  %1788 = vmatprep.subr.bf16.mxu0 0
  %1789 = vmatpush1.bf16.msra.mxu0 0
  %1790 = vmatprep.subr.bf16.mxu0 0
  %1791 = vmatpush1.bf16.msra.mxu0 0
  %1792 = vmatprep.subr.bf16.mxu0 0
  %1793 = vmatpush1.bf16.msra.mxu0 0
  %1794 = vmatprep.mubr.bf16.mxu0 0
  %1795 = vmatmul.mubr.bf16.gmra.mrb[0].mxu0 %v1616
  %v1796 = vpop.f32.mrb[0].mxu0
  %v1797 = vadd.f32 0.0, %v1796
  %v1798 = vpop.f32.mrb[0].mxu0
  %v1799 = vpop.f32.mrb[0].mxu0
  %v1800 = vpop.f32.mrb[0].mxu0
  %1801 = vdwg.mxu0
  %v1802 = vadd.f32 %v1585, %v1674
  %v1803 = vadd.f32 %v1586, %v1676
  %v1804 = vadd.f32 %v1587, %v1715
  %v1805 = vadd.f32 %v1588, %v1717
  %v1806 = vadd.f32 %v1589, %v1756
  %v1807 = vadd.f32 %v1590, %v1758
  %v1808 = vadd.f32 %v1591, %v1797
  %s1809 = scalar_lea.vmem %s2, 28
  %v1810 = vld [vmem:[%s1809] sm:$0xf]
  %1811 = vrot.lane.b32.xlu0 %v310, 87
  %v1812 = vpop.permute.xlu0 %1811
  %1813 = vrot.lane.b32.xlu0 %v311, 87
  %v1814 = vpop.permute.xlu0 %1813
  %1815 = vrot.lane.b32.xlu0 %v312, 87
  %v1816 = vpop.permute.xlu0 %1815
  %1817 = vrot.lane.b32.xlu0 %v313, 87
  %v1818 = vpop.permute.xlu0 %1817
  %1819 = vrot.lane.b32.xlu0 %v314, 87
  %v1820 = vpop.permute.xlu0 %1819
  %1821 = vrot.lane.b32.xlu0 %v315, 87
  %v1822 = vpop.permute.xlu0 %1821
  %1823 = vrot.lane.b32.xlu0 %v316, 87
  %v1824 = vpop.permute.xlu0 %1823
  %vm1825 = vcmask 711680
  %v1826 = vsel %vm1825, %v1812, %v1814
  %v1827 = vsel %vm1825, %v1814, %v1816
  %v1828 = vsel %vm1825, %v1816, %v1818
  %v1829 = vsel %vm1825, %v1818, %v1820
  %v1830 = vsel %vm1825, %v1820, %v1822
  %v1831 = vsel %vm1825, %v1822, %v1824
  %v1833 = vsel %vm348, %v1810, 0
  %v1836 = vsel %vm352, %v1826, 0
  %v1839 = vsel %vm352, %v1827, 0
  %v1842 = vsel %vm352, %v1828, 0
  %v1845 = vsel %vm352, %v1829, 0
  %v1848 = vsel %vm352, %v1830, 0
  %v1851 = vsel %vm352, %v1831, 0
  %v1854 = vsel %vm352, %v1824, 0
  %1856 = vmatprep.subr.bf16.mxu0 %v1839
  %1857 = vmatpush1.bf16.msra.mxu0 %v1836
  %1858 = vmatprep.subr.bf16.mxu0 0
  %1859 = vmatpush1.bf16.msra.mxu0 0
  %1860 = vmatprep.subr.bf16.mxu0 0
  %1861 = vmatpush1.bf16.msra.mxu0 0
  %1862 = vmatprep.subr.bf16.mxu0 0
  %1863 = vmatpush1.bf16.msra.mxu0 0
  %1864 = vmatprep.subr.bf16.mxu0 0
  %1865 = vmatpush1.bf16.msra.mxu0 0
  %1866 = vmatprep.subr.bf16.mxu0 0
  %1867 = vmatpush1.bf16.msra.mxu0 0
  %1868 = vmatprep.subr.bf16.mxu0 0
  %1869 = vmatpush1.bf16.msra.mxu0 0
  %1870 = vmatprep.subr.bf16.mxu0 0
  %1871 = vmatpush1.bf16.msra.mxu0 0
  %1872 = vmatprep.subr.bf16.mxu0 0
  %1873 = vmatpush1.bf16.msra.mxu0 0
  %1874 = vmatprep.subr.bf16.mxu0 0
  %1875 = vmatpush1.bf16.msra.mxu0 0
  %1876 = vmatprep.subr.bf16.mxu0 0
  %1877 = vmatpush1.bf16.msra.mxu0 0
  %1878 = vmatprep.subr.bf16.mxu0 0
  %1879 = vmatpush1.bf16.msra.mxu0 0
  %1880 = vmatprep.subr.bf16.mxu0 0
  %1881 = vmatpush1.bf16.msra.mxu0 0
  %1882 = vmatprep.subr.bf16.mxu0 0
  %1883 = vmatpush1.bf16.msra.mxu0 0
  %1884 = vmatprep.subr.bf16.mxu0 0
  %1885 = vmatpush1.bf16.msra.mxu0 0
  %1886 = vmatprep.subr.bf16.mxu0 0
  %1887 = vmatpush1.bf16.msra.mxu0 0
  %1888 = vmatprep.mubr.bf16.mxu0 0
  %1889 = vmatmul.mubr.bf16.gmra.mrb[0].mxu0 %v1833
  %v1890 = vpop.f32.mrb[0].mxu0
  %v1891 = vadd.f32 0.0, %v1890
  %v1892 = vpop.f32.mrb[0].mxu0
  %v1893 = vadd.f32 0.0, %v1892
  %v1894 = vpop.f32.mrb[0].mxu0
  %v1895 = vpop.f32.mrb[0].mxu0
  %1896 = vdwg.mxu0
  %1897 = vmatprep.subr.bf16.mxu0 %v1845
  %1898 = vmatpush1.bf16.msra.mxu0 %v1842
  %1899 = vmatprep.subr.bf16.mxu0 0
  %1900 = vmatpush1.bf16.msra.mxu0 0
  %1901 = vmatprep.subr.bf16.mxu0 0
  %1902 = vmatpush1.bf16.msra.mxu0 0
  %1903 = vmatprep.subr.bf16.mxu0 0
  %1904 = vmatpush1.bf16.msra.mxu0 0
  %1905 = vmatprep.subr.bf16.mxu0 0
  %1906 = vmatpush1.bf16.msra.mxu0 0
  %1907 = vmatprep.subr.bf16.mxu0 0
  %1908 = vmatpush1.bf16.msra.mxu0 0
  %1909 = vmatprep.subr.bf16.mxu0 0
  %1910 = vmatpush1.bf16.msra.mxu0 0
  %1911 = vmatprep.subr.bf16.mxu0 0
  %1912 = vmatpush1.bf16.msra.mxu0 0
  %1913 = vmatprep.subr.bf16.mxu0 0
  %1914 = vmatpush1.bf16.msra.mxu0 0
  %1915 = vmatprep.subr.bf16.mxu0 0
  %1916 = vmatpush1.bf16.msra.mxu0 0
  %1917 = vmatprep.subr.bf16.mxu0 0
  %1918 = vmatpush1.bf16.msra.mxu0 0
  %1919 = vmatprep.subr.bf16.mxu0 0
  %1920 = vmatpush1.bf16.msra.mxu0 0
  %1921 = vmatprep.subr.bf16.mxu0 0
  %1922 = vmatpush1.bf16.msra.mxu0 0
  %1923 = vmatprep.subr.bf16.mxu0 0
  %1924 = vmatpush1.bf16.msra.mxu0 0
  %1925 = vmatprep.subr.bf16.mxu0 0
  %1926 = vmatpush1.bf16.msra.mxu0 0
  %1927 = vmatprep.subr.bf16.mxu0 0
  %1928 = vmatpush1.bf16.msra.mxu0 0
  %1929 = vmatprep.mubr.bf16.mxu0 0
  %1930 = vmatmul.mubr.bf16.gmra.mrb[0].mxu0 %v1833
  %v1931 = vpop.f32.mrb[0].mxu0
  %v1932 = vadd.f32 0.0, %v1931
  %v1933 = vpop.f32.mrb[0].mxu0
  %v1934 = vadd.f32 0.0, %v1933
  %v1935 = vpop.f32.mrb[0].mxu0
  %v1936 = vpop.f32.mrb[0].mxu0
  %1937 = vdwg.mxu0
  %1938 = vmatprep.subr.bf16.mxu0 %v1851
  %1939 = vmatpush1.bf16.msra.mxu0 %v1848
  %1940 = vmatprep.subr.bf16.mxu0 0
  %1941 = vmatpush1.bf16.msra.mxu0 0
  %1942 = vmatprep.subr.bf16.mxu0 0
  %1943 = vmatpush1.bf16.msra.mxu0 0
  %1944 = vmatprep.subr.bf16.mxu0 0
  %1945 = vmatpush1.bf16.msra.mxu0 0
  %1946 = vmatprep.subr.bf16.mxu0 0
  %1947 = vmatpush1.bf16.msra.mxu0 0
  %1948 = vmatprep.subr.bf16.mxu0 0
  %1949 = vmatpush1.bf16.msra.mxu0 0
  %1950 = vmatprep.subr.bf16.mxu0 0
  %1951 = vmatpush1.bf16.msra.mxu0 0
  %1952 = vmatprep.subr.bf16.mxu0 0
  %1953 = vmatpush1.bf16.msra.mxu0 0
  %1954 = vmatprep.subr.bf16.mxu0 0
  %1955 = vmatpush1.bf16.msra.mxu0 0
  %1956 = vmatprep.subr.bf16.mxu0 0
  %1957 = vmatpush1.bf16.msra.mxu0 0
  %1958 = vmatprep.subr.bf16.mxu0 0
  %1959 = vmatpush1.bf16.msra.mxu0 0
  %1960 = vmatprep.subr.bf16.mxu0 0
  %1961 = vmatpush1.bf16.msra.mxu0 0
  %1962 = vmatprep.subr.bf16.mxu0 0
  %1963 = vmatpush1.bf16.msra.mxu0 0
  %1964 = vmatprep.subr.bf16.mxu0 0
  %1965 = vmatpush1.bf16.msra.mxu0 0
  %1966 = vmatprep.subr.bf16.mxu0 0
  %1967 = vmatpush1.bf16.msra.mxu0 0
  %1968 = vmatprep.subr.bf16.mxu0 0
  %1969 = vmatpush1.bf16.msra.mxu0 0
  %1970 = vmatprep.mubr.bf16.mxu0 0
  %1971 = vmatmul.mubr.bf16.gmra.mrb[0].mxu0 %v1833
  %v1972 = vpop.f32.mrb[0].mxu0
  %v1973 = vadd.f32 0.0, %v1972
  %v1974 = vpop.f32.mrb[0].mxu0
  %v1975 = vadd.f32 0.0, %v1974
  %v1976 = vpop.f32.mrb[0].mxu0
  %v1977 = vpop.f32.mrb[0].mxu0
  %1978 = vdwg.mxu0
  %1979 = vmatprep.subr.bf16.mxu0 0
  %1980 = vmatpush1.bf16.msra.mxu0 %v1854
  %1981 = vmatprep.subr.bf16.mxu0 0
  %1982 = vmatpush1.bf16.msra.mxu0 0
  %1983 = vmatprep.subr.bf16.mxu0 0
  %1984 = vmatpush1.bf16.msra.mxu0 0
  %1985 = vmatprep.subr.bf16.mxu0 0
  %1986 = vmatpush1.bf16.msra.mxu0 0
  %1987 = vmatprep.subr.bf16.mxu0 0
  %1988 = vmatpush1.bf16.msra.mxu0 0
  %1989 = vmatprep.subr.bf16.mxu0 0
  %1990 = vmatpush1.bf16.msra.mxu0 0
  %1991 = vmatprep.subr.bf16.mxu0 0
  %1992 = vmatpush1.bf16.msra.mxu0 0
  %1993 = vmatprep.subr.bf16.mxu0 0
  %1994 = vmatpush1.bf16.msra.mxu0 0
  %1995 = vmatprep.subr.bf16.mxu0 0
  %1996 = vmatpush1.bf16.msra.mxu0 0
  %1997 = vmatprep.subr.bf16.mxu0 0
  %1998 = vmatpush1.bf16.msra.mxu0 0
  %1999 = vmatprep.subr.bf16.mxu0 0
  %2000 = vmatpush1.bf16.msra.mxu0 0
  %2001 = vmatprep.subr.bf16.mxu0 0
  %2002 = vmatpush1.bf16.msra.mxu0 0
  %2003 = vmatprep.subr.bf16.mxu0 0
  %2004 = vmatpush1.bf16.msra.mxu0 0
  %2005 = vmatprep.subr.bf16.mxu0 0
  %2006 = vmatpush1.bf16.msra.mxu0 0
  %2007 = vmatprep.subr.bf16.mxu0 0
  %2008 = vmatpush1.bf16.msra.mxu0 0
  %2009 = vmatprep.subr.bf16.mxu0 0
  %2010 = vmatpush1.bf16.msra.mxu0 0
  %2011 = vmatprep.mubr.bf16.mxu0 0
  %2012 = vmatmul.mubr.bf16.gmra.mrb[0].mxu0 %v1833
  %v2013 = vpop.f32.mrb[0].mxu0
  %v2014 = vadd.f32 0.0, %v2013
  %v2015 = vpop.f32.mrb[0].mxu0
  %v2016 = vpop.f32.mrb[0].mxu0
  %v2017 = vpop.f32.mrb[0].mxu0
  %2018 = vdwg.mxu0
  %v2019 = vadd.f32 %v1802, %v1891
  %v2020 = vadd.f32 %v1803, %v1893
  %v2021 = vadd.f32 %v1804, %v1932
  %v2022 = vadd.f32 %v1805, %v1934
  %v2023 = vadd.f32 %v1806, %v1973
  %v2024 = vadd.f32 %v1807, %v1975
  %v2025 = vadd.f32 %v1808, %v2014
  %s2026 = scalar_lea.vmem %s2, 32
  %v2027 = vld [vmem:[%s2026] sm:$0xf]
  %2028 = vrot.lane.b32.xlu0 %v310, 86
  %v2029 = vpop.permute.xlu0 %2028
  %2030 = vrot.lane.b32.xlu0 %v311, 86
  %v2031 = vpop.permute.xlu0 %2030
  %2032 = vrot.lane.b32.xlu0 %v312, 86
  %v2033 = vpop.permute.xlu0 %2032
  %2034 = vrot.lane.b32.xlu0 %v313, 86
  %v2035 = vpop.permute.xlu0 %2034
  %2036 = vrot.lane.b32.xlu0 %v314, 86
  %v2037 = vpop.permute.xlu0 %2036
  %2038 = vrot.lane.b32.xlu0 %v315, 86
  %v2039 = vpop.permute.xlu0 %2038
  %2040 = vrot.lane.b32.xlu0 %v316, 86
  %v2041 = vpop.permute.xlu0 %2040
  %vm2042 = vcmask 703488
  %v2043 = vsel %vm2042, %v2029, %v2031
  %v2044 = vsel %vm2042, %v2031, %v2033
  %v2045 = vsel %vm2042, %v2033, %v2035
  %v2046 = vsel %vm2042, %v2035, %v2037
  %v2047 = vsel %vm2042, %v2037, %v2039
  %v2048 = vsel %vm2042, %v2039, %v2041
  %v2050 = vsel %vm348, %v2027, 0
  %v2053 = vsel %vm352, %v2043, 0
  %v2056 = vsel %vm352, %v2044, 0
  %v2059 = vsel %vm352, %v2045, 0
  %v2062 = vsel %vm352, %v2046, 0
  %v2065 = vsel %vm352, %v2047, 0
  %v2068 = vsel %vm352, %v2048, 0
  %v2071 = vsel %vm352, %v2041, 0
  %2073 = vmatprep.subr.bf16.mxu0 %v2056
  %2074 = vmatpush1.bf16.msra.mxu0 %v2053
  %2075 = vmatprep.subr.bf16.mxu0 0
  %2076 = vmatpush1.bf16.msra.mxu0 0
  %2077 = vmatprep.subr.bf16.mxu0 0
  %2078 = vmatpush1.bf16.msra.mxu0 0
  %2079 = vmatprep.subr.bf16.mxu0 0
  %2080 = vmatpush1.bf16.msra.mxu0 0
  %2081 = vmatprep.subr.bf16.mxu0 0
  %2082 = vmatpush1.bf16.msra.mxu0 0
  %2083 = vmatprep.subr.bf16.mxu0 0
  %2084 = vmatpush1.bf16.msra.mxu0 0
  %2085 = vmatprep.subr.bf16.mxu0 0
  %2086 = vmatpush1.bf16.msra.mxu0 0
  %2087 = vmatprep.subr.bf16.mxu0 0
  %2088 = vmatpush1.bf16.msra.mxu0 0
  %2089 = vmatprep.subr.bf16.mxu0 0
  %2090 = vmatpush1.bf16.msra.mxu0 0
  %2091 = vmatprep.subr.bf16.mxu0 0
  %2092 = vmatpush1.bf16.msra.mxu0 0
  %2093 = vmatprep.subr.bf16.mxu0 0
  %2094 = vmatpush1.bf16.msra.mxu0 0
  %2095 = vmatprep.subr.bf16.mxu0 0
  %2096 = vmatpush1.bf16.msra.mxu0 0
  %2097 = vmatprep.subr.bf16.mxu0 0
  %2098 = vmatpush1.bf16.msra.mxu0 0
  %2099 = vmatprep.subr.bf16.mxu0 0
  %2100 = vmatpush1.bf16.msra.mxu0 0
  %2101 = vmatprep.subr.bf16.mxu0 0
  %2102 = vmatpush1.bf16.msra.mxu0 0
  %2103 = vmatprep.subr.bf16.mxu0 0
  %2104 = vmatpush1.bf16.msra.mxu0 0
  %2105 = vmatprep.mubr.bf16.mxu0 0
  %2106 = vmatmul.mubr.bf16.gmra.mrb[0].mxu0 %v2050
  %v2107 = vpop.f32.mrb[0].mxu0
  %v2108 = vadd.f32 0.0, %v2107
  %v2109 = vpop.f32.mrb[0].mxu0
  %v2110 = vadd.f32 0.0, %v2109
  %v2111 = vpop.f32.mrb[0].mxu0
  %v2112 = vpop.f32.mrb[0].mxu0
  %2113 = vdwg.mxu0
  %2114 = vmatprep.subr.bf16.mxu0 %v2062
  %2115 = vmatpush1.bf16.msra.mxu0 %v2059
  %2116 = vmatprep.subr.bf16.mxu0 0
  %2117 = vmatpush1.bf16.msra.mxu0 0
  %2118 = vmatprep.subr.bf16.mxu0 0
  %2119 = vmatpush1.bf16.msra.mxu0 0
  %2120 = vmatprep.subr.bf16.mxu0 0
  %2121 = vmatpush1.bf16.msra.mxu0 0
  %2122 = vmatprep.subr.bf16.mxu0 0
  %2123 = vmatpush1.bf16.msra.mxu0 0
  %2124 = vmatprep.subr.bf16.mxu0 0
  %2125 = vmatpush1.bf16.msra.mxu0 0
  %2126 = vmatprep.subr.bf16.mxu0 0
  %2127 = vmatpush1.bf16.msra.mxu0 0
  %2128 = vmatprep.subr.bf16.mxu0 0
  %2129 = vmatpush1.bf16.msra.mxu0 0
  %2130 = vmatprep.subr.bf16.mxu0 0
  %2131 = vmatpush1.bf16.msra.mxu0 0
  %2132 = vmatprep.subr.bf16.mxu0 0
  %2133 = vmatpush1.bf16.msra.mxu0 0
  %2134 = vmatprep.subr.bf16.mxu0 0
  %2135 = vmatpush1.bf16.msra.mxu0 0
  %2136 = vmatprep.subr.bf16.mxu0 0
  %2137 = vmatpush1.bf16.msra.mxu0 0
  %2138 = vmatprep.subr.bf16.mxu0 0
  %2139 = vmatpush1.bf16.msra.mxu0 0
  %2140 = vmatprep.subr.bf16.mxu0 0
  %2141 = vmatpush1.bf16.msra.mxu0 0
  %2142 = vmatprep.subr.bf16.mxu0 0
  %2143 = vmatpush1.bf16.msra.mxu0 0
  %2144 = vmatprep.subr.bf16.mxu0 0
  %2145 = vmatpush1.bf16.msra.mxu0 0
  %2146 = vmatprep.mubr.bf16.mxu0 0
  %2147 = vmatmul.mubr.bf16.gmra.mrb[0].mxu0 %v2050
  %v2148 = vpop.f32.mrb[0].mxu0
  %v2149 = vadd.f32 0.0, %v2148
  %v2150 = vpop.f32.mrb[0].mxu0
  %v2151 = vadd.f32 0.0, %v2150
  %v2152 = vpop.f32.mrb[0].mxu0
  %v2153 = vpop.f32.mrb[0].mxu0
  %2154 = vdwg.mxu0
  %2155 = vmatprep.subr.bf16.mxu0 %v2068
  %2156 = vmatpush1.bf16.msra.mxu0 %v2065
  %2157 = vmatprep.subr.bf16.mxu0 0
  %2158 = vmatpush1.bf16.msra.mxu0 0
  %2159 = vmatprep.subr.bf16.mxu0 0
  %2160 = vmatpush1.bf16.msra.mxu0 0
  %2161 = vmatprep.subr.bf16.mxu0 0
  %2162 = vmatpush1.bf16.msra.mxu0 0
  %2163 = vmatprep.subr.bf16.mxu0 0
  %2164 = vmatpush1.bf16.msra.mxu0 0
  %2165 = vmatprep.subr.bf16.mxu0 0
  %2166 = vmatpush1.bf16.msra.mxu0 0
  %2167 = vmatprep.subr.bf16.mxu0 0
  %2168 = vmatpush1.bf16.msra.mxu0 0
  %2169 = vmatprep.subr.bf16.mxu0 0
  %2170 = vmatpush1.bf16.msra.mxu0 0
  %2171 = vmatprep.subr.bf16.mxu0 0
  %2172 = vmatpush1.bf16.msra.mxu0 0
  %2173 = vmatprep.subr.bf16.mxu0 0
  %2174 = vmatpush1.bf16.msra.mxu0 0
  %2175 = vmatprep.subr.bf16.mxu0 0
  %2176 = vmatpush1.bf16.msra.mxu0 0
  %2177 = vmatprep.subr.bf16.mxu0 0
  %2178 = vmatpush1.bf16.msra.mxu0 0
  %2179 = vmatprep.subr.bf16.mxu0 0
  %2180 = vmatpush1.bf16.msra.mxu0 0
  %2181 = vmatprep.subr.bf16.mxu0 0
  %2182 = vmatpush1.bf16.msra.mxu0 0
  %2183 = vmatprep.subr.bf16.mxu0 0
  %2184 = vmatpush1.bf16.msra.mxu0 0
  %2185 = vmatprep.subr.bf16.mxu0 0
  %2186 = vmatpush1.bf16.msra.mxu0 0
  %2187 = vmatprep.mubr.bf16.mxu0 0
  %2188 = vmatmul.mubr.bf16.gmra.mrb[0].mxu0 %v2050
  %v2189 = vpop.f32.mrb[0].mxu0
  %v2190 = vadd.f32 0.0, %v2189
  %v2191 = vpop.f32.mrb[0].mxu0
  %v2192 = vadd.f32 0.0, %v2191
  %v2193 = vpop.f32.mrb[0].mxu0
  %v2194 = vpop.f32.mrb[0].mxu0
  %2195 = vdwg.mxu0
  %2196 = vmatprep.subr.bf16.mxu0 0
  %2197 = vmatpush1.bf16.msra.mxu0 %v2071
  %2198 = vmatprep.subr.bf16.mxu0 0
  %2199 = vmatpush1.bf16.msra.mxu0 0
  %2200 = vmatprep.subr.bf16.mxu0 0
  %2201 = vmatpush1.bf16.msra.mxu0 0
  %2202 = vmatprep.subr.bf16.mxu0 0
  %2203 = vmatpush1.bf16.msra.mxu0 0
  %2204 = vmatprep.subr.bf16.mxu0 0
  %2205 = vmatpush1.bf16.msra.mxu0 0
  %2206 = vmatprep.subr.bf16.mxu0 0
  %2207 = vmatpush1.bf16.msra.mxu0 0
  %2208 = vmatprep.subr.bf16.mxu0 0
  %2209 = vmatpush1.bf16.msra.mxu0 0
  %2210 = vmatprep.subr.bf16.mxu0 0
  %2211 = vmatpush1.bf16.msra.mxu0 0
  %2212 = vmatprep.subr.bf16.mxu0 0
  %2213 = vmatpush1.bf16.msra.mxu0 0
  %2214 = vmatprep.subr.bf16.mxu0 0
  %2215 = vmatpush1.bf16.msra.mxu0 0
  %2216 = vmatprep.subr.bf16.mxu0 0
  %2217 = vmatpush1.bf16.msra.mxu0 0
  %2218 = vmatprep.subr.bf16.mxu0 0
  %2219 = vmatpush1.bf16.msra.mxu0 0
  %2220 = vmatprep.subr.bf16.mxu0 0
  %2221 = vmatpush1.bf16.msra.mxu0 0
  %2222 = vmatprep.subr.bf16.mxu0 0
  %2223 = vmatpush1.bf16.msra.mxu0 0
  %2224 = vmatprep.subr.bf16.mxu0 0
  %2225 = vmatpush1.bf16.msra.mxu0 0
  %2226 = vmatprep.subr.bf16.mxu0 0
  %2227 = vmatpush1.bf16.msra.mxu0 0
  %2228 = vmatprep.mubr.bf16.mxu0 0
  %2229 = vmatmul.mubr.bf16.gmra.mrb[0].mxu0 %v2050
  %v2230 = vpop.f32.mrb[0].mxu0
  %v2231 = vadd.f32 0.0, %v2230
  %v2232 = vpop.f32.mrb[0].mxu0
  %v2233 = vpop.f32.mrb[0].mxu0
  %v2234 = vpop.f32.mrb[0].mxu0
  %2235 = vdwg.mxu0
  %v2236 = vadd.f32 %v2019, %v2108
  %v2237 = vadd.f32 %v2020, %v2110
  %v2238 = vadd.f32 %v2021, %v2149
  %v2239 = vadd.f32 %v2022, %v2151
  %v2240 = vadd.f32 %v2023, %v2190
  %v2241 = vadd.f32 %v2024, %v2192
  %v2242 = vadd.f32 %v2025, %v2231
  %vm2243 = vcmp.ge.f32.partialorder %v2236, 0.0
  %vm2244 = vcmp.ge.f32.partialorder %v2237, 0.0
  %vm2245 = vcmp.ge.f32.partialorder %v2238, 0.0
  %vm2246 = vcmp.ge.f32.partialorder %v2239, 0.0
  %vm2247 = vcmp.ge.f32.partialorder %v2240, 0.0
  %vm2248 = vcmp.ge.f32.partialorder %v2241, 0.0
  %vm2249 = vcmp.ge.f32.partialorder %v2242, 0.0
  %v2250 = vmul.f32 %v2236, 0.2
  %v2251 = vmul.f32 %v2237, 0.2
  %v2252 = vmul.f32 %v2238, 0.2
  %v2253 = vmul.f32 %v2239, 0.2
  %v2254 = vmul.f32 %v2240, 0.2
  %v2255 = vmul.f32 %v2241, 0.2
  %v2256 = vmul.f32 %v2242, 0.2
  %v2257 = vsel %vm2243, %v2236, %v2250
  %v2258 = vsel %vm2244, %v2237, %v2251
  %v2259 = vsel %vm2245, %v2238, %v2252
  %v2260 = vsel %vm2246, %v2239, %v2253
  %v2261 = vsel %vm2247, %v2240, %v2254
  %v2262 = vsel %vm2248, %v2241, %v2255
  %v2263 = vsel %vm2249, %v2242, %v2256
  %v2264 = vmul.f32 %v2257, 1.4
  %v2265 = vmul.f32 %v2258, 1.4
  %v2266 = vmul.f32 %v2259, 1.4
  %v2267 = vmul.f32 %v2260, 1.4
  %v2268 = vmul.f32 %v2261, 1.4
  %v2269 = vmul.f32 %v2262, 1.4
  %v2270 = vmul.f32 %v2263, 1.4
  %v2271 = vld [vmem:[%s5] sm:$0xff]
  %v2272 = vld [vmem:[%s5 + $0x8] sm:$0xf]
  %v2273 = vld [vmem:[%s5 + $0xc] sm:$0xff]
  %v2274 = vld [vmem:[%s5 + $0x14] sm:$0xf]
  %v2275 = vld [vmem:[%s5 + $0x18] sm:$0xff]
  %v2276 = vld [vmem:[%s5 + $0x20] sm:$0xf]
  %v2277 = vld [vmem:[%s5 + $0x24] sm:$0xff]
  %v2278 = vld [vmem:[%s5 + $0x2c] sm:$0xf]
  %v2279 = vld [vmem:[%s5 + $0x30] sm:$0xff]
  %v2280 = vld [vmem:[%s5 + $0x38] sm:$0xf]
  %v2281 = vld [vmem:[%s5 + $0x3c] sm:$0xff]
  %v2282 = vld [vmem:[%s5 + $0x44] sm:$0xf]
  %v2283 = vld [vmem:[%s5 + $0x48] sm:$0xff]
  %v2284 = vld [vmem:[%s5 + $0x50] sm:$0xf]
  %v2285 = vld [vmem:[%s5 + $0x54] sm:$0xff]
  %v2286 = vld [vmem:[%s5 + $0x5c] sm:$0xf]
  %v2287 = vld [vmem:[%s5 + $0x60] sm:$0xff]
  %v2288 = vld [vmem:[%s5 + $0x68] sm:$0xf]
  %v2289 = vld [vmem:[%s5 + $0x6c] sm:$0xff]
  %v2290 = vld [vmem:[%s5 + $0x74] sm:$0xf]
  %v2291 = vld [vmem:[%s5 + $0x78] sm:$0xff]
  %v2292 = vld [vmem:[%s5 + $0x80] sm:$0xf]
  %v2293 = vld [vmem:[%s5 + $0x84] sm:$0xff]
  %v2294 = vld [vmem:[%s5 + $0x8c] sm:$0xf]
  %v2295 = vld [vmem:[%s5 + $0x90] sm:$0xff]
  %v2296 = vld [vmem:[%s5 + $0x98] sm:$0xf]
  %v2297 = vld [vmem:[%s5 + $0x9c] sm:$0xff]
  %v2298 = vld [vmem:[%s5 + $0xa4] sm:$0xf]
  %v2299 = vld [vmem:[%s5 + $0xa8] sm:$0xff]
  %v2300 = vld [vmem:[%s5 + $0xb0] sm:$0xf]
  %v2301 = vld [vmem:[%s5 + $0xb4] sm:$0xff]
  %v2302 = vld [vmem:[%s5 + $0xbc] sm:$0xf]
  %v2303 = vld [vmem:[%s5 + $0xc0] sm:$0xff]
  %v2304 = vld [vmem:[%s5 + $0xc8] sm:$0xf]
  %v2305 = vld [vmem:[%s5 + $0xcc] sm:$0xff]
  %v2306 = vld [vmem:[%s5 + $0xd4] sm:$0xf]
  %v2307 = vld [vmem:[%s5 + $0xd8] sm:$0xff]
  %v2308 = vld [vmem:[%s5 + $0xe0] sm:$0xf]
  %v2309 = vld [vmem:[%s5 + $0xe4] sm:$0xff]
  %v2310 = vld [vmem:[%s5 + $0xec] sm:$0xf]
  %v2311 = vld [vmem:[%s5 + $0xf0] sm:$0xff]
  %v2312 = vld [vmem:[%s5 + $0xf8] sm:$0xf]
  %v2313 = vld [vmem:[%s5 + $0xfc] sm:$0xff]
  %v2314 = vld [vmem:[%s5 + $0x104] sm:$0xf]
  %v2315 = vld [vmem:[%s5 + $0x108] sm:$0xff]
  %v2316 = vld [vmem:[%s5 + $0x110] sm:$0xf]
  %v2317 = vld [vmem:[%s5 + $0x114] sm:$0xff]
  %v2318 = vld [vmem:[%s5 + $0x11c] sm:$0xf]
  %v2319 = vld [vmem:[%s5 + $0x120] sm:$0xff]
  %v2320 = vld [vmem:[%s5 + $0x128] sm:$0xf]
  %v2321 = vld [vmem:[%s5 + $0x12c] sm:$0xff]
  %v2322 = vld [vmem:[%s5 + $0x134] sm:$0xf]
  %v2323 = vld [vmem:[%s5 + $0x138] sm:$0xff]
  %v2324 = vld [vmem:[%s5 + $0x140] sm:$0xf]
  %v2325 = vld [vmem:[%s5 + $0x144] sm:$0xff]
  %v2326 = vld [vmem:[%s5 + $0x14c] sm:$0xf]
  %v2327 = vld [vmem:[%s5 + $0x150] sm:$0xff]
  %v2328 = vld [vmem:[%s5 + $0x158] sm:$0xf]
  %v2329 = vld [vmem:[%s5 + $0x15c] sm:$0xff]
  %v2330 = vld [vmem:[%s5 + $0x164] sm:$0xf]
  %v2331 = vld [vmem:[%s5 + $0x168] sm:$0xff]
  %v2332 = vld [vmem:[%s5 + $0x170] sm:$0xf]
  %v2333 = vld [vmem:[%s5 + $0x174] sm:$0xff]
  %v2334 = vld [vmem:[%s5 + $0x17c] sm:$0xf]
  %v2335 = vld [vmem:[%s5 + $0x180] sm:$0xff]
  %v2336 = vld [vmem:[%s5 + $0x188] sm:$0xf]
  %v2337 = vld [vmem:[%s5 + $0x18c] sm:$0xff]
  %v2338 = vld [vmem:[%s5 + $0x194] sm:$0xf]
  %v2339 = vld [vmem:[%s5 + $0x198] sm:$0xff]
  %v2340 = vld [vmem:[%s5 + $0x1a0] sm:$0xf]
  %v2341 = vld [vmem:[%s5 + $0x1a4] sm:$0xff]
  %v2342 = vld [vmem:[%s5 + $0x1ac] sm:$0xf]
  %v2343 = vld [vmem:[%s5 + $0x1b0] sm:$0xff]
  %v2344 = vld [vmem:[%s5 + $0x1b8] sm:$0xf]
  %v2345 = vld [vmem:[%s5 + $0x1bc] sm:$0xff]
  %v2346 = vld [vmem:[%s5 + $0x1c4] sm:$0xf]
  %v2347 = vld [vmem:[%s5 + $0x1c8] sm:$0xff]
  %v2348 = vld [vmem:[%s5 + $0x1d0] sm:$0xf]
  %v2349 = vld [vmem:[%s5 + $0x1d4] sm:$0xff]
  %v2350 = vld [vmem:[%s5 + $0x1dc] sm:$0xf]
  %v2351 = vld [vmem:[%s5 + $0x1e0] sm:$0xff]
  %v2352 = vld [vmem:[%s5 + $0x1e8] sm:$0xf]
  %v2353 = vld [vmem:[%s5 + $0x1ec] sm:$0xff]
  %v2354 = vld [vmem:[%s5 + $0x1f4] sm:$0xf]
  %v2355 = vld [vmem:[%s5 + $0x1f8] sm:$0xff]
  %v2356 = vld [vmem:[%s5 + $0x200] sm:$0xf]
  %v2357 = vld [vmem:[%s5 + $0x204] sm:$0xff]
  %v2358 = vld [vmem:[%s5 + $0x20c] sm:$0xf]
  %v2359 = vld [vmem:[%s5 + $0x210] sm:$0xff]
  %v2360 = vld [vmem:[%s5 + $0x218] sm:$0xf]
  %v2361 = vld [vmem:[%s5 + $0x21c] sm:$0xff]
  %v2362 = vld [vmem:[%s5 + $0x224] sm:$0xf]
  %v2363 = vld [vmem:[%s5 + $0x228] sm:$0xff]
  %v2364 = vld [vmem:[%s5 + $0x230] sm:$0xf]
  %v2365 = vld [vmem:[%s5 + $0x234] sm:$0xff]
  %v2366 = vld [vmem:[%s5 + $0x23c] sm:$0xf]
  %v2367 = vld [vmem:[%s5 + $0x240] sm:$0xff]
  %v2368 = vld [vmem:[%s5 + $0x248] sm:$0xf]
  %v2369 = vld [vmem:[%s5 + $0x24c] sm:$0xff]
  %v2370 = vld [vmem:[%s5 + $0x254] sm:$0xf]
  %v2371 = vld [vmem:[%s5 + $0x258] sm:$0xff]
  %v2372 = vld [vmem:[%s5 + $0x260] sm:$0xf]
  %v2373 = vld [vmem:[%s5 + $0x264] sm:$0xff]
  %v2374 = vld [vmem:[%s5 + $0x26c] sm:$0xf]
  %v2375 = vld [vmem:[%s5 + $0x270] sm:$0xff]
  %v2376 = vld [vmem:[%s5 + $0x278] sm:$0xf]
  %v2377 = vld [vmem:[%s5 + $0x27c] sm:$0xff]
  %v2378 = vld [vmem:[%s5 + $0x284] sm:$0xf]
  %v2379 = vld [vmem:[%s5 + $0x288] sm:$0xff]
  %v2380 = vld [vmem:[%s5 + $0x290] sm:$0xf]
  %v2381 = vld [vmem:[%s5 + $0x294] sm:$0xff]
  %v2382 = vld [vmem:[%s5 + $0x29c] sm:$0xf]
  %v2383 = vld [vmem:[%s5 + $0x2a0] sm:$0xff]
  %v2384 = vld [vmem:[%s5 + $0x2a8] sm:$0xf]
  %v2385 = vld [vmem:[%s5 + $0x2ac] sm:$0xff]
  %v2386 = vld [vmem:[%s5 + $0x2b4] sm:$0xf]
  %v2387 = vld [vmem:[%s5 + $0x2b8] sm:$0xff]
  %v2388 = vld [vmem:[%s5 + $0x2c0] sm:$0xf]
  %v2389 = vld [vmem:[%s5 + $0x2c4] sm:$0xff]
  %v2390 = vld [vmem:[%s5 + $0x2cc] sm:$0xf]
  %v2391 = vld [vmem:[%s5 + $0x2d0] sm:$0xff]
  %v2392 = vld [vmem:[%s5 + $0x2d8] sm:$0xf]
  %v2393 = vld [vmem:[%s5 + $0x2dc] sm:$0xff]
  %v2394 = vld [vmem:[%s5 + $0x2e4] sm:$0xf]
  %v2395 = vld [vmem:[%s5 + $0x2e8] sm:$0xff]
  %v2396 = vld [vmem:[%s5 + $0x2f0] sm:$0xf]
  %v2397 = vld [vmem:[%s5 + $0x2f4] sm:$0xff]
  %v2398 = vld [vmem:[%s5 + $0x2fc] sm:$0xf]
  %v2399 = vld [vmem:[%s5 + $0x300] sm:$0xff]
  %v2400 = vld [vmem:[%s5 + $0x308] sm:$0xf]
  %v2401 = vld [vmem:[%s5 + $0x30c] sm:$0xff]
  %v2402 = vld [vmem:[%s5 + $0x314] sm:$0xf]
  %v2403 = vld [vmem:[%s5 + $0x318] sm:$0xff]
  %v2404 = vld [vmem:[%s5 + $0x320] sm:$0xf]
  %v2405 = vld [vmem:[%s5 + $0x324] sm:$0xff]
  %v2406 = vld [vmem:[%s5 + $0x32c] sm:$0xf]
  %v2407 = vld [vmem:[%s5 + $0x330] sm:$0xff]
  %v2408 = vld [vmem:[%s5 + $0x338] sm:$0xf]
  %v2409 = vld [vmem:[%s5 + $0x33c] sm:$0xff]
  %v2410 = vld [vmem:[%s5 + $0x344] sm:$0xf]
  %v2411 = vld [vmem:[%s5 + $0x348] sm:$0xff]
  %v2412 = vld [vmem:[%s5 + $0x350] sm:$0xf]
  %v2413 = vld [vmem:[%s5 + $0x354] sm:$0xff]
  %v2414 = vld [vmem:[%s5 + $0x35c] sm:$0xf]
  %v2415 = vld [vmem:[%s5 + $0x360] sm:$0xff]
  %v2416 = vld [vmem:[%s5 + $0x368] sm:$0xf]
  %v2417 = vld [vmem:[%s5 + $0x36c] sm:$0xff]
  %v2418 = vld [vmem:[%s5 + $0x374] sm:$0xf]
  %v2419 = vld [vmem:[%s5 + $0x378] sm:$0xff]
  %v2420 = vld [vmem:[%s5 + $0x380] sm:$0xf]
  %v2421 = vld [vmem:[%s5 + $0x384] sm:$0xff]
  %v2422 = vld [vmem:[%s5 + $0x38c] sm:$0xf]
  %v2423 = vld [vmem:[%s5 + $0x390] sm:$0xff]
  %v2424 = vld [vmem:[%s5 + $0x398] sm:$0xf]
  %v2425 = vld [vmem:[%s5 + $0x39c] sm:$0xff]
  %v2426 = vld [vmem:[%s5 + $0x3a4] sm:$0xf]
  %v2427 = vld [vmem:[%s5 + $0x3a8] sm:$0xff]
  %v2428 = vld [vmem:[%s5 + $0x3b0] sm:$0xf]
  %v2429 = vld [vmem:[%s5 + $0x3b4] sm:$0xff]
  %v2430 = vld [vmem:[%s5 + $0x3bc] sm:$0xf]
  %v2431 = vld [vmem:[%s5 + $0x3c0] sm:$0xff]
  %v2432 = vld [vmem:[%s5 + $0x3c8] sm:$0xf]
  %v2433 = vld [vmem:[%s5 + $0x3cc] sm:$0xff]
  %v2434 = vld [vmem:[%s5 + $0x3d4] sm:$0xf]
  %v2435 = vld [vmem:[%s5 + $0x3d8] sm:$0xff]
  %v2436 = vld [vmem:[%s5 + $0x3e0] sm:$0xf]
  %v2437 = vld [vmem:[%s5 + $0x3e4] sm:$0xff]
  %v2438 = vld [vmem:[%s5 + $0x3ec] sm:$0xf]
  %v2439 = vld [vmem:[%s5 + $0x3f0] sm:$0xff]
  %v2440 = vld [vmem:[%s5 + $0x3f8] sm:$0xf]
  %v2441 = vld [vmem:[%s5 + $0x3fc] sm:$0xff]
  %v2442 = vld [vmem:[%s5 + $0x404] sm:$0xf]
  %v2443 = vld [vmem:[%s5 + $0x408] sm:$0xff]
  %v2444 = vld [vmem:[%s5 + $0x410] sm:$0xf]
  %v2445 = vld [vmem:[%s5 + $0x414] sm:$0xff]
  %v2446 = vld [vmem:[%s5 + $0x41c] sm:$0xf]
  %v2447 = vld [vmem:[%s5 + $0x420] sm:$0xff]
  %v2448 = vld [vmem:[%s5 + $0x428] sm:$0xf]
  %v2449 = vld [vmem:[%s5 + $0x42c] sm:$0xff]
  %v2450 = vld [vmem:[%s5 + $0x434] sm:$0xf]
  %v2451 = vld [vmem:[%s5 + $0x438] sm:$0xff]
  %v2452 = vld [vmem:[%s5 + $0x440] sm:$0xf]
  %v2453 = vld [vmem:[%s5 + $0x444] sm:$0xff]
  %v2454 = vld [vmem:[%s5 + $0x44c] sm:$0xf]
  %v2455 = vld [vmem:[%s5 + $0x450] sm:$0xff]
  %v2456 = vld [vmem:[%s5 + $0x458] sm:$0xf]
  %v2457 = vld [vmem:[%s5 + $0x45c] sm:$0xff]
  %v2458 = vld [vmem:[%s5 + $0x464] sm:$0xf]
  %v2459 = vld [vmem:[%s5 + $0x468] sm:$0xff]
  %v2460 = vld [vmem:[%s5 + $0x470] sm:$0xf]
  %v2461 = vld [vmem:[%s5 + $0x474] sm:$0xff]
  %v2462 = vld [vmem:[%s5 + $0x47c] sm:$0xf]
  %v2463 = vld [vmem:[%s5 + $0x480] sm:$0xff]
  %v2464 = vld [vmem:[%s5 + $0x488] sm:$0xf]
  %v2465 = vld [vmem:[%s5 + $0x48c] sm:$0xff]
  %v2466 = vld [vmem:[%s5 + $0x494] sm:$0xf]
  %v2467 = vld [vmem:[%s5 + $0x498] sm:$0xff]
  %v2468 = vld [vmem:[%s5 + $0x4a0] sm:$0xf]
  %v2469 = vld [vmem:[%s5 + $0x4a4] sm:$0xff]
  %v2470 = vld [vmem:[%s5 + $0x4ac] sm:$0xf]
  %v2471 = vpack.c.bf16 %v2264, %v2264
  %v2472 = vpack.c.bf16 %v2265, %v2265
  %v2473 = vpack.c.bf16 %v2266, %v2266
  %v2474 = vpack.c.bf16 %v2267, %v2267
  %v2475 = vpack.c.bf16 %v2268, %v2268
  %v2476 = vpack.c.bf16 %v2269, %v2269
  %v2477 = vpack.c.bf16 %v2270, %v2270
  %v2678 = vunpack.c.l.b16 %v2271
  %v2679 = vunpack.c.h.b16 %v2271
  %v2680 = vunpack.c.l.b16 %v2272
  %v2681 = vunpack.c.l.b16 %v2273
  %v2682 = vunpack.c.h.b16 %v2273
  %v2683 = vunpack.c.l.b16 %v2274
  %v2684 = vunpack.c.l.b16 %v2275
  %v2685 = vunpack.c.h.b16 %v2275
  %v2686 = vunpack.c.l.b16 %v2276
  %v2687 = vunpack.c.l.b16 %v2277
  %v2688 = vunpack.c.h.b16 %v2277
  %v2689 = vunpack.c.l.b16 %v2278
  %v2690 = vunpack.c.l.b16 %v2279
  %v2691 = vunpack.c.h.b16 %v2279
  %v2692 = vunpack.c.l.b16 %v2280
  %v2693 = vunpack.c.l.b16 %v2281
  %v2694 = vunpack.c.h.b16 %v2281
  %v2695 = vunpack.c.l.b16 %v2282
  %v2696 = vunpack.c.l.b16 %v2283
  %v2697 = vunpack.c.h.b16 %v2283
  %v2698 = vunpack.c.l.b16 %v2284
  %v2699 = vunpack.c.l.b16 %v2285
  %v2700 = vunpack.c.h.b16 %v2285
  %v2701 = vunpack.c.l.b16 %v2286
  %v2702 = vunpack.c.l.b16 %v2287
  %v2703 = vunpack.c.h.b16 %v2287
  %v2704 = vunpack.c.l.b16 %v2288
  %v2705 = vunpack.c.l.b16 %v2289
  %v2706 = vunpack.c.h.b16 %v2289
  %v2707 = vunpack.c.l.b16 %v2290
  %v2708 = vunpack.c.l.b16 %v2291
  %v2709 = vunpack.c.h.b16 %v2291
  %v2710 = vunpack.c.l.b16 %v2292
  %v2711 = vunpack.c.l.b16 %v2293
  %v2712 = vunpack.c.h.b16 %v2293
  %v2713 = vunpack.c.l.b16 %v2294
  %v2714 = vunpack.c.l.b16 %v2295
  %v2715 = vunpack.c.h.b16 %v2295
  %v2716 = vunpack.c.l.b16 %v2296
  %v2717 = vunpack.c.l.b16 %v2297
  %v2718 = vunpack.c.h.b16 %v2297
  %v2719 = vunpack.c.l.b16 %v2298
  %v2720 = vunpack.c.l.b16 %v2299
  %v2721 = vunpack.c.h.b16 %v2299
  %v2722 = vunpack.c.l.b16 %v2300
  %v2723 = vunpack.c.l.b16 %v2301
  %v2724 = vunpack.c.h.b16 %v2301
  %v2725 = vunpack.c.l.b16 %v2302
  %v2726 = vunpack.c.l.b16 %v2303
  %v2727 = vunpack.c.h.b16 %v2303
  %v2728 = vunpack.c.l.b16 %v2304
  %v2729 = vunpack.c.l.b16 %v2305
  %v2730 = vunpack.c.h.b16 %v2305
  %v2731 = vunpack.c.l.b16 %v2306
  %v2732 = vunpack.c.l.b16 %v2307
  %v2733 = vunpack.c.h.b16 %v2307
  %v2734 = vunpack.c.l.b16 %v2308
  %v2735 = vunpack.c.l.b16 %v2309
  %v2736 = vunpack.c.h.b16 %v2309
  %v2737 = vunpack.c.l.b16 %v2310
  %v2738 = vunpack.c.l.b16 %v2311
  %v2739 = vunpack.c.h.b16 %v2311
  %v2740 = vunpack.c.l.b16 %v2312
  %v2741 = vunpack.c.l.b16 %v2313
  %v2742 = vunpack.c.h.b16 %v2313
  %v2743 = vunpack.c.l.b16 %v2314
  %v2744 = vunpack.c.l.b16 %v2315
  %v2745 = vunpack.c.h.b16 %v2315
  %v2746 = vunpack.c.l.b16 %v2316
  %v2747 = vunpack.c.l.b16 %v2317
  %v2748 = vunpack.c.h.b16 %v2317
  %v2749 = vunpack.c.l.b16 %v2318
  %v2750 = vunpack.c.l.b16 %v2319
  %v2751 = vunpack.c.h.b16 %v2319
  %v2752 = vunpack.c.l.b16 %v2320
  %v2753 = vunpack.c.l.b16 %v2321
  %v2754 = vunpack.c.h.b16 %v2321
  %v2755 = vunpack.c.l.b16 %v2322
  %v2756 = vunpack.c.l.b16 %v2323
  %v2757 = vunpack.c.h.b16 %v2323
  %v2758 = vunpack.c.l.b16 %v2324
  %v2759 = vunpack.c.l.b16 %v2325
  %v2760 = vunpack.c.h.b16 %v2325
  %v2761 = vunpack.c.l.b16 %v2326
  %v2762 = vunpack.c.l.b16 %v2327
  %v2763 = vunpack.c.h.b16 %v2327
  %v2764 = vunpack.c.l.b16 %v2328
  %v2765 = vunpack.c.l.b16 %v2329
  %v2766 = vunpack.c.h.b16 %v2329
  %v2767 = vunpack.c.l.b16 %v2330
  %v2768 = vunpack.c.l.b16 %v2331
  %v2769 = vunpack.c.h.b16 %v2331
  %v2770 = vunpack.c.l.b16 %v2332
  %v2771 = vunpack.c.l.b16 %v2333
  %v2772 = vunpack.c.h.b16 %v2333
  %v2773 = vunpack.c.l.b16 %v2334
  %v2774 = vunpack.c.l.b16 %v2335
  %v2775 = vunpack.c.h.b16 %v2335
  %v2776 = vunpack.c.l.b16 %v2336
  %v2777 = vunpack.c.l.b16 %v2337
  %v2778 = vunpack.c.h.b16 %v2337
  %v2779 = vunpack.c.l.b16 %v2338
  %v2780 = vunpack.c.l.b16 %v2339
  %v2781 = vunpack.c.h.b16 %v2339
  %v2782 = vunpack.c.l.b16 %v2340
  %v2783 = vunpack.c.l.b16 %v2341
  %v2784 = vunpack.c.h.b16 %v2341
  %v2785 = vunpack.c.l.b16 %v2342
  %v2786 = vunpack.c.l.b16 %v2343
  %v2787 = vunpack.c.h.b16 %v2343
  %v2788 = vunpack.c.l.b16 %v2344
  %v2789 = vunpack.c.l.b16 %v2345
  %v2790 = vunpack.c.h.b16 %v2345
  %v2791 = vunpack.c.l.b16 %v2346
  %v2792 = vunpack.c.l.b16 %v2347
  %v2793 = vunpack.c.h.b16 %v2347
  %v2794 = vunpack.c.l.b16 %v2348
  %v2795 = vunpack.c.l.b16 %v2349
  %v2796 = vunpack.c.h.b16 %v2349
  %v2797 = vunpack.c.l.b16 %v2350
  %v2798 = vunpack.c.l.b16 %v2351
  %v2799 = vunpack.c.h.b16 %v2351
  %v2800 = vunpack.c.l.b16 %v2352
  %v2801 = vunpack.c.l.b16 %v2353
  %v2802 = vunpack.c.h.b16 %v2353
  %v2803 = vunpack.c.l.b16 %v2354
  %v2804 = vunpack.c.l.b16 %v2355
  %v2805 = vunpack.c.h.b16 %v2355
  %v2806 = vunpack.c.l.b16 %v2356
  %v2807 = vunpack.c.l.b16 %v2357
  %v2808 = vunpack.c.h.b16 %v2357
  %v2809 = vunpack.c.l.b16 %v2358
  %v2810 = vunpack.c.l.b16 %v2359
  %v2811 = vunpack.c.h.b16 %v2359
  %v2812 = vunpack.c.l.b16 %v2360
  %v2813 = vunpack.c.l.b16 %v2361
  %v2814 = vunpack.c.h.b16 %v2361
  %v2815 = vunpack.c.l.b16 %v2362
  %v2816 = vunpack.c.l.b16 %v2363
  %v2817 = vunpack.c.h.b16 %v2363
  %v2818 = vunpack.c.l.b16 %v2364
  %v2819 = vunpack.c.l.b16 %v2365
  %v2820 = vunpack.c.h.b16 %v2365
  %v2821 = vunpack.c.l.b16 %v2366
  %v2822 = vunpack.c.l.b16 %v2367
  %v2823 = vunpack.c.h.b16 %v2367
  %v2824 = vunpack.c.l.b16 %v2368
  %v2825 = vunpack.c.l.b16 %v2369
  %v2826 = vunpack.c.h.b16 %v2369
  %v2827 = vunpack.c.l.b16 %v2370
  %v2828 = vunpack.c.l.b16 %v2371
  %v2829 = vunpack.c.h.b16 %v2371
  %v2830 = vunpack.c.l.b16 %v2372
  %v2831 = vunpack.c.l.b16 %v2373
  %v2832 = vunpack.c.h.b16 %v2373
  %v2833 = vunpack.c.l.b16 %v2374
  %v2834 = vunpack.c.l.b16 %v2375
  %v2835 = vunpack.c.h.b16 %v2375
  %v2836 = vunpack.c.l.b16 %v2376
  %v2837 = vunpack.c.l.b16 %v2377
  %v2838 = vunpack.c.h.b16 %v2377
  %v2839 = vunpack.c.l.b16 %v2378
  %v2840 = vunpack.c.l.b16 %v2379
  %v2841 = vunpack.c.h.b16 %v2379
  %v2842 = vunpack.c.l.b16 %v2380
  %v2843 = vunpack.c.l.b16 %v2381
  %v2844 = vunpack.c.h.b16 %v2381
  %v2845 = vunpack.c.l.b16 %v2382
  %v2846 = vunpack.c.l.b16 %v2383
  %v2847 = vunpack.c.h.b16 %v2383
  %v2848 = vunpack.c.l.b16 %v2384
  %v2849 = vunpack.c.l.b16 %v2385
  %v2850 = vunpack.c.h.b16 %v2385
  %v2851 = vunpack.c.l.b16 %v2386
  %v2852 = vunpack.c.l.b16 %v2387
  %v2853 = vunpack.c.h.b16 %v2387
  %v2854 = vunpack.c.l.b16 %v2388
  %v2855 = vunpack.c.l.b16 %v2389
  %v2856 = vunpack.c.h.b16 %v2389
  %v2857 = vunpack.c.l.b16 %v2390
  %v2858 = vunpack.c.l.b16 %v2391
  %v2859 = vunpack.c.h.b16 %v2391
  %v2860 = vunpack.c.l.b16 %v2392
  %v2861 = vunpack.c.l.b16 %v2393
  %v2862 = vunpack.c.h.b16 %v2393
  %v2863 = vunpack.c.l.b16 %v2394
  %v2864 = vunpack.c.l.b16 %v2395
  %v2865 = vunpack.c.h.b16 %v2395
  %v2866 = vunpack.c.l.b16 %v2396
  %v2867 = vunpack.c.l.b16 %v2397
  %v2868 = vunpack.c.h.b16 %v2397
  %v2869 = vunpack.c.l.b16 %v2398
  %v2870 = vunpack.c.l.b16 %v2399
  %v2871 = vunpack.c.h.b16 %v2399
  %v2872 = vunpack.c.l.b16 %v2400
  %v2873 = vunpack.c.l.b16 %v2401
  %v2874 = vunpack.c.h.b16 %v2401
  %v2875 = vunpack.c.l.b16 %v2402
  %v2876 = vunpack.c.l.b16 %v2403
  %v2877 = vunpack.c.h.b16 %v2403
  %v2878 = vunpack.c.l.b16 %v2404
  %v2879 = vunpack.c.l.b16 %v2405
  %v2880 = vunpack.c.h.b16 %v2405
  %v2881 = vunpack.c.l.b16 %v2406
  %v2882 = vunpack.c.l.b16 %v2407
  %v2883 = vunpack.c.h.b16 %v2407
  %v2884 = vunpack.c.l.b16 %v2408
  %v2885 = vunpack.c.l.b16 %v2409
  %v2886 = vunpack.c.h.b16 %v2409
  %v2887 = vunpack.c.l.b16 %v2410
  %v2888 = vunpack.c.l.b16 %v2411
  %v2889 = vunpack.c.h.b16 %v2411
  %v2890 = vunpack.c.l.b16 %v2412
  %v2891 = vunpack.c.l.b16 %v2413
  %v2892 = vunpack.c.h.b16 %v2413
  %v2893 = vunpack.c.l.b16 %v2414
  %v2894 = vunpack.c.l.b16 %v2415
  %v2895 = vunpack.c.h.b16 %v2415
  %v2896 = vunpack.c.l.b16 %v2416
  %v2897 = vunpack.c.l.b16 %v2417
  %v2898 = vunpack.c.h.b16 %v2417
  %v2899 = vunpack.c.l.b16 %v2418
  %v2900 = vunpack.c.l.b16 %v2419
  %v2901 = vunpack.c.h.b16 %v2419
  %v2902 = vunpack.c.l.b16 %v2420
  %v2903 = vunpack.c.l.b16 %v2421
  %v2904 = vunpack.c.h.b16 %v2421
  %v2905 = vunpack.c.l.b16 %v2422
  %v2906 = vunpack.c.l.b16 %v2423
  %v2907 = vunpack.c.h.b16 %v2423
  %v2908 = vunpack.c.l.b16 %v2424
  %v2909 = vunpack.c.l.b16 %v2425
  %v2910 = vunpack.c.h.b16 %v2425
  %v2911 = vunpack.c.l.b16 %v2426
  %v2912 = vunpack.c.l.b16 %v2427
  %v2913 = vunpack.c.h.b16 %v2427
  %v2914 = vunpack.c.l.b16 %v2428
  %v2915 = vunpack.c.l.b16 %v2429
  %v2916 = vunpack.c.h.b16 %v2429
  %v2917 = vunpack.c.l.b16 %v2430
  %v2918 = vunpack.c.l.b16 %v2431
  %v2919 = vunpack.c.h.b16 %v2431
  %v2920 = vunpack.c.l.b16 %v2432
  %v2921 = vunpack.c.l.b16 %v2433
  %v2922 = vunpack.c.h.b16 %v2433
  %v2923 = vunpack.c.l.b16 %v2434
  %v2924 = vunpack.c.l.b16 %v2435
  %v2925 = vunpack.c.h.b16 %v2435
  %v2926 = vunpack.c.l.b16 %v2436
  %v2927 = vunpack.c.l.b16 %v2437
  %v2928 = vunpack.c.h.b16 %v2437
  %v2929 = vunpack.c.l.b16 %v2438
  %v2930 = vunpack.c.l.b16 %v2439
  %v2931 = vunpack.c.h.b16 %v2439
  %v2932 = vunpack.c.l.b16 %v2440
  %v2933 = vunpack.c.l.b16 %v2441
  %v2934 = vunpack.c.h.b16 %v2441
  %v2935 = vunpack.c.l.b16 %v2442
  %v2936 = vunpack.c.l.b16 %v2443
  %v2937 = vunpack.c.h.b16 %v2443
  %v2938 = vunpack.c.l.b16 %v2444
  %v2939 = vunpack.c.l.b16 %v2445
  %v2940 = vunpack.c.h.b16 %v2445
  %v2941 = vunpack.c.l.b16 %v2446
  %v2942 = vunpack.c.l.b16 %v2447
  %v2943 = vunpack.c.h.b16 %v2447
  %v2944 = vunpack.c.l.b16 %v2448
  %v2945 = vunpack.c.l.b16 %v2449
  %v2946 = vunpack.c.h.b16 %v2449
  %v2947 = vunpack.c.l.b16 %v2450
  %v2948 = vunpack.c.l.b16 %v2451
  %v2949 = vunpack.c.h.b16 %v2451
  %v2950 = vunpack.c.l.b16 %v2452
  %v2951 = vunpack.c.l.b16 %v2453
  %v2952 = vunpack.c.h.b16 %v2453
  %v2953 = vunpack.c.l.b16 %v2454
  %v2954 = vunpack.c.l.b16 %v2455
  %v2955 = vunpack.c.h.b16 %v2455
  %v2956 = vunpack.c.l.b16 %v2456
  %v2957 = vunpack.c.l.b16 %v2457
  %v2958 = vunpack.c.h.b16 %v2457
  %v2959 = vunpack.c.l.b16 %v2458
  %v2960 = vunpack.c.l.b16 %v2459
  %v2961 = vunpack.c.h.b16 %v2459
  %v2962 = vunpack.c.l.b16 %v2460
  %v2963 = vunpack.c.l.b16 %v2461
  %v2964 = vunpack.c.h.b16 %v2461
  %v2965 = vunpack.c.l.b16 %v2462
  %v2966 = vunpack.c.l.b16 %v2463
  %v2967 = vunpack.c.h.b16 %v2463
  %v2968 = vunpack.c.l.b16 %v2464
  %v2969 = vunpack.c.l.b16 %v2465
  %v2970 = vunpack.c.h.b16 %v2465
  %v2971 = vunpack.c.l.b16 %v2466
  %v2972 = vunpack.c.l.b16 %v2467
  %v2973 = vunpack.c.h.b16 %v2467
  %v2974 = vunpack.c.l.b16 %v2468
  %v2975 = vunpack.c.l.b16 %v2469
  %v2976 = vunpack.c.h.b16 %v2469
  %v2977 = vunpack.c.l.b16 %v2470
  %v2978 = vpack.c.b16 %v2681, %v2678
  %v2979 = vpack.c.b16 %v2682, %v2679
  %v2980 = vpack.c.b16 %v2683, %v2680
  %v2981 = vpack.c.b16 %v2687, %v2684
  %v2982 = vpack.c.b16 %v2688, %v2685
  %v2983 = vpack.c.b16 %v2689, %v2686
  %v2984 = vpack.c.b16 %v2693, %v2690
  %v2985 = vpack.c.b16 %v2694, %v2691
  %v2986 = vpack.c.b16 %v2695, %v2692
  %v2987 = vpack.c.b16 %v2699, %v2696
  %v2988 = vpack.c.b16 %v2700, %v2697
  %v2989 = vpack.c.b16 %v2701, %v2698
  %v2990 = vpack.c.b16 %v2705, %v2702
  %v2991 = vpack.c.b16 %v2706, %v2703
  %v2992 = vpack.c.b16 %v2707, %v2704
  %v2993 = vpack.c.b16 %v2711, %v2708
  %v2994 = vpack.c.b16 %v2712, %v2709
  %v2995 = vpack.c.b16 %v2713, %v2710
  %v2996 = vpack.c.b16 %v2717, %v2714
  %v2997 = vpack.c.b16 %v2718, %v2715
  %v2998 = vpack.c.b16 %v2719, %v2716
  %v2999 = vpack.c.b16 %v2723, %v2720
  %v3000 = vpack.c.b16 %v2724, %v2721
  %v3001 = vpack.c.b16 %v2725, %v2722
  %v3002 = vpack.c.b16 %v2729, %v2726
  %v3003 = vpack.c.b16 %v2730, %v2727
  %v3004 = vpack.c.b16 %v2731, %v2728
  %v3005 = vpack.c.b16 %v2735, %v2732
  %v3006 = vpack.c.b16 %v2736, %v2733
  %v3007 = vpack.c.b16 %v2737, %v2734
  %v3008 = vpack.c.b16 %v2741, %v2738
  %v3009 = vpack.c.b16 %v2742, %v2739
  %v3010 = vpack.c.b16 %v2743, %v2740
  %v3011 = vpack.c.b16 %v2747, %v2744
  %v3012 = vpack.c.b16 %v2748, %v2745
  %v3013 = vpack.c.b16 %v2749, %v2746
  %v3014 = vpack.c.b16 %v2753, %v2750
  %v3015 = vpack.c.b16 %v2754, %v2751
  %v3016 = vpack.c.b16 %v2755, %v2752
  %v3017 = vpack.c.b16 %v2759, %v2756
  %v3018 = vpack.c.b16 %v2760, %v2757
  %v3019 = vpack.c.b16 %v2761, %v2758
  %v3020 = vpack.c.b16 %v2765, %v2762
  %v3021 = vpack.c.b16 %v2766, %v2763
  %v3022 = vpack.c.b16 %v2767, %v2764
  %v3023 = vpack.c.b16 %v2771, %v2768
  %v3024 = vpack.c.b16 %v2772, %v2769
  %v3025 = vpack.c.b16 %v2773, %v2770
  %v3026 = vpack.c.b16 %v2777, %v2774
  %v3027 = vpack.c.b16 %v2778, %v2775
  %v3028 = vpack.c.b16 %v2779, %v2776
  %v3029 = vpack.c.b16 %v2783, %v2780
  %v3030 = vpack.c.b16 %v2784, %v2781
  %v3031 = vpack.c.b16 %v2785, %v2782
  %v3032 = vpack.c.b16 %v2789, %v2786
  %v3033 = vpack.c.b16 %v2790, %v2787
  %v3034 = vpack.c.b16 %v2791, %v2788
  %v3035 = vpack.c.b16 %v2795, %v2792
  %v3036 = vpack.c.b16 %v2796, %v2793
  %v3037 = vpack.c.b16 %v2797, %v2794
  %v3038 = vpack.c.b16 %v2801, %v2798
  %v3039 = vpack.c.b16 %v2802, %v2799
  %v3040 = vpack.c.b16 %v2803, %v2800
  %v3041 = vpack.c.b16 %v2807, %v2804
  %v3042 = vpack.c.b16 %v2808, %v2805
  %v3043 = vpack.c.b16 %v2809, %v2806
  %v3044 = vpack.c.b16 %v2813, %v2810
  %v3045 = vpack.c.b16 %v2814, %v2811
  %v3046 = vpack.c.b16 %v2815, %v2812
  %v3047 = vpack.c.b16 %v2819, %v2816
  %v3048 = vpack.c.b16 %v2820, %v2817
  %v3049 = vpack.c.b16 %v2821, %v2818
  %v3050 = vpack.c.b16 %v2825, %v2822
  %v3051 = vpack.c.b16 %v2826, %v2823
  %v3052 = vpack.c.b16 %v2827, %v2824
  %v3053 = vpack.c.b16 %v2831, %v2828
  %v3054 = vpack.c.b16 %v2832, %v2829
  %v3055 = vpack.c.b16 %v2833, %v2830
  %v3056 = vpack.c.b16 %v2837, %v2834
  %v3057 = vpack.c.b16 %v2838, %v2835
  %v3058 = vpack.c.b16 %v2839, %v2836
  %v3059 = vpack.c.b16 %v2843, %v2840
  %v3060 = vpack.c.b16 %v2844, %v2841
  %v3061 = vpack.c.b16 %v2845, %v2842
  %v3062 = vpack.c.b16 %v2849, %v2846
  %v3063 = vpack.c.b16 %v2850, %v2847
  %v3064 = vpack.c.b16 %v2851, %v2848
  %v3065 = vpack.c.b16 %v2855, %v2852
  %v3066 = vpack.c.b16 %v2856, %v2853
  %v3067 = vpack.c.b16 %v2857, %v2854
  %v3068 = vpack.c.b16 %v2861, %v2858
  %v3069 = vpack.c.b16 %v2862, %v2859
  %v3070 = vpack.c.b16 %v2863, %v2860
  %v3071 = vpack.c.b16 %v2867, %v2864
  %v3072 = vpack.c.b16 %v2868, %v2865
  %v3073 = vpack.c.b16 %v2869, %v2866
  %v3074 = vpack.c.b16 %v2873, %v2870
  %v3075 = vpack.c.b16 %v2874, %v2871
  %v3076 = vpack.c.b16 %v2875, %v2872
  %v3077 = vpack.c.b16 %v2879, %v2876
  %v3078 = vpack.c.b16 %v2880, %v2877
  %v3079 = vpack.c.b16 %v2881, %v2878
  %v3080 = vpack.c.b16 %v2885, %v2882
  %v3081 = vpack.c.b16 %v2886, %v2883
  %v3082 = vpack.c.b16 %v2887, %v2884
  %v3083 = vpack.c.b16 %v2891, %v2888
  %v3084 = vpack.c.b16 %v2892, %v2889
  %v3085 = vpack.c.b16 %v2893, %v2890
  %v3086 = vpack.c.b16 %v2897, %v2894
  %v3087 = vpack.c.b16 %v2898, %v2895
  %v3088 = vpack.c.b16 %v2899, %v2896
  %v3089 = vpack.c.b16 %v2903, %v2900
  %v3090 = vpack.c.b16 %v2904, %v2901
  %v3091 = vpack.c.b16 %v2905, %v2902
  %v3092 = vpack.c.b16 %v2909, %v2906
  %v3093 = vpack.c.b16 %v2910, %v2907
  %v3094 = vpack.c.b16 %v2911, %v2908
  %v3095 = vpack.c.b16 %v2915, %v2912
  %v3096 = vpack.c.b16 %v2916, %v2913
  %v3097 = vpack.c.b16 %v2917, %v2914
  %v3098 = vpack.c.b16 %v2921, %v2918
  %v3099 = vpack.c.b16 %v2922, %v2919
  %v3100 = vpack.c.b16 %v2923, %v2920
  %v3101 = vpack.c.b16 %v2927, %v2924
  %v3102 = vpack.c.b16 %v2928, %v2925
  %v3103 = vpack.c.b16 %v2929, %v2926
  %v3104 = vpack.c.b16 %v2933, %v2930
  %v3105 = vpack.c.b16 %v2934, %v2931
  %v3106 = vpack.c.b16 %v2935, %v2932
  %v3107 = vpack.c.b16 %v2939, %v2936
  %v3108 = vpack.c.b16 %v2940, %v2937
  %v3109 = vpack.c.b16 %v2941, %v2938
  %v3110 = vpack.c.b16 %v2945, %v2942
  %v3111 = vpack.c.b16 %v2946, %v2943
  %v3112 = vpack.c.b16 %v2947, %v2944
  %v3113 = vpack.c.b16 %v2951, %v2948
  %v3114 = vpack.c.b16 %v2952, %v2949
  %v3115 = vpack.c.b16 %v2953, %v2950
  %v3116 = vpack.c.b16 %v2957, %v2954
  %v3117 = vpack.c.b16 %v2958, %v2955
  %v3118 = vpack.c.b16 %v2959, %v2956
  %v3119 = vpack.c.b16 %v2963, %v2960
  %v3120 = vpack.c.b16 %v2964, %v2961
  %v3121 = vpack.c.b16 %v2965, %v2962
  %v3122 = vpack.c.b16 %v2969, %v2966
  %v3123 = vpack.c.b16 %v2970, %v2967
  %v3124 = vpack.c.b16 %v2971, %v2968
  %v3125 = vpack.c.b16 %v2975, %v2972
  %v3126 = vpack.c.b16 %v2976, %v2973
  %v3127 = vpack.c.b16 %v2977, %v2974
  %vm3278 = vcmask 261120
  %v3280 = vsel %vm3278, %v2477, 0
  %3282 = vmatprep.subr.bf16.mxu0 %v2979
  %3283 = vmatpush1.bf16.msra.mxu0 %v2978
  %3284 = vmatprep.subr.bf16.mxu0 %v2982
  %3285 = vmatpush1.bf16.msra.mxu0 %v2981
  %3286 = vmatprep.subr.bf16.mxu0 %v2985
  %3287 = vmatpush1.bf16.msra.mxu0 %v2984
  %3288 = vmatprep.subr.bf16.mxu0 %v2988
  %3289 = vmatpush1.bf16.msra.mxu0 %v2987
  %3290 = vmatprep.subr.bf16.mxu0 %v2991
  %3291 = vmatpush1.bf16.msra.mxu0 %v2990
  %3292 = vmatprep.subr.bf16.mxu0 %v2994
  %3293 = vmatpush1.bf16.msra.mxu0 %v2993
  %3294 = vmatprep.subr.bf16.mxu0 %v2997
  %3295 = vmatpush1.bf16.msra.mxu0 %v2996
  %3296 = vmatprep.subr.bf16.mxu0 %v3000
  %3297 = vmatpush1.bf16.msra.mxu0 %v2999
  %3298 = vmatprep.subr.bf16.mxu0 %v3003
  %3299 = vmatpush1.bf16.msra.mxu0 %v3002
  %3300 = vmatprep.subr.bf16.mxu0 %v3006
  %3301 = vmatpush1.bf16.msra.mxu0 %v3005
  %3302 = vmatprep.subr.bf16.mxu0 %v3009
  %3303 = vmatpush1.bf16.msra.mxu0 %v3008
  %3304 = vmatprep.subr.bf16.mxu0 %v3012
  %3305 = vmatpush1.bf16.msra.mxu0 %v3011
  %3306 = vmatprep.subr.bf16.mxu0 %v3015
  %3307 = vmatpush1.bf16.msra.mxu0 %v3014
  %3308 = vmatprep.subr.bf16.mxu0 %v3018
  %3309 = vmatpush1.bf16.msra.mxu0 %v3017
  %3310 = vmatprep.subr.bf16.mxu0 %v3021
  %3311 = vmatpush1.bf16.msra.mxu0 %v3020
  %3312 = vmatprep.subr.bf16.mxu0 %v3024
  %3313 = vmatpush1.bf16.msra.mxu0 %v3023
  %3314 = vmatprep.mubr.bf16.mxu0 %v2472
  %3315 = vmatmul.mubr.bf16.gmra.mrb[0].mxu0 %v2471
  %v3316 = vpop.f32.mrb[0].mxu0
  %v3317 = vadd.f32 0.0, %v3316
  %v3318 = vpop.f32.mrb[0].mxu0
  %v3319 = vadd.f32 0.0, %v3318
  %v3320 = vpop.f32.mrb[0].mxu0
  %v3321 = vpop.f32.mrb[0].mxu0
  %3322 = vdwg.mxu0
  %3323 = vmatprep.subr.bf16.mxu0 %v3027
  %3324 = vmatpush1.bf16.msra.mxu0 %v3026
  %3325 = vmatprep.subr.bf16.mxu0 %v3030
  %3326 = vmatpush1.bf16.msra.mxu0 %v3029
  %3327 = vmatprep.subr.bf16.mxu0 %v3033
  %3328 = vmatpush1.bf16.msra.mxu0 %v3032
  %3329 = vmatprep.subr.bf16.mxu0 %v3036
  %3330 = vmatpush1.bf16.msra.mxu0 %v3035
  %3331 = vmatprep.subr.bf16.mxu0 %v3039
  %3332 = vmatpush1.bf16.msra.mxu0 %v3038
  %3333 = vmatprep.subr.bf16.mxu0 %v3042
  %3334 = vmatpush1.bf16.msra.mxu0 %v3041
  %3335 = vmatprep.subr.bf16.mxu0 %v3045
  %3336 = vmatpush1.bf16.msra.mxu0 %v3044
  %3337 = vmatprep.subr.bf16.mxu0 %v3048
  %3338 = vmatpush1.bf16.msra.mxu0 %v3047
  %3339 = vmatprep.subr.bf16.mxu0 %v3051
  %3340 = vmatpush1.bf16.msra.mxu0 %v3050
  %3341 = vmatprep.subr.bf16.mxu0 %v3054
  %3342 = vmatpush1.bf16.msra.mxu0 %v3053
  %3343 = vmatprep.subr.bf16.mxu0 %v3057
  %3344 = vmatpush1.bf16.msra.mxu0 %v3056
  %3345 = vmatprep.subr.bf16.mxu0 %v3060
  %3346 = vmatpush1.bf16.msra.mxu0 %v3059
  %3347 = vmatprep.subr.bf16.mxu0 %v3063
  %3348 = vmatpush1.bf16.msra.mxu0 %v3062
  %3349 = vmatprep.subr.bf16.mxu0 %v3066
  %3350 = vmatpush1.bf16.msra.mxu0 %v3065
  %3351 = vmatprep.subr.bf16.mxu0 %v3069
  %3352 = vmatpush1.bf16.msra.mxu0 %v3068
  %3353 = vmatprep.subr.bf16.mxu0 %v3072
  %3354 = vmatpush1.bf16.msra.mxu0 %v3071
  %3355 = vmatprep.mubr.bf16.mxu0 %v2474
  %3356 = vmatmul.mubr.bf16.gmra.mrb[0].mxu0 %v2473
  %v3357 = vpop.f32.mrb[0].mxu0
  %v3358 = vadd.f32 %v3317, %v3357
  %v3359 = vpop.f32.mrb[0].mxu0
  %v3360 = vadd.f32 %v3319, %v3359
  %v3361 = vpop.f32.mrb[0].mxu0
  %v3362 = vpop.f32.mrb[0].mxu0
  %3363 = vdwg.mxu0
  %3364 = vmatprep.subr.bf16.mxu0 %v3075
  %3365 = vmatpush1.bf16.msra.mxu0 %v3074
  %3366 = vmatprep.subr.bf16.mxu0 %v3078
  %3367 = vmatpush1.bf16.msra.mxu0 %v3077
  %3368 = vmatprep.subr.bf16.mxu0 %v3081
  %3369 = vmatpush1.bf16.msra.mxu0 %v3080
  %3370 = vmatprep.subr.bf16.mxu0 %v3084
  %3371 = vmatpush1.bf16.msra.mxu0 %v3083
  %3372 = vmatprep.subr.bf16.mxu0 %v3087
  %3373 = vmatpush1.bf16.msra.mxu0 %v3086
  %3374 = vmatprep.subr.bf16.mxu0 %v3090
  %3375 = vmatpush1.bf16.msra.mxu0 %v3089
  %3376 = vmatprep.subr.bf16.mxu0 %v3093
  %3377 = vmatpush1.bf16.msra.mxu0 %v3092
  %3378 = vmatprep.subr.bf16.mxu0 %v3096
  %3379 = vmatpush1.bf16.msra.mxu0 %v3095
  %3380 = vmatprep.subr.bf16.mxu0 %v3099
  %3381 = vmatpush1.bf16.msra.mxu0 %v3098
  %3382 = vmatprep.subr.bf16.mxu0 %v3102
  %3383 = vmatpush1.bf16.msra.mxu0 %v3101
  %3384 = vmatprep.subr.bf16.mxu0 %v3105
  %3385 = vmatpush1.bf16.msra.mxu0 %v3104
  %3386 = vmatprep.subr.bf16.mxu0 %v3108
  %3387 = vmatpush1.bf16.msra.mxu0 %v3107
  %3388 = vmatprep.subr.bf16.mxu0 %v3111
  %3389 = vmatpush1.bf16.msra.mxu0 %v3110
  %3390 = vmatprep.subr.bf16.mxu0 %v3114
  %3391 = vmatpush1.bf16.msra.mxu0 %v3113
  %3392 = vmatprep.subr.bf16.mxu0 %v3117
  %3393 = vmatpush1.bf16.msra.mxu0 %v3116
  %3394 = vmatprep.subr.bf16.mxu0 %v3120
  %3395 = vmatpush1.bf16.msra.mxu0 %v3119
  %3396 = vmatprep.mubr.bf16.mxu0 %v2476
  %3397 = vmatmul.mubr.bf16.gmra.mrb[0].mxu0 %v2475
  %v3398 = vpop.f32.mrb[0].mxu0
  %v3399 = vadd.f32 %v3358, %v3398
  %v3400 = vpop.f32.mrb[0].mxu0
  %v3401 = vadd.f32 %v3360, %v3400
  %v3402 = vpop.f32.mrb[0].mxu0
  %v3403 = vpop.f32.mrb[0].mxu0
  %3404 = vdwg.mxu0
  %3405 = vmatprep.subr.bf16.mxu0 %v3123
  %3406 = vmatpush1.bf16.msra.mxu0 %v3122
  %3407 = vmatprep.subr.bf16.mxu0 %v3126
  %3408 = vmatpush1.bf16.msra.mxu0 %v3125
  %3409 = vmatprep.subr.bf16.mxu0 0
  %3410 = vmatpush1.bf16.msra.mxu0 0
  %3411 = vmatprep.subr.bf16.mxu0 0
  %3412 = vmatpush1.bf16.msra.mxu0 0
  %3413 = vmatprep.subr.bf16.mxu0 0
  %3414 = vmatpush1.bf16.msra.mxu0 0
  %3415 = vmatprep.subr.bf16.mxu0 0
  %3416 = vmatpush1.bf16.msra.mxu0 0
  %3417 = vmatprep.subr.bf16.mxu0 0
  %3418 = vmatpush1.bf16.msra.mxu0 0
  %3419 = vmatprep.subr.bf16.mxu0 0
  %3420 = vmatpush1.bf16.msra.mxu0 0
  %3421 = vmatprep.subr.bf16.mxu0 0
  %3422 = vmatpush1.bf16.msra.mxu0 0
  %3423 = vmatprep.subr.bf16.mxu0 0
  %3424 = vmatpush1.bf16.msra.mxu0 0
  %3425 = vmatprep.subr.bf16.mxu0 0
  %3426 = vmatpush1.bf16.msra.mxu0 0
  %3427 = vmatprep.subr.bf16.mxu0 0
  %3428 = vmatpush1.bf16.msra.mxu0 0
  %3429 = vmatprep.subr.bf16.mxu0 0
  %3430 = vmatpush1.bf16.msra.mxu0 0
  %3431 = vmatprep.subr.bf16.mxu0 0
  %3432 = vmatpush1.bf16.msra.mxu0 0
  %3433 = vmatprep.subr.bf16.mxu0 0
  %3434 = vmatpush1.bf16.msra.mxu0 0
  %3435 = vmatprep.subr.bf16.mxu0 0
  %3436 = vmatpush1.bf16.msra.mxu0 0
  %3437 = vmatprep.mubr.bf16.mxu0 0
  %3438 = vmatmul.mubr.bf16.gmra.mrb[0].mxu0 %v3280
  %v3439 = vpop.f32.mrb[0].mxu0
  %v3440 = vadd.f32 %v3399, %v3439
  %v3441 = vpop.f32.mrb[0].mxu0
  %v3442 = vadd.f32 %v3401, %v3441
  %v3443 = vpop.f32.mrb[0].mxu0
  %v3444 = vpop.f32.mrb[0].mxu0
  %3445 = vdwg.mxu0
  %3446 = vmatprep.subr.bf16.mxu0 0
  %3447 = vmatpush1.bf16.msra.mxu0 %v2980
  %3448 = vmatprep.subr.bf16.mxu0 0
  %3449 = vmatpush1.bf16.msra.mxu0 %v2983
  %3450 = vmatprep.subr.bf16.mxu0 0
  %3451 = vmatpush1.bf16.msra.mxu0 %v2986
  %3452 = vmatprep.subr.bf16.mxu0 0
  %3453 = vmatpush1.bf16.msra.mxu0 %v2989
  %3454 = vmatprep.subr.bf16.mxu0 0
  %3455 = vmatpush1.bf16.msra.mxu0 %v2992
  %3456 = vmatprep.subr.bf16.mxu0 0
  %3457 = vmatpush1.bf16.msra.mxu0 %v2995
  %3458 = vmatprep.subr.bf16.mxu0 0
  %3459 = vmatpush1.bf16.msra.mxu0 %v2998
  %3460 = vmatprep.subr.bf16.mxu0 0
  %3461 = vmatpush1.bf16.msra.mxu0 %v3001
  %3462 = vmatprep.subr.bf16.mxu0 0
  %3463 = vmatpush1.bf16.msra.mxu0 %v3004
  %3464 = vmatprep.subr.bf16.mxu0 0
  %3465 = vmatpush1.bf16.msra.mxu0 %v3007
  %3466 = vmatprep.subr.bf16.mxu0 0
  %3467 = vmatpush1.bf16.msra.mxu0 %v3010
  %3468 = vmatprep.subr.bf16.mxu0 0
  %3469 = vmatpush1.bf16.msra.mxu0 %v3013
  %3470 = vmatprep.subr.bf16.mxu0 0
  %3471 = vmatpush1.bf16.msra.mxu0 %v3016
  %3472 = vmatprep.subr.bf16.mxu0 0
  %3473 = vmatpush1.bf16.msra.mxu0 %v3019
  %3474 = vmatprep.subr.bf16.mxu0 0
  %3475 = vmatpush1.bf16.msra.mxu0 %v3022
  %3476 = vmatprep.subr.bf16.mxu0 0
  %3477 = vmatpush1.bf16.msra.mxu0 %v3025
  %3478 = vmatprep.mubr.bf16.mxu0 %v2472
  %3479 = vmatmul.mubr.bf16.gmra.mrb[0].mxu0 %v2471
  %v3480 = vpop.f32.mrb[0].mxu0
  %v3481 = vadd.f32 0.0, %v3480
  %v3482 = vpop.f32.mrb[0].mxu0
  %v3483 = vpop.f32.mrb[0].mxu0
  %v3484 = vpop.f32.mrb[0].mxu0
  %3485 = vdwg.mxu0
  %3486 = vmatprep.subr.bf16.mxu0 0
  %3487 = vmatpush1.bf16.msra.mxu0 %v3028
  %3488 = vmatprep.subr.bf16.mxu0 0
  %3489 = vmatpush1.bf16.msra.mxu0 %v3031
  %3490 = vmatprep.subr.bf16.mxu0 0
  %3491 = vmatpush1.bf16.msra.mxu0 %v3034
  %3492 = vmatprep.subr.bf16.mxu0 0
  %3493 = vmatpush1.bf16.msra.mxu0 %v3037
  %3494 = vmatprep.subr.bf16.mxu0 0
  %3495 = vmatpush1.bf16.msra.mxu0 %v3040
  %3496 = vmatprep.subr.bf16.mxu0 0
  %3497 = vmatpush1.bf16.msra.mxu0 %v3043
  %3498 = vmatprep.subr.bf16.mxu0 0
  %3499 = vmatpush1.bf16.msra.mxu0 %v3046
  %3500 = vmatprep.subr.bf16.mxu0 0
  %3501 = vmatpush1.bf16.msra.mxu0 %v3049
  %3502 = vmatprep.subr.bf16.mxu0 0
  %3503 = vmatpush1.bf16.msra.mxu0 %v3052
  %3504 = vmatprep.subr.bf16.mxu0 0
  %3505 = vmatpush1.bf16.msra.mxu0 %v3055
  %3506 = vmatprep.subr.bf16.mxu0 0
  %3507 = vmatpush1.bf16.msra.mxu0 %v3058
  %3508 = vmatprep.subr.bf16.mxu0 0
  %3509 = vmatpush1.bf16.msra.mxu0 %v3061
  %3510 = vmatprep.subr.bf16.mxu0 0
  %3511 = vmatpush1.bf16.msra.mxu0 %v3064
  %3512 = vmatprep.subr.bf16.mxu0 0
  %3513 = vmatpush1.bf16.msra.mxu0 %v3067
  %3514 = vmatprep.subr.bf16.mxu0 0
  %3515 = vmatpush1.bf16.msra.mxu0 %v3070
  %3516 = vmatprep.subr.bf16.mxu0 0
  %3517 = vmatpush1.bf16.msra.mxu0 %v3073
  %3518 = vmatprep.mubr.bf16.mxu0 %v2474
  %3519 = vmatmul.mubr.bf16.gmra.mrb[0].mxu0 %v2473
  %v3520 = vpop.f32.mrb[0].mxu0
  %v3521 = vadd.f32 %v3481, %v3520
  %v3522 = vpop.f32.mrb[0].mxu0
  %v3523 = vpop.f32.mrb[0].mxu0
  %v3524 = vpop.f32.mrb[0].mxu0
  %3525 = vdwg.mxu0
  %3526 = vmatprep.subr.bf16.mxu0 0
  %3527 = vmatpush1.bf16.msra.mxu0 %v3076
  %3528 = vmatprep.subr.bf16.mxu0 0
  %3529 = vmatpush1.bf16.msra.mxu0 %v3079
  %3530 = vmatprep.subr.bf16.mxu0 0
  %3531 = vmatpush1.bf16.msra.mxu0 %v3082
  %3532 = vmatprep.subr.bf16.mxu0 0
  %3533 = vmatpush1.bf16.msra.mxu0 %v3085
  %3534 = vmatprep.subr.bf16.mxu0 0
  %3535 = vmatpush1.bf16.msra.mxu0 %v3088
  %3536 = vmatprep.subr.bf16.mxu0 0
  %3537 = vmatpush1.bf16.msra.mxu0 %v3091
  %3538 = vmatprep.subr.bf16.mxu0 0
  %3539 = vmatpush1.bf16.msra.mxu0 %v3094
  %3540 = vmatprep.subr.bf16.mxu0 0
  %3541 = vmatpush1.bf16.msra.mxu0 %v3097
  %3542 = vmatprep.subr.bf16.mxu0 0
  %3543 = vmatpush1.bf16.msra.mxu0 %v3100
  %3544 = vmatprep.subr.bf16.mxu0 0
  %3545 = vmatpush1.bf16.msra.mxu0 %v3103
  %3546 = vmatprep.subr.bf16.mxu0 0
  %3547 = vmatpush1.bf16.msra.mxu0 %v3106
  %3548 = vmatprep.subr.bf16.mxu0 0
  %3549 = vmatpush1.bf16.msra.mxu0 %v3109
  %3550 = vmatprep.subr.bf16.mxu0 0
  %3551 = vmatpush1.bf16.msra.mxu0 %v3112
  %3552 = vmatprep.subr.bf16.mxu0 0
  %3553 = vmatpush1.bf16.msra.mxu0 %v3115
  %3554 = vmatprep.subr.bf16.mxu0 0
  %3555 = vmatpush1.bf16.msra.mxu0 %v3118
  %3556 = vmatprep.subr.bf16.mxu0 0
  %3557 = vmatpush1.bf16.msra.mxu0 %v3121
  %3558 = vmatprep.mubr.bf16.mxu0 %v2476
  %3559 = vmatmul.mubr.bf16.gmra.mrb[0].mxu0 %v2475
  %v3560 = vpop.f32.mrb[0].mxu0
  %v3561 = vadd.f32 %v3521, %v3560
  %v3562 = vpop.f32.mrb[0].mxu0
  %v3563 = vpop.f32.mrb[0].mxu0
  %v3564 = vpop.f32.mrb[0].mxu0
  %3565 = vdwg.mxu0
  %3566 = vmatprep.subr.bf16.mxu0 0
  %3567 = vmatpush1.bf16.msra.mxu0 %v3124
  %3568 = vmatprep.subr.bf16.mxu0 0
  %3569 = vmatpush1.bf16.msra.mxu0 %v3127
  %3570 = vmatprep.subr.bf16.mxu0 0
  %3571 = vmatpush1.bf16.msra.mxu0 0
  %3572 = vmatprep.subr.bf16.mxu0 0
  %3573 = vmatpush1.bf16.msra.mxu0 0
  %3574 = vmatprep.subr.bf16.mxu0 0
  %3575 = vmatpush1.bf16.msra.mxu0 0
  %3576 = vmatprep.subr.bf16.mxu0 0
  %3577 = vmatpush1.bf16.msra.mxu0 0
  %3578 = vmatprep.subr.bf16.mxu0 0
  %3579 = vmatpush1.bf16.msra.mxu0 0
  %3580 = vmatprep.subr.bf16.mxu0 0
  %3581 = vmatpush1.bf16.msra.mxu0 0
  %3582 = vmatprep.subr.bf16.mxu0 0
  %3583 = vmatpush1.bf16.msra.mxu0 0
  %3584 = vmatprep.subr.bf16.mxu0 0
  %3585 = vmatpush1.bf16.msra.mxu0 0
  %3586 = vmatprep.subr.bf16.mxu0 0
  %3587 = vmatpush1.bf16.msra.mxu0 0
  %3588 = vmatprep.subr.bf16.mxu0 0
  %3589 = vmatpush1.bf16.msra.mxu0 0
  %3590 = vmatprep.subr.bf16.mxu0 0
  %3591 = vmatpush1.bf16.msra.mxu0 0
  %3592 = vmatprep.subr.bf16.mxu0 0
  %3593 = vmatpush1.bf16.msra.mxu0 0
  %3594 = vmatprep.subr.bf16.mxu0 0
  %3595 = vmatpush1.bf16.msra.mxu0 0
  %3596 = vmatprep.subr.bf16.mxu0 0
  %3597 = vmatpush1.bf16.msra.mxu0 0
  %3598 = vmatprep.mubr.bf16.mxu0 0
  %3599 = vmatmul.mubr.bf16.gmra.mrb[0].mxu0 %v3280
  %v3600 = vpop.f32.mrb[0].mxu0
  %v3601 = vadd.f32 %v3561, %v3600
  %v3602 = vpop.f32.mrb[0].mxu0
  %v3603 = vpop.f32.mrb[0].mxu0
  %v3604 = vpop.f32.mrb[0].mxu0
  %3605 = vdwg.mxu0
  %v3612 = vsel %vm3278, %v1173, 0
  %3614 = vmatprep.subr.bf16.mxu0 %v2979
  %3615 = vmatpush1.bf16.msra.mxu0 %v2978
  %3616 = vmatprep.subr.bf16.mxu0 %v2982
  %3617 = vmatpush1.bf16.msra.mxu0 %v2981
  %3618 = vmatprep.subr.bf16.mxu0 %v2985
  %3619 = vmatpush1.bf16.msra.mxu0 %v2984
  %3620 = vmatprep.subr.bf16.mxu0 %v2988
  %3621 = vmatpush1.bf16.msra.mxu0 %v2987
  %3622 = vmatprep.subr.bf16.mxu0 %v2991
  %3623 = vmatpush1.bf16.msra.mxu0 %v2990
  %3624 = vmatprep.subr.bf16.mxu0 %v2994
  %3625 = vmatpush1.bf16.msra.mxu0 %v2993
  %3626 = vmatprep.subr.bf16.mxu0 %v2997
  %3627 = vmatpush1.bf16.msra.mxu0 %v2996
  %3628 = vmatprep.subr.bf16.mxu0 %v3000
  %3629 = vmatpush1.bf16.msra.mxu0 %v2999
  %3630 = vmatprep.subr.bf16.mxu0 %v3003
  %3631 = vmatpush1.bf16.msra.mxu0 %v3002
  %3632 = vmatprep.subr.bf16.mxu0 %v3006
  %3633 = vmatpush1.bf16.msra.mxu0 %v3005
  %3634 = vmatprep.subr.bf16.mxu0 %v3009
  %3635 = vmatpush1.bf16.msra.mxu0 %v3008
  %3636 = vmatprep.subr.bf16.mxu0 %v3012
  %3637 = vmatpush1.bf16.msra.mxu0 %v3011
  %3638 = vmatprep.subr.bf16.mxu0 %v3015
  %3639 = vmatpush1.bf16.msra.mxu0 %v3014
  %3640 = vmatprep.subr.bf16.mxu0 %v3018
  %3641 = vmatpush1.bf16.msra.mxu0 %v3017
  %3642 = vmatprep.subr.bf16.mxu0 %v3021
  %3643 = vmatpush1.bf16.msra.mxu0 %v3020
  %3644 = vmatprep.subr.bf16.mxu0 %v3024
  %3645 = vmatpush1.bf16.msra.mxu0 %v3023
  %3646 = vmatprep.mubr.bf16.mxu0 %v1176
  %3647 = vmatmul.mubr.bf16.gmra.mrb[0].mxu0 %v1175
  %v3648 = vpop.f32.mrb[0].mxu0
  %v3649 = vadd.f32 0.0, %v3648
  %v3650 = vpop.f32.mrb[0].mxu0
  %v3651 = vadd.f32 0.0, %v3650
  %v3652 = vpop.f32.mrb[0].mxu0
  %v3653 = vpop.f32.mrb[0].mxu0
  %3654 = vdwg.mxu0
  %3655 = vmatprep.subr.bf16.mxu0 %v3027
  %3656 = vmatpush1.bf16.msra.mxu0 %v3026
  %3657 = vmatprep.subr.bf16.mxu0 %v3030
  %3658 = vmatpush1.bf16.msra.mxu0 %v3029
  %3659 = vmatprep.subr.bf16.mxu0 %v3033
  %3660 = vmatpush1.bf16.msra.mxu0 %v3032
  %3661 = vmatprep.subr.bf16.mxu0 %v3036
  %3662 = vmatpush1.bf16.msra.mxu0 %v3035
  %3663 = vmatprep.subr.bf16.mxu0 %v3039
  %3664 = vmatpush1.bf16.msra.mxu0 %v3038
  %3665 = vmatprep.subr.bf16.mxu0 %v3042
  %3666 = vmatpush1.bf16.msra.mxu0 %v3041
  %3667 = vmatprep.subr.bf16.mxu0 %v3045
  %3668 = vmatpush1.bf16.msra.mxu0 %v3044
  %3669 = vmatprep.subr.bf16.mxu0 %v3048
  %3670 = vmatpush1.bf16.msra.mxu0 %v3047
  %3671 = vmatprep.subr.bf16.mxu0 %v3051
  %3672 = vmatpush1.bf16.msra.mxu0 %v3050
  %3673 = vmatprep.subr.bf16.mxu0 %v3054
  %3674 = vmatpush1.bf16.msra.mxu0 %v3053
  %3675 = vmatprep.subr.bf16.mxu0 %v3057
  %3676 = vmatpush1.bf16.msra.mxu0 %v3056
  %3677 = vmatprep.subr.bf16.mxu0 %v3060
  %3678 = vmatpush1.bf16.msra.mxu0 %v3059
  %3679 = vmatprep.subr.bf16.mxu0 %v3063
  %3680 = vmatpush1.bf16.msra.mxu0 %v3062
  %3681 = vmatprep.subr.bf16.mxu0 %v3066
  %3682 = vmatpush1.bf16.msra.mxu0 %v3065
  %3683 = vmatprep.subr.bf16.mxu0 %v3069
  %3684 = vmatpush1.bf16.msra.mxu0 %v3068
  %3685 = vmatprep.subr.bf16.mxu0 %v3072
  %3686 = vmatpush1.bf16.msra.mxu0 %v3071
  %3687 = vmatprep.mubr.bf16.mxu0 %v1178
  %3688 = vmatmul.mubr.bf16.gmra.mrb[0].mxu0 %v1177
  %v3689 = vpop.f32.mrb[0].mxu0
  %v3690 = vadd.f32 %v3649, %v3689
  %v3691 = vpop.f32.mrb[0].mxu0
  %v3692 = vadd.f32 %v3651, %v3691
  %v3693 = vpop.f32.mrb[0].mxu0
  %v3694 = vpop.f32.mrb[0].mxu0
  %3695 = vdwg.mxu0
  %3696 = vmatprep.subr.bf16.mxu0 %v3075
  %3697 = vmatpush1.bf16.msra.mxu0 %v3074
  %3698 = vmatprep.subr.bf16.mxu0 %v3078
  %3699 = vmatpush1.bf16.msra.mxu0 %v3077
  %3700 = vmatprep.subr.bf16.mxu0 %v3081
  %3701 = vmatpush1.bf16.msra.mxu0 %v3080
  %3702 = vmatprep.subr.bf16.mxu0 %v3084
  %3703 = vmatpush1.bf16.msra.mxu0 %v3083
  %3704 = vmatprep.subr.bf16.mxu0 %v3087
  %3705 = vmatpush1.bf16.msra.mxu0 %v3086
  %3706 = vmatprep.subr.bf16.mxu0 %v3090
  %3707 = vmatpush1.bf16.msra.mxu0 %v3089
  %3708 = vmatprep.subr.bf16.mxu0 %v3093
  %3709 = vmatpush1.bf16.msra.mxu0 %v3092
  %3710 = vmatprep.subr.bf16.mxu0 %v3096
  %3711 = vmatpush1.bf16.msra.mxu0 %v3095
  %3712 = vmatprep.subr.bf16.mxu0 %v3099
  %3713 = vmatpush1.bf16.msra.mxu0 %v3098
  %3714 = vmatprep.subr.bf16.mxu0 %v3102
  %3715 = vmatpush1.bf16.msra.mxu0 %v3101
  %3716 = vmatprep.subr.bf16.mxu0 %v3105
  %3717 = vmatpush1.bf16.msra.mxu0 %v3104
  %3718 = vmatprep.subr.bf16.mxu0 %v3108
  %3719 = vmatpush1.bf16.msra.mxu0 %v3107
  %3720 = vmatprep.subr.bf16.mxu0 %v3111
  %3721 = vmatpush1.bf16.msra.mxu0 %v3110
  %3722 = vmatprep.subr.bf16.mxu0 %v3114
  %3723 = vmatpush1.bf16.msra.mxu0 %v3113
  %3724 = vmatprep.subr.bf16.mxu0 %v3117
  %3725 = vmatpush1.bf16.msra.mxu0 %v3116
  %3726 = vmatprep.subr.bf16.mxu0 %v3120
  %3727 = vmatpush1.bf16.msra.mxu0 %v3119
  %3728 = vmatprep.mubr.bf16.mxu0 %v1180
  %3729 = vmatmul.mubr.bf16.gmra.mrb[0].mxu0 %v1179
  %v3730 = vpop.f32.mrb[0].mxu0
  %v3731 = vadd.f32 %v3690, %v3730
  %v3732 = vpop.f32.mrb[0].mxu0
  %v3733 = vadd.f32 %v3692, %v3732
  %v3734 = vpop.f32.mrb[0].mxu0
  %v3735 = vpop.f32.mrb[0].mxu0
  %3736 = vdwg.mxu0
  %3737 = vmatprep.subr.bf16.mxu0 %v3123
  %3738 = vmatpush1.bf16.msra.mxu0 %v3122
  %3739 = vmatprep.subr.bf16.mxu0 %v3126
  %3740 = vmatpush1.bf16.msra.mxu0 %v3125
  %3741 = vmatprep.subr.bf16.mxu0 0
  %3742 = vmatpush1.bf16.msra.mxu0 0
  %3743 = vmatprep.subr.bf16.mxu0 0
  %3744 = vmatpush1.bf16.msra.mxu0 0
  %3745 = vmatprep.subr.bf16.mxu0 0
  %3746 = vmatpush1.bf16.msra.mxu0 0
  %3747 = vmatprep.subr.bf16.mxu0 0
  %3748 = vmatpush1.bf16.msra.mxu0 0
  %3749 = vmatprep.subr.bf16.mxu0 0
  %3750 = vmatpush1.bf16.msra.mxu0 0
  %3751 = vmatprep.subr.bf16.mxu0 0
  %3752 = vmatpush1.bf16.msra.mxu0 0
  %3753 = vmatprep.subr.bf16.mxu0 0
  %3754 = vmatpush1.bf16.msra.mxu0 0
  %3755 = vmatprep.subr.bf16.mxu0 0
  %3756 = vmatpush1.bf16.msra.mxu0 0
  %3757 = vmatprep.subr.bf16.mxu0 0
  %3758 = vmatpush1.bf16.msra.mxu0 0
  %3759 = vmatprep.subr.bf16.mxu0 0
  %3760 = vmatpush1.bf16.msra.mxu0 0
  %3761 = vmatprep.subr.bf16.mxu0 0
  %3762 = vmatpush1.bf16.msra.mxu0 0
  %3763 = vmatprep.subr.bf16.mxu0 0
  %3764 = vmatpush1.bf16.msra.mxu0 0
  %3765 = vmatprep.subr.bf16.mxu0 0
  %3766 = vmatpush1.bf16.msra.mxu0 0
  %3767 = vmatprep.subr.bf16.mxu0 0
  %3768 = vmatpush1.bf16.msra.mxu0 0
  %3769 = vmatprep.mubr.bf16.mxu0 0
  %3770 = vmatmul.mubr.bf16.gmra.mrb[0].mxu0 %v3612
  %v3771 = vpop.f32.mrb[0].mxu0
  %v3772 = vadd.f32 %v3731, %v3771
  %v3773 = vpop.f32.mrb[0].mxu0
  %v3774 = vadd.f32 %v3733, %v3773
  %v3775 = vpop.f32.mrb[0].mxu0
  %v3776 = vpop.f32.mrb[0].mxu0
  %3777 = vdwg.mxu0
  %v3778 = vpack.c.bf16 %v3440, %v3440
  %v3779 = vpack.c.bf16 %v3442, %v3442
  %v3780 = vpack.c.bf16 %v3601, %v3601
  %v3781 = vld [vmem:[%s3] sm:$0xf]
  %v3782 = vld [vmem:[%s3 + $0x4] sm:$0xf]
  %s3783 = scalar_lea.vmem %s3, 8
  %v3784 = vld [vmem:[%s3783] sm:$0xf]
  %v3785 = vld [vmem:[%s3783 + $0x4] sm:$0xf]
  %v3788 = vunpack.c.l.b16 %v3784
  %v3789 = vunpack.c.l.b16 %v3785
  %v3790 = vpack.c.b16 %v3789, %v3788
  %3793 = vrot.lane.b32.xlu0 %v3778, 127
  %v3794 = vpop.permute.xlu0 %3793
  %3795 = vrot.lane.b32.xlu0 %v3779, 127
  %v3796 = vpop.permute.xlu0 %3795
  %v3797 = vsel %vm341, %v3794, %v3796
  %v3799 = vsel %vm348, %v3790, 0
  %v3802 = vsel %vm352, %v3797, 0
  %v3805 = vsel %vm352, %v3796, 0
  %3807 = vmatprep.subr.bf16.mxu0 %v3805
  %3808 = vmatpush1.bf16.msra.mxu0 %v3802
  %3809 = vmatprep.subr.bf16.mxu0 0
  %3810 = vmatpush1.bf16.msra.mxu0 0
  %3811 = vmatprep.subr.bf16.mxu0 0
  %3812 = vmatpush1.bf16.msra.mxu0 0
  %3813 = vmatprep.subr.bf16.mxu0 0
  %3814 = vmatpush1.bf16.msra.mxu0 0
  %3815 = vmatprep.subr.bf16.mxu0 0
  %3816 = vmatpush1.bf16.msra.mxu0 0
  %3817 = vmatprep.subr.bf16.mxu0 0
  %3818 = vmatpush1.bf16.msra.mxu0 0
  %3819 = vmatprep.subr.bf16.mxu0 0
  %3820 = vmatpush1.bf16.msra.mxu0 0
  %3821 = vmatprep.subr.bf16.mxu0 0
  %3822 = vmatpush1.bf16.msra.mxu0 0
  %3823 = vmatprep.subr.bf16.mxu0 0
  %3824 = vmatpush1.bf16.msra.mxu0 0
  %3825 = vmatprep.subr.bf16.mxu0 0
  %3826 = vmatpush1.bf16.msra.mxu0 0
  %3827 = vmatprep.subr.bf16.mxu0 0
  %3828 = vmatpush1.bf16.msra.mxu0 0
  %3829 = vmatprep.subr.bf16.mxu0 0
  %3830 = vmatpush1.bf16.msra.mxu0 0
  %3831 = vmatprep.subr.bf16.mxu0 0
  %3832 = vmatpush1.bf16.msra.mxu0 0
  %3833 = vmatprep.subr.bf16.mxu0 0
  %3834 = vmatpush1.bf16.msra.mxu0 0
  %3835 = vmatprep.subr.bf16.mxu0 0
  %3836 = vmatpush1.bf16.msra.mxu0 0
  %3837 = vmatprep.subr.bf16.mxu0 0
  %3838 = vmatpush1.bf16.msra.mxu0 0
  %3839 = vmatprep.mubr.bf16.mxu0 0
  %3840 = vmatmul.mubr.bf16.gmra.mrb[0].mxu0 %v3799
  %v3841 = vpop.f32.mrb[0].mxu0
  %v3842 = vadd.f32 0.0, %v3841
  %v3843 = vpop.f32.mrb[0].mxu0
  %v3844 = vadd.f32 0.0, %v3843
  %v3845 = vpop.f32.mrb[0].mxu0
  %v3846 = vadd.f32 0.0, %v3845
  %v3847 = vpop.f32.mrb[0].mxu0
  %v3848 = vadd.f32 0.0, %v3847
  %3849 = vdwg.mxu0
  %v3852 = vunpack.c.l.b16 %v3781
  %v3853 = vunpack.c.l.b16 %v3782
  %v3854 = vpack.c.b16 %v3853, %v3852
  %v3856 = vsel %vm348, %v3854, 0
  %v3859 = vsel %vm352, %v3778, 0
  %v3862 = vsel %vm352, %v3779, 0
  %3864 = vmatprep.subr.bf16.mxu0 %v3862
  %3865 = vmatpush1.bf16.msra.mxu0 %v3859
  %3866 = vmatprep.subr.bf16.mxu0 0
  %3867 = vmatpush1.bf16.msra.mxu0 0
  %3868 = vmatprep.subr.bf16.mxu0 0
  %3869 = vmatpush1.bf16.msra.mxu0 0
  %3870 = vmatprep.subr.bf16.mxu0 0
  %3871 = vmatpush1.bf16.msra.mxu0 0
  %3872 = vmatprep.subr.bf16.mxu0 0
  %3873 = vmatpush1.bf16.msra.mxu0 0
  %3874 = vmatprep.subr.bf16.mxu0 0
  %3875 = vmatpush1.bf16.msra.mxu0 0
  %3876 = vmatprep.subr.bf16.mxu0 0
  %3877 = vmatpush1.bf16.msra.mxu0 0
  %3878 = vmatprep.subr.bf16.mxu0 0
  %3879 = vmatpush1.bf16.msra.mxu0 0
  %3880 = vmatprep.subr.bf16.mxu0 0
  %3881 = vmatpush1.bf16.msra.mxu0 0
  %3882 = vmatprep.subr.bf16.mxu0 0
  %3883 = vmatpush1.bf16.msra.mxu0 0
  %3884 = vmatprep.subr.bf16.mxu0 0
  %3885 = vmatpush1.bf16.msra.mxu0 0
  %3886 = vmatprep.subr.bf16.mxu0 0
  %3887 = vmatpush1.bf16.msra.mxu0 0
  %3888 = vmatprep.subr.bf16.mxu0 0
  %3889 = vmatpush1.bf16.msra.mxu0 0
  %3890 = vmatprep.subr.bf16.mxu0 0
  %3891 = vmatpush1.bf16.msra.mxu0 0
  %3892 = vmatprep.subr.bf16.mxu0 0
  %3893 = vmatpush1.bf16.msra.mxu0 0
  %3894 = vmatprep.subr.bf16.mxu0 0
  %3895 = vmatpush1.bf16.msra.mxu0 0
  %3896 = vmatprep.mubr.bf16.mxu0 0
  %3897 = vmatmul.mubr.bf16.gmra.mrb[0].mxu0 %v3856
  %v3898 = vpop.f32.mrb[0].mxu0
  %v3899 = vadd.f32 %v3842, %v3898
  %v3900 = vpop.f32.mrb[0].mxu0
  %v3901 = vadd.f32 %v3844, %v3900
  %v3902 = vpop.f32.mrb[0].mxu0
  %v3903 = vadd.f32 %v3846, %v3902
  %v3904 = vpop.f32.mrb[0].mxu0
  %v3905 = vadd.f32 %v3848, %v3904
  %3906 = vdwg.mxu0
  %s3907 = scalar_lea.vmem %s3, 16
  %v3908 = vld [vmem:[%s3907] sm:$0xf]
  %v3909 = vld [vmem:[%s3907 + $0x4] sm:$0xf]
  %v3912 = vunpack.c.l.b16 %v3908
  %v3913 = vunpack.c.l.b16 %v3909
  %v3914 = vpack.c.b16 %v3913, %v3912
  %3915 = vrot.lane.b32.xlu0 %v3778, 126
  %v3916 = vpop.permute.xlu0 %3915
  %3917 = vrot.lane.b32.xlu0 %v3779, 126
  %v3918 = vpop.permute.xlu0 %3917
  %v3919 = vsel %vm740, %v3916, %v3918
  %v3921 = vsel %vm348, %v3914, 0
  %v3924 = vsel %vm352, %v3919, 0
  %v3927 = vsel %vm352, %v3918, 0
  %3929 = vmatprep.subr.bf16.mxu0 %v3927
  %3930 = vmatpush1.bf16.msra.mxu0 %v3924
  %3931 = vmatprep.subr.bf16.mxu0 0
  %3932 = vmatpush1.bf16.msra.mxu0 0
  %3933 = vmatprep.subr.bf16.mxu0 0
  %3934 = vmatpush1.bf16.msra.mxu0 0
  %3935 = vmatprep.subr.bf16.mxu0 0
  %3936 = vmatpush1.bf16.msra.mxu0 0
  %3937 = vmatprep.subr.bf16.mxu0 0
  %3938 = vmatpush1.bf16.msra.mxu0 0
  %3939 = vmatprep.subr.bf16.mxu0 0
  %3940 = vmatpush1.bf16.msra.mxu0 0
  %3941 = vmatprep.subr.bf16.mxu0 0
  %3942 = vmatpush1.bf16.msra.mxu0 0
  %3943 = vmatprep.subr.bf16.mxu0 0
  %3944 = vmatpush1.bf16.msra.mxu0 0
  %3945 = vmatprep.subr.bf16.mxu0 0
  %3946 = vmatpush1.bf16.msra.mxu0 0
  %3947 = vmatprep.subr.bf16.mxu0 0
  %3948 = vmatpush1.bf16.msra.mxu0 0
  %3949 = vmatprep.subr.bf16.mxu0 0
  %3950 = vmatpush1.bf16.msra.mxu0 0
  %3951 = vmatprep.subr.bf16.mxu0 0
  %3952 = vmatpush1.bf16.msra.mxu0 0
  %3953 = vmatprep.subr.bf16.mxu0 0
  %3954 = vmatpush1.bf16.msra.mxu0 0
  %3955 = vmatprep.subr.bf16.mxu0 0
  %3956 = vmatpush1.bf16.msra.mxu0 0
  %3957 = vmatprep.subr.bf16.mxu0 0
  %3958 = vmatpush1.bf16.msra.mxu0 0
  %3959 = vmatprep.subr.bf16.mxu0 0
  %3960 = vmatpush1.bf16.msra.mxu0 0
  %3961 = vmatprep.mubr.bf16.mxu0 0
  %3962 = vmatmul.mubr.bf16.gmra.mrb[0].mxu0 %v3921
  %v3963 = vpop.f32.mrb[0].mxu0
  %v3964 = vadd.f32 0.0, %v3963
  %v3965 = vpop.f32.mrb[0].mxu0
  %v3966 = vadd.f32 0.0, %v3965
  %v3967 = vpop.f32.mrb[0].mxu0
  %v3968 = vadd.f32 0.0, %v3967
  %v3969 = vpop.f32.mrb[0].mxu0
  %v3970 = vadd.f32 0.0, %v3969
  %3971 = vdwg.mxu0
  %v3972 = vadd.f32 %v3899, %v3964
  %v3973 = vadd.f32 %v3901, %v3966
  %v3974 = vadd.f32 %v3903, %v3968
  %v3975 = vadd.f32 %v3905, %v3970
  %s3976 = scalar_lea.vmem %s3, 24
  %v3977 = vld [vmem:[%s3976] sm:$0xf]
  %v3978 = vld [vmem:[%s3976 + $0x4] sm:$0xf]
  %v3981 = vunpack.c.l.b16 %v3977
  %v3982 = vunpack.c.l.b16 %v3978
  %v3983 = vpack.c.b16 %v3982, %v3981
  %3984 = vrot.lane.b32.xlu0 %v3778, 117
  %v3985 = vpop.permute.xlu0 %3984
  %3986 = vrot.lane.b32.xlu0 %v3779, 117
  %v3987 = vpop.permute.xlu0 %3986
  %vm3988 = vcmask 957440
  %v3989 = vsel %vm3988, %v3985, %v3987
  %v3991 = vsel %vm348, %v3983, 0
  %v3994 = vsel %vm352, %v3989, 0
  %v3997 = vsel %vm352, %v3987, 0
  %3999 = vmatprep.subr.bf16.mxu0 %v3997
  %4000 = vmatpush1.bf16.msra.mxu0 %v3994
  %4001 = vmatprep.subr.bf16.mxu0 0
  %4002 = vmatpush1.bf16.msra.mxu0 0
  %4003 = vmatprep.subr.bf16.mxu0 0
  %4004 = vmatpush1.bf16.msra.mxu0 0
  %4005 = vmatprep.subr.bf16.mxu0 0
  %4006 = vmatpush1.bf16.msra.mxu0 0
  %4007 = vmatprep.subr.bf16.mxu0 0
  %4008 = vmatpush1.bf16.msra.mxu0 0
  %4009 = vmatprep.subr.bf16.mxu0 0
  %4010 = vmatpush1.bf16.msra.mxu0 0
  %4011 = vmatprep.subr.bf16.mxu0 0
  %4012 = vmatpush1.bf16.msra.mxu0 0
  %4013 = vmatprep.subr.bf16.mxu0 0
  %4014 = vmatpush1.bf16.msra.mxu0 0
  %4015 = vmatprep.subr.bf16.mxu0 0
  %4016 = vmatpush1.bf16.msra.mxu0 0
  %4017 = vmatprep.subr.bf16.mxu0 0
  %4018 = vmatpush1.bf16.msra.mxu0 0
  %4019 = vmatprep.subr.bf16.mxu0 0
  %4020 = vmatpush1.bf16.msra.mxu0 0
  %4021 = vmatprep.subr.bf16.mxu0 0
  %4022 = vmatpush1.bf16.msra.mxu0 0
  %4023 = vmatprep.subr.bf16.mxu0 0
  %4024 = vmatpush1.bf16.msra.mxu0 0
  %4025 = vmatprep.subr.bf16.mxu0 0
  %4026 = vmatpush1.bf16.msra.mxu0 0
  %4027 = vmatprep.subr.bf16.mxu0 0
  %4028 = vmatpush1.bf16.msra.mxu0 0
  %4029 = vmatprep.subr.bf16.mxu0 0
  %4030 = vmatpush1.bf16.msra.mxu0 0
  %4031 = vmatprep.mubr.bf16.mxu0 0
  %4032 = vmatmul.mubr.bf16.gmra.mrb[0].mxu0 %v3991
  %v4033 = vpop.f32.mrb[0].mxu0
  %v4034 = vadd.f32 0.0, %v4033
  %v4035 = vpop.f32.mrb[0].mxu0
  %v4036 = vadd.f32 0.0, %v4035
  %v4037 = vpop.f32.mrb[0].mxu0
  %v4038 = vadd.f32 0.0, %v4037
  %v4039 = vpop.f32.mrb[0].mxu0
  %v4040 = vadd.f32 0.0, %v4039
  %4041 = vdwg.mxu0
  %v4042 = vadd.f32 %v3972, %v4034
  %v4043 = vadd.f32 %v3973, %v4036
  %v4044 = vadd.f32 %v3974, %v4038
  %v4045 = vadd.f32 %v3975, %v4040
  %s4046 = scalar_lea.vmem %s3, 32
  %v4047 = vld [vmem:[%s4046] sm:$0xf]
  %v4048 = vld [vmem:[%s4046 + $0x4] sm:$0xf]
  %v4051 = vunpack.c.l.b16 %v4047
  %v4052 = vunpack.c.l.b16 %v4048
  %v4053 = vpack.c.b16 %v4052, %v4051
  %4054 = vrot.lane.b32.xlu0 %v3778, 116
  %v4055 = vpop.permute.xlu0 %4054
  %4056 = vrot.lane.b32.xlu0 %v3779, 116
  %v4057 = vpop.permute.xlu0 %4056
  %vm4058 = vcmask 949248
  %v4059 = vsel %vm4058, %v4055, %v4057
  %v4061 = vsel %vm348, %v4053, 0
  %v4064 = vsel %vm352, %v4059, 0
  %v4067 = vsel %vm352, %v4057, 0
  %4069 = vmatprep.subr.bf16.mxu0 %v4067
  %4070 = vmatpush1.bf16.msra.mxu0 %v4064
  %4071 = vmatprep.subr.bf16.mxu0 0
  %4072 = vmatpush1.bf16.msra.mxu0 0
  %4073 = vmatprep.subr.bf16.mxu0 0
  %4074 = vmatpush1.bf16.msra.mxu0 0
  %4075 = vmatprep.subr.bf16.mxu0 0
  %4076 = vmatpush1.bf16.msra.mxu0 0
  %4077 = vmatprep.subr.bf16.mxu0 0
  %4078 = vmatpush1.bf16.msra.mxu0 0
  %4079 = vmatprep.subr.bf16.mxu0 0
  %4080 = vmatpush1.bf16.msra.mxu0 0
  %4081 = vmatprep.subr.bf16.mxu0 0
  %4082 = vmatpush1.bf16.msra.mxu0 0
  %4083 = vmatprep.subr.bf16.mxu0 0
  %4084 = vmatpush1.bf16.msra.mxu0 0
  %4085 = vmatprep.subr.bf16.mxu0 0
  %4086 = vmatpush1.bf16.msra.mxu0 0
  %4087 = vmatprep.subr.bf16.mxu0 0
  %4088 = vmatpush1.bf16.msra.mxu0 0
  %4089 = vmatprep.subr.bf16.mxu0 0
  %4090 = vmatpush1.bf16.msra.mxu0 0
  %4091 = vmatprep.subr.bf16.mxu0 0
  %4092 = vmatpush1.bf16.msra.mxu0 0
  %4093 = vmatprep.subr.bf16.mxu0 0
  %4094 = vmatpush1.bf16.msra.mxu0 0
  %4095 = vmatprep.subr.bf16.mxu0 0
  %4096 = vmatpush1.bf16.msra.mxu0 0
  %4097 = vmatprep.subr.bf16.mxu0 0
  %4098 = vmatpush1.bf16.msra.mxu0 0
  %4099 = vmatprep.subr.bf16.mxu0 0
  %4100 = vmatpush1.bf16.msra.mxu0 0
  %4101 = vmatprep.mubr.bf16.mxu0 0
  %4102 = vmatmul.mubr.bf16.gmra.mrb[0].mxu0 %v4061
  %v4103 = vpop.f32.mrb[0].mxu0
  %v4104 = vadd.f32 0.0, %v4103
  %v4105 = vpop.f32.mrb[0].mxu0
  %v4106 = vadd.f32 0.0, %v4105
  %v4107 = vpop.f32.mrb[0].mxu0
  %v4108 = vadd.f32 0.0, %v4107
  %v4109 = vpop.f32.mrb[0].mxu0
  %v4110 = vadd.f32 0.0, %v4109
  %4111 = vdwg.mxu0
  %v4112 = vadd.f32 %v4042, %v4104
  %v4113 = vadd.f32 %v4043, %v4106
  %v4114 = vadd.f32 %v4044, %v4108
  %v4115 = vadd.f32 %v4045, %v4110
  %s4116 = scalar_lea.vmem %s3, 40
  %v4117 = vld [vmem:[%s4116] sm:$0xf]
  %v4118 = vld [vmem:[%s4116 + $0x4] sm:$0xf]
  %v4121 = vunpack.c.l.b16 %v4117
  %v4122 = vunpack.c.l.b16 %v4118
  %v4123 = vpack.c.b16 %v4122, %v4121
  %4124 = vrot.lane.b32.xlu0 %v3778, 115
  %v4125 = vpop.permute.xlu0 %4124
  %4126 = vrot.lane.b32.xlu0 %v3779, 115
  %v4127 = vpop.permute.xlu0 %4126
  %vm4128 = vcmask 941056
  %v4129 = vsel %vm4128, %v4125, %v4127
  %v4131 = vsel %vm348, %v4123, 0
  %v4134 = vsel %vm352, %v4129, 0
  %v4137 = vsel %vm352, %v4127, 0
  %4139 = vmatprep.subr.bf16.mxu0 %v4137
  %4140 = vmatpush1.bf16.msra.mxu0 %v4134
  %4141 = vmatprep.subr.bf16.mxu0 0
  %4142 = vmatpush1.bf16.msra.mxu0 0
  %4143 = vmatprep.subr.bf16.mxu0 0
  %4144 = vmatpush1.bf16.msra.mxu0 0
  %4145 = vmatprep.subr.bf16.mxu0 0
  %4146 = vmatpush1.bf16.msra.mxu0 0
  %4147 = vmatprep.subr.bf16.mxu0 0
  %4148 = vmatpush1.bf16.msra.mxu0 0
  %4149 = vmatprep.subr.bf16.mxu0 0
  %4150 = vmatpush1.bf16.msra.mxu0 0
  %4151 = vmatprep.subr.bf16.mxu0 0
  %4152 = vmatpush1.bf16.msra.mxu0 0
  %4153 = vmatprep.subr.bf16.mxu0 0
  %4154 = vmatpush1.bf16.msra.mxu0 0
  %4155 = vmatprep.subr.bf16.mxu0 0
  %4156 = vmatpush1.bf16.msra.mxu0 0
  %4157 = vmatprep.subr.bf16.mxu0 0
  %4158 = vmatpush1.bf16.msra.mxu0 0
  %4159 = vmatprep.subr.bf16.mxu0 0
  %4160 = vmatpush1.bf16.msra.mxu0 0
  %4161 = vmatprep.subr.bf16.mxu0 0
  %4162 = vmatpush1.bf16.msra.mxu0 0
  %4163 = vmatprep.subr.bf16.mxu0 0
  %4164 = vmatpush1.bf16.msra.mxu0 0
  %4165 = vmatprep.subr.bf16.mxu0 0
  %4166 = vmatpush1.bf16.msra.mxu0 0
  %4167 = vmatprep.subr.bf16.mxu0 0
  %4168 = vmatpush1.bf16.msra.mxu0 0
  %4169 = vmatprep.subr.bf16.mxu0 0
  %4170 = vmatpush1.bf16.msra.mxu0 0
  %4171 = vmatprep.mubr.bf16.mxu0 0
  %4172 = vmatmul.mubr.bf16.gmra.mrb[0].mxu0 %v4131
  %v4173 = vpop.f32.mrb[0].mxu0
  %v4174 = vadd.f32 0.0, %v4173
  %v4175 = vpop.f32.mrb[0].mxu0
  %v4176 = vadd.f32 0.0, %v4175
  %v4177 = vpop.f32.mrb[0].mxu0
  %v4178 = vadd.f32 0.0, %v4177
  %v4179 = vpop.f32.mrb[0].mxu0
  %v4180 = vadd.f32 0.0, %v4179
  %4181 = vdwg.mxu0
  %v4182 = vadd.f32 %v4112, %v4174
  %v4183 = vadd.f32 %v4113, %v4176
  %v4184 = vadd.f32 %v4114, %v4178
  %v4185 = vadd.f32 %v4115, %v4180
  %s4186 = scalar_lea.vmem %s3, 48
  %v4187 = vld [vmem:[%s4186] sm:$0xf]
  %v4188 = vld [vmem:[%s4186 + $0x4] sm:$0xf]
  %v4191 = vunpack.c.l.b16 %v4187
  %v4192 = vunpack.c.l.b16 %v4188
  %v4193 = vpack.c.b16 %v4192, %v4191
  %4195 = vrot.lane.b32.xlu0 %v3778, 106
  %v4196 = vpop.permute.xlu0 %4195
  %4197 = vrot.lane.b32.xlu0 %v3779, 106
  %v4198 = vpop.permute.xlu0 %4197
  %4199 = vrot.lane.b32.xlu0 %v3780, 106
  %v4200 = vpop.permute.xlu0 %4199
  %v4201 = vsel %vm1391, %v4196, %v4198
  %v4202 = vsel %vm1391, %v4198, %v4200
  %v4204 = vsel %vm348, %v4193, 0
  %v4207 = vsel %vm352, %v4201, 0
  %v4210 = vsel %vm352, %v4202, 0
  %4212 = vmatprep.subr.bf16.mxu0 %v4210
  %4213 = vmatpush1.bf16.msra.mxu0 %v4207
  %4214 = vmatprep.subr.bf16.mxu0 0
  %4215 = vmatpush1.bf16.msra.mxu0 0
  %4216 = vmatprep.subr.bf16.mxu0 0
  %4217 = vmatpush1.bf16.msra.mxu0 0
  %4218 = vmatprep.subr.bf16.mxu0 0
  %4219 = vmatpush1.bf16.msra.mxu0 0
  %4220 = vmatprep.subr.bf16.mxu0 0
  %4221 = vmatpush1.bf16.msra.mxu0 0
  %4222 = vmatprep.subr.bf16.mxu0 0
  %4223 = vmatpush1.bf16.msra.mxu0 0
  %4224 = vmatprep.subr.bf16.mxu0 0
  %4225 = vmatpush1.bf16.msra.mxu0 0
  %4226 = vmatprep.subr.bf16.mxu0 0
  %4227 = vmatpush1.bf16.msra.mxu0 0
  %4228 = vmatprep.subr.bf16.mxu0 0
  %4229 = vmatpush1.bf16.msra.mxu0 0
  %4230 = vmatprep.subr.bf16.mxu0 0
  %4231 = vmatpush1.bf16.msra.mxu0 0
  %4232 = vmatprep.subr.bf16.mxu0 0
  %4233 = vmatpush1.bf16.msra.mxu0 0
  %4234 = vmatprep.subr.bf16.mxu0 0
  %4235 = vmatpush1.bf16.msra.mxu0 0
  %4236 = vmatprep.subr.bf16.mxu0 0
  %4237 = vmatpush1.bf16.msra.mxu0 0
  %4238 = vmatprep.subr.bf16.mxu0 0
  %4239 = vmatpush1.bf16.msra.mxu0 0
  %4240 = vmatprep.subr.bf16.mxu0 0
  %4241 = vmatpush1.bf16.msra.mxu0 0
  %4242 = vmatprep.subr.bf16.mxu0 0
  %4243 = vmatpush1.bf16.msra.mxu0 0
  %4244 = vmatprep.mubr.bf16.mxu0 0
  %4245 = vmatmul.mubr.bf16.gmra.mrb[0].mxu0 %v4204
  %v4246 = vpop.f32.mrb[0].mxu0
  %v4247 = vadd.f32 0.0, %v4246
  %v4248 = vpop.f32.mrb[0].mxu0
  %v4249 = vadd.f32 0.0, %v4248
  %v4250 = vpop.f32.mrb[0].mxu0
  %v4251 = vadd.f32 0.0, %v4250
  %v4252 = vpop.f32.mrb[0].mxu0
  %v4253 = vadd.f32 0.0, %v4252
  %4254 = vdwg.mxu0
  %v4255 = vadd.f32 %v4182, %v4247
  %v4256 = vadd.f32 %v4183, %v4249
  %v4257 = vadd.f32 %v4184, %v4251
  %v4258 = vadd.f32 %v4185, %v4253
  %s4259 = scalar_lea.vmem %s3, 56
  %v4260 = vld [vmem:[%s4259] sm:$0xf]
  %v4261 = vld [vmem:[%s4259 + $0x4] sm:$0xf]
  %v4264 = vunpack.c.l.b16 %v4260
  %v4265 = vunpack.c.l.b16 %v4261
  %v4266 = vpack.c.b16 %v4265, %v4264
  %4267 = vrot.lane.b32.xlu0 %v3778, 105
  %v4268 = vpop.permute.xlu0 %4267
  %4269 = vrot.lane.b32.xlu0 %v3779, 105
  %v4270 = vpop.permute.xlu0 %4269
  %4271 = vrot.lane.b32.xlu0 %v3780, 105
  %v4272 = vpop.permute.xlu0 %4271
  %vm4273 = vcmask 859136
  %v4274 = vsel %vm4273, %v4268, %v4270
  %v4275 = vsel %vm4273, %v4270, %v4272
  %v4277 = vsel %vm348, %v4266, 0
  %v4280 = vsel %vm352, %v4274, 0
  %v4283 = vsel %vm352, %v4275, 0
  %4285 = vmatprep.subr.bf16.mxu0 %v4283
  %4286 = vmatpush1.bf16.msra.mxu0 %v4280
  %4287 = vmatprep.subr.bf16.mxu0 0
  %4288 = vmatpush1.bf16.msra.mxu0 0
  %4289 = vmatprep.subr.bf16.mxu0 0
  %4290 = vmatpush1.bf16.msra.mxu0 0
  %4291 = vmatprep.subr.bf16.mxu0 0
  %4292 = vmatpush1.bf16.msra.mxu0 0
  %4293 = vmatprep.subr.bf16.mxu0 0
  %4294 = vmatpush1.bf16.msra.mxu0 0
  %4295 = vmatprep.subr.bf16.mxu0 0
  %4296 = vmatpush1.bf16.msra.mxu0 0
  %4297 = vmatprep.subr.bf16.mxu0 0
  %4298 = vmatpush1.bf16.msra.mxu0 0
  %4299 = vmatprep.subr.bf16.mxu0 0
  %4300 = vmatpush1.bf16.msra.mxu0 0
  %4301 = vmatprep.subr.bf16.mxu0 0
  %4302 = vmatpush1.bf16.msra.mxu0 0
  %4303 = vmatprep.subr.bf16.mxu0 0
  %4304 = vmatpush1.bf16.msra.mxu0 0
  %4305 = vmatprep.subr.bf16.mxu0 0
  %4306 = vmatpush1.bf16.msra.mxu0 0
  %4307 = vmatprep.subr.bf16.mxu0 0
  %4308 = vmatpush1.bf16.msra.mxu0 0
  %4309 = vmatprep.subr.bf16.mxu0 0
  %4310 = vmatpush1.bf16.msra.mxu0 0
  %4311 = vmatprep.subr.bf16.mxu0 0
  %4312 = vmatpush1.bf16.msra.mxu0 0
  %4313 = vmatprep.subr.bf16.mxu0 0
  %4314 = vmatpush1.bf16.msra.mxu0 0
  %4315 = vmatprep.subr.bf16.mxu0 0
  %4316 = vmatpush1.bf16.msra.mxu0 0
  %4317 = vmatprep.mubr.bf16.mxu0 0
  %4318 = vmatmul.mubr.bf16.gmra.mrb[0].mxu0 %v4277
  %v4319 = vpop.f32.mrb[0].mxu0
  %v4320 = vadd.f32 0.0, %v4319
  %v4321 = vpop.f32.mrb[0].mxu0
  %v4322 = vadd.f32 0.0, %v4321
  %v4323 = vpop.f32.mrb[0].mxu0
  %v4324 = vadd.f32 0.0, %v4323
  %v4325 = vpop.f32.mrb[0].mxu0
  %v4326 = vadd.f32 0.0, %v4325
  %4327 = vdwg.mxu0
  %v4328 = vadd.f32 %v4255, %v4320
  %v4329 = vadd.f32 %v4256, %v4322
  %v4330 = vadd.f32 %v4257, %v4324
  %v4331 = vadd.f32 %v4258, %v4326
  %s4332 = scalar_lea.vmem %s3, 64
  %v4333 = vld [vmem:[%s4332] sm:$0xf]
  %v4334 = vld [vmem:[%s4332 + $0x4] sm:$0xf]
  %v4337 = vunpack.c.l.b16 %v4333
  %v4338 = vunpack.c.l.b16 %v4334
  %v4339 = vpack.c.b16 %v4338, %v4337
  %4340 = vrot.lane.b32.xlu0 %v3778, 104
  %v4341 = vpop.permute.xlu0 %4340
  %4342 = vrot.lane.b32.xlu0 %v3779, 104
  %v4343 = vpop.permute.xlu0 %4342
  %4344 = vrot.lane.b32.xlu0 %v3780, 104
  %v4345 = vpop.permute.xlu0 %4344
  %vm4346 = vcmask 850944
  %v4347 = vsel %vm4346, %v4341, %v4343
  %v4348 = vsel %vm4346, %v4343, %v4345
  %v4350 = vsel %vm348, %v4339, 0
  %v4353 = vsel %vm352, %v4347, 0
  %v4356 = vsel %vm352, %v4348, 0
  %4358 = vmatprep.subr.bf16.mxu0 %v4356
  %4359 = vmatpush1.bf16.msra.mxu0 %v4353
  %4360 = vmatprep.subr.bf16.mxu0 0
  %4361 = vmatpush1.bf16.msra.mxu0 0
  %4362 = vmatprep.subr.bf16.mxu0 0
  %4363 = vmatpush1.bf16.msra.mxu0 0
  %4364 = vmatprep.subr.bf16.mxu0 0
  %4365 = vmatpush1.bf16.msra.mxu0 0
  %4366 = vmatprep.subr.bf16.mxu0 0
  %4367 = vmatpush1.bf16.msra.mxu0 0
  %4368 = vmatprep.subr.bf16.mxu0 0
  %4369 = vmatpush1.bf16.msra.mxu0 0
  %4370 = vmatprep.subr.bf16.mxu0 0
  %4371 = vmatpush1.bf16.msra.mxu0 0
  %4372 = vmatprep.subr.bf16.mxu0 0
  %4373 = vmatpush1.bf16.msra.mxu0 0
  %4374 = vmatprep.subr.bf16.mxu0 0
  %4375 = vmatpush1.bf16.msra.mxu0 0
  %4376 = vmatprep.subr.bf16.mxu0 0
  %4377 = vmatpush1.bf16.msra.mxu0 0
  %4378 = vmatprep.subr.bf16.mxu0 0
  %4379 = vmatpush1.bf16.msra.mxu0 0
  %4380 = vmatprep.subr.bf16.mxu0 0
  %4381 = vmatpush1.bf16.msra.mxu0 0
  %4382 = vmatprep.subr.bf16.mxu0 0
  %4383 = vmatpush1.bf16.msra.mxu0 0
  %4384 = vmatprep.subr.bf16.mxu0 0
  %4385 = vmatpush1.bf16.msra.mxu0 0
  %4386 = vmatprep.subr.bf16.mxu0 0
  %4387 = vmatpush1.bf16.msra.mxu0 0
  %4388 = vmatprep.subr.bf16.mxu0 0
  %4389 = vmatpush1.bf16.msra.mxu0 0
  %4390 = vmatprep.mubr.bf16.mxu0 0
  %4391 = vmatmul.mubr.bf16.gmra.mrb[0].mxu0 %v4350
  %v4392 = vpop.f32.mrb[0].mxu0
  %v4393 = vadd.f32 0.0, %v4392
  %v4394 = vpop.f32.mrb[0].mxu0
  %v4395 = vadd.f32 0.0, %v4394
  %v4396 = vpop.f32.mrb[0].mxu0
  %v4397 = vadd.f32 0.0, %v4396
  %v4398 = vpop.f32.mrb[0].mxu0
  %v4399 = vadd.f32 0.0, %v4398
  %4400 = vdwg.mxu0
  %v4401 = vadd.f32 %v4328, %v4393
  %v4402 = vadd.f32 %v4329, %v4395
  %v4403 = vadd.f32 %v4330, %v4397
  %v4404 = vadd.f32 %v4331, %v4399
  %vm4405 = vcmp.ge.f32.partialorder %v4401, 0.0
  %vm4406 = vcmp.ge.f32.partialorder %v4402, 0.0
  %vm4407 = vcmp.ge.f32.partialorder %v4403, 0.0
  %vm4408 = vcmp.ge.f32.partialorder %v4404, 0.0
  %v4409 = vmul.f32 %v4401, 0.2
  %v4410 = vmul.f32 %v4402, 0.2
  %v4411 = vmul.f32 %v4403, 0.2
  %v4412 = vmul.f32 %v4404, 0.2
  %v4413 = vsel %vm4405, %v4401, %v4409
  %v4414 = vsel %vm4406, %v4402, %v4410
  %v4415 = vsel %vm4407, %v4403, %v4411
  %v4416 = vsel %vm4408, %v4404, %v4412
  %v4417 = vmul.f32 %v4413, 1.4
  %v4418 = vmul.f32 %v4414, 1.4
  %v4419 = vmul.f32 %v4415, 1.4
  %v4420 = vmul.f32 %v4416, 1.4
  %v4421 = vld [vmem:[%s4] sm:$0xf]
  %v4422 = vld [vmem:[%s4 + $0x4] sm:$0xf]
  %v4423 = vpack.c.bf16 %v3772, %v3772
  %v4424 = vpack.c.bf16 %v3774, %v3774
  %v4427 = vunpack.c.l.b16 %v4421
  %v4428 = vunpack.c.l.b16 %v4422
  %v4429 = vpack.c.b16 %v4428, %v4427
  %4432 = vrot.lane.b32.xlu0 %v4423, 116
  %v4433 = vpop.permute.xlu0 %4432
  %4434 = vrot.lane.b32.xlu0 %v4424, 116
  %v4435 = vpop.permute.xlu0 %4434
  %v4436 = vsel %vm4058, %v4433, %v4435
  %v4438 = vsel %vm348, %v4429, 0
  %v4441 = vsel %vm352, %v4436, 0
  %v4444 = vsel %vm352, %v4435, 0
  %4446 = vmatprep.subr.bf16.mxu0 %v4444
  %4447 = vmatpush1.bf16.msra.mxu0 %v4441
  %4448 = vmatprep.subr.bf16.mxu0 0
  %4449 = vmatpush1.bf16.msra.mxu0 0
  %4450 = vmatprep.subr.bf16.mxu0 0
  %4451 = vmatpush1.bf16.msra.mxu0 0
  %4452 = vmatprep.subr.bf16.mxu0 0
  %4453 = vmatpush1.bf16.msra.mxu0 0
  %4454 = vmatprep.subr.bf16.mxu0 0
  %4455 = vmatpush1.bf16.msra.mxu0 0
  %4456 = vmatprep.subr.bf16.mxu0 0
  %4457 = vmatpush1.bf16.msra.mxu0 0
  %4458 = vmatprep.subr.bf16.mxu0 0
  %4459 = vmatpush1.bf16.msra.mxu0 0
  %4460 = vmatprep.subr.bf16.mxu0 0
  %4461 = vmatpush1.bf16.msra.mxu0 0
  %4462 = vmatprep.subr.bf16.mxu0 0
  %4463 = vmatpush1.bf16.msra.mxu0 0
  %4464 = vmatprep.subr.bf16.mxu0 0
  %4465 = vmatpush1.bf16.msra.mxu0 0
  %4466 = vmatprep.subr.bf16.mxu0 0
  %4467 = vmatpush1.bf16.msra.mxu0 0
  %4468 = vmatprep.subr.bf16.mxu0 0
  %4469 = vmatpush1.bf16.msra.mxu0 0
  %4470 = vmatprep.subr.bf16.mxu0 0
  %4471 = vmatpush1.bf16.msra.mxu0 0
  %4472 = vmatprep.subr.bf16.mxu0 0
  %4473 = vmatpush1.bf16.msra.mxu0 0
  %4474 = vmatprep.subr.bf16.mxu0 0
  %4475 = vmatpush1.bf16.msra.mxu0 0
  %4476 = vmatprep.subr.bf16.mxu0 0
  %4477 = vmatpush1.bf16.msra.mxu0 0
  %4478 = vmatprep.mubr.bf16.mxu0 0
  %4479 = vmatmul.mubr.bf16.gmra.mrb[0].mxu0 %v4438
  %v4480 = vpop.f32.mrb[0].mxu0
  %v4481 = vadd.f32 0.0, %v4480
  %v4482 = vpop.f32.mrb[0].mxu0
  %v4483 = vadd.f32 0.0, %v4482
  %v4484 = vpop.f32.mrb[0].mxu0
  %v4485 = vadd.f32 0.0, %v4484
  %v4486 = vpop.f32.mrb[0].mxu0
  %v4487 = vadd.f32 0.0, %v4486
  %4488 = vdwg.mxu0
  %v4489 = vmul.f32 %v4481, 1.4
  %v4490 = vmul.f32 %v4483, 1.4
  %v4491 = vmul.f32 %v4485, 1.4
  %v4492 = vmul.f32 %v4487, 1.4
  %v4493 = vadd.f32 %v4417, %v4489
  %v4494 = vadd.f32 %v4418, %v4490
  %v4495 = vadd.f32 %v4419, %v4491
  %v4496 = vadd.f32 %v4420, %v4492
  %v4497 = vmul.f32 %v4493, 0.70710677
  %v4498 = vmul.f32 %v4494, 0.70710677
  %v4499 = vmul.f32 %v4495, 0.70710677
  %v4500 = vmul.f32 %v4496, 0.70710677
  %v4501 = vpack.c.bf16 %v4499, %v4497
  %v4502 = vpack.c.bf16 %v4500, %v4498
  %v4503 = vld [vmem:[%s6] sm:$0xff]
  %v4504 = vld [vmem:[%s6 + $0x8] sm:$0xf]
  %v4505 = vld [vmem:[%s6 + $0xc] sm:$0xff]
  %v4506 = vld [vmem:[%s6 + $0x14] sm:$0xf]
  %v4507 = vld [vmem:[%s6 + $0x18] sm:$0xff]
  %v4508 = vld [vmem:[%s6 + $0x20] sm:$0xf]
  %v4509 = vld [vmem:[%s6 + $0x24] sm:$0xff]
  %v4510 = vld [vmem:[%s6 + $0x2c] sm:$0xf]
  %v4511 = vld [vmem:[%s6 + $0x30] sm:$0xff]
  %v4512 = vld [vmem:[%s6 + $0x38] sm:$0xf]
  %v4513 = vld [vmem:[%s6 + $0x3c] sm:$0xff]
  %v4514 = vld [vmem:[%s6 + $0x44] sm:$0xf]
  %v4515 = vld [vmem:[%s6 + $0x48] sm:$0xff]
  %v4516 = vld [vmem:[%s6 + $0x50] sm:$0xf]
  %v4517 = vld [vmem:[%s6 + $0x54] sm:$0xff]
  %v4518 = vld [vmem:[%s6 + $0x5c] sm:$0xf]
  %v4519 = vld [vmem:[%s6 + $0x60] sm:$0xff]
  %v4520 = vld [vmem:[%s6 + $0x68] sm:$0xf]
  %v4521 = vld [vmem:[%s6 + $0x6c] sm:$0xff]
  %v4522 = vld [vmem:[%s6 + $0x74] sm:$0xf]
  %v4523 = vld [vmem:[%s6 + $0x78] sm:$0xff]
  %v4524 = vld [vmem:[%s6 + $0x80] sm:$0xf]
  %v4525 = vld [vmem:[%s6 + $0x84] sm:$0xff]
  %v4526 = vld [vmem:[%s6 + $0x8c] sm:$0xf]
  %v4527 = vld [vmem:[%s6 + $0x90] sm:$0xff]
  %v4528 = vld [vmem:[%s6 + $0x98] sm:$0xf]
  %v4529 = vld [vmem:[%s6 + $0x9c] sm:$0xff]
  %v4530 = vld [vmem:[%s6 + $0xa4] sm:$0xf]
  %v4531 = vld [vmem:[%s6 + $0xa8] sm:$0xff]
  %v4532 = vld [vmem:[%s6 + $0xb0] sm:$0xf]
  %v4533 = vld [vmem:[%s6 + $0xb4] sm:$0xff]
  %v4534 = vld [vmem:[%s6 + $0xbc] sm:$0xf]
  %v4535 = vld [vmem:[%s6 + $0xc0] sm:$0xff]
  %v4536 = vld [vmem:[%s6 + $0xc8] sm:$0xf]
  %v4537 = vld [vmem:[%s6 + $0xcc] sm:$0xff]
  %v4538 = vld [vmem:[%s6 + $0xd4] sm:$0xf]
  %v4539 = vld [vmem:[%s6 + $0xd8] sm:$0xff]
  %v4540 = vld [vmem:[%s6 + $0xe0] sm:$0xf]
  %v4541 = vld [vmem:[%s6 + $0xe4] sm:$0xff]
  %v4542 = vld [vmem:[%s6 + $0xec] sm:$0xf]
  %v4543 = vld [vmem:[%s6 + $0xf0] sm:$0xff]
  %v4544 = vld [vmem:[%s6 + $0xf8] sm:$0xf]
  %v4545 = vld [vmem:[%s6 + $0xfc] sm:$0xff]
  %v4546 = vld [vmem:[%s6 + $0x104] sm:$0xf]
  %v4547 = vld [vmem:[%s6 + $0x108] sm:$0xff]
  %v4548 = vld [vmem:[%s6 + $0x110] sm:$0xf]
  %v4549 = vld [vmem:[%s6 + $0x114] sm:$0xff]
  %v4550 = vld [vmem:[%s6 + $0x11c] sm:$0xf]
  %v4551 = vld [vmem:[%s6 + $0x120] sm:$0xff]
  %v4552 = vld [vmem:[%s6 + $0x128] sm:$0xf]
  %v4553 = vld [vmem:[%s6 + $0x12c] sm:$0xff]
  %v4554 = vld [vmem:[%s6 + $0x134] sm:$0xf]
  %v4555 = vld [vmem:[%s6 + $0x138] sm:$0xff]
  %v4556 = vld [vmem:[%s6 + $0x140] sm:$0xf]
  %v4557 = vld [vmem:[%s6 + $0x144] sm:$0xff]
  %v4558 = vld [vmem:[%s6 + $0x14c] sm:$0xf]
  %v4559 = vld [vmem:[%s6 + $0x150] sm:$0xff]
  %v4560 = vld [vmem:[%s6 + $0x158] sm:$0xf]
  %v4561 = vld [vmem:[%s6 + $0x15c] sm:$0xff]
  %v4562 = vld [vmem:[%s6 + $0x164] sm:$0xf]
  %v4563 = vld [vmem:[%s6 + $0x168] sm:$0x11]
  %v4564 = vld [vmem:[%s6 + $0x170] sm:$0x1]
  %v4627 = vunpack.c.l.b16 %v4503
  %v4628 = vunpack.c.h.b16 %v4503
  %v4629 = vunpack.c.l.b16 %v4504
  %v4630 = vunpack.c.l.b16 %v4505
  %v4631 = vunpack.c.h.b16 %v4505
  %v4632 = vunpack.c.l.b16 %v4506
  %v4633 = vunpack.c.l.b16 %v4507
  %v4634 = vunpack.c.h.b16 %v4507
  %v4635 = vunpack.c.l.b16 %v4508
  %v4636 = vunpack.c.l.b16 %v4509
  %v4637 = vunpack.c.h.b16 %v4509
  %v4638 = vunpack.c.l.b16 %v4510
  %v4639 = vunpack.c.l.b16 %v4511
  %v4640 = vunpack.c.h.b16 %v4511
  %v4641 = vunpack.c.l.b16 %v4512
  %v4642 = vunpack.c.l.b16 %v4513
  %v4643 = vunpack.c.h.b16 %v4513
  %v4644 = vunpack.c.l.b16 %v4514
  %v4645 = vunpack.c.l.b16 %v4515
  %v4646 = vunpack.c.h.b16 %v4515
  %v4647 = vunpack.c.l.b16 %v4516
  %v4648 = vunpack.c.l.b16 %v4517
  %v4649 = vunpack.c.h.b16 %v4517
  %v4650 = vunpack.c.l.b16 %v4518
  %v4651 = vunpack.c.l.b16 %v4519
  %v4652 = vunpack.c.h.b16 %v4519
  %v4653 = vunpack.c.l.b16 %v4520
  %v4654 = vunpack.c.l.b16 %v4521
  %v4655 = vunpack.c.h.b16 %v4521
  %v4656 = vunpack.c.l.b16 %v4522
  %v4657 = vunpack.c.l.b16 %v4523
  %v4658 = vunpack.c.h.b16 %v4523
  %v4659 = vunpack.c.l.b16 %v4524
  %v4660 = vunpack.c.l.b16 %v4525
  %v4661 = vunpack.c.h.b16 %v4525
  %v4662 = vunpack.c.l.b16 %v4526
  %v4663 = vunpack.c.l.b16 %v4527
  %v4664 = vunpack.c.h.b16 %v4527
  %v4665 = vunpack.c.l.b16 %v4528
  %v4666 = vunpack.c.l.b16 %v4529
  %v4667 = vunpack.c.h.b16 %v4529
  %v4668 = vunpack.c.l.b16 %v4530
  %v4669 = vunpack.c.l.b16 %v4531
  %v4670 = vunpack.c.h.b16 %v4531
  %v4671 = vunpack.c.l.b16 %v4532
  %v4672 = vunpack.c.l.b16 %v4533
  %v4673 = vunpack.c.h.b16 %v4533
  %v4674 = vunpack.c.l.b16 %v4534
  %v4675 = vunpack.c.l.b16 %v4535
  %v4676 = vunpack.c.h.b16 %v4535
  %v4677 = vunpack.c.l.b16 %v4536
  %v4678 = vunpack.c.l.b16 %v4537
  %v4679 = vunpack.c.h.b16 %v4537
  %v4680 = vunpack.c.l.b16 %v4538
  %v4681 = vunpack.c.l.b16 %v4539
  %v4682 = vunpack.c.h.b16 %v4539
  %v4683 = vunpack.c.l.b16 %v4540
  %v4684 = vunpack.c.l.b16 %v4541
  %v4685 = vunpack.c.h.b16 %v4541
  %v4686 = vunpack.c.l.b16 %v4542
  %v4687 = vunpack.c.l.b16 %v4543
  %v4688 = vunpack.c.h.b16 %v4543
  %v4689 = vunpack.c.l.b16 %v4544
  %v4690 = vunpack.c.l.b16 %v4545
  %v4691 = vunpack.c.h.b16 %v4545
  %v4692 = vunpack.c.l.b16 %v4546
  %v4693 = vunpack.c.l.b16 %v4547
  %v4694 = vunpack.c.h.b16 %v4547
  %v4695 = vunpack.c.l.b16 %v4548
  %v4696 = vunpack.c.l.b16 %v4549
  %v4697 = vunpack.c.h.b16 %v4549
  %v4698 = vunpack.c.l.b16 %v4550
  %v4699 = vunpack.c.l.b16 %v4551
  %v4700 = vunpack.c.h.b16 %v4551
  %v4701 = vunpack.c.l.b16 %v4552
  %v4702 = vunpack.c.l.b16 %v4553
  %v4703 = vunpack.c.h.b16 %v4553
  %v4704 = vunpack.c.l.b16 %v4554
  %v4705 = vunpack.c.l.b16 %v4555
  %v4706 = vunpack.c.h.b16 %v4555
  %v4707 = vunpack.c.l.b16 %v4556
  %v4708 = vunpack.c.l.b16 %v4557
  %v4709 = vunpack.c.h.b16 %v4557
  %v4710 = vunpack.c.l.b16 %v4558
  %v4711 = vunpack.c.l.b16 %v4559
  %v4712 = vunpack.c.h.b16 %v4559
  %v4713 = vunpack.c.l.b16 %v4560
  %v4714 = vunpack.c.l.b16 %v4561
  %v4715 = vunpack.c.h.b16 %v4561
  %v4716 = vunpack.c.l.b16 %v4562
  %v4717 = vunpack.c.l.b16 %v4563
  %v4718 = vunpack.c.h.b16 %v4563
  %v4719 = vunpack.c.l.b16 %v4564
  %v4720 = vpack.c.b16 %v4630, %v4627
  %v4721 = vpack.c.b16 %v4631, %v4628
  %v4722 = vpack.c.b16 %v4632, %v4629
  %v4723 = vpack.c.b16 %v4636, %v4633
  %v4724 = vpack.c.b16 %v4637, %v4634
  %v4725 = vpack.c.b16 %v4638, %v4635
  %v4726 = vpack.c.b16 %v4642, %v4639
  %v4727 = vpack.c.b16 %v4643, %v4640
  %v4728 = vpack.c.b16 %v4644, %v4641
  %v4729 = vpack.c.b16 %v4648, %v4645
  %v4730 = vpack.c.b16 %v4649, %v4646
  %v4731 = vpack.c.b16 %v4650, %v4647
  %v4732 = vpack.c.b16 %v4654, %v4651
  %v4733 = vpack.c.b16 %v4655, %v4652
  %v4734 = vpack.c.b16 %v4656, %v4653
  %v4735 = vpack.c.b16 %v4660, %v4657
  %v4736 = vpack.c.b16 %v4661, %v4658
  %v4737 = vpack.c.b16 %v4662, %v4659
  %v4738 = vpack.c.b16 %v4666, %v4663
  %v4739 = vpack.c.b16 %v4667, %v4664
  %v4740 = vpack.c.b16 %v4668, %v4665
  %v4741 = vpack.c.b16 %v4672, %v4669
  %v4742 = vpack.c.b16 %v4673, %v4670
  %v4743 = vpack.c.b16 %v4674, %v4671
  %v4744 = vpack.c.b16 %v4678, %v4675
  %v4745 = vpack.c.b16 %v4679, %v4676
  %v4746 = vpack.c.b16 %v4680, %v4677
  %v4747 = vpack.c.b16 %v4684, %v4681
  %v4748 = vpack.c.b16 %v4685, %v4682
  %v4749 = vpack.c.b16 %v4686, %v4683
  %v4750 = vpack.c.b16 %v4690, %v4687
  %v4751 = vpack.c.b16 %v4691, %v4688
  %v4752 = vpack.c.b16 %v4692, %v4689
  %v4753 = vpack.c.b16 %v4696, %v4693
  %v4754 = vpack.c.b16 %v4697, %v4694
  %v4755 = vpack.c.b16 %v4698, %v4695
  %v4756 = vpack.c.b16 %v4702, %v4699
  %v4757 = vpack.c.b16 %v4703, %v4700
  %v4758 = vpack.c.b16 %v4704, %v4701
  %v4759 = vpack.c.b16 %v4708, %v4705
  %v4760 = vpack.c.b16 %v4709, %v4706
  %v4761 = vpack.c.b16 %v4710, %v4707
  %v4762 = vpack.c.b16 %v4714, %v4711
  %v4763 = vpack.c.b16 %v4715, %v4712
  %v4764 = vpack.c.b16 %v4716, %v4713
  %v4765 = vpack.c.b16 %v4717, %v4717
  %v4766 = vpack.c.b16 %v4718, %v4718
  %v4767 = vpack.c.b16 %v4719, %v4719
  %vm4813 = vcmask 932864
  %v4815 = vsel %vm4813, %v4502, 0
  %v4818 = vsel %vm101, %v4765, 0
  %v4821 = vsel %vm101, %v4766, 0
  %v4824 = vsel %vm101, %v4767, 0
  %4826 = vmatprep.subr.bf16.mxu0 %v4721
  %4827 = vmatpush1.bf16.msra.mxu0 %v4720
  %4828 = vmatprep.subr.bf16.mxu0 %v4724
  %4829 = vmatpush1.bf16.msra.mxu0 %v4723
  %4830 = vmatprep.subr.bf16.mxu0 %v4727
  %4831 = vmatpush1.bf16.msra.mxu0 %v4726
  %4832 = vmatprep.subr.bf16.mxu0 %v4730
  %4833 = vmatpush1.bf16.msra.mxu0 %v4729
  %4834 = vmatprep.subr.bf16.mxu0 %v4733
  %4835 = vmatpush1.bf16.msra.mxu0 %v4732
  %4836 = vmatprep.subr.bf16.mxu0 %v4736
  %4837 = vmatpush1.bf16.msra.mxu0 %v4735
  %4838 = vmatprep.subr.bf16.mxu0 %v4739
  %4839 = vmatpush1.bf16.msra.mxu0 %v4738
  %4840 = vmatprep.subr.bf16.mxu0 %v4742
  %4841 = vmatpush1.bf16.msra.mxu0 %v4741
  %4842 = vmatprep.subr.bf16.mxu0 %v4745
  %4843 = vmatpush1.bf16.msra.mxu0 %v4744
  %4844 = vmatprep.subr.bf16.mxu0 %v4748
  %4845 = vmatpush1.bf16.msra.mxu0 %v4747
  %4846 = vmatprep.subr.bf16.mxu0 %v4751
  %4847 = vmatpush1.bf16.msra.mxu0 %v4750
  %4848 = vmatprep.subr.bf16.mxu0 %v4754
  %4849 = vmatpush1.bf16.msra.mxu0 %v4753
  %4850 = vmatprep.subr.bf16.mxu0 %v4757
  %4851 = vmatpush1.bf16.msra.mxu0 %v4756
  %4852 = vmatprep.subr.bf16.mxu0 %v4760
  %4853 = vmatpush1.bf16.msra.mxu0 %v4759
  %4854 = vmatprep.subr.bf16.mxu0 %v4763
  %4855 = vmatpush1.bf16.msra.mxu0 %v4762
  %4856 = vmatprep.subr.bf16.mxu0 %v4821
  %4857 = vmatpush1.bf16.msra.mxu0 %v4818
  %4858 = vmatprep.mubr.bf16.mxu0 %v4815
  %4859 = vmatmul.mubr.bf16.gmra.mrb[0].mxu0 %v4501
  %v4860 = vpop.f32.mrb[0].mxu0
  %v4861 = vadd.f32 0.0, %v4860
  %v4862 = vpop.f32.mrb[0].mxu0
  %v4863 = vadd.f32 0.0, %v4862
  %v4864 = vpop.f32.mrb[0].mxu0
  %v4865 = vadd.f32 0.0, %v4864
  %v4866 = vpop.f32.mrb[0].mxu0
  %v4867 = vadd.f32 0.0, %v4866
  %4868 = vdwg.mxu0
  %4869 = vmatprep.subr.bf16.mxu0 0
  %4870 = vmatpush1.bf16.msra.mxu0 %v4722
  %4871 = vmatprep.subr.bf16.mxu0 0
  %4872 = vmatpush1.bf16.msra.mxu0 %v4725
  %4873 = vmatprep.subr.bf16.mxu0 0
  %4874 = vmatpush1.bf16.msra.mxu0 %v4728
  %4875 = vmatprep.subr.bf16.mxu0 0
  %4876 = vmatpush1.bf16.msra.mxu0 %v4731
  %4877 = vmatprep.subr.bf16.mxu0 0
  %4878 = vmatpush1.bf16.msra.mxu0 %v4734
  %4879 = vmatprep.subr.bf16.mxu0 0
  %4880 = vmatpush1.bf16.msra.mxu0 %v4737
  %4881 = vmatprep.subr.bf16.mxu0 0
  %4882 = vmatpush1.bf16.msra.mxu0 %v4740
  %4883 = vmatprep.subr.bf16.mxu0 0
  %4884 = vmatpush1.bf16.msra.mxu0 %v4743
  %4885 = vmatprep.subr.bf16.mxu0 0
  %4886 = vmatpush1.bf16.msra.mxu0 %v4746
  %4887 = vmatprep.subr.bf16.mxu0 0
  %4888 = vmatpush1.bf16.msra.mxu0 %v4749
  %4889 = vmatprep.subr.bf16.mxu0 0
  %4890 = vmatpush1.bf16.msra.mxu0 %v4752
  %4891 = vmatprep.subr.bf16.mxu0 0
  %4892 = vmatpush1.bf16.msra.mxu0 %v4755
  %4893 = vmatprep.subr.bf16.mxu0 0
  %4894 = vmatpush1.bf16.msra.mxu0 %v4758
  %4895 = vmatprep.subr.bf16.mxu0 0
  %4896 = vmatpush1.bf16.msra.mxu0 %v4761
  %4897 = vmatprep.subr.bf16.mxu0 0
  %4898 = vmatpush1.bf16.msra.mxu0 %v4764
  %4899 = vmatprep.subr.bf16.mxu0 0
  %4900 = vmatpush1.bf16.msra.mxu0 %v4824
  %4901 = vmatprep.mubr.bf16.mxu0 %v4815
  %4902 = vmatmul.mubr.bf16.gmra.mrb[0].mxu0 %v4501
  %v4903 = vpop.f32.mrb[0].mxu0
  %v4904 = vadd.f32 0.0, %v4903
  %v4905 = vpop.f32.mrb[0].mxu0
  %v4906 = vpop.f32.mrb[0].mxu0
  %v4907 = vadd.f32 0.0, %v4906
  %v4908 = vpop.f32.mrb[0].mxu0
  %4909 = vdwg.mxu0
  %v4910 = vpack.c.bf16 %v4865, %v4861
  %v4911 = vpack.c.bf16 %v4867, %v4863
  %v4912 = vpack.c.bf16 %v4907, %v4904
  %v4913 = vld [vmem:[%s7] sm:$0xf]
  %v4914 = vld [vmem:[%s7 + $0x4] sm:$0xf]
  %s4915 = scalar_lea.vmem %s7, 8
  %v4916 = vld [vmem:[%s4915] sm:$0xf]
  %v4917 = vld [vmem:[%s4915 + $0x4] sm:$0xf]
  %v4920 = vunpack.c.l.b16 %v4916
  %v4921 = vunpack.c.l.b16 %v4917
  %v4922 = vpack.c.b16 %v4921, %v4920
  %4925 = vrot.lane.b32.xlu0 %v4910, 127
  %v4926 = vpop.permute.xlu0 %4925
  %4927 = vrot.lane.b32.xlu0 %v4911, 127
  %v4928 = vpop.permute.xlu0 %4927
  %v4929 = vsel %vm341, %v4926, %v4928
  %vm4932 = vcmask 130048
  %v4934 = vsel %vm4932, %v4922, 0
  %4936 = vmatprep.subr.bf16.mxu0 %v4928
  %4937 = vmatpush1.bf16.msra.mxu0 %v4929
  %4938 = vmatprep.subr.bf16.mxu0 0
  %4939 = vmatpush1.bf16.msra.mxu0 0
  %4940 = vmatprep.subr.bf16.mxu0 0
  %4941 = vmatpush1.bf16.msra.mxu0 0
  %4942 = vmatprep.subr.bf16.mxu0 0
  %4943 = vmatpush1.bf16.msra.mxu0 0
  %4944 = vmatprep.subr.bf16.mxu0 0
  %4945 = vmatpush1.bf16.msra.mxu0 0
  %4946 = vmatprep.subr.bf16.mxu0 0
  %4947 = vmatpush1.bf16.msra.mxu0 0
  %4948 = vmatprep.subr.bf16.mxu0 0
  %4949 = vmatpush1.bf16.msra.mxu0 0
  %4950 = vmatprep.subr.bf16.mxu0 0
  %4951 = vmatpush1.bf16.msra.mxu0 0
  %4952 = vmatprep.subr.bf16.mxu0 0
  %4953 = vmatpush1.bf16.msra.mxu0 0
  %4954 = vmatprep.subr.bf16.mxu0 0
  %4955 = vmatpush1.bf16.msra.mxu0 0
  %4956 = vmatprep.subr.bf16.mxu0 0
  %4957 = vmatpush1.bf16.msra.mxu0 0
  %4958 = vmatprep.subr.bf16.mxu0 0
  %4959 = vmatpush1.bf16.msra.mxu0 0
  %4960 = vmatprep.subr.bf16.mxu0 0
  %4961 = vmatpush1.bf16.msra.mxu0 0
  %4962 = vmatprep.subr.bf16.mxu0 0
  %4963 = vmatpush1.bf16.msra.mxu0 0
  %4964 = vmatprep.subr.bf16.mxu0 0
  %4965 = vmatpush1.bf16.msra.mxu0 0
  %4966 = vmatprep.subr.bf16.mxu0 0
  %4967 = vmatpush1.bf16.msra.mxu0 0
  %4968 = vmatprep.mubr.bf16.mxu0 0
  %4969 = vmatmul.mubr.bf16.gmra.mrb[0].mxu0 %v4934
  %v4970 = vpop.f32.mrb[0].mxu0
  %v4971 = vadd.f32 0.0, %v4970
  %v4972 = vpop.f32.mrb[0].mxu0
  %v4973 = vadd.f32 0.0, %v4972
  %v4974 = vpop.f32.mrb[0].mxu0
  %v4975 = vadd.f32 0.0, %v4974
  %v4976 = vpop.f32.mrb[0].mxu0
  %v4977 = vadd.f32 0.0, %v4976
  %4978 = vdwg.mxu0
  %v4981 = vunpack.c.l.b16 %v4913
  %v4982 = vunpack.c.l.b16 %v4914
  %v4983 = vpack.c.b16 %v4982, %v4981
  %v4985 = vsel %vm4932, %v4983, 0
  %4987 = vmatprep.subr.bf16.mxu0 %v4911
  %4988 = vmatpush1.bf16.msra.mxu0 %v4910
  %4989 = vmatprep.subr.bf16.mxu0 0
  %4990 = vmatpush1.bf16.msra.mxu0 0
  %4991 = vmatprep.subr.bf16.mxu0 0
  %4992 = vmatpush1.bf16.msra.mxu0 0
  %4993 = vmatprep.subr.bf16.mxu0 0
  %4994 = vmatpush1.bf16.msra.mxu0 0
  %4995 = vmatprep.subr.bf16.mxu0 0
  %4996 = vmatpush1.bf16.msra.mxu0 0
  %4997 = vmatprep.subr.bf16.mxu0 0
  %4998 = vmatpush1.bf16.msra.mxu0 0
  %4999 = vmatprep.subr.bf16.mxu0 0
  %5000 = vmatpush1.bf16.msra.mxu0 0
  %5001 = vmatprep.subr.bf16.mxu0 0
  %5002 = vmatpush1.bf16.msra.mxu0 0
  %5003 = vmatprep.subr.bf16.mxu0 0
  %5004 = vmatpush1.bf16.msra.mxu0 0
  %5005 = vmatprep.subr.bf16.mxu0 0
  %5006 = vmatpush1.bf16.msra.mxu0 0
  %5007 = vmatprep.subr.bf16.mxu0 0
  %5008 = vmatpush1.bf16.msra.mxu0 0
  %5009 = vmatprep.subr.bf16.mxu0 0
  %5010 = vmatpush1.bf16.msra.mxu0 0
  %5011 = vmatprep.subr.bf16.mxu0 0
  %5012 = vmatpush1.bf16.msra.mxu0 0
  %5013 = vmatprep.subr.bf16.mxu0 0
  %5014 = vmatpush1.bf16.msra.mxu0 0
  %5015 = vmatprep.subr.bf16.mxu0 0
  %5016 = vmatpush1.bf16.msra.mxu0 0
  %5017 = vmatprep.subr.bf16.mxu0 0
  %5018 = vmatpush1.bf16.msra.mxu0 0
  %5019 = vmatprep.mubr.bf16.mxu0 0
  %5020 = vmatmul.mubr.bf16.gmra.mrb[0].mxu0 %v4985
  %v5021 = vpop.f32.mrb[0].mxu0
  %v5022 = vadd.f32 %v4971, %v5021
  %v5023 = vpop.f32.mrb[0].mxu0
  %v5024 = vadd.f32 %v4973, %v5023
  %v5025 = vpop.f32.mrb[0].mxu0
  %v5026 = vadd.f32 %v4975, %v5025
  %v5027 = vpop.f32.mrb[0].mxu0
  %v5028 = vadd.f32 %v4977, %v5027
  %5029 = vdwg.mxu0
  %s5030 = scalar_lea.vmem %s7, 16
  %v5031 = vld [vmem:[%s5030] sm:$0xf]
  %v5032 = vld [vmem:[%s5030 + $0x4] sm:$0xf]
  %v5035 = vunpack.c.l.b16 %v5031
  %v5036 = vunpack.c.l.b16 %v5032
  %v5037 = vpack.c.b16 %v5036, %v5035
  %5038 = vrot.lane.b32.xlu0 %v4910, 126
  %v5039 = vpop.permute.xlu0 %5038
  %5040 = vrot.lane.b32.xlu0 %v4911, 126
  %v5041 = vpop.permute.xlu0 %5040
  %v5042 = vsel %vm740, %v5039, %v5041
  %v5046 = vsel %vm4932, %v5037, 0
  %5048 = vmatprep.subr.bf16.mxu0 %v5041
  %5049 = vmatpush1.bf16.msra.mxu0 %v5042
  %5050 = vmatprep.subr.bf16.mxu0 0
  %5051 = vmatpush1.bf16.msra.mxu0 0
  %5052 = vmatprep.subr.bf16.mxu0 0
  %5053 = vmatpush1.bf16.msra.mxu0 0
  %5054 = vmatprep.subr.bf16.mxu0 0
  %5055 = vmatpush1.bf16.msra.mxu0 0
  %5056 = vmatprep.subr.bf16.mxu0 0
  %5057 = vmatpush1.bf16.msra.mxu0 0
  %5058 = vmatprep.subr.bf16.mxu0 0
  %5059 = vmatpush1.bf16.msra.mxu0 0
  %5060 = vmatprep.subr.bf16.mxu0 0
  %5061 = vmatpush1.bf16.msra.mxu0 0
  %5062 = vmatprep.subr.bf16.mxu0 0
  %5063 = vmatpush1.bf16.msra.mxu0 0
  %5064 = vmatprep.subr.bf16.mxu0 0
  %5065 = vmatpush1.bf16.msra.mxu0 0
  %5066 = vmatprep.subr.bf16.mxu0 0
  %5067 = vmatpush1.bf16.msra.mxu0 0
  %5068 = vmatprep.subr.bf16.mxu0 0
  %5069 = vmatpush1.bf16.msra.mxu0 0
  %5070 = vmatprep.subr.bf16.mxu0 0
  %5071 = vmatpush1.bf16.msra.mxu0 0
  %5072 = vmatprep.subr.bf16.mxu0 0
  %5073 = vmatpush1.bf16.msra.mxu0 0
  %5074 = vmatprep.subr.bf16.mxu0 0
  %5075 = vmatpush1.bf16.msra.mxu0 0
  %5076 = vmatprep.subr.bf16.mxu0 0
  %5077 = vmatpush1.bf16.msra.mxu0 0
  %5078 = vmatprep.subr.bf16.mxu0 0
  %5079 = vmatpush1.bf16.msra.mxu0 0
  %5080 = vmatprep.mubr.bf16.mxu0 0
  %5081 = vmatmul.mubr.bf16.gmra.mrb[0].mxu0 %v5046
  %v5082 = vpop.f32.mrb[0].mxu0
  %v5083 = vadd.f32 0.0, %v5082
  %v5084 = vpop.f32.mrb[0].mxu0
  %v5085 = vadd.f32 0.0, %v5084
  %v5086 = vpop.f32.mrb[0].mxu0
  %v5087 = vadd.f32 0.0, %v5086
  %v5088 = vpop.f32.mrb[0].mxu0
  %v5089 = vadd.f32 0.0, %v5088
  %5090 = vdwg.mxu0
  %v5091 = vadd.f32 %v5022, %v5083
  %v5092 = vadd.f32 %v5024, %v5085
  %v5093 = vadd.f32 %v5026, %v5087
  %v5094 = vadd.f32 %v5028, %v5089
  %s5095 = scalar_lea.vmem %s7, 24
  %v5096 = vld [vmem:[%s5095] sm:$0xf]
  %v5097 = vld [vmem:[%s5095 + $0x4] sm:$0xf]
  %v5100 = vunpack.c.l.b16 %v5096
  %v5101 = vunpack.c.l.b16 %v5097
  %v5102 = vpack.c.b16 %v5101, %v5100
  %5103 = vrot.lane.b32.xlu0 %v4910, 117
  %v5104 = vpop.permute.xlu0 %5103
  %5105 = vrot.lane.b32.xlu0 %v4911, 117
  %v5106 = vpop.permute.xlu0 %5105
  %v5107 = vsel %vm3988, %v5104, %v5106
  %v5111 = vsel %vm4932, %v5102, 0
  %5113 = vmatprep.subr.bf16.mxu0 %v5106
  %5114 = vmatpush1.bf16.msra.mxu0 %v5107
  %5115 = vmatprep.subr.bf16.mxu0 0
  %5116 = vmatpush1.bf16.msra.mxu0 0
  %5117 = vmatprep.subr.bf16.mxu0 0
  %5118 = vmatpush1.bf16.msra.mxu0 0
  %5119 = vmatprep.subr.bf16.mxu0 0
  %5120 = vmatpush1.bf16.msra.mxu0 0
  %5121 = vmatprep.subr.bf16.mxu0 0
  %5122 = vmatpush1.bf16.msra.mxu0 0
  %5123 = vmatprep.subr.bf16.mxu0 0
  %5124 = vmatpush1.bf16.msra.mxu0 0
  %5125 = vmatprep.subr.bf16.mxu0 0
  %5126 = vmatpush1.bf16.msra.mxu0 0
  %5127 = vmatprep.subr.bf16.mxu0 0
  %5128 = vmatpush1.bf16.msra.mxu0 0
  %5129 = vmatprep.subr.bf16.mxu0 0
  %5130 = vmatpush1.bf16.msra.mxu0 0
  %5131 = vmatprep.subr.bf16.mxu0 0
  %5132 = vmatpush1.bf16.msra.mxu0 0
  %5133 = vmatprep.subr.bf16.mxu0 0
  %5134 = vmatpush1.bf16.msra.mxu0 0
  %5135 = vmatprep.subr.bf16.mxu0 0
  %5136 = vmatpush1.bf16.msra.mxu0 0
  %5137 = vmatprep.subr.bf16.mxu0 0
  %5138 = vmatpush1.bf16.msra.mxu0 0
  %5139 = vmatprep.subr.bf16.mxu0 0
  %5140 = vmatpush1.bf16.msra.mxu0 0
  %5141 = vmatprep.subr.bf16.mxu0 0
  %5142 = vmatpush1.bf16.msra.mxu0 0
  %5143 = vmatprep.subr.bf16.mxu0 0
  %5144 = vmatpush1.bf16.msra.mxu0 0
  %5145 = vmatprep.mubr.bf16.mxu0 0
  %5146 = vmatmul.mubr.bf16.gmra.mrb[0].mxu0 %v5111
  %v5147 = vpop.f32.mrb[0].mxu0
  %v5148 = vadd.f32 0.0, %v5147
  %v5149 = vpop.f32.mrb[0].mxu0
  %v5150 = vadd.f32 0.0, %v5149
  %v5151 = vpop.f32.mrb[0].mxu0
  %v5152 = vadd.f32 0.0, %v5151
  %v5153 = vpop.f32.mrb[0].mxu0
  %v5154 = vadd.f32 0.0, %v5153
  %5155 = vdwg.mxu0
  %v5156 = vadd.f32 %v5091, %v5148
  %v5157 = vadd.f32 %v5092, %v5150
  %v5158 = vadd.f32 %v5093, %v5152
  %v5159 = vadd.f32 %v5094, %v5154
  %s5160 = scalar_lea.vmem %s7, 32
  %v5161 = vld [vmem:[%s5160] sm:$0xf]
  %v5162 = vld [vmem:[%s5160 + $0x4] sm:$0xf]
  %v5165 = vunpack.c.l.b16 %v5161
  %v5166 = vunpack.c.l.b16 %v5162
  %v5167 = vpack.c.b16 %v5166, %v5165
  %5168 = vrot.lane.b32.xlu0 %v4910, 116
  %v5169 = vpop.permute.xlu0 %5168
  %5170 = vrot.lane.b32.xlu0 %v4911, 116
  %v5171 = vpop.permute.xlu0 %5170
  %v5172 = vsel %vm4058, %v5169, %v5171
  %v5176 = vsel %vm4932, %v5167, 0
  %5178 = vmatprep.subr.bf16.mxu0 %v5171
  %5179 = vmatpush1.bf16.msra.mxu0 %v5172
  %5180 = vmatprep.subr.bf16.mxu0 0
  %5181 = vmatpush1.bf16.msra.mxu0 0
  %5182 = vmatprep.subr.bf16.mxu0 0
  %5183 = vmatpush1.bf16.msra.mxu0 0
  %5184 = vmatprep.subr.bf16.mxu0 0
  %5185 = vmatpush1.bf16.msra.mxu0 0
  %5186 = vmatprep.subr.bf16.mxu0 0
  %5187 = vmatpush1.bf16.msra.mxu0 0
  %5188 = vmatprep.subr.bf16.mxu0 0
  %5189 = vmatpush1.bf16.msra.mxu0 0
  %5190 = vmatprep.subr.bf16.mxu0 0
  %5191 = vmatpush1.bf16.msra.mxu0 0
  %5192 = vmatprep.subr.bf16.mxu0 0
  %5193 = vmatpush1.bf16.msra.mxu0 0
  %5194 = vmatprep.subr.bf16.mxu0 0
  %5195 = vmatpush1.bf16.msra.mxu0 0
  %5196 = vmatprep.subr.bf16.mxu0 0
  %5197 = vmatpush1.bf16.msra.mxu0 0
  %5198 = vmatprep.subr.bf16.mxu0 0
  %5199 = vmatpush1.bf16.msra.mxu0 0
  %5200 = vmatprep.subr.bf16.mxu0 0
  %5201 = vmatpush1.bf16.msra.mxu0 0
  %5202 = vmatprep.subr.bf16.mxu0 0
  %5203 = vmatpush1.bf16.msra.mxu0 0
  %5204 = vmatprep.subr.bf16.mxu0 0
  %5205 = vmatpush1.bf16.msra.mxu0 0
  %5206 = vmatprep.subr.bf16.mxu0 0
  %5207 = vmatpush1.bf16.msra.mxu0 0
  %5208 = vmatprep.subr.bf16.mxu0 0
  %5209 = vmatpush1.bf16.msra.mxu0 0
  %5210 = vmatprep.mubr.bf16.mxu0 0
  %5211 = vmatmul.mubr.bf16.gmra.mrb[0].mxu0 %v5176
  %v5212 = vpop.f32.mrb[0].mxu0
  %v5213 = vadd.f32 0.0, %v5212
  %v5214 = vpop.f32.mrb[0].mxu0
  %v5215 = vadd.f32 0.0, %v5214
  %v5216 = vpop.f32.mrb[0].mxu0
  %v5217 = vadd.f32 0.0, %v5216
  %v5218 = vpop.f32.mrb[0].mxu0
  %v5219 = vadd.f32 0.0, %v5218
  %5220 = vdwg.mxu0
  %v5221 = vadd.f32 %v5156, %v5213
  %v5222 = vadd.f32 %v5157, %v5215
  %v5223 = vadd.f32 %v5158, %v5217
  %v5224 = vadd.f32 %v5159, %v5219
  %s5225 = scalar_lea.vmem %s7, 40
  %v5226 = vld [vmem:[%s5225] sm:$0xf]
  %v5227 = vld [vmem:[%s5225 + $0x4] sm:$0xf]
  %v5230 = vunpack.c.l.b16 %v5226
  %v5231 = vunpack.c.l.b16 %v5227
  %v5232 = vpack.c.b16 %v5231, %v5230
  %5233 = vrot.lane.b32.xlu0 %v4910, 115
  %v5234 = vpop.permute.xlu0 %5233
  %5235 = vrot.lane.b32.xlu0 %v4911, 115
  %v5236 = vpop.permute.xlu0 %5235
  %v5237 = vsel %vm4128, %v5234, %v5236
  %v5241 = vsel %vm4932, %v5232, 0
  %5243 = vmatprep.subr.bf16.mxu0 %v5236
  %5244 = vmatpush1.bf16.msra.mxu0 %v5237
  %5245 = vmatprep.subr.bf16.mxu0 0
  %5246 = vmatpush1.bf16.msra.mxu0 0
  %5247 = vmatprep.subr.bf16.mxu0 0
  %5248 = vmatpush1.bf16.msra.mxu0 0
  %5249 = vmatprep.subr.bf16.mxu0 0
  %5250 = vmatpush1.bf16.msra.mxu0 0
  %5251 = vmatprep.subr.bf16.mxu0 0
  %5252 = vmatpush1.bf16.msra.mxu0 0
  %5253 = vmatprep.subr.bf16.mxu0 0
  %5254 = vmatpush1.bf16.msra.mxu0 0
  %5255 = vmatprep.subr.bf16.mxu0 0
  %5256 = vmatpush1.bf16.msra.mxu0 0
  %5257 = vmatprep.subr.bf16.mxu0 0
  %5258 = vmatpush1.bf16.msra.mxu0 0
  %5259 = vmatprep.subr.bf16.mxu0 0
  %5260 = vmatpush1.bf16.msra.mxu0 0
  %5261 = vmatprep.subr.bf16.mxu0 0
  %5262 = vmatpush1.bf16.msra.mxu0 0
  %5263 = vmatprep.subr.bf16.mxu0 0
  %5264 = vmatpush1.bf16.msra.mxu0 0
  %5265 = vmatprep.subr.bf16.mxu0 0
  %5266 = vmatpush1.bf16.msra.mxu0 0
  %5267 = vmatprep.subr.bf16.mxu0 0
  %5268 = vmatpush1.bf16.msra.mxu0 0
  %5269 = vmatprep.subr.bf16.mxu0 0
  %5270 = vmatpush1.bf16.msra.mxu0 0
  %5271 = vmatprep.subr.bf16.mxu0 0
  %5272 = vmatpush1.bf16.msra.mxu0 0
  %5273 = vmatprep.subr.bf16.mxu0 0
  %5274 = vmatpush1.bf16.msra.mxu0 0
  %5275 = vmatprep.mubr.bf16.mxu0 0
  %5276 = vmatmul.mubr.bf16.gmra.mrb[0].mxu0 %v5241
  %v5277 = vpop.f32.mrb[0].mxu0
  %v5278 = vadd.f32 0.0, %v5277
  %v5279 = vpop.f32.mrb[0].mxu0
  %v5280 = vadd.f32 0.0, %v5279
  %v5281 = vpop.f32.mrb[0].mxu0
  %v5282 = vadd.f32 0.0, %v5281
  %v5283 = vpop.f32.mrb[0].mxu0
  %v5284 = vadd.f32 0.0, %v5283
  %5285 = vdwg.mxu0
  %v5286 = vadd.f32 %v5221, %v5278
  %v5287 = vadd.f32 %v5222, %v5280
  %v5288 = vadd.f32 %v5223, %v5282
  %v5289 = vadd.f32 %v5224, %v5284
  %s5290 = scalar_lea.vmem %s7, 48
  %v5291 = vld [vmem:[%s5290] sm:$0xf]
  %v5292 = vld [vmem:[%s5290 + $0x4] sm:$0xf]
  %v5295 = vunpack.c.l.b16 %v5291
  %v5296 = vunpack.c.l.b16 %v5292
  %v5297 = vpack.c.b16 %v5296, %v5295
  %5299 = vrot.lane.b32.xlu0 %v4910, 106
  %v5300 = vpop.permute.xlu0 %5299
  %5301 = vrot.lane.b32.xlu0 %v4911, 106
  %v5302 = vpop.permute.xlu0 %5301
  %5303 = vrot.lane.b32.xlu0 %v4912, 106
  %v5304 = vpop.permute.xlu0 %5303
  %v5305 = vsel %vm1391, %v5300, %v5302
  %v5306 = vsel %vm1391, %v5302, %v5304
  %v5310 = vsel %vm4932, %v5297, 0
  %5312 = vmatprep.subr.bf16.mxu0 %v5306
  %5313 = vmatpush1.bf16.msra.mxu0 %v5305
  %5314 = vmatprep.subr.bf16.mxu0 0
  %5315 = vmatpush1.bf16.msra.mxu0 0
  %5316 = vmatprep.subr.bf16.mxu0 0
  %5317 = vmatpush1.bf16.msra.mxu0 0
  %5318 = vmatprep.subr.bf16.mxu0 0
  %5319 = vmatpush1.bf16.msra.mxu0 0
  %5320 = vmatprep.subr.bf16.mxu0 0
  %5321 = vmatpush1.bf16.msra.mxu0 0
  %5322 = vmatprep.subr.bf16.mxu0 0
  %5323 = vmatpush1.bf16.msra.mxu0 0
  %5324 = vmatprep.subr.bf16.mxu0 0
  %5325 = vmatpush1.bf16.msra.mxu0 0
  %5326 = vmatprep.subr.bf16.mxu0 0
  %5327 = vmatpush1.bf16.msra.mxu0 0
  %5328 = vmatprep.subr.bf16.mxu0 0
  %5329 = vmatpush1.bf16.msra.mxu0 0
  %5330 = vmatprep.subr.bf16.mxu0 0
  %5331 = vmatpush1.bf16.msra.mxu0 0
  %5332 = vmatprep.subr.bf16.mxu0 0
  %5333 = vmatpush1.bf16.msra.mxu0 0
  %5334 = vmatprep.subr.bf16.mxu0 0
  %5335 = vmatpush1.bf16.msra.mxu0 0
  %5336 = vmatprep.subr.bf16.mxu0 0
  %5337 = vmatpush1.bf16.msra.mxu0 0
  %5338 = vmatprep.subr.bf16.mxu0 0
  %5339 = vmatpush1.bf16.msra.mxu0 0
  %5340 = vmatprep.subr.bf16.mxu0 0
  %5341 = vmatpush1.bf16.msra.mxu0 0
  %5342 = vmatprep.subr.bf16.mxu0 0
  %5343 = vmatpush1.bf16.msra.mxu0 0
  %5344 = vmatprep.mubr.bf16.mxu0 0
  %5345 = vmatmul.mubr.bf16.gmra.mrb[0].mxu0 %v5310
  %v5346 = vpop.f32.mrb[0].mxu0
  %v5347 = vadd.f32 0.0, %v5346
  %v5348 = vpop.f32.mrb[0].mxu0
  %v5349 = vadd.f32 0.0, %v5348
  %v5350 = vpop.f32.mrb[0].mxu0
  %v5351 = vadd.f32 0.0, %v5350
  %v5352 = vpop.f32.mrb[0].mxu0
  %v5353 = vadd.f32 0.0, %v5352
  %5354 = vdwg.mxu0
  %v5355 = vadd.f32 %v5286, %v5347
  %v5356 = vadd.f32 %v5287, %v5349
  %v5357 = vadd.f32 %v5288, %v5351
  %v5358 = vadd.f32 %v5289, %v5353
  %s5359 = scalar_lea.vmem %s7, 56
  %v5360 = vld [vmem:[%s5359] sm:$0xf]
  %v5361 = vld [vmem:[%s5359 + $0x4] sm:$0xf]
  %v5364 = vunpack.c.l.b16 %v5360
  %v5365 = vunpack.c.l.b16 %v5361
  %v5366 = vpack.c.b16 %v5365, %v5364
  %5367 = vrot.lane.b32.xlu0 %v4910, 105
  %v5368 = vpop.permute.xlu0 %5367
  %5369 = vrot.lane.b32.xlu0 %v4911, 105
  %v5370 = vpop.permute.xlu0 %5369
  %5371 = vrot.lane.b32.xlu0 %v4912, 105
  %v5372 = vpop.permute.xlu0 %5371
  %v5373 = vsel %vm4273, %v5368, %v5370
  %v5374 = vsel %vm4273, %v5370, %v5372
  %v5378 = vsel %vm4932, %v5366, 0
  %5380 = vmatprep.subr.bf16.mxu0 %v5374
  %5381 = vmatpush1.bf16.msra.mxu0 %v5373
  %5382 = vmatprep.subr.bf16.mxu0 0
  %5383 = vmatpush1.bf16.msra.mxu0 0
  %5384 = vmatprep.subr.bf16.mxu0 0
  %5385 = vmatpush1.bf16.msra.mxu0 0
  %5386 = vmatprep.subr.bf16.mxu0 0
  %5387 = vmatpush1.bf16.msra.mxu0 0
  %5388 = vmatprep.subr.bf16.mxu0 0
  %5389 = vmatpush1.bf16.msra.mxu0 0
  %5390 = vmatprep.subr.bf16.mxu0 0
  %5391 = vmatpush1.bf16.msra.mxu0 0
  %5392 = vmatprep.subr.bf16.mxu0 0
  %5393 = vmatpush1.bf16.msra.mxu0 0
  %5394 = vmatprep.subr.bf16.mxu0 0
  %5395 = vmatpush1.bf16.msra.mxu0 0
  %5396 = vmatprep.subr.bf16.mxu0 0
  %5397 = vmatpush1.bf16.msra.mxu0 0
  %5398 = vmatprep.subr.bf16.mxu0 0
  %5399 = vmatpush1.bf16.msra.mxu0 0
  %5400 = vmatprep.subr.bf16.mxu0 0
  %5401 = vmatpush1.bf16.msra.mxu0 0
  %5402 = vmatprep.subr.bf16.mxu0 0
  %5403 = vmatpush1.bf16.msra.mxu0 0
  %5404 = vmatprep.subr.bf16.mxu0 0
  %5405 = vmatpush1.bf16.msra.mxu0 0
  %5406 = vmatprep.subr.bf16.mxu0 0
  %5407 = vmatpush1.bf16.msra.mxu0 0
  %5408 = vmatprep.subr.bf16.mxu0 0
  %5409 = vmatpush1.bf16.msra.mxu0 0
  %5410 = vmatprep.subr.bf16.mxu0 0
  %5411 = vmatpush1.bf16.msra.mxu0 0
  %5412 = vmatprep.mubr.bf16.mxu0 0
  %5413 = vmatmul.mubr.bf16.gmra.mrb[0].mxu0 %v5378
  %v5414 = vpop.f32.mrb[0].mxu0
  %v5415 = vadd.f32 0.0, %v5414
  %v5416 = vpop.f32.mrb[0].mxu0
  %v5417 = vadd.f32 0.0, %v5416
  %v5418 = vpop.f32.mrb[0].mxu0
  %v5419 = vadd.f32 0.0, %v5418
  %v5420 = vpop.f32.mrb[0].mxu0
  %v5421 = vadd.f32 0.0, %v5420
  %5422 = vdwg.mxu0
  %v5423 = vadd.f32 %v5355, %v5415
  %v5424 = vadd.f32 %v5356, %v5417
  %v5425 = vadd.f32 %v5357, %v5419
  %v5426 = vadd.f32 %v5358, %v5421
  %s5427 = scalar_lea.vmem %s7, 64
  %v5428 = vld [vmem:[%s5427] sm:$0xf]
  %v5429 = vld [vmem:[%s5427 + $0x4] sm:$0xf]
  %v5432 = vunpack.c.l.b16 %v5428
  %v5433 = vunpack.c.l.b16 %v5429
  %v5434 = vpack.c.b16 %v5433, %v5432
  %5435 = vrot.lane.b32.xlu0 %v4910, 104
  %v5436 = vpop.permute.xlu0 %5435
  %5437 = vrot.lane.b32.xlu0 %v4911, 104
  %v5438 = vpop.permute.xlu0 %5437
  %5439 = vrot.lane.b32.xlu0 %v4912, 104
  %v5440 = vpop.permute.xlu0 %5439
  %v5441 = vsel %vm4346, %v5436, %v5438
  %v5442 = vsel %vm4346, %v5438, %v5440
  %v5446 = vsel %vm4932, %v5434, 0
  %5448 = vmatprep.subr.bf16.mxu0 %v5442
  %5449 = vmatpush1.bf16.msra.mxu0 %v5441
  %5450 = vmatprep.subr.bf16.mxu0 0
  %5451 = vmatpush1.bf16.msra.mxu0 0
  %5452 = vmatprep.subr.bf16.mxu0 0
  %5453 = vmatpush1.bf16.msra.mxu0 0
  %5454 = vmatprep.subr.bf16.mxu0 0
  %5455 = vmatpush1.bf16.msra.mxu0 0
  %5456 = vmatprep.subr.bf16.mxu0 0
  %5457 = vmatpush1.bf16.msra.mxu0 0
  %5458 = vmatprep.subr.bf16.mxu0 0
  %5459 = vmatpush1.bf16.msra.mxu0 0
  %5460 = vmatprep.subr.bf16.mxu0 0
  %5461 = vmatpush1.bf16.msra.mxu0 0
  %5462 = vmatprep.subr.bf16.mxu0 0
  %5463 = vmatpush1.bf16.msra.mxu0 0
  %5464 = vmatprep.subr.bf16.mxu0 0
  %5465 = vmatpush1.bf16.msra.mxu0 0
  %5466 = vmatprep.subr.bf16.mxu0 0
  %5467 = vmatpush1.bf16.msra.mxu0 0
  %5468 = vmatprep.subr.bf16.mxu0 0
  %5469 = vmatpush1.bf16.msra.mxu0 0
  %5470 = vmatprep.subr.bf16.mxu0 0
  %5471 = vmatpush1.bf16.msra.mxu0 0
  %5472 = vmatprep.subr.bf16.mxu0 0
  %5473 = vmatpush1.bf16.msra.mxu0 0
  %5474 = vmatprep.subr.bf16.mxu0 0
  %5475 = vmatpush1.bf16.msra.mxu0 0
  %5476 = vmatprep.subr.bf16.mxu0 0
  %5477 = vmatpush1.bf16.msra.mxu0 0
  %5478 = vmatprep.subr.bf16.mxu0 0
  %5479 = vmatpush1.bf16.msra.mxu0 0
  %5480 = vmatprep.mubr.bf16.mxu0 0
  %5481 = vmatmul.mubr.bf16.gmra.mrb[0].mxu0 %v5446
  %v5482 = vpop.f32.mrb[0].mxu0
  %v5483 = vadd.f32 0.0, %v5482
  %v5484 = vpop.f32.mrb[0].mxu0
  %v5485 = vadd.f32 0.0, %v5484
  %v5486 = vpop.f32.mrb[0].mxu0
  %v5487 = vadd.f32 0.0, %v5486
  %v5488 = vpop.f32.mrb[0].mxu0
  %v5489 = vadd.f32 0.0, %v5488
  %5490 = vdwg.mxu0
  %v5491 = vadd.f32 %v5423, %v5483
  %v5492 = vadd.f32 %v5424, %v5485
  %v5493 = vadd.f32 %v5425, %v5487
  %v5494 = vadd.f32 %v5426, %v5489
  %vm5495 = vcmp.ge.f32.partialorder %v5491, 0.0
  %vm5496 = vcmp.ge.f32.partialorder %v5492, 0.0
  %vm5497 = vcmp.ge.f32.partialorder %v5493, 0.0
  %vm5498 = vcmp.ge.f32.partialorder %v5494, 0.0
  %v5499 = vmul.f32 %v5491, 0.2
  %v5500 = vmul.f32 %v5492, 0.2
  %v5501 = vmul.f32 %v5493, 0.2
  %v5502 = vmul.f32 %v5494, 0.2
  %v5503 = vsel %vm5495, %v5491, %v5499
  %v5504 = vsel %vm5496, %v5492, %v5500
  %v5505 = vsel %vm5497, %v5493, %v5501
  %v5506 = vsel %vm5498, %v5494, %v5502
  %v5507 = vmul.f32 %v5503, 1.4
  %v5508 = vmul.f32 %v5504, 1.4
  %v5509 = vmul.f32 %v5505, 1.4
  %v5510 = vmul.f32 %v5506, 1.4
  %v5511 = vld [vmem:[%s10] sm:$0xf]
  %v5512 = vld [vmem:[%s10 + $0x4] sm:$0xf]
  %v5513 = vld [vmem:[%s10 + $0x8] sm:$0xf]
  %v5514 = vld [vmem:[%s10 + $0xc] sm:$0xf]
  %v5515 = vld [vmem:[%s10 + $0x10] sm:$0xf]
  %v5516 = vld [vmem:[%s10 + $0x14] sm:$0xf]
  %v5517 = vld [vmem:[%s10 + $0x18] sm:$0xf]
  %v5518 = vld [vmem:[%s10 + $0x1c] sm:$0xf]
  %v5519 = vld [vmem:[%s10 + $0x20] sm:$0xf]
  %v5520 = vld [vmem:[%s10 + $0x24] sm:$0xf]
  %v5521 = vld [vmem:[%s10 + $0x28] sm:$0xf]
  %v5522 = vld [vmem:[%s10 + $0x2c] sm:$0xf]
  %v5523 = vld [vmem:[%s10 + $0x30] sm:$0xf]
  %v5524 = vld [vmem:[%s10 + $0x34] sm:$0xf]
  %v5525 = vld [vmem:[%s10 + $0x38] sm:$0xf]
  %v5526 = vld [vmem:[%s10 + $0x3c] sm:$0xf]
  %v5527 = vld [vmem:[%s10 + $0x40] sm:$0xf]
  %v5528 = vld [vmem:[%s10 + $0x44] sm:$0xf]
  %v5529 = vld [vmem:[%s10 + $0x48] sm:$0xf]
  %v5530 = vld [vmem:[%s10 + $0x4c] sm:$0xf]
  %v5531 = vld [vmem:[%s10 + $0x50] sm:$0xf]
  %v5532 = vld [vmem:[%s10 + $0x54] sm:$0xf]
  %v5533 = vld [vmem:[%s10 + $0x58] sm:$0xf]
  %v5534 = vld [vmem:[%s10 + $0x5c] sm:$0xf]
  %v5535 = vld [vmem:[%s10 + $0x60] sm:$0xf]
  %v5536 = vld [vmem:[%s10 + $0x64] sm:$0xf]
  %v5537 = vld [vmem:[%s10 + $0x68] sm:$0xf]
  %v5538 = vld [vmem:[%s10 + $0x6c] sm:$0xf]
  %v5539 = vld [vmem:[%s10 + $0x70] sm:$0xf]
  %v5540 = vld [vmem:[%s10 + $0x74] sm:$0xf]
  %v5541 = vld [vmem:[%s10 + $0x78] sm:$0x1]
  %v5542 = vpack.c.bf16 %v5509, %v5507
  %v5543 = vpack.c.bf16 %v5510, %v5508
  %v5575 = vunpack.c.l.b16 %v5511
  %v5576 = vunpack.c.l.b16 %v5512
  %v5577 = vunpack.c.l.b16 %v5513
  %v5578 = vunpack.c.l.b16 %v5514
  %v5579 = vunpack.c.l.b16 %v5515
  %v5580 = vunpack.c.l.b16 %v5516
  %v5581 = vunpack.c.l.b16 %v5517
  %v5582 = vunpack.c.l.b16 %v5518
  %v5583 = vunpack.c.l.b16 %v5519
  %v5584 = vunpack.c.l.b16 %v5520
  %v5585 = vunpack.c.l.b16 %v5521
  %v5586 = vunpack.c.l.b16 %v5522
  %v5587 = vunpack.c.l.b16 %v5523
  %v5588 = vunpack.c.l.b16 %v5524
  %v5589 = vunpack.c.l.b16 %v5525
  %v5590 = vunpack.c.l.b16 %v5526
  %v5591 = vunpack.c.l.b16 %v5527
  %v5592 = vunpack.c.l.b16 %v5528
  %v5593 = vunpack.c.l.b16 %v5529
  %v5594 = vunpack.c.l.b16 %v5530
  %v5595 = vunpack.c.l.b16 %v5531
  %v5596 = vunpack.c.l.b16 %v5532
  %v5597 = vunpack.c.l.b16 %v5533
  %v5598 = vunpack.c.l.b16 %v5534
  %v5599 = vunpack.c.l.b16 %v5535
  %v5600 = vunpack.c.l.b16 %v5536
  %v5601 = vunpack.c.l.b16 %v5537
  %v5602 = vunpack.c.l.b16 %v5538
  %v5603 = vunpack.c.l.b16 %v5539
  %v5604 = vunpack.c.l.b16 %v5540
  %v5605 = vunpack.c.l.b16 %v5541
  %v5606 = vpack.c.b16 %v5576, %v5575
  %v5607 = vpack.c.b16 %v5578, %v5577
  %v5608 = vpack.c.b16 %v5580, %v5579
  %v5609 = vpack.c.b16 %v5582, %v5581
  %v5610 = vpack.c.b16 %v5584, %v5583
  %v5611 = vpack.c.b16 %v5586, %v5585
  %v5612 = vpack.c.b16 %v5588, %v5587
  %v5613 = vpack.c.b16 %v5590, %v5589
  %v5614 = vpack.c.b16 %v5592, %v5591
  %v5615 = vpack.c.b16 %v5594, %v5593
  %v5616 = vpack.c.b16 %v5596, %v5595
  %v5617 = vpack.c.b16 %v5598, %v5597
  %v5618 = vpack.c.b16 %v5600, %v5599
  %v5619 = vpack.c.b16 %v5602, %v5601
  %v5620 = vpack.c.b16 %v5604, %v5603
  %v5621 = vpack.c.b16 %v5605, %v5605
  %v5638 = vsel %vm4813, %v5543, 0
  %v5641 = vsel %vm101, %v5621, 0
  %5643 = vmatprep.subr.bf16.mxu0 0
  %5644 = vmatpush1.bf16.msra.mxu0 %v5606
  %5645 = vmatprep.subr.bf16.mxu0 0
  %5646 = vmatpush1.bf16.msra.mxu0 %v5607
  %5647 = vmatprep.subr.bf16.mxu0 0
  %5648 = vmatpush1.bf16.msra.mxu0 %v5608
  %5649 = vmatprep.subr.bf16.mxu0 0
  %5650 = vmatpush1.bf16.msra.mxu0 %v5609
  %5651 = vmatprep.subr.bf16.mxu0 0
  %5652 = vmatpush1.bf16.msra.mxu0 %v5610
  %5653 = vmatprep.subr.bf16.mxu0 0
  %5654 = vmatpush1.bf16.msra.mxu0 %v5611
  %5655 = vmatprep.subr.bf16.mxu0 0
  %5656 = vmatpush1.bf16.msra.mxu0 %v5612
  %5657 = vmatprep.subr.bf16.mxu0 0
  %5658 = vmatpush1.bf16.msra.mxu0 %v5613
  %5659 = vmatprep.subr.bf16.mxu0 0
  %5660 = vmatpush1.bf16.msra.mxu0 %v5614
  %5661 = vmatprep.subr.bf16.mxu0 0
  %5662 = vmatpush1.bf16.msra.mxu0 %v5615
  %5663 = vmatprep.subr.bf16.mxu0 0
  %5664 = vmatpush1.bf16.msra.mxu0 %v5616
  %5665 = vmatprep.subr.bf16.mxu0 0
  %5666 = vmatpush1.bf16.msra.mxu0 %v5617
  %5667 = vmatprep.subr.bf16.mxu0 0
  %5668 = vmatpush1.bf16.msra.mxu0 %v5618
  %5669 = vmatprep.subr.bf16.mxu0 0
  %5670 = vmatpush1.bf16.msra.mxu0 %v5619
  %5671 = vmatprep.subr.bf16.mxu0 0
  %5672 = vmatpush1.bf16.msra.mxu0 %v5620
  %5673 = vmatprep.subr.bf16.mxu0 0
  %5674 = vmatpush1.bf16.msra.mxu0 %v5641
  %5675 = vmatprep.mubr.bf16.mxu0 %v5638
  %5676 = vmatmul.mubr.bf16.gmra.mrb[0].mxu0 %v5542
  %v5677 = vpop.f32.mrb[0].mxu0
  %v5678 = vadd.f32 0.0, %v5677
  %v5679 = vpop.f32.mrb[0].mxu0
  %v5680 = vpop.f32.mrb[0].mxu0
  %v5681 = vadd.f32 0.0, %v5680
  %v5682 = vpop.f32.mrb[0].mxu0
  %5683 = vdwg.mxu0
  %v5685 = vsel %vm4813, %v5171, 0
  %5687 = vmatprep.subr.bf16.mxu0 0
  %5688 = vmatpush1.bf16.msra.mxu0 %v5606
  %5689 = vmatprep.subr.bf16.mxu0 0
  %5690 = vmatpush1.bf16.msra.mxu0 %v5607
  %5691 = vmatprep.subr.bf16.mxu0 0
  %5692 = vmatpush1.bf16.msra.mxu0 %v5608
  %5693 = vmatprep.subr.bf16.mxu0 0
  %5694 = vmatpush1.bf16.msra.mxu0 %v5609
  %5695 = vmatprep.subr.bf16.mxu0 0
  %5696 = vmatpush1.bf16.msra.mxu0 %v5610
  %5697 = vmatprep.subr.bf16.mxu0 0
  %5698 = vmatpush1.bf16.msra.mxu0 %v5611
  %5699 = vmatprep.subr.bf16.mxu0 0
  %5700 = vmatpush1.bf16.msra.mxu0 %v5612
  %5701 = vmatprep.subr.bf16.mxu0 0
  %5702 = vmatpush1.bf16.msra.mxu0 %v5613
  %5703 = vmatprep.subr.bf16.mxu0 0
  %5704 = vmatpush1.bf16.msra.mxu0 %v5614
  %5705 = vmatprep.subr.bf16.mxu0 0
  %5706 = vmatpush1.bf16.msra.mxu0 %v5615
  %5707 = vmatprep.subr.bf16.mxu0 0
  %5708 = vmatpush1.bf16.msra.mxu0 %v5616
  %5709 = vmatprep.subr.bf16.mxu0 0
  %5710 = vmatpush1.bf16.msra.mxu0 %v5617
  %5711 = vmatprep.subr.bf16.mxu0 0
  %5712 = vmatpush1.bf16.msra.mxu0 %v5618
  %5713 = vmatprep.subr.bf16.mxu0 0
  %5714 = vmatpush1.bf16.msra.mxu0 %v5619
  %5715 = vmatprep.subr.bf16.mxu0 0
  %5716 = vmatpush1.bf16.msra.mxu0 %v5620
  %5717 = vmatprep.subr.bf16.mxu0 0
  %5718 = vmatpush1.bf16.msra.mxu0 %v5641
  %5719 = vmatprep.mubr.bf16.mxu0 %v5685
  %5720 = vmatmul.mubr.bf16.gmra.mrb[0].mxu0 %v5172
  %v5721 = vpop.f32.mrb[0].mxu0
  %v5722 = vadd.f32 0.0, %v5721
  %v5723 = vpop.f32.mrb[0].mxu0
  %v5724 = vpop.f32.mrb[0].mxu0
  %v5725 = vadd.f32 0.0, %v5724
  %v5726 = vpop.f32.mrb[0].mxu0
  %5727 = vdwg.mxu0
  %v5728 = vpack.c.bf16 %v5681, %v5678
  %v5729 = vld [vmem:[%s8] sm:$0xf]
  %v5730 = vld [vmem:[%s8 + $0x4] sm:$0xf]
  %s5731 = scalar_lea.vmem %s8, 8
  %v5732 = vld [vmem:[%s5731] sm:$0xf]
  %v5733 = vld [vmem:[%s5731 + $0x4] sm:$0xf]
  %v5736 = vunpack.c.l.b16 %v5732
  %v5737 = vunpack.c.l.b16 %v5733
  %v5738 = vpack.c.b16 %v5737, %v5736
  %5740 = vrot.lane.b32.xlu0 %v5728, 113
  %v5741 = vpop.permute.xlu0 %5740
  %v5744 = vsel %vm4932, %v5738, 0
  %5746 = vmatprep.subr.bf16.mxu0 0
  %5747 = vmatpush1.bf16.msra.mxu0 %v5741
  %5748 = vmatprep.subr.bf16.mxu0 0
  %5749 = vmatpush1.bf16.msra.mxu0 0
  %5750 = vmatprep.subr.bf16.mxu0 0
  %5751 = vmatpush1.bf16.msra.mxu0 0
  %5752 = vmatprep.subr.bf16.mxu0 0
  %5753 = vmatpush1.bf16.msra.mxu0 0
  %5754 = vmatprep.subr.bf16.mxu0 0
  %5755 = vmatpush1.bf16.msra.mxu0 0
  %5756 = vmatprep.subr.bf16.mxu0 0
  %5757 = vmatpush1.bf16.msra.mxu0 0
  %5758 = vmatprep.subr.bf16.mxu0 0
  %5759 = vmatpush1.bf16.msra.mxu0 0
  %5760 = vmatprep.subr.bf16.mxu0 0
  %5761 = vmatpush1.bf16.msra.mxu0 0
  %5762 = vmatprep.subr.bf16.mxu0 0
  %5763 = vmatpush1.bf16.msra.mxu0 0
  %5764 = vmatprep.subr.bf16.mxu0 0
  %5765 = vmatpush1.bf16.msra.mxu0 0
  %5766 = vmatprep.subr.bf16.mxu0 0
  %5767 = vmatpush1.bf16.msra.mxu0 0
  %5768 = vmatprep.subr.bf16.mxu0 0
  %5769 = vmatpush1.bf16.msra.mxu0 0
  %5770 = vmatprep.subr.bf16.mxu0 0
  %5771 = vmatpush1.bf16.msra.mxu0 0
  %5772 = vmatprep.subr.bf16.mxu0 0
  %5773 = vmatpush1.bf16.msra.mxu0 0
  %5774 = vmatprep.subr.bf16.mxu0 0
  %5775 = vmatpush1.bf16.msra.mxu0 0
  %5776 = vmatprep.subr.bf16.mxu0 0
  %5777 = vmatpush1.bf16.msra.mxu0 0
  %5778 = vmatprep.mubr.bf16.mxu0 0
  %5779 = vmatmul.mubr.bf16.gmra.mrb[0].mxu0 %v5744
  %v5780 = vpop.f32.mrb[0].mxu0
  %v5781 = vadd.f32 0.0, %v5780
  %v5782 = vpop.f32.mrb[0].mxu0
  %v5783 = vpop.f32.mrb[0].mxu0
  %v5784 = vadd.f32 0.0, %v5783
  %v5785 = vpop.f32.mrb[0].mxu0
  %5786 = vdwg.mxu0
  %v5789 = vunpack.c.l.b16 %v5729
  %v5790 = vunpack.c.l.b16 %v5730
  %v5791 = vpack.c.b16 %v5790, %v5789
  %5792 = vrot.lane.b32.xlu0 %v5728, 114
  %v5793 = vpop.permute.xlu0 %5792
  %v5796 = vsel %vm4932, %v5791, 0
  %5798 = vmatprep.subr.bf16.mxu0 0
  %5799 = vmatpush1.bf16.msra.mxu0 %v5793
  %5800 = vmatprep.subr.bf16.mxu0 0
  %5801 = vmatpush1.bf16.msra.mxu0 0
  %5802 = vmatprep.subr.bf16.mxu0 0
  %5803 = vmatpush1.bf16.msra.mxu0 0
  %5804 = vmatprep.subr.bf16.mxu0 0
  %5805 = vmatpush1.bf16.msra.mxu0 0
  %5806 = vmatprep.subr.bf16.mxu0 0
  %5807 = vmatpush1.bf16.msra.mxu0 0
  %5808 = vmatprep.subr.bf16.mxu0 0
  %5809 = vmatpush1.bf16.msra.mxu0 0
  %5810 = vmatprep.subr.bf16.mxu0 0
  %5811 = vmatpush1.bf16.msra.mxu0 0
  %5812 = vmatprep.subr.bf16.mxu0 0
  %5813 = vmatpush1.bf16.msra.mxu0 0
  %5814 = vmatprep.subr.bf16.mxu0 0
  %5815 = vmatpush1.bf16.msra.mxu0 0
  %5816 = vmatprep.subr.bf16.mxu0 0
  %5817 = vmatpush1.bf16.msra.mxu0 0
  %5818 = vmatprep.subr.bf16.mxu0 0
  %5819 = vmatpush1.bf16.msra.mxu0 0
  %5820 = vmatprep.subr.bf16.mxu0 0
  %5821 = vmatpush1.bf16.msra.mxu0 0
  %5822 = vmatprep.subr.bf16.mxu0 0
  %5823 = vmatpush1.bf16.msra.mxu0 0
  %5824 = vmatprep.subr.bf16.mxu0 0
  %5825 = vmatpush1.bf16.msra.mxu0 0
  %5826 = vmatprep.subr.bf16.mxu0 0
  %5827 = vmatpush1.bf16.msra.mxu0 0
  %5828 = vmatprep.subr.bf16.mxu0 0
  %5829 = vmatpush1.bf16.msra.mxu0 0
  %5830 = vmatprep.mubr.bf16.mxu0 0
  %5831 = vmatmul.mubr.bf16.gmra.mrb[0].mxu0 %v5796
  %v5832 = vpop.f32.mrb[0].mxu0
  %v5833 = vadd.f32 %v5781, %v5832
  %v5834 = vpop.f32.mrb[0].mxu0
  %v5835 = vpop.f32.mrb[0].mxu0
  %v5836 = vadd.f32 %v5784, %v5835
  %v5837 = vpop.f32.mrb[0].mxu0
  %5838 = vdwg.mxu0
  %s5839 = scalar_lea.vmem %s8, 16
  %v5840 = vld [vmem:[%s5839] sm:$0xf]
  %v5841 = vld [vmem:[%s5839 + $0x4] sm:$0xf]
  %v5844 = vunpack.c.l.b16 %v5840
  %v5845 = vunpack.c.l.b16 %v5841
  %v5846 = vpack.c.b16 %v5845, %v5844
  %5847 = vrot.lane.b32.xlu0 %v5728, 112
  %v5848 = vpop.permute.xlu0 %5847
  %v5851 = vsel %vm4932, %v5846, 0
  %5853 = vmatprep.subr.bf16.mxu0 0
  %5854 = vmatpush1.bf16.msra.mxu0 %v5848
  %5855 = vmatprep.subr.bf16.mxu0 0
  %5856 = vmatpush1.bf16.msra.mxu0 0
  %5857 = vmatprep.subr.bf16.mxu0 0
  %5858 = vmatpush1.bf16.msra.mxu0 0
  %5859 = vmatprep.subr.bf16.mxu0 0
  %5860 = vmatpush1.bf16.msra.mxu0 0
  %5861 = vmatprep.subr.bf16.mxu0 0
  %5862 = vmatpush1.bf16.msra.mxu0 0
  %5863 = vmatprep.subr.bf16.mxu0 0
  %5864 = vmatpush1.bf16.msra.mxu0 0
  %5865 = vmatprep.subr.bf16.mxu0 0
  %5866 = vmatpush1.bf16.msra.mxu0 0
  %5867 = vmatprep.subr.bf16.mxu0 0
  %5868 = vmatpush1.bf16.msra.mxu0 0
  %5869 = vmatprep.subr.bf16.mxu0 0
  %5870 = vmatpush1.bf16.msra.mxu0 0
  %5871 = vmatprep.subr.bf16.mxu0 0
  %5872 = vmatpush1.bf16.msra.mxu0 0
  %5873 = vmatprep.subr.bf16.mxu0 0
  %5874 = vmatpush1.bf16.msra.mxu0 0
  %5875 = vmatprep.subr.bf16.mxu0 0
  %5876 = vmatpush1.bf16.msra.mxu0 0
  %5877 = vmatprep.subr.bf16.mxu0 0
  %5878 = vmatpush1.bf16.msra.mxu0 0
  %5879 = vmatprep.subr.bf16.mxu0 0
  %5880 = vmatpush1.bf16.msra.mxu0 0
  %5881 = vmatprep.subr.bf16.mxu0 0
  %5882 = vmatpush1.bf16.msra.mxu0 0
  %5883 = vmatprep.subr.bf16.mxu0 0
  %5884 = vmatpush1.bf16.msra.mxu0 0
  %5885 = vmatprep.mubr.bf16.mxu0 0
  %5886 = vmatmul.mubr.bf16.gmra.mrb[0].mxu0 %v5851
  %v5887 = vpop.f32.mrb[0].mxu0
  %v5888 = vadd.f32 0.0, %v5887
  %v5889 = vpop.f32.mrb[0].mxu0
  %v5890 = vpop.f32.mrb[0].mxu0
  %v5891 = vadd.f32 0.0, %v5890
  %v5892 = vpop.f32.mrb[0].mxu0
  %5893 = vdwg.mxu0
  %v5894 = vadd.f32 %v5833, %v5888
  %v5895 = vadd.f32 %v5836, %v5891
  %s5896 = scalar_lea.vmem %s8, 24
  %v5897 = vld [vmem:[%s5896] sm:$0xf]
  %v5898 = vld [vmem:[%s5896 + $0x4] sm:$0xf]
  %v5901 = vunpack.c.l.b16 %v5897
  %v5902 = vunpack.c.l.b16 %v5898
  %v5903 = vpack.c.b16 %v5902, %v5901
  %5904 = vrot.lane.b32.xlu0 %v5728, 108
  %v5905 = vpop.permute.xlu0 %5904
  %v5908 = vsel %vm4932, %v5903, 0
  %5910 = vmatprep.subr.bf16.mxu0 0
  %5911 = vmatpush1.bf16.msra.mxu0 %v5905
  %5912 = vmatprep.subr.bf16.mxu0 0
  %5913 = vmatpush1.bf16.msra.mxu0 0
  %5914 = vmatprep.subr.bf16.mxu0 0
  %5915 = vmatpush1.bf16.msra.mxu0 0
  %5916 = vmatprep.subr.bf16.mxu0 0
  %5917 = vmatpush1.bf16.msra.mxu0 0
  %5918 = vmatprep.subr.bf16.mxu0 0
  %5919 = vmatpush1.bf16.msra.mxu0 0
  %5920 = vmatprep.subr.bf16.mxu0 0
  %5921 = vmatpush1.bf16.msra.mxu0 0
  %5922 = vmatprep.subr.bf16.mxu0 0
  %5923 = vmatpush1.bf16.msra.mxu0 0
  %5924 = vmatprep.subr.bf16.mxu0 0
  %5925 = vmatpush1.bf16.msra.mxu0 0
  %5926 = vmatprep.subr.bf16.mxu0 0
  %5927 = vmatpush1.bf16.msra.mxu0 0
  %5928 = vmatprep.subr.bf16.mxu0 0
  %5929 = vmatpush1.bf16.msra.mxu0 0
  %5930 = vmatprep.subr.bf16.mxu0 0
  %5931 = vmatpush1.bf16.msra.mxu0 0
  %5932 = vmatprep.subr.bf16.mxu0 0
  %5933 = vmatpush1.bf16.msra.mxu0 0
  %5934 = vmatprep.subr.bf16.mxu0 0
  %5935 = vmatpush1.bf16.msra.mxu0 0
  %5936 = vmatprep.subr.bf16.mxu0 0
  %5937 = vmatpush1.bf16.msra.mxu0 0
  %5938 = vmatprep.subr.bf16.mxu0 0
  %5939 = vmatpush1.bf16.msra.mxu0 0
  %5940 = vmatprep.subr.bf16.mxu0 0
  %5941 = vmatpush1.bf16.msra.mxu0 0
  %5942 = vmatprep.mubr.bf16.mxu0 0
  %5943 = vmatmul.mubr.bf16.gmra.mrb[0].mxu0 %v5908
  %v5944 = vpop.f32.mrb[0].mxu0
  %v5945 = vadd.f32 0.0, %v5944
  %v5946 = vpop.f32.mrb[0].mxu0
  %v5947 = vpop.f32.mrb[0].mxu0
  %v5948 = vadd.f32 0.0, %v5947
  %v5949 = vpop.f32.mrb[0].mxu0
  %5950 = vdwg.mxu0
  %v5951 = vadd.f32 %v5894, %v5945
  %v5952 = vadd.f32 %v5895, %v5948
  %s5953 = scalar_lea.vmem %s8, 32
  %v5954 = vld [vmem:[%s5953] sm:$0xf]
  %v5955 = vld [vmem:[%s5953 + $0x4] sm:$0xf]
  %v5958 = vunpack.c.l.b16 %v5954
  %v5959 = vunpack.c.l.b16 %v5955
  %v5960 = vpack.c.b16 %v5959, %v5958
  %5961 = vrot.lane.b32.xlu0 %v5728, 107
  %v5962 = vpop.permute.xlu0 %5961
  %v5965 = vsel %vm4932, %v5960, 0
  %5967 = vmatprep.subr.bf16.mxu0 0
  %5968 = vmatpush1.bf16.msra.mxu0 %v5962
  %5969 = vmatprep.subr.bf16.mxu0 0
  %5970 = vmatpush1.bf16.msra.mxu0 0
  %5971 = vmatprep.subr.bf16.mxu0 0
  %5972 = vmatpush1.bf16.msra.mxu0 0
  %5973 = vmatprep.subr.bf16.mxu0 0
  %5974 = vmatpush1.bf16.msra.mxu0 0
  %5975 = vmatprep.subr.bf16.mxu0 0
  %5976 = vmatpush1.bf16.msra.mxu0 0
  %5977 = vmatprep.subr.bf16.mxu0 0
  %5978 = vmatpush1.bf16.msra.mxu0 0
  %5979 = vmatprep.subr.bf16.mxu0 0
  %5980 = vmatpush1.bf16.msra.mxu0 0
  %5981 = vmatprep.subr.bf16.mxu0 0
  %5982 = vmatpush1.bf16.msra.mxu0 0
  %5983 = vmatprep.subr.bf16.mxu0 0
  %5984 = vmatpush1.bf16.msra.mxu0 0
  %5985 = vmatprep.subr.bf16.mxu0 0
  %5986 = vmatpush1.bf16.msra.mxu0 0
  %5987 = vmatprep.subr.bf16.mxu0 0
  %5988 = vmatpush1.bf16.msra.mxu0 0
  %5989 = vmatprep.subr.bf16.mxu0 0
  %5990 = vmatpush1.bf16.msra.mxu0 0
  %5991 = vmatprep.subr.bf16.mxu0 0
  %5992 = vmatpush1.bf16.msra.mxu0 0
  %5993 = vmatprep.subr.bf16.mxu0 0
  %5994 = vmatpush1.bf16.msra.mxu0 0
  %5995 = vmatprep.subr.bf16.mxu0 0
  %5996 = vmatpush1.bf16.msra.mxu0 0
  %5997 = vmatprep.subr.bf16.mxu0 0
  %5998 = vmatpush1.bf16.msra.mxu0 0
  %5999 = vmatprep.mubr.bf16.mxu0 0
  %6000 = vmatmul.mubr.bf16.gmra.mrb[0].mxu0 %v5965
  %v6001 = vpop.f32.mrb[0].mxu0
  %v6002 = vadd.f32 0.0, %v6001
  %v6003 = vpop.f32.mrb[0].mxu0
  %v6004 = vpop.f32.mrb[0].mxu0
  %v6005 = vadd.f32 0.0, %v6004
  %v6006 = vpop.f32.mrb[0].mxu0
  %6007 = vdwg.mxu0
  %v6008 = vadd.f32 %v5951, %v6002
  %v6009 = vadd.f32 %v5952, %v6005
  %s6010 = scalar_lea.vmem %s8, 40
  %v6011 = vld [vmem:[%s6010] sm:$0xf]
  %v6012 = vld [vmem:[%s6010 + $0x4] sm:$0xf]
  %v6015 = vunpack.c.l.b16 %v6011
  %v6016 = vunpack.c.l.b16 %v6012
  %v6017 = vpack.c.b16 %v6016, %v6015
  %6018 = vrot.lane.b32.xlu0 %v5728, 106
  %v6019 = vpop.permute.xlu0 %6018
  %v6022 = vsel %vm4932, %v6017, 0
  %6024 = vmatprep.subr.bf16.mxu0 0
  %6025 = vmatpush1.bf16.msra.mxu0 %v6019
  %6026 = vmatprep.subr.bf16.mxu0 0
  %6027 = vmatpush1.bf16.msra.mxu0 0
  %6028 = vmatprep.subr.bf16.mxu0 0
  %6029 = vmatpush1.bf16.msra.mxu0 0
  %6030 = vmatprep.subr.bf16.mxu0 0
  %6031 = vmatpush1.bf16.msra.mxu0 0
  %6032 = vmatprep.subr.bf16.mxu0 0
  %6033 = vmatpush1.bf16.msra.mxu0 0
  %6034 = vmatprep.subr.bf16.mxu0 0
  %6035 = vmatpush1.bf16.msra.mxu0 0
  %6036 = vmatprep.subr.bf16.mxu0 0
  %6037 = vmatpush1.bf16.msra.mxu0 0
  %6038 = vmatprep.subr.bf16.mxu0 0
  %6039 = vmatpush1.bf16.msra.mxu0 0
  %6040 = vmatprep.subr.bf16.mxu0 0
  %6041 = vmatpush1.bf16.msra.mxu0 0
  %6042 = vmatprep.subr.bf16.mxu0 0
  %6043 = vmatpush1.bf16.msra.mxu0 0
  %6044 = vmatprep.subr.bf16.mxu0 0
  %6045 = vmatpush1.bf16.msra.mxu0 0
  %6046 = vmatprep.subr.bf16.mxu0 0
  %6047 = vmatpush1.bf16.msra.mxu0 0
  %6048 = vmatprep.subr.bf16.mxu0 0
  %6049 = vmatpush1.bf16.msra.mxu0 0
  %6050 = vmatprep.subr.bf16.mxu0 0
  %6051 = vmatpush1.bf16.msra.mxu0 0
  %6052 = vmatprep.subr.bf16.mxu0 0
  %6053 = vmatpush1.bf16.msra.mxu0 0
  %6054 = vmatprep.subr.bf16.mxu0 0
  %6055 = vmatpush1.bf16.msra.mxu0 0
  %6056 = vmatprep.mubr.bf16.mxu0 0
  %6057 = vmatmul.mubr.bf16.gmra.mrb[0].mxu0 %v6022
  %v6058 = vpop.f32.mrb[0].mxu0
  %v6059 = vadd.f32 0.0, %v6058
  %v6060 = vpop.f32.mrb[0].mxu0
  %v6061 = vpop.f32.mrb[0].mxu0
  %v6062 = vadd.f32 0.0, %v6061
  %v6063 = vpop.f32.mrb[0].mxu0
  %6064 = vdwg.mxu0
  %v6065 = vadd.f32 %v6008, %v6059
  %v6066 = vadd.f32 %v6009, %v6062
  %s6067 = scalar_lea.vmem %s8, 48
  %v6068 = vld [vmem:[%s6067] sm:$0xf]
  %v6069 = vld [vmem:[%s6067 + $0x4] sm:$0xf]
  %v6072 = vunpack.c.l.b16 %v6068
  %v6073 = vunpack.c.l.b16 %v6069
  %v6074 = vpack.c.b16 %v6073, %v6072
  %6075 = vrot.lane.b32.xlu0 %v5728, 102
  %v6076 = vpop.permute.xlu0 %6075
  %v6079 = vsel %vm4932, %v6074, 0
  %6081 = vmatprep.subr.bf16.mxu0 0
  %6082 = vmatpush1.bf16.msra.mxu0 %v6076
  %6083 = vmatprep.subr.bf16.mxu0 0
  %6084 = vmatpush1.bf16.msra.mxu0 0
  %6085 = vmatprep.subr.bf16.mxu0 0
  %6086 = vmatpush1.bf16.msra.mxu0 0
  %6087 = vmatprep.subr.bf16.mxu0 0
  %6088 = vmatpush1.bf16.msra.mxu0 0
  %6089 = vmatprep.subr.bf16.mxu0 0
  %6090 = vmatpush1.bf16.msra.mxu0 0
  %6091 = vmatprep.subr.bf16.mxu0 0
  %6092 = vmatpush1.bf16.msra.mxu0 0
  %6093 = vmatprep.subr.bf16.mxu0 0
  %6094 = vmatpush1.bf16.msra.mxu0 0
  %6095 = vmatprep.subr.bf16.mxu0 0
  %6096 = vmatpush1.bf16.msra.mxu0 0
  %6097 = vmatprep.subr.bf16.mxu0 0
  %6098 = vmatpush1.bf16.msra.mxu0 0
  %6099 = vmatprep.subr.bf16.mxu0 0
  %6100 = vmatpush1.bf16.msra.mxu0 0
  %6101 = vmatprep.subr.bf16.mxu0 0
  %6102 = vmatpush1.bf16.msra.mxu0 0
  %6103 = vmatprep.subr.bf16.mxu0 0
  %6104 = vmatpush1.bf16.msra.mxu0 0
  %6105 = vmatprep.subr.bf16.mxu0 0
  %6106 = vmatpush1.bf16.msra.mxu0 0
  %6107 = vmatprep.subr.bf16.mxu0 0
  %6108 = vmatpush1.bf16.msra.mxu0 0
  %6109 = vmatprep.subr.bf16.mxu0 0
  %6110 = vmatpush1.bf16.msra.mxu0 0
  %6111 = vmatprep.subr.bf16.mxu0 0
  %6112 = vmatpush1.bf16.msra.mxu0 0
  %6113 = vmatprep.mubr.bf16.mxu0 0
  %6114 = vmatmul.mubr.bf16.gmra.mrb[0].mxu0 %v6079
  %v6115 = vpop.f32.mrb[0].mxu0
  %v6116 = vadd.f32 0.0, %v6115
  %v6117 = vpop.f32.mrb[0].mxu0
  %v6118 = vpop.f32.mrb[0].mxu0
  %v6119 = vadd.f32 0.0, %v6118
  %v6120 = vpop.f32.mrb[0].mxu0
  %6121 = vdwg.mxu0
  %v6122 = vadd.f32 %v6065, %v6116
  %v6123 = vadd.f32 %v6066, %v6119
  %s6124 = scalar_lea.vmem %s8, 56
  %v6125 = vld [vmem:[%s6124] sm:$0xf]
  %v6126 = vld [vmem:[%s6124 + $0x4] sm:$0xf]
  %v6129 = vunpack.c.l.b16 %v6125
  %v6130 = vunpack.c.l.b16 %v6126
  %v6131 = vpack.c.b16 %v6130, %v6129
  %6132 = vrot.lane.b32.xlu0 %v5728, 101
  %v6133 = vpop.permute.xlu0 %6132
  %v6136 = vsel %vm4932, %v6131, 0
  %6138 = vmatprep.subr.bf16.mxu0 0
  %6139 = vmatpush1.bf16.msra.mxu0 %v6133
  %6140 = vmatprep.subr.bf16.mxu0 0
  %6141 = vmatpush1.bf16.msra.mxu0 0
  %6142 = vmatprep.subr.bf16.mxu0 0
  %6143 = vmatpush1.bf16.msra.mxu0 0
  %6144 = vmatprep.subr.bf16.mxu0 0
  %6145 = vmatpush1.bf16.msra.mxu0 0
  %6146 = vmatprep.subr.bf16.mxu0 0
  %6147 = vmatpush1.bf16.msra.mxu0 0
  %6148 = vmatprep.subr.bf16.mxu0 0
  %6149 = vmatpush1.bf16.msra.mxu0 0
  %6150 = vmatprep.subr.bf16.mxu0 0
  %6151 = vmatpush1.bf16.msra.mxu0 0
  %6152 = vmatprep.subr.bf16.mxu0 0
  %6153 = vmatpush1.bf16.msra.mxu0 0
  %6154 = vmatprep.subr.bf16.mxu0 0
  %6155 = vmatpush1.bf16.msra.mxu0 0
  %6156 = vmatprep.subr.bf16.mxu0 0
  %6157 = vmatpush1.bf16.msra.mxu0 0
  %6158 = vmatprep.subr.bf16.mxu0 0
  %6159 = vmatpush1.bf16.msra.mxu0 0
  %6160 = vmatprep.subr.bf16.mxu0 0
  %6161 = vmatpush1.bf16.msra.mxu0 0
  %6162 = vmatprep.subr.bf16.mxu0 0
  %6163 = vmatpush1.bf16.msra.mxu0 0
  %6164 = vmatprep.subr.bf16.mxu0 0
  %6165 = vmatpush1.bf16.msra.mxu0 0
  %6166 = vmatprep.subr.bf16.mxu0 0
  %6167 = vmatpush1.bf16.msra.mxu0 0
  %6168 = vmatprep.subr.bf16.mxu0 0
  %6169 = vmatpush1.bf16.msra.mxu0 0
  %6170 = vmatprep.mubr.bf16.mxu0 0
  %6171 = vmatmul.mubr.bf16.gmra.mrb[0].mxu0 %v6136
  %v6172 = vpop.f32.mrb[0].mxu0
  %v6173 = vadd.f32 0.0, %v6172
  %v6174 = vpop.f32.mrb[0].mxu0
  %v6175 = vpop.f32.mrb[0].mxu0
  %v6176 = vadd.f32 0.0, %v6175
  %v6177 = vpop.f32.mrb[0].mxu0
  %6178 = vdwg.mxu0
  %v6179 = vadd.f32 %v6122, %v6173
  %v6180 = vadd.f32 %v6123, %v6176
  %s6181 = scalar_lea.vmem %s8, 64
  %v6182 = vld [vmem:[%s6181] sm:$0xf]
  %v6183 = vld [vmem:[%s6181 + $0x4] sm:$0xf]
  %v6186 = vunpack.c.l.b16 %v6182
  %v6187 = vunpack.c.l.b16 %v6183
  %v6188 = vpack.c.b16 %v6187, %v6186
  %6189 = vrot.lane.b32.xlu0 %v5728, 100
  %v6190 = vpop.permute.xlu0 %6189
  %v6193 = vsel %vm4932, %v6188, 0
  %6195 = vmatprep.subr.bf16.mxu0 0
  %6196 = vmatpush1.bf16.msra.mxu0 %v6190
  %6197 = vmatprep.subr.bf16.mxu0 0
  %6198 = vmatpush1.bf16.msra.mxu0 0
  %6199 = vmatprep.subr.bf16.mxu0 0
  %6200 = vmatpush1.bf16.msra.mxu0 0
  %6201 = vmatprep.subr.bf16.mxu0 0
  %6202 = vmatpush1.bf16.msra.mxu0 0
  %6203 = vmatprep.subr.bf16.mxu0 0
  %6204 = vmatpush1.bf16.msra.mxu0 0
  %6205 = vmatprep.subr.bf16.mxu0 0
  %6206 = vmatpush1.bf16.msra.mxu0 0
  %6207 = vmatprep.subr.bf16.mxu0 0
  %6208 = vmatpush1.bf16.msra.mxu0 0
  %6209 = vmatprep.subr.bf16.mxu0 0
  %6210 = vmatpush1.bf16.msra.mxu0 0
  %6211 = vmatprep.subr.bf16.mxu0 0
  %6212 = vmatpush1.bf16.msra.mxu0 0
  %6213 = vmatprep.subr.bf16.mxu0 0
  %6214 = vmatpush1.bf16.msra.mxu0 0
  %6215 = vmatprep.subr.bf16.mxu0 0
  %6216 = vmatpush1.bf16.msra.mxu0 0
  %6217 = vmatprep.subr.bf16.mxu0 0
  %6218 = vmatpush1.bf16.msra.mxu0 0
  %6219 = vmatprep.subr.bf16.mxu0 0
  %6220 = vmatpush1.bf16.msra.mxu0 0
  %6221 = vmatprep.subr.bf16.mxu0 0
  %6222 = vmatpush1.bf16.msra.mxu0 0
  %6223 = vmatprep.subr.bf16.mxu0 0
  %6224 = vmatpush1.bf16.msra.mxu0 0
  %6225 = vmatprep.subr.bf16.mxu0 0
  %6226 = vmatpush1.bf16.msra.mxu0 0
  %6227 = vmatprep.mubr.bf16.mxu0 0
  %6228 = vmatmul.mubr.bf16.gmra.mrb[0].mxu0 %v6193
  %v6229 = vpop.f32.mrb[0].mxu0
  %v6230 = vadd.f32 0.0, %v6229
  %v6231 = vpop.f32.mrb[0].mxu0
  %v6232 = vpop.f32.mrb[0].mxu0
  %v6233 = vadd.f32 0.0, %v6232
  %v6234 = vpop.f32.mrb[0].mxu0
  %6235 = vdwg.mxu0
  %v6236 = vadd.f32 %v6179, %v6230
  %v6237 = vadd.f32 %v6180, %v6233
  %vm6238 = vcmp.ge.f32.partialorder %v6236, 0.0
  %vm6239 = vcmp.ge.f32.partialorder %v6237, 0.0
  %v6240 = vmul.f32 %v6236, 0.2
  %v6241 = vmul.f32 %v6237, 0.2
  %v6242 = vsel %vm6238, %v6236, %v6240
  %v6243 = vsel %vm6239, %v6237, %v6241
  %v6244 = vmul.f32 %v6242, 1.4
  %v6245 = vmul.f32 %v6243, 1.4
  %v6246 = vld [vmem:[%s9] sm:$0xf]
  %v6247 = vld [vmem:[%s9 + $0x4] sm:$0xf]
  %v6248 = vpack.c.bf16 %v5725, %v5722
  %v6251 = vunpack.c.l.b16 %v6246
  %v6252 = vunpack.c.l.b16 %v6247
  %v6253 = vpack.c.b16 %v6252, %v6251
  %6255 = vrot.lane.b32.xlu0 %v6248, 107
  %v6256 = vpop.permute.xlu0 %6255
  %v6259 = vsel %vm4932, %v6253, 0
  %6261 = vmatprep.subr.bf16.mxu0 0
  %6262 = vmatpush1.bf16.msra.mxu0 %v6256
  %6263 = vmatprep.subr.bf16.mxu0 0
  %6264 = vmatpush1.bf16.msra.mxu0 0
  %6265 = vmatprep.subr.bf16.mxu0 0
  %6266 = vmatpush1.bf16.msra.mxu0 0
  %6267 = vmatprep.subr.bf16.mxu0 0
  %6268 = vmatpush1.bf16.msra.mxu0 0
  %6269 = vmatprep.subr.bf16.mxu0 0
  %6270 = vmatpush1.bf16.msra.mxu0 0
  %6271 = vmatprep.subr.bf16.mxu0 0
  %6272 = vmatpush1.bf16.msra.mxu0 0
  %6273 = vmatprep.subr.bf16.mxu0 0
  %6274 = vmatpush1.bf16.msra.mxu0 0
  %6275 = vmatprep.subr.bf16.mxu0 0
  %6276 = vmatpush1.bf16.msra.mxu0 0
  %6277 = vmatprep.subr.bf16.mxu0 0
  %6278 = vmatpush1.bf16.msra.mxu0 0
  %6279 = vmatprep.subr.bf16.mxu0 0
  %6280 = vmatpush1.bf16.msra.mxu0 0
  %6281 = vmatprep.subr.bf16.mxu0 0
  %6282 = vmatpush1.bf16.msra.mxu0 0
  %6283 = vmatprep.subr.bf16.mxu0 0
  %6284 = vmatpush1.bf16.msra.mxu0 0
  %6285 = vmatprep.subr.bf16.mxu0 0
  %6286 = vmatpush1.bf16.msra.mxu0 0
  %6287 = vmatprep.subr.bf16.mxu0 0
  %6288 = vmatpush1.bf16.msra.mxu0 0
  %6289 = vmatprep.subr.bf16.mxu0 0
  %6290 = vmatpush1.bf16.msra.mxu0 0
  %6291 = vmatprep.subr.bf16.mxu0 0
  %6292 = vmatpush1.bf16.msra.mxu0 0
  %6293 = vmatprep.mubr.bf16.mxu0 0
  %6294 = vmatmul.mubr.bf16.gmra.mrb[0].mxu0 %v6259
  %v6295 = vpop.f32.mrb[0].mxu0
  %v6296 = vadd.f32 0.0, %v6295
  %v6297 = vpop.f32.mrb[0].mxu0
  %v6298 = vpop.f32.mrb[0].mxu0
  %v6299 = vadd.f32 0.0, %v6298
  %v6300 = vpop.f32.mrb[0].mxu0
  %6301 = vdwg.mxu0
  %v6302 = vmul.f32 %v6296, 1.4
  %v6303 = vmul.f32 %v6299, 1.4
  %v6304 = vadd.f32 %v6244, %v6302
  %v6305 = vadd.f32 %v6245, %v6303
  %v6306 = vmul.f32 %v6304, 0.70710677
  %v6307 = vmul.f32 %v6305, 0.70710677
  %v6308 = vmul.f32 %v6306, 1.4
  %v6309 = vmul.f32 %v6307, 1.4
  %v6310 = vpack.c.bf16 %v6309, %v6308
  %v6311 = vld [vmem:[%s11] sm:$0xf]
  %v6312 = vld [vmem:[%s11 + $0x4] sm:$0xf]
  %v6313 = vld [vmem:[%s11 + $0x8] sm:$0xf]
  %v6314 = vld [vmem:[%s11 + $0xc] sm:$0xf]
  %v6315 = vld [vmem:[%s11 + $0x10] sm:$0xf]
  %v6316 = vld [vmem:[%s11 + $0x14] sm:$0xf]
  %v6317 = vld [vmem:[%s11 + $0x18] sm:$0xf]
  %v6318 = vld [vmem:[%s11 + $0x1c] sm:$0xf]
  %v6319 = vld [vmem:[%s11 + $0x20] sm:$0xf]
  %v6329 = vunpack.c.l.b16 %v6311
  %v6330 = vunpack.c.l.b16 %v6312
  %v6331 = vunpack.c.l.b16 %v6313
  %v6332 = vunpack.c.l.b16 %v6314
  %v6333 = vunpack.c.l.b16 %v6315
  %v6334 = vunpack.c.l.b16 %v6316
  %v6335 = vunpack.c.l.b16 %v6317
  %v6336 = vunpack.c.l.b16 %v6318
  %v6337 = vunpack.c.l.b16 %v6319
  %v6338 = vpack.c.b16 %v6330, %v6329
  %v6339 = vpack.c.b16 %v6332, %v6331
  %v6340 = vpack.c.b16 %v6334, %v6333
  %v6341 = vpack.c.b16 %v6336, %v6335
  %v6342 = vpack.c.b16 %v6337, %v6337
  %vm6347 = vcmask 588800
  %v6349 = vsel %vm6347, %v6310, 0
  %v6352 = vsel %vm352, %v6342, 0
  %6354 = vmatprep.subr.bf16.mxu0 0
  %6355 = vmatpush1.bf16.msra.mxu0 %v6338
  %6356 = vmatprep.subr.bf16.mxu0 0
  %6357 = vmatpush1.bf16.msra.mxu0 %v6339
  %6358 = vmatprep.subr.bf16.mxu0 0
  %6359 = vmatpush1.bf16.msra.mxu0 %v6340
  %6360 = vmatprep.subr.bf16.mxu0 0
  %6361 = vmatpush1.bf16.msra.mxu0 %v6341
  %6362 = vmatprep.subr.bf16.mxu0 0
  %6363 = vmatpush1.bf16.msra.mxu0 %v6352
  %6364 = vmatprep.subr.bf16.mxu0 0
  %6365 = vmatpush1.bf16.msra.mxu0 0
  %6366 = vmatprep.subr.bf16.mxu0 0
  %6367 = vmatpush1.bf16.msra.mxu0 0
  %6368 = vmatprep.subr.bf16.mxu0 0
  %6369 = vmatpush1.bf16.msra.mxu0 0
  %6370 = vmatprep.subr.bf16.mxu0 0
  %6371 = vmatpush1.bf16.msra.mxu0 0
  %6372 = vmatprep.subr.bf16.mxu0 0
  %6373 = vmatpush1.bf16.msra.mxu0 0
  %6374 = vmatprep.subr.bf16.mxu0 0
  %6375 = vmatpush1.bf16.msra.mxu0 0
  %6376 = vmatprep.subr.bf16.mxu0 0
  %6377 = vmatpush1.bf16.msra.mxu0 0
  %6378 = vmatprep.subr.bf16.mxu0 0
  %6379 = vmatpush1.bf16.msra.mxu0 0
  %6380 = vmatprep.subr.bf16.mxu0 0
  %6381 = vmatpush1.bf16.msra.mxu0 0
  %6382 = vmatprep.subr.bf16.mxu0 0
  %6383 = vmatpush1.bf16.msra.mxu0 0
  %6384 = vmatprep.subr.bf16.mxu0 0
  %6385 = vmatpush1.bf16.msra.mxu0 0
  %6386 = vmatprep.mubr.bf16.mxu0 0
  %6387 = vmatmul.mubr.bf16.gmra.mrb[0].mxu0 %v6349
  %v6388 = vpop.f32.mrb[0].mxu0
  %v6389 = vadd.f32 0.0, %v6388
  %v6390 = vpop.f32.mrb[0].mxu0
  %v6391 = vpop.f32.mrb[0].mxu0
  %v6392 = vadd.f32 0.0, %v6391
  %v6393 = vpop.f32.mrb[0].mxu0
  %6394 = vdwg.mxu0
  %6397 = vrot.lane.b32.xlu0 %v6389, 92
  %v6398 = vpop.permute.xlu0 %6397
  %6399 = vrot.lane.b32.xlu0 %v6392, 92
  %v6400 = vpop.permute.xlu0 %6399
  %v6403 = vadd.f32 %v6389, %v6398
  %v6404 = vadd.f32 %v6392, %v6400
  %v6405 = vmul.f32 %v6403, 0.5
  %v6406 = vmul.f32 %v6404, 0.5
  %v6407 = vsub.f32 %v6389, %v6405
  %v6408 = vsub.f32 %v6392, %v6406
  %v6409 = vmul.f32 %v6407, %v6407
  %v6410 = vmul.f32 %v6408, %v6408
  %6413 = vrot.lane.b32.xlu0 %v6405, 36
  %v6414 = vpop.permute.xlu0 %6413
  %6415 = vrot.lane.b32.xlu0 %v6406, 36
  %v6416 = vpop.permute.xlu0 %6415
  %v6419 = vsub.f32 %v6389, %v6414
  %v6420 = vsub.f32 %v6392, %v6416
  %v6421 = vmul.f32 %v6419, %v6419
  %v6422 = vmul.f32 %v6420, %v6420
  %6425 = vrot.lane.b32.xlu0 %v6421, 92
  %v6426 = vpop.permute.xlu0 %6425
  %6427 = vrot.lane.b32.xlu0 %v6422, 92
  %v6428 = vpop.permute.xlu0 %6427
  %v6431 = vadd.f32 %v6409, %v6426
  %v6432 = vadd.f32 %v6410, %v6428
  %v6433 = vmul.f32 %v6431, 0.5
  %v6434 = vmul.f32 %v6432, 0.5
  %v6435 = vadd.f32 %v6433, 1e-08
  %v6436 = vadd.f32 %v6434, 1e-08
  %v6437 = vrsqrt.pop %v6435
  %v6438 = vmul.f32 %v6435, %v6437
  %vm6439 = vcmp.eq.f32.partialorder %v6435, inf
  %v6440 = vsel %vm6439, %v6435, %v6438
  %vm6441 = vcmp.eq.f32.partialorder %v6435, 0.0
  %v6442 = vand.u32 %v6435, 2147483648
  %v6443 = vsel %vm6441, %v6442, %v6440
  %v6444 = vrsqrt.pop %v6436
  %v6445 = vmul.f32 %v6436, %v6444
  %vm6446 = vcmp.eq.f32.partialorder %v6436, inf
  %v6447 = vsel %vm6446, %v6436, %v6445
  %vm6448 = vcmp.eq.f32.partialorder %v6436, 0.0
  %v6449 = vand.u32 %v6436, 2147483648
  %v6450 = vsel %vm6448, %v6449, %v6447
  %v6451 = vld [vmem:[%s12] sm:$0x1]
  %v6453 = vlaneseq
  %v6454 = vshrl.u32 %v6453, 7
  %v6455 = vsub.s32 0, %v6454
  %v6456 = vrot.slane %v6451, %v6455
  %v6458 = vmul.f32 %v6443, %v6456
  %v6459 = vmul.f32 %v6450, %v6456
  %6462 = vrot.lane.b32.xlu0 %v6458, 107
  %v6463 = vpop.permute.xlu0 %6462
  %6464 = vrot.lane.b32.xlu0 %v6459, 107
  %v6465 = vpop.permute.xlu0 %6464
  %vm6468 = vcmask 293888
  %v6469 = vsel %vm6468, %v6463, 0.0
  %6470 = vadd.xlane.f32.xlu0 %v6469
  %v6471 = vpop.xlane.xlu0 %6470
  %v6472 = vsel %vm6468, %v6465, 0.0
  %6473 = vadd.xlane.f32.xlu0 %v6472
  %v6474 = vpop.xlane.xlu0 %6473
  %v6475 = vadd.f32 %v6471, %v6474
  %v6476 = vrot.slane %v6475, 4
  %v6477 = vadd.f32 %v6475, %v6476
  %v6478 = vrot.slane %v6477, 2
  %v6479 = vadd.f32 %v6477, %v6478
  %v6480 = vrot.slane %v6479, 1
  %v6481 = vadd.f32 %v6479, %v6480
  %v6482 = vmul.f32 %v6481, 0.00390625
  %v6483 = vmul.f32 %v6482, %v6451
  %v6484 = vpack.c.bf16 %v6483, %v6483
  %v6485 = vunpack.c.l.bf16 %v6484
  %v6486 = vpack.c.bf16 %v6392, %v6389
  %v6487 = vld [vmem:[%s13] sm:$0xf]
  %v6488 = vld [vmem:[%s13 + $0x4] sm:$0xf]
  %v6489 = vunpack.c.l.bf16 %v6487
  %v6490 = vunpack.c.l.bf16 %v6488
  %6492 = vset.pattern.permute.xlu0 16
  %6493 = vperm.xlu0 %6492, %v6489
  %v6494 = vpop.permute.xlu0 %6493
  %6497 = vset.pattern.permute.xlu0 16
  %6498 = vperm.xlu0 %6497, %v6490
  %v6499 = vpop.permute.xlu0 %6498
  %v6501 = vlaneseq
  %v6502 = vshrl.u32 %v6501, 7
  %v6503 = vsub.s32 0, %v6502
  %v6504 = vrot.slane %v6485, %v6503
  %v6505 = vmul.f32 %v6494, %v6504
  %v6506 = vmul.f32 %v6499, %v6504
  %v6509 = vunpack.c.l.b16 %v6487
  %v6510 = vunpack.c.l.b16 %v6488
  %v6511 = vpack.c.b16 %v6510, %v6509
  %6513 = vrot.lane.b32.xlu0 %v6486, 114
  %v6514 = vpop.permute.xlu0 %6513
  %6518 = vrot.lane.b32.xlu0 %v6505, 114
  %v6519 = vpop.permute.xlu0 %6518
  %6520 = vrot.lane.b32.xlu0 %v6506, 114
  %v6521 = vpop.permute.xlu0 %6520
  %v6525 = vsel %vm4932, %v6511, 0
  %6527 = vmatprep.subr.bf16.mxu0 0
  %6528 = vmatpush1.bf16.msra.mxu0 %v6514
  %6529 = vmatprep.subr.bf16.mxu0 0
  %6530 = vmatpush1.bf16.msra.mxu0 0
  %6531 = vmatprep.subr.bf16.mxu0 0
  %6532 = vmatpush1.bf16.msra.mxu0 0
  %6533 = vmatprep.subr.bf16.mxu0 0
  %6534 = vmatpush1.bf16.msra.mxu0 0
  %6535 = vmatprep.subr.bf16.mxu0 0
  %6536 = vmatpush1.bf16.msra.mxu0 0
  %6537 = vmatprep.subr.bf16.mxu0 0
  %6538 = vmatpush1.bf16.msra.mxu0 0
  %6539 = vmatprep.subr.bf16.mxu0 0
  %6540 = vmatpush1.bf16.msra.mxu0 0
  %6541 = vmatprep.subr.bf16.mxu0 0
  %6542 = vmatpush1.bf16.msra.mxu0 0
  %6543 = vmatprep.subr.bf16.mxu0 0
  %6544 = vmatpush1.bf16.msra.mxu0 0
  %6545 = vmatprep.subr.bf16.mxu0 0
  %6546 = vmatpush1.bf16.msra.mxu0 0
  %6547 = vmatprep.subr.bf16.mxu0 0
  %6548 = vmatpush1.bf16.msra.mxu0 0
  %6549 = vmatprep.subr.bf16.mxu0 0
  %6550 = vmatpush1.bf16.msra.mxu0 0
  %6551 = vmatprep.subr.bf16.mxu0 0
  %6552 = vmatpush1.bf16.msra.mxu0 0
  %6553 = vmatprep.subr.bf16.mxu0 0
  %6554 = vmatpush1.bf16.msra.mxu0 0
  %6555 = vmatprep.subr.bf16.mxu0 0
  %6556 = vmatpush1.bf16.msra.mxu0 0
  %6557 = vmatprep.subr.bf16.mxu0 0
  %6558 = vmatpush1.bf16.msra.mxu0 0
  %6559 = vmatprep.mubr.bf16.mxu0 0
  %6560 = vmatmul.mubr.bf16.gmra.mrb[0].mxu0 %v6525
  %v6561 = vpop.f32.mrb[0].mxu0
  %v6562 = vadd.f32 %v6519, %v6561
  %v6563 = vpop.f32.mrb[0].mxu0
  %v6564 = vpop.f32.mrb[0].mxu0
  %v6565 = vadd.f32 %v6521, %v6564
  %v6566 = vpop.f32.mrb[0].mxu0
  %6567 = vdwg.mxu0
  %s6568 = scalar_lea.vmem %s13, 8
  %v6569 = vld [vmem:[%s6568] sm:$0xf]
  %v6570 = vld [vmem:[%s6568 + $0x4] sm:$0xf]
  %v6571 = vunpack.c.l.bf16 %v6569
  %v6572 = vunpack.c.l.bf16 %v6570
  %6574 = vset.pattern.permute.xlu0 16
  %6575 = vperm.xlu0 %6574, %v6571
  %v6576 = vpop.permute.xlu0 %6575
  %6579 = vset.pattern.permute.xlu0 16
  %6580 = vperm.xlu0 %6579, %v6572
  %v6581 = vpop.permute.xlu0 %6580
  %v6583 = vmul.f32 %v6576, %v6504
  %v6584 = vmul.f32 %v6581, %v6504
  %v6587 = vunpack.c.l.b16 %v6569
  %v6588 = vunpack.c.l.b16 %v6570
  %v6589 = vpack.c.b16 %v6588, %v6587
  %6590 = vrot.lane.b32.xlu0 %v6486, 113
  %v6591 = vpop.permute.xlu0 %6590
  %6595 = vrot.lane.b32.xlu0 %v6583, 113
  %v6596 = vpop.permute.xlu0 %6595
  %6597 = vrot.lane.b32.xlu0 %v6584, 113
  %v6598 = vpop.permute.xlu0 %6597
  %v6602 = vsel %vm4932, %v6589, 0
  %6604 = vmatprep.subr.bf16.mxu0 0
  %6605 = vmatpush1.bf16.msra.mxu0 %v6591
  %6606 = vmatprep.subr.bf16.mxu0 0
  %6607 = vmatpush1.bf16.msra.mxu0 0
  %6608 = vmatprep.subr.bf16.mxu0 0
  %6609 = vmatpush1.bf16.msra.mxu0 0
  %6610 = vmatprep.subr.bf16.mxu0 0
  %6611 = vmatpush1.bf16.msra.mxu0 0
  %6612 = vmatprep.subr.bf16.mxu0 0
  %6613 = vmatpush1.bf16.msra.mxu0 0
  %6614 = vmatprep.subr.bf16.mxu0 0
  %6615 = vmatpush1.bf16.msra.mxu0 0
  %6616 = vmatprep.subr.bf16.mxu0 0
  %6617 = vmatpush1.bf16.msra.mxu0 0
  %6618 = vmatprep.subr.bf16.mxu0 0
  %6619 = vmatpush1.bf16.msra.mxu0 0
  %6620 = vmatprep.subr.bf16.mxu0 0
  %6621 = vmatpush1.bf16.msra.mxu0 0
  %6622 = vmatprep.subr.bf16.mxu0 0
  %6623 = vmatpush1.bf16.msra.mxu0 0
  %6624 = vmatprep.subr.bf16.mxu0 0
  %6625 = vmatpush1.bf16.msra.mxu0 0
  %6626 = vmatprep.subr.bf16.mxu0 0
  %6627 = vmatpush1.bf16.msra.mxu0 0
  %6628 = vmatprep.subr.bf16.mxu0 0
  %6629 = vmatpush1.bf16.msra.mxu0 0
  %6630 = vmatprep.subr.bf16.mxu0 0
  %6631 = vmatpush1.bf16.msra.mxu0 0
  %6632 = vmatprep.subr.bf16.mxu0 0
  %6633 = vmatpush1.bf16.msra.mxu0 0
  %6634 = vmatprep.subr.bf16.mxu0 0
  %6635 = vmatpush1.bf16.msra.mxu0 0
  %6636 = vmatprep.mubr.bf16.mxu0 0
  %6637 = vmatmul.mubr.bf16.gmra.mrb[0].mxu0 %v6602
  %v6638 = vpop.f32.mrb[0].mxu0
  %v6639 = vadd.f32 %v6596, %v6638
  %v6640 = vpop.f32.mrb[0].mxu0
  %v6641 = vpop.f32.mrb[0].mxu0
  %v6642 = vadd.f32 %v6598, %v6641
  %v6643 = vpop.f32.mrb[0].mxu0
  %6644 = vdwg.mxu0
  %v6645 = vadd.f32 %v6562, %v6639
  %v6646 = vadd.f32 %v6565, %v6642
  %s6647 = scalar_lea.vmem %s13, 16
  %v6648 = vld [vmem:[%s6647] sm:$0xf]
  %v6649 = vld [vmem:[%s6647 + $0x4] sm:$0xf]
  %v6650 = vunpack.c.l.bf16 %v6648
  %v6651 = vunpack.c.l.bf16 %v6649
  %6653 = vset.pattern.permute.xlu0 16
  %6654 = vperm.xlu0 %6653, %v6650
  %v6655 = vpop.permute.xlu0 %6654
  %6658 = vset.pattern.permute.xlu0 16
  %6659 = vperm.xlu0 %6658, %v6651
  %v6660 = vpop.permute.xlu0 %6659
  %v6662 = vmul.f32 %v6655, %v6504
  %v6663 = vmul.f32 %v6660, %v6504
  %v6666 = vunpack.c.l.b16 %v6648
  %v6667 = vunpack.c.l.b16 %v6649
  %v6668 = vpack.c.b16 %v6667, %v6666
  %6669 = vrot.lane.b32.xlu0 %v6486, 112
  %v6670 = vpop.permute.xlu0 %6669
  %6674 = vrot.lane.b32.xlu0 %v6662, 112
  %v6675 = vpop.permute.xlu0 %6674
  %6676 = vrot.lane.b32.xlu0 %v6663, 112
  %v6677 = vpop.permute.xlu0 %6676
  %v6681 = vsel %vm4932, %v6668, 0
  %6683 = vmatprep.subr.bf16.mxu0 0
  %6684 = vmatpush1.bf16.msra.mxu0 %v6670
  %6685 = vmatprep.subr.bf16.mxu0 0
  %6686 = vmatpush1.bf16.msra.mxu0 0
  %6687 = vmatprep.subr.bf16.mxu0 0
  %6688 = vmatpush1.bf16.msra.mxu0 0
  %6689 = vmatprep.subr.bf16.mxu0 0
  %6690 = vmatpush1.bf16.msra.mxu0 0
  %6691 = vmatprep.subr.bf16.mxu0 0
  %6692 = vmatpush1.bf16.msra.mxu0 0
  %6693 = vmatprep.subr.bf16.mxu0 0
  %6694 = vmatpush1.bf16.msra.mxu0 0
  %6695 = vmatprep.subr.bf16.mxu0 0
  %6696 = vmatpush1.bf16.msra.mxu0 0
  %6697 = vmatprep.subr.bf16.mxu0 0
  %6698 = vmatpush1.bf16.msra.mxu0 0
  %6699 = vmatprep.subr.bf16.mxu0 0
  %6700 = vmatpush1.bf16.msra.mxu0 0
  %6701 = vmatprep.subr.bf16.mxu0 0
  %6702 = vmatpush1.bf16.msra.mxu0 0
  %6703 = vmatprep.subr.bf16.mxu0 0
  %6704 = vmatpush1.bf16.msra.mxu0 0
  %6705 = vmatprep.subr.bf16.mxu0 0
  %6706 = vmatpush1.bf16.msra.mxu0 0
  %6707 = vmatprep.subr.bf16.mxu0 0
  %6708 = vmatpush1.bf16.msra.mxu0 0
  %6709 = vmatprep.subr.bf16.mxu0 0
  %6710 = vmatpush1.bf16.msra.mxu0 0
  %6711 = vmatprep.subr.bf16.mxu0 0
  %6712 = vmatpush1.bf16.msra.mxu0 0
  %6713 = vmatprep.subr.bf16.mxu0 0
  %6714 = vmatpush1.bf16.msra.mxu0 0
  %6715 = vmatprep.mubr.bf16.mxu0 0
  %6716 = vmatmul.mubr.bf16.gmra.mrb[0].mxu0 %v6681
  %v6717 = vpop.f32.mrb[0].mxu0
  %v6718 = vadd.f32 %v6675, %v6717
  %v6719 = vpop.f32.mrb[0].mxu0
  %v6720 = vpop.f32.mrb[0].mxu0
  %v6721 = vadd.f32 %v6677, %v6720
  %v6722 = vpop.f32.mrb[0].mxu0
  %6723 = vdwg.mxu0
  %v6724 = vadd.f32 %v6645, %v6718
  %v6725 = vadd.f32 %v6646, %v6721
  %s6726 = scalar_lea.vmem %s13, 24
  %v6727 = vld [vmem:[%s6726] sm:$0xf]
  %v6728 = vld [vmem:[%s6726 + $0x4] sm:$0xf]
  %v6729 = vunpack.c.l.bf16 %v6727
  %v6730 = vunpack.c.l.bf16 %v6728
  %6732 = vset.pattern.permute.xlu0 16
  %6733 = vperm.xlu0 %6732, %v6729
  %v6734 = vpop.permute.xlu0 %6733
  %6737 = vset.pattern.permute.xlu0 16
  %6738 = vperm.xlu0 %6737, %v6730
  %v6739 = vpop.permute.xlu0 %6738
  %v6741 = vmul.f32 %v6734, %v6504
  %v6742 = vmul.f32 %v6739, %v6504
  %v6745 = vunpack.c.l.b16 %v6727
  %v6746 = vunpack.c.l.b16 %v6728
  %v6747 = vpack.c.b16 %v6746, %v6745
  %6748 = vrot.lane.b32.xlu0 %v6486, 108
  %v6749 = vpop.permute.xlu0 %6748
  %6753 = vrot.lane.b32.xlu0 %v6741, 108
  %v6754 = vpop.permute.xlu0 %6753
  %6755 = vrot.lane.b32.xlu0 %v6742, 108
  %v6756 = vpop.permute.xlu0 %6755
  %v6760 = vsel %vm4932, %v6747, 0
  %6762 = vmatprep.subr.bf16.mxu0 0
  %6763 = vmatpush1.bf16.msra.mxu0 %v6749
  %6764 = vmatprep.subr.bf16.mxu0 0
  %6765 = vmatpush1.bf16.msra.mxu0 0
  %6766 = vmatprep.subr.bf16.mxu0 0
  %6767 = vmatpush1.bf16.msra.mxu0 0
  %6768 = vmatprep.subr.bf16.mxu0 0
  %6769 = vmatpush1.bf16.msra.mxu0 0
  %6770 = vmatprep.subr.bf16.mxu0 0
  %6771 = vmatpush1.bf16.msra.mxu0 0
  %6772 = vmatprep.subr.bf16.mxu0 0
  %6773 = vmatpush1.bf16.msra.mxu0 0
  %6774 = vmatprep.subr.bf16.mxu0 0
  %6775 = vmatpush1.bf16.msra.mxu0 0
  %6776 = vmatprep.subr.bf16.mxu0 0
  %6777 = vmatpush1.bf16.msra.mxu0 0
  %6778 = vmatprep.subr.bf16.mxu0 0
  %6779 = vmatpush1.bf16.msra.mxu0 0
  %6780 = vmatprep.subr.bf16.mxu0 0
  %6781 = vmatpush1.bf16.msra.mxu0 0
  %6782 = vmatprep.subr.bf16.mxu0 0
  %6783 = vmatpush1.bf16.msra.mxu0 0
  %6784 = vmatprep.subr.bf16.mxu0 0
  %6785 = vmatpush1.bf16.msra.mxu0 0
  %6786 = vmatprep.subr.bf16.mxu0 0
  %6787 = vmatpush1.bf16.msra.mxu0 0
  %6788 = vmatprep.subr.bf16.mxu0 0
  %6789 = vmatpush1.bf16.msra.mxu0 0
  %6790 = vmatprep.subr.bf16.mxu0 0
  %6791 = vmatpush1.bf16.msra.mxu0 0
  %6792 = vmatprep.subr.bf16.mxu0 0
  %6793 = vmatpush1.bf16.msra.mxu0 0
  %6794 = vmatprep.mubr.bf16.mxu0 0
  %6795 = vmatmul.mubr.bf16.gmra.mrb[0].mxu0 %v6760
  %v6796 = vpop.f32.mrb[0].mxu0
  %v6797 = vadd.f32 %v6754, %v6796
  %v6798 = vpop.f32.mrb[0].mxu0
  %v6799 = vpop.f32.mrb[0].mxu0
  %v6800 = vadd.f32 %v6756, %v6799
  %v6801 = vpop.f32.mrb[0].mxu0
  %6802 = vdwg.mxu0
  %v6803 = vadd.f32 %v6724, %v6797
  %v6804 = vadd.f32 %v6725, %v6800
  %s6805 = scalar_lea.vmem %s13, 32
  %v6806 = vld [vmem:[%s6805] sm:$0xf]
  %v6807 = vld [vmem:[%s6805 + $0x4] sm:$0xf]
  %v6808 = vunpack.c.l.bf16 %v6806
  %v6809 = vunpack.c.l.bf16 %v6807
  %6811 = vset.pattern.permute.xlu0 16
  %6812 = vperm.xlu0 %6811, %v6808
  %v6813 = vpop.permute.xlu0 %6812
  %6816 = vset.pattern.permute.xlu0 16
  %6817 = vperm.xlu0 %6816, %v6809
  %v6818 = vpop.permute.xlu0 %6817
  %v6820 = vmul.f32 %v6813, %v6504
  %v6821 = vmul.f32 %v6818, %v6504
  %v6824 = vunpack.c.l.b16 %v6806
  %v6825 = vunpack.c.l.b16 %v6807
  %v6826 = vpack.c.b16 %v6825, %v6824
  %6827 = vrot.lane.b32.xlu0 %v6486, 107
  %v6828 = vpop.permute.xlu0 %6827
  %6832 = vrot.lane.b32.xlu0 %v6820, 107
  %v6833 = vpop.permute.xlu0 %6832
  %6834 = vrot.lane.b32.xlu0 %v6821, 107
  %v6835 = vpop.permute.xlu0 %6834
  %v6839 = vsel %vm4932, %v6826, 0
  %6841 = vmatprep.subr.bf16.mxu0 0
  %6842 = vmatpush1.bf16.msra.mxu0 %v6828
  %6843 = vmatprep.subr.bf16.mxu0 0
  %6844 = vmatpush1.bf16.msra.mxu0 0
  %6845 = vmatprep.subr.bf16.mxu0 0
  %6846 = vmatpush1.bf16.msra.mxu0 0
  %6847 = vmatprep.subr.bf16.mxu0 0
  %6848 = vmatpush1.bf16.msra.mxu0 0
  %6849 = vmatprep.subr.bf16.mxu0 0
  %6850 = vmatpush1.bf16.msra.mxu0 0
  %6851 = vmatprep.subr.bf16.mxu0 0
  %6852 = vmatpush1.bf16.msra.mxu0 0
  %6853 = vmatprep.subr.bf16.mxu0 0
  %6854 = vmatpush1.bf16.msra.mxu0 0
  %6855 = vmatprep.subr.bf16.mxu0 0
  %6856 = vmatpush1.bf16.msra.mxu0 0
  %6857 = vmatprep.subr.bf16.mxu0 0
  %6858 = vmatpush1.bf16.msra.mxu0 0
  %6859 = vmatprep.subr.bf16.mxu0 0
  %6860 = vmatpush1.bf16.msra.mxu0 0
  %6861 = vmatprep.subr.bf16.mxu0 0
  %6862 = vmatpush1.bf16.msra.mxu0 0
  %6863 = vmatprep.subr.bf16.mxu0 0
  %6864 = vmatpush1.bf16.msra.mxu0 0
  %6865 = vmatprep.subr.bf16.mxu0 0
  %6866 = vmatpush1.bf16.msra.mxu0 0
  %6867 = vmatprep.subr.bf16.mxu0 0
  %6868 = vmatpush1.bf16.msra.mxu0 0
  %6869 = vmatprep.subr.bf16.mxu0 0
  %6870 = vmatpush1.bf16.msra.mxu0 0
  %6871 = vmatprep.subr.bf16.mxu0 0
  %6872 = vmatpush1.bf16.msra.mxu0 0
  %6873 = vmatprep.mubr.bf16.mxu0 0
  %6874 = vmatmul.mubr.bf16.gmra.mrb[0].mxu0 %v6839
  %v6875 = vpop.f32.mrb[0].mxu0
  %v6876 = vadd.f32 %v6833, %v6875
  %v6877 = vpop.f32.mrb[0].mxu0
  %v6878 = vpop.f32.mrb[0].mxu0
  %v6879 = vadd.f32 %v6835, %v6878
  %v6880 = vpop.f32.mrb[0].mxu0
  %6881 = vdwg.mxu0
  %v6882 = vadd.f32 %v6803, %v6876
  %v6883 = vadd.f32 %v6804, %v6879
  %s6884 = scalar_lea.vmem %s13, 40
  %v6885 = vld [vmem:[%s6884] sm:$0xf]
  %v6886 = vld [vmem:[%s6884 + $0x4] sm:$0xf]
  %v6887 = vunpack.c.l.bf16 %v6885
  %v6888 = vunpack.c.l.bf16 %v6886
  %6890 = vset.pattern.permute.xlu0 16
  %6891 = vperm.xlu0 %6890, %v6887
  %v6892 = vpop.permute.xlu0 %6891
  %6895 = vset.pattern.permute.xlu0 16
  %6896 = vperm.xlu0 %6895, %v6888
  %v6897 = vpop.permute.xlu0 %6896
  %v6899 = vmul.f32 %v6892, %v6504
  %v6900 = vmul.f32 %v6897, %v6504
  %v6903 = vunpack.c.l.b16 %v6885
  %v6904 = vunpack.c.l.b16 %v6886
  %v6905 = vpack.c.b16 %v6904, %v6903
  %6906 = vrot.lane.b32.xlu0 %v6486, 106
  %v6907 = vpop.permute.xlu0 %6906
  %6911 = vrot.lane.b32.xlu0 %v6899, 106
  %v6912 = vpop.permute.xlu0 %6911
  %6913 = vrot.lane.b32.xlu0 %v6900, 106
  %v6914 = vpop.permute.xlu0 %6913
  %v6918 = vsel %vm4932, %v6905, 0
  %6920 = vmatprep.subr.bf16.mxu0 0
  %6921 = vmatpush1.bf16.msra.mxu0 %v6907
  %6922 = vmatprep.subr.bf16.mxu0 0
  %6923 = vmatpush1.bf16.msra.mxu0 0
  %6924 = vmatprep.subr.bf16.mxu0 0
  %6925 = vmatpush1.bf16.msra.mxu0 0
  %6926 = vmatprep.subr.bf16.mxu0 0
  %6927 = vmatpush1.bf16.msra.mxu0 0
  %6928 = vmatprep.subr.bf16.mxu0 0
  %6929 = vmatpush1.bf16.msra.mxu0 0
  %6930 = vmatprep.subr.bf16.mxu0 0
  %6931 = vmatpush1.bf16.msra.mxu0 0
  %6932 = vmatprep.subr.bf16.mxu0 0
  %6933 = vmatpush1.bf16.msra.mxu0 0
  %6934 = vmatprep.subr.bf16.mxu0 0
  %6935 = vmatpush1.bf16.msra.mxu0 0
  %6936 = vmatprep.subr.bf16.mxu0 0
  %6937 = vmatpush1.bf16.msra.mxu0 0
  %6938 = vmatprep.subr.bf16.mxu0 0
  %6939 = vmatpush1.bf16.msra.mxu0 0
  %6940 = vmatprep.subr.bf16.mxu0 0
  %6941 = vmatpush1.bf16.msra.mxu0 0
  %6942 = vmatprep.subr.bf16.mxu0 0
  %6943 = vmatpush1.bf16.msra.mxu0 0
  %6944 = vmatprep.subr.bf16.mxu0 0
  %6945 = vmatpush1.bf16.msra.mxu0 0
  %6946 = vmatprep.subr.bf16.mxu0 0
  %6947 = vmatpush1.bf16.msra.mxu0 0
  %6948 = vmatprep.subr.bf16.mxu0 0
  %6949 = vmatpush1.bf16.msra.mxu0 0
  %6950 = vmatprep.subr.bf16.mxu0 0
  %6951 = vmatpush1.bf16.msra.mxu0 0
  %6952 = vmatprep.mubr.bf16.mxu0 0
  %6953 = vmatmul.mubr.bf16.gmra.mrb[0].mxu0 %v6918
  %v6954 = vpop.f32.mrb[0].mxu0
  %v6955 = vadd.f32 %v6912, %v6954
  %v6956 = vpop.f32.mrb[0].mxu0
  %v6957 = vpop.f32.mrb[0].mxu0
  %v6958 = vadd.f32 %v6914, %v6957
  %v6959 = vpop.f32.mrb[0].mxu0
  %6960 = vdwg.mxu0
  %v6961 = vadd.f32 %v6882, %v6955
  %v6962 = vadd.f32 %v6883, %v6958
  %s6963 = scalar_lea.vmem %s13, 48
  %v6964 = vld [vmem:[%s6963] sm:$0xf]
  %v6965 = vld [vmem:[%s6963 + $0x4] sm:$0xf]
  %v6966 = vunpack.c.l.bf16 %v6964
  %v6967 = vunpack.c.l.bf16 %v6965
  %6969 = vset.pattern.permute.xlu0 16
  %6970 = vperm.xlu0 %6969, %v6966
  %v6971 = vpop.permute.xlu0 %6970
  %6974 = vset.pattern.permute.xlu0 16
  %6975 = vperm.xlu0 %6974, %v6967
  %v6976 = vpop.permute.xlu0 %6975
  %v6978 = vmul.f32 %v6971, %v6504
  %v6979 = vmul.f32 %v6976, %v6504
  %v6982 = vunpack.c.l.b16 %v6964
  %v6983 = vunpack.c.l.b16 %v6965
  %v6984 = vpack.c.b16 %v6983, %v6982
  %6985 = vrot.lane.b32.xlu0 %v6486, 102
  %v6986 = vpop.permute.xlu0 %6985
  %6990 = vrot.lane.b32.xlu0 %v6978, 102
  %v6991 = vpop.permute.xlu0 %6990
  %6992 = vrot.lane.b32.xlu0 %v6979, 102
  %v6993 = vpop.permute.xlu0 %6992
  %v6997 = vsel %vm4932, %v6984, 0
  %6999 = vmatprep.subr.bf16.mxu0 0
  %7000 = vmatpush1.bf16.msra.mxu0 %v6986
  %7001 = vmatprep.subr.bf16.mxu0 0
  %7002 = vmatpush1.bf16.msra.mxu0 0
  %7003 = vmatprep.subr.bf16.mxu0 0
  %7004 = vmatpush1.bf16.msra.mxu0 0
  %7005 = vmatprep.subr.bf16.mxu0 0
  %7006 = vmatpush1.bf16.msra.mxu0 0
  %7007 = vmatprep.subr.bf16.mxu0 0
  %7008 = vmatpush1.bf16.msra.mxu0 0
  %7009 = vmatprep.subr.bf16.mxu0 0
  %7010 = vmatpush1.bf16.msra.mxu0 0
  %7011 = vmatprep.subr.bf16.mxu0 0
  %7012 = vmatpush1.bf16.msra.mxu0 0
  %7013 = vmatprep.subr.bf16.mxu0 0
  %7014 = vmatpush1.bf16.msra.mxu0 0
  %7015 = vmatprep.subr.bf16.mxu0 0
  %7016 = vmatpush1.bf16.msra.mxu0 0
  %7017 = vmatprep.subr.bf16.mxu0 0
  %7018 = vmatpush1.bf16.msra.mxu0 0
  %7019 = vmatprep.subr.bf16.mxu0 0
  %7020 = vmatpush1.bf16.msra.mxu0 0
  %7021 = vmatprep.subr.bf16.mxu0 0
  %7022 = vmatpush1.bf16.msra.mxu0 0
  %7023 = vmatprep.subr.bf16.mxu0 0
  %7024 = vmatpush1.bf16.msra.mxu0 0
  %7025 = vmatprep.subr.bf16.mxu0 0
  %7026 = vmatpush1.bf16.msra.mxu0 0
  %7027 = vmatprep.subr.bf16.mxu0 0
  %7028 = vmatpush1.bf16.msra.mxu0 0
  %7029 = vmatprep.subr.bf16.mxu0 0
  %7030 = vmatpush1.bf16.msra.mxu0 0
  %7031 = vmatprep.mubr.bf16.mxu0 0
  %7032 = vmatmul.mubr.bf16.gmra.mrb[0].mxu0 %v6997
  %v7033 = vpop.f32.mrb[0].mxu0
  %v7034 = vadd.f32 %v6991, %v7033
  %v7035 = vpop.f32.mrb[0].mxu0
  %v7036 = vpop.f32.mrb[0].mxu0
  %v7037 = vadd.f32 %v6993, %v7036
  %v7038 = vpop.f32.mrb[0].mxu0
  %7039 = vdwg.mxu0
  %v7040 = vadd.f32 %v6961, %v7034
  %v7041 = vadd.f32 %v6962, %v7037
  %s7042 = scalar_lea.vmem %s13, 56
  %v7043 = vld [vmem:[%s7042] sm:$0xf]
  %v7044 = vld [vmem:[%s7042 + $0x4] sm:$0xf]
  %v7045 = vunpack.c.l.bf16 %v7043
  %v7046 = vunpack.c.l.bf16 %v7044
  %7048 = vset.pattern.permute.xlu0 16
  %7049 = vperm.xlu0 %7048, %v7045
  %v7050 = vpop.permute.xlu0 %7049
  %7053 = vset.pattern.permute.xlu0 16
  %7054 = vperm.xlu0 %7053, %v7046
  %v7055 = vpop.permute.xlu0 %7054
  %v7057 = vmul.f32 %v7050, %v6504
  %v7058 = vmul.f32 %v7055, %v6504
  %v7061 = vunpack.c.l.b16 %v7043
  %v7062 = vunpack.c.l.b16 %v7044
  %v7063 = vpack.c.b16 %v7062, %v7061
  %7064 = vrot.lane.b32.xlu0 %v6486, 101
  %v7065 = vpop.permute.xlu0 %7064
  %7069 = vrot.lane.b32.xlu0 %v7057, 101
  %v7070 = vpop.permute.xlu0 %7069
  %7071 = vrot.lane.b32.xlu0 %v7058, 101
  %v7072 = vpop.permute.xlu0 %7071
  %v7076 = vsel %vm4932, %v7063, 0
  %7078 = vmatprep.subr.bf16.mxu0 0
  %7079 = vmatpush1.bf16.msra.mxu0 %v7065
  %7080 = vmatprep.subr.bf16.mxu0 0
  %7081 = vmatpush1.bf16.msra.mxu0 0
  %7082 = vmatprep.subr.bf16.mxu0 0
  %7083 = vmatpush1.bf16.msra.mxu0 0
  %7084 = vmatprep.subr.bf16.mxu0 0
  %7085 = vmatpush1.bf16.msra.mxu0 0
  %7086 = vmatprep.subr.bf16.mxu0 0
  %7087 = vmatpush1.bf16.msra.mxu0 0
  %7088 = vmatprep.subr.bf16.mxu0 0
  %7089 = vmatpush1.bf16.msra.mxu0 0
  %7090 = vmatprep.subr.bf16.mxu0 0
  %7091 = vmatpush1.bf16.msra.mxu0 0
  %7092 = vmatprep.subr.bf16.mxu0 0
  %7093 = vmatpush1.bf16.msra.mxu0 0
  %7094 = vmatprep.subr.bf16.mxu0 0
  %7095 = vmatpush1.bf16.msra.mxu0 0
  %7096 = vmatprep.subr.bf16.mxu0 0
  %7097 = vmatpush1.bf16.msra.mxu0 0
  %7098 = vmatprep.subr.bf16.mxu0 0
  %7099 = vmatpush1.bf16.msra.mxu0 0
  %7100 = vmatprep.subr.bf16.mxu0 0
  %7101 = vmatpush1.bf16.msra.mxu0 0
  %7102 = vmatprep.subr.bf16.mxu0 0
  %7103 = vmatpush1.bf16.msra.mxu0 0
  %7104 = vmatprep.subr.bf16.mxu0 0
  %7105 = vmatpush1.bf16.msra.mxu0 0
  %7106 = vmatprep.subr.bf16.mxu0 0
  %7107 = vmatpush1.bf16.msra.mxu0 0
  %7108 = vmatprep.subr.bf16.mxu0 0
  %7109 = vmatpush1.bf16.msra.mxu0 0
  %7110 = vmatprep.mubr.bf16.mxu0 0
  %7111 = vmatmul.mubr.bf16.gmra.mrb[0].mxu0 %v7076
  %v7112 = vpop.f32.mrb[0].mxu0
  %v7113 = vadd.f32 %v7070, %v7112
  %v7114 = vpop.f32.mrb[0].mxu0
  %v7115 = vpop.f32.mrb[0].mxu0
  %v7116 = vadd.f32 %v7072, %v7115
  %v7117 = vpop.f32.mrb[0].mxu0
  %7118 = vdwg.mxu0
  %v7119 = vadd.f32 %v7040, %v7113
  %v7120 = vadd.f32 %v7041, %v7116
  %s7121 = scalar_lea.vmem %s13, 64
  %v7122 = vld [vmem:[%s7121] sm:$0xf]
  %v7123 = vld [vmem:[%s7121 + $0x4] sm:$0xf]
  %v7124 = vunpack.c.l.bf16 %v7122
  %v7125 = vunpack.c.l.bf16 %v7123
  %7127 = vset.pattern.permute.xlu0 16
  %7128 = vperm.xlu0 %7127, %v7124
  %v7129 = vpop.permute.xlu0 %7128
  %7132 = vset.pattern.permute.xlu0 16
  %7133 = vperm.xlu0 %7132, %v7125
  %v7134 = vpop.permute.xlu0 %7133
  %v7136 = vmul.f32 %v7129, %v6504
  %v7137 = vmul.f32 %v7134, %v6504
  %v7140 = vunpack.c.l.b16 %v7122
  %v7141 = vunpack.c.l.b16 %v7123
  %v7142 = vpack.c.b16 %v7141, %v7140
  %7143 = vrot.lane.b32.xlu0 %v6486, 100
  %v7144 = vpop.permute.xlu0 %7143
  %7148 = vrot.lane.b32.xlu0 %v7136, 100
  %v7149 = vpop.permute.xlu0 %7148
  %7150 = vrot.lane.b32.xlu0 %v7137, 100
  %v7151 = vpop.permute.xlu0 %7150
  %v7155 = vsel %vm4932, %v7142, 0
  %7157 = vmatprep.subr.bf16.mxu0 0
  %7158 = vmatpush1.bf16.msra.mxu0 %v7144
  %7159 = vmatprep.subr.bf16.mxu0 0
  %7160 = vmatpush1.bf16.msra.mxu0 0
  %7161 = vmatprep.subr.bf16.mxu0 0
  %7162 = vmatpush1.bf16.msra.mxu0 0
  %7163 = vmatprep.subr.bf16.mxu0 0
  %7164 = vmatpush1.bf16.msra.mxu0 0
  %7165 = vmatprep.subr.bf16.mxu0 0
  %7166 = vmatpush1.bf16.msra.mxu0 0
  %7167 = vmatprep.subr.bf16.mxu0 0
  %7168 = vmatpush1.bf16.msra.mxu0 0
  %7169 = vmatprep.subr.bf16.mxu0 0
  %7170 = vmatpush1.bf16.msra.mxu0 0
  %7171 = vmatprep.subr.bf16.mxu0 0
  %7172 = vmatpush1.bf16.msra.mxu0 0
  %7173 = vmatprep.subr.bf16.mxu0 0
  %7174 = vmatpush1.bf16.msra.mxu0 0
  %7175 = vmatprep.subr.bf16.mxu0 0
  %7176 = vmatpush1.bf16.msra.mxu0 0
  %7177 = vmatprep.subr.bf16.mxu0 0
  %7178 = vmatpush1.bf16.msra.mxu0 0
  %7179 = vmatprep.subr.bf16.mxu0 0
  %7180 = vmatpush1.bf16.msra.mxu0 0
  %7181 = vmatprep.subr.bf16.mxu0 0
  %7182 = vmatpush1.bf16.msra.mxu0 0
  %7183 = vmatprep.subr.bf16.mxu0 0
  %7184 = vmatpush1.bf16.msra.mxu0 0
  %7185 = vmatprep.subr.bf16.mxu0 0
  %7186 = vmatpush1.bf16.msra.mxu0 0
  %7187 = vmatprep.subr.bf16.mxu0 0
  %7188 = vmatpush1.bf16.msra.mxu0 0
  %7189 = vmatprep.mubr.bf16.mxu0 0
  %7190 = vmatmul.mubr.bf16.gmra.mrb[0].mxu0 %v7155
  %v7191 = vpop.f32.mrb[0].mxu0
  %v7192 = vadd.f32 %v7149, %v7191
  %v7193 = vpop.f32.mrb[0].mxu0
  %v7194 = vpop.f32.mrb[0].mxu0
  %v7195 = vadd.f32 %v7151, %v7194
  %v7196 = vpop.f32.mrb[0].mxu0
  %7197 = vdwg.mxu0
  %v7198 = vadd.f32 %v7119, %v7192
  %v7199 = vadd.f32 %v7120, %v7195
  %vm7200 = vcmp.ge.f32.partialorder %v7198, 0.0
  %vm7201 = vcmp.ge.f32.partialorder %v7199, 0.0
  %v7202 = vmul.f32 %v7198, 0.2
  %v7203 = vmul.f32 %v7199, 0.2
  %v7204 = vsel %vm7200, %v7198, %v7202
  %v7205 = vsel %vm7201, %v7199, %v7203
  %v7206 = vmul.f32 %v7204, 1.4
  %v7207 = vmul.f32 %v7205, 1.4
  %v7208 = vpack.c.bf16 %v7207, %v7206
  %v7209 = vld [vmem:[%s14] sm:$0xf]
  %v7210 = vld [vmem:[%s14 + $0x4] sm:$0xf]
  %s7211 = scalar_lea.vmem %s14, 8
  %v7212 = vld [vmem:[%s7211] sm:$0xf]
  %v7213 = vld [vmem:[%s7211 + $0x4] sm:$0xf]
  %v7216 = vunpack.c.l.b16 %v7212
  %v7217 = vunpack.c.l.b16 %v7213
  %v7218 = vpack.c.b16 %v7217, %v7216
  %7220 = vrot.lane.b32.xlu0 %v7208, 127
  %v7221 = vpop.permute.xlu0 %7220
  %v7224 = vsel %vm4932, %v7218, 0
  %7226 = vmatprep.subr.bf16.mxu0 0
  %7227 = vmatpush1.bf16.msra.mxu0 %v7221
  %7228 = vmatprep.subr.bf16.mxu0 0
  %7229 = vmatpush1.bf16.msra.mxu0 0
  %7230 = vmatprep.subr.bf16.mxu0 0
  %7231 = vmatpush1.bf16.msra.mxu0 0
  %7232 = vmatprep.subr.bf16.mxu0 0
  %7233 = vmatpush1.bf16.msra.mxu0 0
  %7234 = vmatprep.subr.bf16.mxu0 0
  %7235 = vmatpush1.bf16.msra.mxu0 0
  %7236 = vmatprep.subr.bf16.mxu0 0
  %7237 = vmatpush1.bf16.msra.mxu0 0
  %7238 = vmatprep.subr.bf16.mxu0 0
  %7239 = vmatpush1.bf16.msra.mxu0 0
  %7240 = vmatprep.subr.bf16.mxu0 0
  %7241 = vmatpush1.bf16.msra.mxu0 0
  %7242 = vmatprep.subr.bf16.mxu0 0
  %7243 = vmatpush1.bf16.msra.mxu0 0
  %7244 = vmatprep.subr.bf16.mxu0 0
  %7245 = vmatpush1.bf16.msra.mxu0 0
  %7246 = vmatprep.subr.bf16.mxu0 0
  %7247 = vmatpush1.bf16.msra.mxu0 0
  %7248 = vmatprep.subr.bf16.mxu0 0
  %7249 = vmatpush1.bf16.msra.mxu0 0
  %7250 = vmatprep.subr.bf16.mxu0 0
  %7251 = vmatpush1.bf16.msra.mxu0 0
  %7252 = vmatprep.subr.bf16.mxu0 0
  %7253 = vmatpush1.bf16.msra.mxu0 0
  %7254 = vmatprep.subr.bf16.mxu0 0
  %7255 = vmatpush1.bf16.msra.mxu0 0
  %7256 = vmatprep.subr.bf16.mxu0 0
  %7257 = vmatpush1.bf16.msra.mxu0 0
  %7258 = vmatprep.mubr.bf16.mxu0 0
  %7259 = vmatmul.mubr.bf16.gmra.mrb[0].mxu0 %v7224
  %v7260 = vpop.f32.mrb[0].mxu0
  %v7261 = vadd.f32 0.0, %v7260
  %v7262 = vpop.f32.mrb[0].mxu0
  %v7263 = vpop.f32.mrb[0].mxu0
  %v7264 = vadd.f32 0.0, %v7263
  %v7265 = vpop.f32.mrb[0].mxu0
  %7266 = vdwg.mxu0
  %v7269 = vunpack.c.l.b16 %v7209
  %v7270 = vunpack.c.l.b16 %v7210
  %v7271 = vpack.c.b16 %v7270, %v7269
  %v7273 = vsel %vm4932, %v7271, 0
  %7275 = vmatprep.subr.bf16.mxu0 0
  %7276 = vmatpush1.bf16.msra.mxu0 %v7208
  %7277 = vmatprep.subr.bf16.mxu0 0
  %7278 = vmatpush1.bf16.msra.mxu0 0
  %7279 = vmatprep.subr.bf16.mxu0 0
  %7280 = vmatpush1.bf16.msra.mxu0 0
  %7281 = vmatprep.subr.bf16.mxu0 0
  %7282 = vmatpush1.bf16.msra.mxu0 0
  %7283 = vmatprep.subr.bf16.mxu0 0
  %7284 = vmatpush1.bf16.msra.mxu0 0
  %7285 = vmatprep.subr.bf16.mxu0 0
  %7286 = vmatpush1.bf16.msra.mxu0 0
  %7287 = vmatprep.subr.bf16.mxu0 0
  %7288 = vmatpush1.bf16.msra.mxu0 0
  %7289 = vmatprep.subr.bf16.mxu0 0
  %7290 = vmatpush1.bf16.msra.mxu0 0
  %7291 = vmatprep.subr.bf16.mxu0 0
  %7292 = vmatpush1.bf16.msra.mxu0 0
  %7293 = vmatprep.subr.bf16.mxu0 0
  %7294 = vmatpush1.bf16.msra.mxu0 0
  %7295 = vmatprep.subr.bf16.mxu0 0
  %7296 = vmatpush1.bf16.msra.mxu0 0
  %7297 = vmatprep.subr.bf16.mxu0 0
  %7298 = vmatpush1.bf16.msra.mxu0 0
  %7299 = vmatprep.subr.bf16.mxu0 0
  %7300 = vmatpush1.bf16.msra.mxu0 0
  %7301 = vmatprep.subr.bf16.mxu0 0
  %7302 = vmatpush1.bf16.msra.mxu0 0
  %7303 = vmatprep.subr.bf16.mxu0 0
  %7304 = vmatpush1.bf16.msra.mxu0 0
  %7305 = vmatprep.subr.bf16.mxu0 0
  %7306 = vmatpush1.bf16.msra.mxu0 0
  %7307 = vmatprep.mubr.bf16.mxu0 0
  %7308 = vmatmul.mubr.bf16.gmra.mrb[0].mxu0 %v7273
  %v7309 = vpop.f32.mrb[0].mxu0
  %v7310 = vadd.f32 %v7261, %v7309
  %v7311 = vpop.f32.mrb[0].mxu0
  %v7312 = vpop.f32.mrb[0].mxu0
  %v7313 = vadd.f32 %v7264, %v7312
  %v7314 = vpop.f32.mrb[0].mxu0
  %7315 = vdwg.mxu0
  %s7316 = scalar_lea.vmem %s14, 16
  %v7317 = vld [vmem:[%s7316] sm:$0xf]
  %v7318 = vld [vmem:[%s7316 + $0x4] sm:$0xf]
  %v7321 = vunpack.c.l.b16 %v7317
  %v7322 = vunpack.c.l.b16 %v7318
  %v7323 = vpack.c.b16 %v7322, %v7321
  %7324 = vrot.lane.b32.xlu0 %v7208, 126
  %v7325 = vpop.permute.xlu0 %7324
  %v7328 = vsel %vm4932, %v7323, 0
  %7330 = vmatprep.subr.bf16.mxu0 0
  %7331 = vmatpush1.bf16.msra.mxu0 %v7325
  %7332 = vmatprep.subr.bf16.mxu0 0
  %7333 = vmatpush1.bf16.msra.mxu0 0
  %7334 = vmatprep.subr.bf16.mxu0 0
  %7335 = vmatpush1.bf16.msra.mxu0 0
  %7336 = vmatprep.subr.bf16.mxu0 0
  %7337 = vmatpush1.bf16.msra.mxu0 0
  %7338 = vmatprep.subr.bf16.mxu0 0
  %7339 = vmatpush1.bf16.msra.mxu0 0
  %7340 = vmatprep.subr.bf16.mxu0 0
  %7341 = vmatpush1.bf16.msra.mxu0 0
  %7342 = vmatprep.subr.bf16.mxu0 0
  %7343 = vmatpush1.bf16.msra.mxu0 0
  %7344 = vmatprep.subr.bf16.mxu0 0
  %7345 = vmatpush1.bf16.msra.mxu0 0
  %7346 = vmatprep.subr.bf16.mxu0 0
  %7347 = vmatpush1.bf16.msra.mxu0 0
  %7348 = vmatprep.subr.bf16.mxu0 0
  %7349 = vmatpush1.bf16.msra.mxu0 0
  %7350 = vmatprep.subr.bf16.mxu0 0
  %7351 = vmatpush1.bf16.msra.mxu0 0
  %7352 = vmatprep.subr.bf16.mxu0 0
  %7353 = vmatpush1.bf16.msra.mxu0 0
  %7354 = vmatprep.subr.bf16.mxu0 0
  %7355 = vmatpush1.bf16.msra.mxu0 0
  %7356 = vmatprep.subr.bf16.mxu0 0
  %7357 = vmatpush1.bf16.msra.mxu0 0
  %7358 = vmatprep.subr.bf16.mxu0 0
  %7359 = vmatpush1.bf16.msra.mxu0 0
  %7360 = vmatprep.subr.bf16.mxu0 0
  %7361 = vmatpush1.bf16.msra.mxu0 0
  %7362 = vmatprep.mubr.bf16.mxu0 0
  %7363 = vmatmul.mubr.bf16.gmra.mrb[0].mxu0 %v7328
  %v7364 = vpop.f32.mrb[0].mxu0
  %v7365 = vadd.f32 0.0, %v7364
  %v7366 = vpop.f32.mrb[0].mxu0
  %v7367 = vpop.f32.mrb[0].mxu0
  %v7368 = vadd.f32 0.0, %v7367
  %v7369 = vpop.f32.mrb[0].mxu0
  %7370 = vdwg.mxu0
  %v7371 = vadd.f32 %v7310, %v7365
  %v7372 = vadd.f32 %v7313, %v7368
  %s7373 = scalar_lea.vmem %s14, 24
  %v7374 = vld [vmem:[%s7373] sm:$0xf]
  %v7375 = vld [vmem:[%s7373 + $0x4] sm:$0xf]
  %v7378 = vunpack.c.l.b16 %v7374
  %v7379 = vunpack.c.l.b16 %v7375
  %v7380 = vpack.c.b16 %v7379, %v7378
  %7381 = vrot.lane.b32.xlu0 %v7208, 125
  %v7382 = vpop.permute.xlu0 %7381
  %v7385 = vsel %vm4932, %v7380, 0
  %7387 = vmatprep.subr.bf16.mxu0 0
  %7388 = vmatpush1.bf16.msra.mxu0 %v7382
  %7389 = vmatprep.subr.bf16.mxu0 0
  %7390 = vmatpush1.bf16.msra.mxu0 0
  %7391 = vmatprep.subr.bf16.mxu0 0
  %7392 = vmatpush1.bf16.msra.mxu0 0
  %7393 = vmatprep.subr.bf16.mxu0 0
  %7394 = vmatpush1.bf16.msra.mxu0 0
  %7395 = vmatprep.subr.bf16.mxu0 0
  %7396 = vmatpush1.bf16.msra.mxu0 0
  %7397 = vmatprep.subr.bf16.mxu0 0
  %7398 = vmatpush1.bf16.msra.mxu0 0
  %7399 = vmatprep.subr.bf16.mxu0 0
  %7400 = vmatpush1.bf16.msra.mxu0 0
  %7401 = vmatprep.subr.bf16.mxu0 0
  %7402 = vmatpush1.bf16.msra.mxu0 0
  %7403 = vmatprep.subr.bf16.mxu0 0
  %7404 = vmatpush1.bf16.msra.mxu0 0
  %7405 = vmatprep.subr.bf16.mxu0 0
  %7406 = vmatpush1.bf16.msra.mxu0 0
  %7407 = vmatprep.subr.bf16.mxu0 0
  %7408 = vmatpush1.bf16.msra.mxu0 0
  %7409 = vmatprep.subr.bf16.mxu0 0
  %7410 = vmatpush1.bf16.msra.mxu0 0
  %7411 = vmatprep.subr.bf16.mxu0 0
  %7412 = vmatpush1.bf16.msra.mxu0 0
  %7413 = vmatprep.subr.bf16.mxu0 0
  %7414 = vmatpush1.bf16.msra.mxu0 0
  %7415 = vmatprep.subr.bf16.mxu0 0
  %7416 = vmatpush1.bf16.msra.mxu0 0
  %7417 = vmatprep.subr.bf16.mxu0 0
  %7418 = vmatpush1.bf16.msra.mxu0 0
  %7419 = vmatprep.mubr.bf16.mxu0 0
  %7420 = vmatmul.mubr.bf16.gmra.mrb[0].mxu0 %v7385
  %v7421 = vpop.f32.mrb[0].mxu0
  %v7422 = vadd.f32 0.0, %v7421
  %v7423 = vpop.f32.mrb[0].mxu0
  %v7424 = vpop.f32.mrb[0].mxu0
  %v7425 = vadd.f32 0.0, %v7424
  %v7426 = vpop.f32.mrb[0].mxu0
  %7427 = vdwg.mxu0
  %v7428 = vadd.f32 %v7371, %v7422
  %v7429 = vadd.f32 %v7372, %v7425
  %s7430 = scalar_lea.vmem %s14, 32
  %v7431 = vld [vmem:[%s7430] sm:$0xf]
  %v7432 = vld [vmem:[%s7430 + $0x4] sm:$0xf]
  %v7435 = vunpack.c.l.b16 %v7431
  %v7436 = vunpack.c.l.b16 %v7432
  %v7437 = vpack.c.b16 %v7436, %v7435
  %7438 = vrot.lane.b32.xlu0 %v7208, 122
  %v7439 = vpop.permute.xlu0 %7438
  %v7442 = vsel %vm4932, %v7437, 0
  %7444 = vmatprep.subr.bf16.mxu0 0
  %7445 = vmatpush1.bf16.msra.mxu0 %v7439
  %7446 = vmatprep.subr.bf16.mxu0 0
  %7447 = vmatpush1.bf16.msra.mxu0 0
  %7448 = vmatprep.subr.bf16.mxu0 0
  %7449 = vmatpush1.bf16.msra.mxu0 0
  %7450 = vmatprep.subr.bf16.mxu0 0
  %7451 = vmatpush1.bf16.msra.mxu0 0
  %7452 = vmatprep.subr.bf16.mxu0 0
  %7453 = vmatpush1.bf16.msra.mxu0 0
  %7454 = vmatprep.subr.bf16.mxu0 0
  %7455 = vmatpush1.bf16.msra.mxu0 0
  %7456 = vmatprep.subr.bf16.mxu0 0
  %7457 = vmatpush1.bf16.msra.mxu0 0
  %7458 = vmatprep.subr.bf16.mxu0 0
  %7459 = vmatpush1.bf16.msra.mxu0 0
  %7460 = vmatprep.subr.bf16.mxu0 0
  %7461 = vmatpush1.bf16.msra.mxu0 0
  %7462 = vmatprep.subr.bf16.mxu0 0
  %7463 = vmatpush1.bf16.msra.mxu0 0
  %7464 = vmatprep.subr.bf16.mxu0 0
  %7465 = vmatpush1.bf16.msra.mxu0 0
  %7466 = vmatprep.subr.bf16.mxu0 0
  %7467 = vmatpush1.bf16.msra.mxu0 0
  %7468 = vmatprep.subr.bf16.mxu0 0
  %7469 = vmatpush1.bf16.msra.mxu0 0
  %7470 = vmatprep.subr.bf16.mxu0 0
  %7471 = vmatpush1.bf16.msra.mxu0 0
  %7472 = vmatprep.subr.bf16.mxu0 0
  %7473 = vmatpush1.bf16.msra.mxu0 0
  %7474 = vmatprep.subr.bf16.mxu0 0
  %7475 = vmatpush1.bf16.msra.mxu0 0
  %7476 = vmatprep.mubr.bf16.mxu0 0
  %7477 = vmatmul.mubr.bf16.gmra.mrb[0].mxu0 %v7442
  %v7478 = vpop.f32.mrb[0].mxu0
  %v7479 = vadd.f32 0.0, %v7478
  %v7480 = vpop.f32.mrb[0].mxu0
  %v7481 = vpop.f32.mrb[0].mxu0
  %v7482 = vadd.f32 0.0, %v7481
  %v7483 = vpop.f32.mrb[0].mxu0
  %7484 = vdwg.mxu0
  %v7485 = vadd.f32 %v7428, %v7479
  %v7486 = vadd.f32 %v7429, %v7482
  %s7487 = scalar_lea.vmem %s14, 40
  %v7488 = vld [vmem:[%s7487] sm:$0xf]
  %v7489 = vld [vmem:[%s7487 + $0x4] sm:$0xf]
  %v7492 = vunpack.c.l.b16 %v7488
  %v7493 = vunpack.c.l.b16 %v7489
  %v7494 = vpack.c.b16 %v7493, %v7492
  %7495 = vrot.lane.b32.xlu0 %v7208, 121
  %v7496 = vpop.permute.xlu0 %7495
  %v7499 = vsel %vm4932, %v7494, 0
  %7501 = vmatprep.subr.bf16.mxu0 0
  %7502 = vmatpush1.bf16.msra.mxu0 %v7496
  %7503 = vmatprep.subr.bf16.mxu0 0
  %7504 = vmatpush1.bf16.msra.mxu0 0
  %7505 = vmatprep.subr.bf16.mxu0 0
  %7506 = vmatpush1.bf16.msra.mxu0 0
  %7507 = vmatprep.subr.bf16.mxu0 0
  %7508 = vmatpush1.bf16.msra.mxu0 0
  %7509 = vmatprep.subr.bf16.mxu0 0
  %7510 = vmatpush1.bf16.msra.mxu0 0
  %7511 = vmatprep.subr.bf16.mxu0 0
  %7512 = vmatpush1.bf16.msra.mxu0 0
  %7513 = vmatprep.subr.bf16.mxu0 0
  %7514 = vmatpush1.bf16.msra.mxu0 0
  %7515 = vmatprep.subr.bf16.mxu0 0
  %7516 = vmatpush1.bf16.msra.mxu0 0
  %7517 = vmatprep.subr.bf16.mxu0 0
  %7518 = vmatpush1.bf16.msra.mxu0 0
  %7519 = vmatprep.subr.bf16.mxu0 0
  %7520 = vmatpush1.bf16.msra.mxu0 0
  %7521 = vmatprep.subr.bf16.mxu0 0
  %7522 = vmatpush1.bf16.msra.mxu0 0
  %7523 = vmatprep.subr.bf16.mxu0 0
  %7524 = vmatpush1.bf16.msra.mxu0 0
  %7525 = vmatprep.subr.bf16.mxu0 0
  %7526 = vmatpush1.bf16.msra.mxu0 0
  %7527 = vmatprep.subr.bf16.mxu0 0
  %7528 = vmatpush1.bf16.msra.mxu0 0
  %7529 = vmatprep.subr.bf16.mxu0 0
  %7530 = vmatpush1.bf16.msra.mxu0 0
  %7531 = vmatprep.subr.bf16.mxu0 0
  %7532 = vmatpush1.bf16.msra.mxu0 0
  %7533 = vmatprep.mubr.bf16.mxu0 0
  %7534 = vmatmul.mubr.bf16.gmra.mrb[0].mxu0 %v7499
  %v7535 = vpop.f32.mrb[0].mxu0
  %v7536 = vadd.f32 0.0, %v7535
  %v7537 = vpop.f32.mrb[0].mxu0
  %v7538 = vpop.f32.mrb[0].mxu0
  %v7539 = vadd.f32 0.0, %v7538
  %v7540 = vpop.f32.mrb[0].mxu0
  %7541 = vdwg.mxu0
  %v7542 = vadd.f32 %v7485, %v7536
  %v7543 = vadd.f32 %v7486, %v7539
  %s7544 = scalar_lea.vmem %s14, 48
  %v7545 = vld [vmem:[%s7544] sm:$0xf]
  %v7546 = vld [vmem:[%s7544 + $0x4] sm:$0xf]
  %v7549 = vunpack.c.l.b16 %v7545
  %v7550 = vunpack.c.l.b16 %v7546
  %v7551 = vpack.c.b16 %v7550, %v7549
  %7552 = vrot.lane.b32.xlu0 %v7208, 120
  %v7553 = vpop.permute.xlu0 %7552
  %v7556 = vsel %vm4932, %v7551, 0
  %7558 = vmatprep.subr.bf16.mxu0 0
  %7559 = vmatpush1.bf16.msra.mxu0 %v7553
  %7560 = vmatprep.subr.bf16.mxu0 0
  %7561 = vmatpush1.bf16.msra.mxu0 0
  %7562 = vmatprep.subr.bf16.mxu0 0
  %7563 = vmatpush1.bf16.msra.mxu0 0
  %7564 = vmatprep.subr.bf16.mxu0 0
  %7565 = vmatpush1.bf16.msra.mxu0 0
  %7566 = vmatprep.subr.bf16.mxu0 0
  %7567 = vmatpush1.bf16.msra.mxu0 0
  %7568 = vmatprep.subr.bf16.mxu0 0
  %7569 = vmatpush1.bf16.msra.mxu0 0
  %7570 = vmatprep.subr.bf16.mxu0 0
  %7571 = vmatpush1.bf16.msra.mxu0 0
  %7572 = vmatprep.subr.bf16.mxu0 0
  %7573 = vmatpush1.bf16.msra.mxu0 0
  %7574 = vmatprep.subr.bf16.mxu0 0
  %7575 = vmatpush1.bf16.msra.mxu0 0
  %7576 = vmatprep.subr.bf16.mxu0 0
  %7577 = vmatpush1.bf16.msra.mxu0 0
  %7578 = vmatprep.subr.bf16.mxu0 0
  %7579 = vmatpush1.bf16.msra.mxu0 0
  %7580 = vmatprep.subr.bf16.mxu0 0
  %7581 = vmatpush1.bf16.msra.mxu0 0
  %7582 = vmatprep.subr.bf16.mxu0 0
  %7583 = vmatpush1.bf16.msra.mxu0 0
  %7584 = vmatprep.subr.bf16.mxu0 0
  %7585 = vmatpush1.bf16.msra.mxu0 0
  %7586 = vmatprep.subr.bf16.mxu0 0
  %7587 = vmatpush1.bf16.msra.mxu0 0
  %7588 = vmatprep.subr.bf16.mxu0 0
  %7589 = vmatpush1.bf16.msra.mxu0 0
  %7590 = vmatprep.mubr.bf16.mxu0 0
  %7591 = vmatmul.mubr.bf16.gmra.mrb[0].mxu0 %v7556
  %v7592 = vpop.f32.mrb[0].mxu0
  %v7593 = vadd.f32 0.0, %v7592
  %v7594 = vpop.f32.mrb[0].mxu0
  %v7595 = vpop.f32.mrb[0].mxu0
  %v7596 = vadd.f32 0.0, %v7595
  %v7597 = vpop.f32.mrb[0].mxu0
  %7598 = vdwg.mxu0
  %v7599 = vadd.f32 %v7542, %v7593
  %v7600 = vadd.f32 %v7543, %v7596
  %s7601 = scalar_lea.vmem %s14, 56
  %v7602 = vld [vmem:[%s7601] sm:$0xf]
  %v7603 = vld [vmem:[%s7601 + $0x4] sm:$0xf]
  %v7606 = vunpack.c.l.b16 %v7602
  %v7607 = vunpack.c.l.b16 %v7603
  %v7608 = vpack.c.b16 %v7607, %v7606
  %7609 = vrot.lane.b32.xlu0 %v7208, 119
  %v7610 = vpop.permute.xlu0 %7609
  %v7613 = vsel %vm4932, %v7608, 0
  %7615 = vmatprep.subr.bf16.mxu0 0
  %7616 = vmatpush1.bf16.msra.mxu0 %v7610
  %7617 = vmatprep.subr.bf16.mxu0 0
  %7618 = vmatpush1.bf16.msra.mxu0 0
  %7619 = vmatprep.subr.bf16.mxu0 0
  %7620 = vmatpush1.bf16.msra.mxu0 0
  %7621 = vmatprep.subr.bf16.mxu0 0
  %7622 = vmatpush1.bf16.msra.mxu0 0
  %7623 = vmatprep.subr.bf16.mxu0 0
  %7624 = vmatpush1.bf16.msra.mxu0 0
  %7625 = vmatprep.subr.bf16.mxu0 0
  %7626 = vmatpush1.bf16.msra.mxu0 0
  %7627 = vmatprep.subr.bf16.mxu0 0
  %7628 = vmatpush1.bf16.msra.mxu0 0
  %7629 = vmatprep.subr.bf16.mxu0 0
  %7630 = vmatpush1.bf16.msra.mxu0 0
  %7631 = vmatprep.subr.bf16.mxu0 0
  %7632 = vmatpush1.bf16.msra.mxu0 0
  %7633 = vmatprep.subr.bf16.mxu0 0
  %7634 = vmatpush1.bf16.msra.mxu0 0
  %7635 = vmatprep.subr.bf16.mxu0 0
  %7636 = vmatpush1.bf16.msra.mxu0 0
  %7637 = vmatprep.subr.bf16.mxu0 0
  %7638 = vmatpush1.bf16.msra.mxu0 0
  %7639 = vmatprep.subr.bf16.mxu0 0
  %7640 = vmatpush1.bf16.msra.mxu0 0
  %7641 = vmatprep.subr.bf16.mxu0 0
  %7642 = vmatpush1.bf16.msra.mxu0 0
  %7643 = vmatprep.subr.bf16.mxu0 0
  %7644 = vmatpush1.bf16.msra.mxu0 0
  %7645 = vmatprep.subr.bf16.mxu0 0
  %7646 = vmatpush1.bf16.msra.mxu0 0
  %7647 = vmatprep.mubr.bf16.mxu0 0
  %7648 = vmatmul.mubr.bf16.gmra.mrb[0].mxu0 %v7613
  %v7649 = vpop.f32.mrb[0].mxu0
  %v7650 = vadd.f32 0.0, %v7649
  %v7651 = vpop.f32.mrb[0].mxu0
  %v7652 = vpop.f32.mrb[0].mxu0
  %v7653 = vadd.f32 0.0, %v7652
  %v7654 = vpop.f32.mrb[0].mxu0
  %7655 = vdwg.mxu0
  %v7656 = vadd.f32 %v7599, %v7650
  %v7657 = vadd.f32 %v7600, %v7653
  %s7658 = scalar_lea.vmem %s14, 64
  %v7659 = vld [vmem:[%s7658] sm:$0xf]
  %v7660 = vld [vmem:[%s7658 + $0x4] sm:$0xf]
  %v7663 = vunpack.c.l.b16 %v7659
  %v7664 = vunpack.c.l.b16 %v7660
  %v7665 = vpack.c.b16 %v7664, %v7663
  %7666 = vrot.lane.b32.xlu0 %v7208, 116
  %v7667 = vpop.permute.xlu0 %7666
  %v7670 = vsel %vm4932, %v7665, 0
  %7672 = vmatprep.subr.bf16.mxu0 0
  %7673 = vmatpush1.bf16.msra.mxu0 %v7667
  %7674 = vmatprep.subr.bf16.mxu0 0
  %7675 = vmatpush1.bf16.msra.mxu0 0
  %7676 = vmatprep.subr.bf16.mxu0 0
  %7677 = vmatpush1.bf16.msra.mxu0 0
  %7678 = vmatprep.subr.bf16.mxu0 0
  %7679 = vmatpush1.bf16.msra.mxu0 0
  %7680 = vmatprep.subr.bf16.mxu0 0
  %7681 = vmatpush1.bf16.msra.mxu0 0
  %7682 = vmatprep.subr.bf16.mxu0 0
  %7683 = vmatpush1.bf16.msra.mxu0 0
  %7684 = vmatprep.subr.bf16.mxu0 0
  %7685 = vmatpush1.bf16.msra.mxu0 0
  %7686 = vmatprep.subr.bf16.mxu0 0
  %7687 = vmatpush1.bf16.msra.mxu0 0
  %7688 = vmatprep.subr.bf16.mxu0 0
  %7689 = vmatpush1.bf16.msra.mxu0 0
  %7690 = vmatprep.subr.bf16.mxu0 0
  %7691 = vmatpush1.bf16.msra.mxu0 0
  %7692 = vmatprep.subr.bf16.mxu0 0
  %7693 = vmatpush1.bf16.msra.mxu0 0
  %7694 = vmatprep.subr.bf16.mxu0 0
  %7695 = vmatpush1.bf16.msra.mxu0 0
  %7696 = vmatprep.subr.bf16.mxu0 0
  %7697 = vmatpush1.bf16.msra.mxu0 0
  %7698 = vmatprep.subr.bf16.mxu0 0
  %7699 = vmatpush1.bf16.msra.mxu0 0
  %7700 = vmatprep.subr.bf16.mxu0 0
  %7701 = vmatpush1.bf16.msra.mxu0 0
  %7702 = vmatprep.subr.bf16.mxu0 0
  %7703 = vmatpush1.bf16.msra.mxu0 0
  %7704 = vmatprep.mubr.bf16.mxu0 0
  %7705 = vmatmul.mubr.bf16.gmra.mrb[0].mxu0 %v7670
  %v7706 = vpop.f32.mrb[0].mxu0
  %v7707 = vadd.f32 0.0, %v7706
  %v7708 = vpop.f32.mrb[0].mxu0
  %v7709 = vpop.f32.mrb[0].mxu0
  %v7710 = vadd.f32 0.0, %v7709
  %v7711 = vpop.f32.mrb[0].mxu0
  %7712 = vdwg.mxu0
  %v7713 = vadd.f32 %v7656, %v7707
  %v7714 = vadd.f32 %v7657, %v7710
  %s7715 = scalar_lea.vmem %s14, 72
  %v7716 = vld [vmem:[%s7715] sm:$0xf]
  %v7717 = vld [vmem:[%s7715 + $0x4] sm:$0xf]
  %v7720 = vunpack.c.l.b16 %v7716
  %v7721 = vunpack.c.l.b16 %v7717
  %v7722 = vpack.c.b16 %v7721, %v7720
  %7723 = vrot.lane.b32.xlu0 %v7208, 115
  %v7724 = vpop.permute.xlu0 %7723
  %v7727 = vsel %vm4932, %v7722, 0
  %7729 = vmatprep.subr.bf16.mxu0 0
  %7730 = vmatpush1.bf16.msra.mxu0 %v7724
  %7731 = vmatprep.subr.bf16.mxu0 0
  %7732 = vmatpush1.bf16.msra.mxu0 0
  %7733 = vmatprep.subr.bf16.mxu0 0
  %7734 = vmatpush1.bf16.msra.mxu0 0
  %7735 = vmatprep.subr.bf16.mxu0 0
  %7736 = vmatpush1.bf16.msra.mxu0 0
  %7737 = vmatprep.subr.bf16.mxu0 0
  %7738 = vmatpush1.bf16.msra.mxu0 0
  %7739 = vmatprep.subr.bf16.mxu0 0
  %7740 = vmatpush1.bf16.msra.mxu0 0
  %7741 = vmatprep.subr.bf16.mxu0 0
  %7742 = vmatpush1.bf16.msra.mxu0 0
  %7743 = vmatprep.subr.bf16.mxu0 0
  %7744 = vmatpush1.bf16.msra.mxu0 0
  %7745 = vmatprep.subr.bf16.mxu0 0
  %7746 = vmatpush1.bf16.msra.mxu0 0
  %7747 = vmatprep.subr.bf16.mxu0 0
  %7748 = vmatpush1.bf16.msra.mxu0 0
  %7749 = vmatprep.subr.bf16.mxu0 0
  %7750 = vmatpush1.bf16.msra.mxu0 0
  %7751 = vmatprep.subr.bf16.mxu0 0
  %7752 = vmatpush1.bf16.msra.mxu0 0
  %7753 = vmatprep.subr.bf16.mxu0 0
  %7754 = vmatpush1.bf16.msra.mxu0 0
  %7755 = vmatprep.subr.bf16.mxu0 0
  %7756 = vmatpush1.bf16.msra.mxu0 0
  %7757 = vmatprep.subr.bf16.mxu0 0
  %7758 = vmatpush1.bf16.msra.mxu0 0
  %7759 = vmatprep.subr.bf16.mxu0 0
  %7760 = vmatpush1.bf16.msra.mxu0 0
  %7761 = vmatprep.mubr.bf16.mxu0 0
  %7762 = vmatmul.mubr.bf16.gmra.mrb[0].mxu0 %v7727
  %v7763 = vpop.f32.mrb[0].mxu0
  %v7764 = vadd.f32 0.0, %v7763
  %v7765 = vpop.f32.mrb[0].mxu0
  %v7766 = vpop.f32.mrb[0].mxu0
  %v7767 = vadd.f32 0.0, %v7766
  %v7768 = vpop.f32.mrb[0].mxu0
  %7769 = vdwg.mxu0
  %v7770 = vadd.f32 %v7713, %v7764
  %v7771 = vadd.f32 %v7714, %v7767
  %s7772 = scalar_lea.vmem %s14, 80
  %v7773 = vld [vmem:[%s7772] sm:$0xf]
  %v7774 = vld [vmem:[%s7772 + $0x4] sm:$0xf]
  %v7777 = vunpack.c.l.b16 %v7773
  %v7778 = vunpack.c.l.b16 %v7774
  %v7779 = vpack.c.b16 %v7778, %v7777
  %7780 = vrot.lane.b32.xlu0 %v7208, 114
  %v7781 = vpop.permute.xlu0 %7780
  %v7784 = vsel %vm4932, %v7779, 0
  %7786 = vmatprep.subr.bf16.mxu0 0
  %7787 = vmatpush1.bf16.msra.mxu0 %v7781
  %7788 = vmatprep.subr.bf16.mxu0 0
  %7789 = vmatpush1.bf16.msra.mxu0 0
  %7790 = vmatprep.subr.bf16.mxu0 0
  %7791 = vmatpush1.bf16.msra.mxu0 0
  %7792 = vmatprep.subr.bf16.mxu0 0
  %7793 = vmatpush1.bf16.msra.mxu0 0
  %7794 = vmatprep.subr.bf16.mxu0 0
  %7795 = vmatpush1.bf16.msra.mxu0 0
  %7796 = vmatprep.subr.bf16.mxu0 0
  %7797 = vmatpush1.bf16.msra.mxu0 0
  %7798 = vmatprep.subr.bf16.mxu0 0
  %7799 = vmatpush1.bf16.msra.mxu0 0
  %7800 = vmatprep.subr.bf16.mxu0 0
  %7801 = vmatpush1.bf16.msra.mxu0 0
  %7802 = vmatprep.subr.bf16.mxu0 0
  %7803 = vmatpush1.bf16.msra.mxu0 0
  %7804 = vmatprep.subr.bf16.mxu0 0
  %7805 = vmatpush1.bf16.msra.mxu0 0
  %7806 = vmatprep.subr.bf16.mxu0 0
  %7807 = vmatpush1.bf16.msra.mxu0 0
  %7808 = vmatprep.subr.bf16.mxu0 0
  %7809 = vmatpush1.bf16.msra.mxu0 0
  %7810 = vmatprep.subr.bf16.mxu0 0
  %7811 = vmatpush1.bf16.msra.mxu0 0
  %7812 = vmatprep.subr.bf16.mxu0 0
  %7813 = vmatpush1.bf16.msra.mxu0 0
  %7814 = vmatprep.subr.bf16.mxu0 0
  %7815 = vmatpush1.bf16.msra.mxu0 0
  %7816 = vmatprep.subr.bf16.mxu0 0
  %7817 = vmatpush1.bf16.msra.mxu0 0
  %7818 = vmatprep.mubr.bf16.mxu0 0
  %7819 = vmatmul.mubr.bf16.gmra.mrb[0].mxu0 %v7784
  %v7820 = vpop.f32.mrb[0].mxu0
  %v7821 = vadd.f32 0.0, %v7820
  %v7822 = vpop.f32.mrb[0].mxu0
  %v7823 = vpop.f32.mrb[0].mxu0
  %v7824 = vadd.f32 0.0, %v7823
  %v7825 = vpop.f32.mrb[0].mxu0
  %7826 = vdwg.mxu0
  %v7827 = vadd.f32 %v7770, %v7821
  %v7828 = vadd.f32 %v7771, %v7824
  %s7829 = scalar_lea.vmem %s14, 88
  %v7830 = vld [vmem:[%s7829] sm:$0xf]
  %v7831 = vld [vmem:[%s7829 + $0x4] sm:$0xf]
  %v7834 = vunpack.c.l.b16 %v7830
  %v7835 = vunpack.c.l.b16 %v7831
  %v7836 = vpack.c.b16 %v7835, %v7834
  %7837 = vrot.lane.b32.xlu0 %v7208, 113
  %v7838 = vpop.permute.xlu0 %7837
  %v7841 = vsel %vm4932, %v7836, 0
  %7843 = vmatprep.subr.bf16.mxu0 0
  %7844 = vmatpush1.bf16.msra.mxu0 %v7838
  %7845 = vmatprep.subr.bf16.mxu0 0
  %7846 = vmatpush1.bf16.msra.mxu0 0
  %7847 = vmatprep.subr.bf16.mxu0 0
  %7848 = vmatpush1.bf16.msra.mxu0 0
  %7849 = vmatprep.subr.bf16.mxu0 0
  %7850 = vmatpush1.bf16.msra.mxu0 0
  %7851 = vmatprep.subr.bf16.mxu0 0
  %7852 = vmatpush1.bf16.msra.mxu0 0
  %7853 = vmatprep.subr.bf16.mxu0 0
  %7854 = vmatpush1.bf16.msra.mxu0 0
  %7855 = vmatprep.subr.bf16.mxu0 0
  %7856 = vmatpush1.bf16.msra.mxu0 0
  %7857 = vmatprep.subr.bf16.mxu0 0
  %7858 = vmatpush1.bf16.msra.mxu0 0
  %7859 = vmatprep.subr.bf16.mxu0 0
  %7860 = vmatpush1.bf16.msra.mxu0 0
  %7861 = vmatprep.subr.bf16.mxu0 0
  %7862 = vmatpush1.bf16.msra.mxu0 0
  %7863 = vmatprep.subr.bf16.mxu0 0
  %7864 = vmatpush1.bf16.msra.mxu0 0
  %7865 = vmatprep.subr.bf16.mxu0 0
  %7866 = vmatpush1.bf16.msra.mxu0 0
  %7867 = vmatprep.subr.bf16.mxu0 0
  %7868 = vmatpush1.bf16.msra.mxu0 0
  %7869 = vmatprep.subr.bf16.mxu0 0
  %7870 = vmatpush1.bf16.msra.mxu0 0
  %7871 = vmatprep.subr.bf16.mxu0 0
  %7872 = vmatpush1.bf16.msra.mxu0 0
  %7873 = vmatprep.subr.bf16.mxu0 0
  %7874 = vmatpush1.bf16.msra.mxu0 0
  %7875 = vmatprep.mubr.bf16.mxu0 0
  %7876 = vmatmul.mubr.bf16.gmra.mrb[0].mxu0 %v7841
  %v7877 = vpop.f32.mrb[0].mxu0
  %v7878 = vadd.f32 0.0, %v7877
  %v7879 = vpop.f32.mrb[0].mxu0
  %v7880 = vpop.f32.mrb[0].mxu0
  %v7881 = vadd.f32 0.0, %v7880
  %v7882 = vpop.f32.mrb[0].mxu0
  %7883 = vdwg.mxu0
  %v7884 = vadd.f32 %v7827, %v7878
  %v7885 = vadd.f32 %v7828, %v7881
  %s7886 = scalar_lea.vmem %s14, 96
  %v7887 = vld [vmem:[%s7886] sm:$0xf]
  %v7888 = vld [vmem:[%s7886 + $0x4] sm:$0xf]
  %v7891 = vunpack.c.l.b16 %v7887
  %v7892 = vunpack.c.l.b16 %v7888
  %v7893 = vpack.c.b16 %v7892, %v7891
  %7894 = vrot.lane.b32.xlu0 %v7208, 110
  %v7895 = vpop.permute.xlu0 %7894
  %v7898 = vsel %vm4932, %v7893, 0
  %7900 = vmatprep.subr.bf16.mxu0 0
  %7901 = vmatpush1.bf16.msra.mxu0 %v7895
  %7902 = vmatprep.subr.bf16.mxu0 0
  %7903 = vmatpush1.bf16.msra.mxu0 0
  %7904 = vmatprep.subr.bf16.mxu0 0
  %7905 = vmatpush1.bf16.msra.mxu0 0
  %7906 = vmatprep.subr.bf16.mxu0 0
  %7907 = vmatpush1.bf16.msra.mxu0 0
  %7908 = vmatprep.subr.bf16.mxu0 0
  %7909 = vmatpush1.bf16.msra.mxu0 0
  %7910 = vmatprep.subr.bf16.mxu0 0
  %7911 = vmatpush1.bf16.msra.mxu0 0
  %7912 = vmatprep.subr.bf16.mxu0 0
  %7913 = vmatpush1.bf16.msra.mxu0 0
  %7914 = vmatprep.subr.bf16.mxu0 0
  %7915 = vmatpush1.bf16.msra.mxu0 0
  %7916 = vmatprep.subr.bf16.mxu0 0
  %7917 = vmatpush1.bf16.msra.mxu0 0
  %7918 = vmatprep.subr.bf16.mxu0 0
  %7919 = vmatpush1.bf16.msra.mxu0 0
  %7920 = vmatprep.subr.bf16.mxu0 0
  %7921 = vmatpush1.bf16.msra.mxu0 0
  %7922 = vmatprep.subr.bf16.mxu0 0
  %7923 = vmatpush1.bf16.msra.mxu0 0
  %7924 = vmatprep.subr.bf16.mxu0 0
  %7925 = vmatpush1.bf16.msra.mxu0 0
  %7926 = vmatprep.subr.bf16.mxu0 0
  %7927 = vmatpush1.bf16.msra.mxu0 0
  %7928 = vmatprep.subr.bf16.mxu0 0
  %7929 = vmatpush1.bf16.msra.mxu0 0
  %7930 = vmatprep.subr.bf16.mxu0 0
  %7931 = vmatpush1.bf16.msra.mxu0 0
  %7932 = vmatprep.mubr.bf16.mxu0 0
  %7933 = vmatmul.mubr.bf16.gmra.mrb[0].mxu0 %v7898
  %v7934 = vpop.f32.mrb[0].mxu0
  %v7935 = vadd.f32 0.0, %v7934
  %v7936 = vpop.f32.mrb[0].mxu0
  %v7937 = vpop.f32.mrb[0].mxu0
  %v7938 = vadd.f32 0.0, %v7937
  %v7939 = vpop.f32.mrb[0].mxu0
  %7940 = vdwg.mxu0
  %v7941 = vadd.f32 %v7884, %v7935
  %v7942 = vadd.f32 %v7885, %v7938
  %s7943 = scalar_lea.vmem %s14, 104
  %v7944 = vld [vmem:[%s7943] sm:$0xf]
  %v7945 = vld [vmem:[%s7943 + $0x4] sm:$0xf]
  %v7948 = vunpack.c.l.b16 %v7944
  %v7949 = vunpack.c.l.b16 %v7945
  %v7950 = vpack.c.b16 %v7949, %v7948
  %7951 = vrot.lane.b32.xlu0 %v7208, 109
  %v7952 = vpop.permute.xlu0 %7951
  %v7955 = vsel %vm4932, %v7950, 0
  %7957 = vmatprep.subr.bf16.mxu0 0
  %7958 = vmatpush1.bf16.msra.mxu0 %v7952
  %7959 = vmatprep.subr.bf16.mxu0 0
  %7960 = vmatpush1.bf16.msra.mxu0 0
  %7961 = vmatprep.subr.bf16.mxu0 0
  %7962 = vmatpush1.bf16.msra.mxu0 0
  %7963 = vmatprep.subr.bf16.mxu0 0
  %7964 = vmatpush1.bf16.msra.mxu0 0
  %7965 = vmatprep.subr.bf16.mxu0 0
  %7966 = vmatpush1.bf16.msra.mxu0 0
  %7967 = vmatprep.subr.bf16.mxu0 0
  %7968 = vmatpush1.bf16.msra.mxu0 0
  %7969 = vmatprep.subr.bf16.mxu0 0
  %7970 = vmatpush1.bf16.msra.mxu0 0
  %7971 = vmatprep.subr.bf16.mxu0 0
  %7972 = vmatpush1.bf16.msra.mxu0 0
  %7973 = vmatprep.subr.bf16.mxu0 0
  %7974 = vmatpush1.bf16.msra.mxu0 0
  %7975 = vmatprep.subr.bf16.mxu0 0
  %7976 = vmatpush1.bf16.msra.mxu0 0
  %7977 = vmatprep.subr.bf16.mxu0 0
  %7978 = vmatpush1.bf16.msra.mxu0 0
  %7979 = vmatprep.subr.bf16.mxu0 0
  %7980 = vmatpush1.bf16.msra.mxu0 0
  %7981 = vmatprep.subr.bf16.mxu0 0
  %7982 = vmatpush1.bf16.msra.mxu0 0
  %7983 = vmatprep.subr.bf16.mxu0 0
  %7984 = vmatpush1.bf16.msra.mxu0 0
  %7985 = vmatprep.subr.bf16.mxu0 0
  %7986 = vmatpush1.bf16.msra.mxu0 0
  %7987 = vmatprep.subr.bf16.mxu0 0
  %7988 = vmatpush1.bf16.msra.mxu0 0
  %7989 = vmatprep.mubr.bf16.mxu0 0
  %7990 = vmatmul.mubr.bf16.gmra.mrb[0].mxu0 %v7955
  %v7991 = vpop.f32.mrb[0].mxu0
  %v7992 = vadd.f32 0.0, %v7991
  %v7993 = vpop.f32.mrb[0].mxu0
  %v7994 = vpop.f32.mrb[0].mxu0
  %v7995 = vadd.f32 0.0, %v7994
  %v7996 = vpop.f32.mrb[0].mxu0
  %7997 = vdwg.mxu0
  %v7998 = vadd.f32 %v7941, %v7992
  %v7999 = vadd.f32 %v7942, %v7995
  %s8000 = scalar_lea.vmem %s14, 112
  %v8001 = vld [vmem:[%s8000] sm:$0xf]
  %v8002 = vld [vmem:[%s8000 + $0x4] sm:$0xf]
  %v8005 = vunpack.c.l.b16 %v8001
  %v8006 = vunpack.c.l.b16 %v8002
  %v8007 = vpack.c.b16 %v8006, %v8005
  %8008 = vrot.lane.b32.xlu0 %v7208, 108
  %v8009 = vpop.permute.xlu0 %8008
  %v8012 = vsel %vm4932, %v8007, 0
  %8014 = vmatprep.subr.bf16.mxu0 0
  %8015 = vmatpush1.bf16.msra.mxu0 %v8009
  %8016 = vmatprep.subr.bf16.mxu0 0
  %8017 = vmatpush1.bf16.msra.mxu0 0
  %8018 = vmatprep.subr.bf16.mxu0 0
  %8019 = vmatpush1.bf16.msra.mxu0 0
  %8020 = vmatprep.subr.bf16.mxu0 0
  %8021 = vmatpush1.bf16.msra.mxu0 0
  %8022 = vmatprep.subr.bf16.mxu0 0
  %8023 = vmatpush1.bf16.msra.mxu0 0
  %8024 = vmatprep.subr.bf16.mxu0 0
  %8025 = vmatpush1.bf16.msra.mxu0 0
  %8026 = vmatprep.subr.bf16.mxu0 0
  %8027 = vmatpush1.bf16.msra.mxu0 0
  %8028 = vmatprep.subr.bf16.mxu0 0
  %8029 = vmatpush1.bf16.msra.mxu0 0
  %8030 = vmatprep.subr.bf16.mxu0 0
  %8031 = vmatpush1.bf16.msra.mxu0 0
  %8032 = vmatprep.subr.bf16.mxu0 0
  %8033 = vmatpush1.bf16.msra.mxu0 0
  %8034 = vmatprep.subr.bf16.mxu0 0
  %8035 = vmatpush1.bf16.msra.mxu0 0
  %8036 = vmatprep.subr.bf16.mxu0 0
  %8037 = vmatpush1.bf16.msra.mxu0 0
  %8038 = vmatprep.subr.bf16.mxu0 0
  %8039 = vmatpush1.bf16.msra.mxu0 0
  %8040 = vmatprep.subr.bf16.mxu0 0
  %8041 = vmatpush1.bf16.msra.mxu0 0
  %8042 = vmatprep.subr.bf16.mxu0 0
  %8043 = vmatpush1.bf16.msra.mxu0 0
  %8044 = vmatprep.subr.bf16.mxu0 0
  %8045 = vmatpush1.bf16.msra.mxu0 0
  %8046 = vmatprep.mubr.bf16.mxu0 0
  %8047 = vmatmul.mubr.bf16.gmra.mrb[0].mxu0 %v8012
  %v8048 = vpop.f32.mrb[0].mxu0
  %v8049 = vadd.f32 0.0, %v8048
  %v8050 = vpop.f32.mrb[0].mxu0
  %v8051 = vpop.f32.mrb[0].mxu0
  %v8052 = vadd.f32 0.0, %v8051
  %v8053 = vpop.f32.mrb[0].mxu0
  %8054 = vdwg.mxu0
  %v8055 = vadd.f32 %v7998, %v8049
  %v8056 = vadd.f32 %v7999, %v8052
  %s8057 = scalar_lea.vmem %s14, 120
  %v8058 = vld [vmem:[%s8057] sm:$0xf]
  %v8059 = vld [vmem:[%s8057 + $0x4] sm:$0xf]
  %v8062 = vunpack.c.l.b16 %v8058
  %v8063 = vunpack.c.l.b16 %v8059
  %v8064 = vpack.c.b16 %v8063, %v8062
  %8065 = vrot.lane.b32.xlu0 %v7208, 107
  %v8066 = vpop.permute.xlu0 %8065
  %v8069 = vsel %vm4932, %v8064, 0
  %8071 = vmatprep.subr.bf16.mxu0 0
  %8072 = vmatpush1.bf16.msra.mxu0 %v8066
  %8073 = vmatprep.subr.bf16.mxu0 0
  %8074 = vmatpush1.bf16.msra.mxu0 0
  %8075 = vmatprep.subr.bf16.mxu0 0
  %8076 = vmatpush1.bf16.msra.mxu0 0
  %8077 = vmatprep.subr.bf16.mxu0 0
  %8078 = vmatpush1.bf16.msra.mxu0 0
  %8079 = vmatprep.subr.bf16.mxu0 0
  %8080 = vmatpush1.bf16.msra.mxu0 0
  %8081 = vmatprep.subr.bf16.mxu0 0
  %8082 = vmatpush1.bf16.msra.mxu0 0
  %8083 = vmatprep.subr.bf16.mxu0 0
  %8084 = vmatpush1.bf16.msra.mxu0 0
  %8085 = vmatprep.subr.bf16.mxu0 0
  %8086 = vmatpush1.bf16.msra.mxu0 0
  %8087 = vmatprep.subr.bf16.mxu0 0
  %8088 = vmatpush1.bf16.msra.mxu0 0
  %8089 = vmatprep.subr.bf16.mxu0 0
  %8090 = vmatpush1.bf16.msra.mxu0 0
  %8091 = vmatprep.subr.bf16.mxu0 0
  %8092 = vmatpush1.bf16.msra.mxu0 0
  %8093 = vmatprep.subr.bf16.mxu0 0
  %8094 = vmatpush1.bf16.msra.mxu0 0
  %8095 = vmatprep.subr.bf16.mxu0 0
  %8096 = vmatpush1.bf16.msra.mxu0 0
  %8097 = vmatprep.subr.bf16.mxu0 0
  %8098 = vmatpush1.bf16.msra.mxu0 0
  %8099 = vmatprep.subr.bf16.mxu0 0
  %8100 = vmatpush1.bf16.msra.mxu0 0
  %8101 = vmatprep.subr.bf16.mxu0 0
  %8102 = vmatpush1.bf16.msra.mxu0 0
  %8103 = vmatprep.mubr.bf16.mxu0 0
  %8104 = vmatmul.mubr.bf16.gmra.mrb[0].mxu0 %v8069
  %v8105 = vpop.f32.mrb[0].mxu0
  %v8106 = vadd.f32 0.0, %v8105
  %v8107 = vpop.f32.mrb[0].mxu0
  %v8108 = vpop.f32.mrb[0].mxu0
  %v8109 = vadd.f32 0.0, %v8108
  %v8110 = vpop.f32.mrb[0].mxu0
  %8111 = vdwg.mxu0
  %v8112 = vadd.f32 %v8055, %v8106
  %v8113 = vadd.f32 %v8056, %v8109
  %vm8114 = vcmp.ge.f32.partialorder %v8112, 0.0
  %vm8115 = vcmp.ge.f32.partialorder %v8113, 0.0
  %v8116 = vmul.f32 %v8112, 0.2
  %v8117 = vmul.f32 %v8113, 0.2
  %v8118 = vsel %vm8114, %v8112, %v8116
  %v8119 = vsel %vm8115, %v8113, %v8117
  %v8120 = vmul.f32 %v8118, 1.4
  %v8121 = vmul.f32 %v8119, 1.4
  %v8122 = vld [vmem:[%s15] sm:$0x1]
  %v8123 = vld [vmem:[#allocation2] sm:$0x1]
  %8125 = vset.pattern.permute.xlu0 0
  %8126 = vperm.xlu0 %8125, %v8123
  %v8127 = vpop.permute.xlu0 %8126
  %v8129 = vlaneseq
  %v8130 = vshrl.u32 %v8129, 7
  %v8131 = vsub.s32 0, %v8130
  %v8132 = vrot.slane %v8127, %v8131
  %v8134 = vsel %vm4932, %v8122, 0
  %8136 = vmatprep.subr.mxu0 0.0
  %8137 = vmatpush1.msra.mxu0 %v8120
  %8138 = vmatprep.subr.mxu0 0.0
  %8139 = vmatpush1.msra.mxu0 %v8121
  %8140 = vmatprep.subr.mxu0 0.0
  %8141 = vmatpush1.msra.mxu0 0.0
  %8142 = vmatprep.subr.mxu0 0.0
  %8143 = vmatpush1.msra.mxu0 0.0
  %8144 = vmatprep.subr.mxu0 0.0
  %8145 = vmatpush1.msra.mxu0 0.0
  %8146 = vmatprep.subr.mxu0 0.0
  %8147 = vmatpush1.msra.mxu0 0.0
  %8148 = vmatprep.subr.mxu0 0.0
  %8149 = vmatpush1.msra.mxu0 0.0
  %8150 = vmatprep.subr.mxu0 0.0
  %8151 = vmatpush1.msra.mxu0 0.0
  %8152 = vmatprep.subr.mxu0 0.0
  %8153 = vmatpush1.msra.mxu0 0.0
  %8154 = vmatprep.subr.mxu0 0.0
  %8155 = vmatpush1.msra.mxu0 0.0
  %8156 = vmatprep.subr.mxu0 0.0
  %8157 = vmatpush1.msra.mxu0 0.0
  %8158 = vmatprep.subr.mxu0 0.0
  %8159 = vmatpush1.msra.mxu0 0.0
  %8160 = vmatprep.subr.mxu0 0.0
  %8161 = vmatpush1.msra.mxu0 0.0
  %8162 = vmatprep.subr.mxu0 0.0
  %8163 = vmatpush1.msra.mxu0 0.0
  %8164 = vmatprep.subr.mxu0 0.0
  %8165 = vmatpush1.msra.mxu0 0.0
  %8166 = vmatprep.subr.mxu0 0.0
  %8167 = vmatpush1.msra.mxu0 0.0
  %8168 = vmatprep.subr.mxu0 0.0
  %8169 = vmatpush1.msra.mxu0 0.0
  %8170 = vmatprep.subr.mxu0 0.0
  %8171 = vmatpush1.msra.mxu0 0.0
  %8172 = vmatprep.subr.mxu0 0.0
  %8173 = vmatpush1.msra.mxu0 0.0
  %8174 = vmatprep.subr.mxu0 0.0
  %8175 = vmatpush1.msra.mxu0 0.0
  %8176 = vmatprep.subr.mxu0 0.0
  %8177 = vmatpush1.msra.mxu0 0.0
  %8178 = vmatprep.subr.mxu0 0.0
  %8179 = vmatpush1.msra.mxu0 0.0
  %8180 = vmatprep.subr.mxu0 0.0
  %8181 = vmatpush1.msra.mxu0 0.0
  %8182 = vmatprep.subr.mxu0 0.0
  %8183 = vmatpush1.msra.mxu0 0.0
  %8184 = vmatprep.subr.mxu0 0.0
  %8185 = vmatpush1.msra.mxu0 0.0
  %8186 = vmatprep.subr.mxu0 0.0
  %8187 = vmatpush1.msra.mxu0 0.0
  %8188 = vmatprep.subr.mxu0 0.0
  %8189 = vmatpush1.msra.mxu0 0.0
  %8190 = vmatprep.subr.mxu0 0.0
  %8191 = vmatpush1.msra.mxu0 0.0
  %8192 = vmatprep.subr.mxu0 0.0
  %8193 = vmatpush1.msra.mxu0 0.0
  %8194 = vmatprep.subr.mxu0 0.0
  %8195 = vmatpush1.msra.mxu0 0.0
  %8196 = vmatprep.subr.mxu0 0.0
  %8197 = vmatpush1.msra.mxu0 0.0
  %8198 = vmatprep.subr.mxu0 0.0
  %8199 = vmatpush1.msra.mxu0 0.0
  %8200 = vmatprep.mubr.f32.mxu0 0.0
  %8201 = vmatmul.mubr.f32.gmra.mrb[0].mxu0 %v8134
  %v8202 = vpop.f32.mrb[0].mxu0
  %v8203 = vadd.f32 %v8132, %v8202
  %v8204 = vpop.f32.mrb[0].mxu0
  %8205 = vdwg.mxu0
  %8207 = vrot.lane.b32.xlu0 %v8203, 121
  %v8208 = vpop.permute.xlu0 %8207
  %vm8210 = vcmask 0
  %8211 = vst.msk [vmem:[%s17] sm:$0x1] %vm8210, %v8208
  %8212 = vrot.lane.b32.xlu0 %v8203, 85
  %v8213 = vpop.permute.xlu0 %8212
  %8215 = vst.msk [vmem:[%s17 + $0x1] sm:$0x1] %vm8210, %v8213
  // Predicated region
  $region70: #{discriminator_forward.1} parent=0 // pred_check
    _
  $region71: #{discriminator_forward.1} parent=0 // pred_check_branch
    %8217 = sbr.rel (0) target = $region73
  $region72: #{discriminator_forward.1} parent=0 // pred_region
    _
  $region73: #{discriminator_forward.1} parent=0 // pred_fallthru
    _
  // Predicated region
  $region74: #{discriminator_forward.1} parent=0 // pred_check
    _
  $region75: #{discriminator_forward.1} parent=0 // pred_check_branch
    %8219 = sbr.rel (0) target = $region77
  $region76: #{discriminator_forward.1} parent=0 // pred_region
    _
  $region77: #{discriminator_forward.1} parent=0 // pred_fallthru
    _

</llo_original>
